<compile_context>
chip_gen: v7x
topology: tpu7x:2x2x1
jax: 0.10.0
libtpu: 0.0.40
codegen_flags: <defaults>
</compile_context>

<pallas_src>
import math
from functools import partial

import jax
import jax.numpy as jnp
from jax.experimental import pallas as pl
from jax.experimental.pallas import tpu as pltpu


# ----------------------------- in-kernel helpers -----------------------------

def _apply_act(x, act):
    if act == "relu":
        return jnp.maximum(x, 0.0)
    return jax.nn.gelu(x, approximate=True)


def _layernorm(x, g, b, eps=1e-5):
    """x: (R, D) f32, g/b: (1, D) f32."""
    mu = jnp.mean(x, axis=-1, keepdims=True)
    xc = x - mu
    var = jnp.mean(xc * xc, axis=-1, keepdims=True)
    return xc * jax.lax.rsqrt(var + eps) * g + b


def _attend(q, k, v, wo, bo, n_heads, causal):
    """Multi-head attention on pre-projected q/k/v + fused output projection.

    q: (Lq, D) f32 (softmax scale already folded into the query projection),
    k, v: (Lk, D) f32, wo: (D, D) bf16 (head-concat rows), bo: (1, D) f32.
    Returns (Lq, D) f32.
    """
    Lq, D = q.shape
    Lk = k.shape[0]
    E = D // n_heads

    if causal:
        row = jax.lax.broadcasted_iota(jnp.int32, (Lq, Lk), 0)
        col = jax.lax.broadcasted_iota(jnp.int32, (Lq, Lk), 1)
        keep = col <= row

    q_b = q.astype(jnp.bfloat16)
    k_b = k.astype(jnp.bfloat16)
    v_b = v.astype(jnp.bfloat16)

    heads = []
    for h in range(n_heads):                       # static, n_heads is small
        qh = q_b[:, h * E:(h + 1) * E]
        kh = k_b[:, h * E:(h + 1) * E]
        vh = v_b[:, h * E:(h + 1) * E]
        s = jax.lax.dot_general(qh, kh, (((1,), (1,)), ((), ())),
                                preferred_element_type=jnp.float32)
        if causal:
            s = jnp.where(keep, s, jnp.float32(-1e30))
        m = jnp.max(s, axis=-1, keepdims=True)
        p = jnp.exp(s - m)
        inv = pl.reciprocal(jnp.sum(p, axis=-1, keepdims=True), approx=True)
        heads.append(jnp.dot((p * inv).astype(jnp.bfloat16), vh,
                             preferred_element_type=jnp.float32))
    ctx = jnp.concatenate(heads, axis=-1).astype(jnp.bfloat16)     # (Lq, D)
    return jnp.dot(ctx, wo, preferred_element_type=jnp.float32) + bo


# ----------------------------- fused whole-model kernel -----------------------------

def _forward_kernel(xe_ref, xd_ref,
                    e_emb_w_ref, e_pe_ref, d_emb_w_ref, d_pe_ref,
                    e_wqkv_ref, e_bqkv_ref, e_wo_ref, e_bo_ref,
                    e_w1_ref, e_b1_ref, e_w2_ref, e_b2_ref, e_ln_ref,
                    e_norm_ref,
                    s_wqkv_ref, s_bqkv_ref, s_wo_ref, s_bo_ref,
                    c_wq_ref, c_bq_ref, c_wkv_ref, c_bkv_ref,
                    c_wo_ref, c_bo_ref,
                    d_w1_ref, d_b1_ref, d_w2_ref, d_b2_ref, d_ln_ref,
                    d_norm_ref,
                    proj_w_ref, proj_b_ref,
                    o_ref,
                    *, n_heads, act, e_layers, d_layers, pred_len):
    D = e_pe_ref.shape[-1]

    # ---- encoder embedding: [x_{t-1}|x_t|x_{t+1}|x_mark] @ W (one matmul) + PE
    enc = jnp.dot(xe_ref[0].astype(jnp.bfloat16), e_emb_w_ref[...],
                  preferred_element_type=jnp.float32) + e_pe_ref[...]

    # ---- encoder layers (activations never leave VMEM) ----
    for l in range(e_layers):
        ln = e_ln_ref[l]                                            # (4, D)
        qkv = jnp.dot(enc.astype(jnp.bfloat16), e_wqkv_ref[l],
                      preferred_element_type=jnp.float32) + e_bqkv_ref[l]
        a = _attend(qkv[:, :D], qkv[:, D:2 * D], qkv[:, 2 * D:],
                    e_wo_ref[l], e_bo_ref[l], n_heads, causal=False)
        x1 = _layernorm(enc + a, ln[0:1], ln[1:2])
        h = _apply_act(jnp.dot(x1.astype(jnp.bfloat16), e_w1_ref[l],
                               preferred_element_type=jnp.float32) + e_b1_ref[l],
                       act)
        y = jnp.dot(h.astype(jnp.bfloat16), e_w2_ref[l],
                    preferred_element_type=jnp.float32) + e_b2_ref[l]
        enc = _layernorm(x1 + y, ln[2:3], ln[3:4])

    enc = _layernorm(enc, e_norm_ref[0:1], e_norm_ref[1:2])
    enc_b = enc.astype(jnp.bfloat16)                # hoisted: reused by every decoder layer

    # ---- decoder embedding ----
    dec = jnp.dot(xd_ref[0].astype(jnp.bfloat16), d_emb_w_ref[...],
                  preferred_element_type=jnp.float32) + d_pe_ref[...]

    # ---- decoder layers ----
    for l in range(d_layers):
        ln = d_ln_ref[l]                                            # (6, D)
        # masked self-attention
        qkv = jnp.dot(dec.astype(jnp.bfloat16), s_wqkv_ref[l],
                      preferred_element_type=jnp.float32) + s_bqkv_ref[l]
        a = _attend(qkv[:, :D], qkv[:, D:2 * D], qkv[:, 2 * D:],
                    s_wo_ref[l], s_bo_ref[l], n_heads, causal=True)
        x1 = _layernorm(dec + a, ln[0:1], ln[1:2])
        # cross-attention over the encoder output
        q = jnp.dot(x1.astype(jnp.bfloat16), c_wq_ref[l],
                    preferred_element_type=jnp.float32) + c_bq_ref[l]
        kv = jnp.dot(enc_b, c_wkv_ref[l],
                     preferred_element_type=jnp.float32) + c_bkv_ref[l]
        c = _attend(q, kv[:, :D], kv[:, D:],
                    c_wo_ref[l], c_bo_ref[l], n_heads, causal=False)
        x2 = _layernorm(x1 + c, ln[2:3], ln[3:4])
        # feed-forward
        h = _apply_act(jnp.dot(x2.astype(jnp.bfloat16), d_w1_ref[l],
                               preferred_element_type=jnp.float32) + d_b1_ref[l],
                       act)
        y = jnp.dot(h.astype(jnp.bfloat16), d_w2_ref[l],
                    preferred_element_type=jnp.float32) + d_b2_ref[l]
        dec = _layernorm(x2 + y, ln[4:5], ln[5:6])

    # ---- final LayerNorm + projection on the pred_len tail (per-position ops,
    #      so norm/project-then-slice == slice-then-norm/project) ----
    tail = _layernorm(dec[-pred_len:, :], d_norm_ref[0:1], d_norm_ref[1:2])
    o_ref[0] = (jnp.dot(tail.astype(jnp.bfloat16), proj_w_ref[...],
                        preferred_element_type=jnp.float32)
                + proj_b_ref[...]).astype(o_ref.dtype)


# ----------------------------- pallas_call wrapper -----------------------------

def _full_spec(a):
    """Full-array block, same block every grid step (no re-DMA)."""
    if a.ndim == 2:
        return pl.BlockSpec(a.shape, lambda b: (0, 0))
    return pl.BlockSpec(a.shape, lambda b: (0, 0, 0))


def pallas_forward(xe, xd, params, cfg):
    B, Le, Ce = xe.shape
    _, Ld, Cd = xd.shape
    P, C = cfg["pred_len"], cfg["c_out"]
    p = params
    consts = (p["e_emb_w"], p["e_pe"], p["d_emb_w"], p["d_pe"],
              p["e_wqkv"], p["e_bqkv"], p["e_wo"], p["e_bo"],
              p["e_w1"], p["e_b1"], p["e_w2"], p["e_b2"], p["e_ln"],
              p["e_norm"],
              p["s_wqkv"], p["s_bqkv"], p["s_wo"], p["s_bo"],
              p["c_wq"], p["c_bq"], p["c_wkv"], p["c_bkv"],
              p["c_wo"], p["c_bo"],
              p["d_w1"], p["d_b1"], p["d_w2"], p["d_b2"], p["d_ln"],
              p["d_norm"],
              p["proj_w"], p["proj_b"])
    kernel = partial(_forward_kernel, n_heads=cfg["n_heads"],
                     act=cfg["activation"], e_layers=cfg["e_layers"],
                     d_layers=cfg["d_layers"], pred_len=P)
    return pl.pallas_call(
        kernel,
        out_shape=jax.ShapeDtypeStruct((B, P, C), jnp.float32),
        grid=(B,),
        in_specs=[pl.BlockSpec((1, Le, Ce), lambda b: (b, 0, 0)),
                  pl.BlockSpec((1, Ld, Cd), lambda b: (b, 0, 0))]
                 + [_full_spec(a) for a in consts],
        out_specs=pl.BlockSpec((1, P, C), lambda b: (b, 0, 0)),
        compiler_params=pltpu.CompilerParams(
            dimension_semantics=("parallel",)),     # 1 batch element per TC on v7x
    )(xe, xd, *consts)


# ----------------------------- model wrapper -----------------------------

def _conv_taps(x, x_mark):
    """Columns [x_{t-1} | x_t | x_{t+1} | x_mark]: folds the circular Conv1d(k=3)
    token embedding and the timeF linear embedding into one in-kernel matmul."""
    x_prev = jnp.roll(x, 1, axis=1)
    x_next = jnp.roll(x, -1, axis=1)
    return jnp.concatenate([x_prev, x, x_next, x_mark], axis=-1)


def model_forward(params, cfg, x_enc, x_mark_enc, x_dec, x_mark_dec):
    xe = _conv_taps(x_enc, x_mark_enc)
    xd = _conv_taps(x_dec, x_mark_dec)
    return pallas_forward(xe, xd, params, cfg)      # output_attention=False


# ----------------------------- parameters -----------------------------

def sinusoidal_pe(max_len, d_model):
    pos = jnp.arange(max_len, dtype=jnp.float32)[:, None]
    div = jnp.exp(jnp.arange(0, d_model, 2, dtype=jnp.float32)
                  * (-math.log(10000.0) / d_model))
    pe = jnp.zeros((max_len, d_model), jnp.float32)
    pe = pe.at[:, 0::2].set(jnp.sin(pos * div))
    pe = pe.at[:, 1::2].set(jnp.cos(pos * div))
    return pe


def init_params(cfg, key):
    keys = iter(jax.random.split(key, 512))
    D, F, H = cfg["d_model"], cfg["d_ff"], cfg["n_heads"]
    E = D // H
    scale = 1.0 / math.sqrt(E)      # softmax scale folded into W_q / b_q

    def w(shape, s=0.05):
        return s * jax.random.normal(next(keys), shape, dtype=jnp.float32)

    def zeros(shape):
        return jnp.zeros(shape, jnp.float32)

    def ones(shape):
        return jnp.ones(shape, jnp.float32)

    def bf16(x):
        return x.astype(jnp.bfloat16)      # pre-cast once; no per-forward converts

    def attn_self(n):
        """Fused [Wq*scale | Wk | Wv] -> (n, D, 3D) bf16, bias (n, 1, 3D) f32."""
        ws, bs = [], []
        for _ in range(n):
            ws.append(jnp.concatenate([w((D, D)) * scale, w((D, D)), w((D, D))], 1))
            bs.append(jnp.concatenate([w((1, D)) * scale, w((1, D)), w((1, D))], 1))
        return bf16(jnp.stack(ws)), jnp.stack(bs)

    NLe, NLd = cfg["e_layers"], cfg["d_layers"]

    # --- encoder layer stacks (layer-major packing) ---
    e_wqkv, e_bqkv = attn_self(NLe)
    e_wo = bf16(jnp.stack([w((D, D)) for _ in range(NLe)]))
    e_bo = jnp.stack([w((1, D)) for _ in range(NLe)])
    e_w1 = bf16(jnp.stack([w((D, F)) for _ in range(NLe)]))
    e_b1 = jnp.stack([w((1, F)) for _ in range(NLe)])
    e_w2 = bf16(jnp.stack([w((F, D)) for _ in range(NLe)]))
    e_b2 = jnp.stack([w((1, D)) for _ in range(NLe)])
    e_ln = jnp.stack([jnp.concatenate([ones((1, D)), zeros((1, D))] * 2, 0)
                      for _ in range(NLe)])

    # --- decoder layer stacks ---
    s_wqkv, s_bqkv = attn_self(NLd)
    s_wo = bf16(jnp.stack([w((D, D)) for _ in range(NLd)]))
    s_bo = jnp.stack([w((1, D)) for _ in range(NLd)])
    c_wq = bf16(jnp.stack([w((D, D)) * scale for _ in range(NLd)]))
    c_bq = jnp.stack([w((1, D)) * scale for _ in range(NLd)])
    c_wkv = bf16(jnp.stack([jnp.concatenate([w((D, D)), w((D, D))], 1)
                            for _ in range(NLd)]))
    c_bkv = jnp.stack([jnp.concatenate([w((1, D)), w((1, D))], 1)
                       for _ in range(NLd)])
    c_wo = bf16(jnp.stack([w((D, D)) for _ in range(NLd)]))
    c_bo = jnp.stack([w((1, D)) for _ in range(NLd)])
    d_w1 = bf16(jnp.stack([w((D, F)) for _ in range(NLd)]))
    d_b1 = jnp.stack([w((1, F)) for _ in range(NLd)])
    d_w2 = bf16(jnp.stack([w((F, D)) for _ in range(NLd)]))
    d_b2 = jnp.stack([w((1, D)) for _ in range(NLd)])
    d_ln = jnp.stack([jnp.concatenate([ones((1, D)), zeros((1, D))] * 3, 0)
                      for _ in range(NLd)])

    Le = cfg["seq_len"]
    Ld = cfg["label_len"] + cfg["pred_len"]
    pe = sinusoidal_pe(max(Le, Ld), D)

    # TODO(synk): weights are packed column-concat / head-major; importing real
    # PyTorch checkpoints needs the matching q|k|v / conv-tap permutes.
    return dict(
        e_emb_w=bf16(w((3 * cfg["enc_in"] + cfg["mark_in"], D))),
        e_pe=pe[:Le],
        d_emb_w=bf16(w((3 * cfg["dec_in"] + cfg["mark_in"], D))),
        d_pe=pe[:Ld],
        e_wqkv=e_wqkv, e_bqkv=e_bqkv, e_wo=e_wo, e_bo=e_bo,
        e_w1=e_w1, e_b1=e_b1, e_w2=e_w2, e_b2=e_b2, e_ln=e_ln,
        e_norm=jnp.concatenate([ones((1, D)), zeros((1, D))], 0),
        s_wqkv=s_wqkv, s_bqkv=s_bqkv, s_wo=s_wo, s_bo=s_bo,
        c_wq=c_wq, c_bq=c_bq, c_wkv=c_wkv, c_bkv=c_bkv, c_wo=c_wo, c_bo=c_bo,
        d_w1=d_w1, d_b1=d_b1, d_w2=d_w2, d_b2=d_b2, d_ln=d_ln,
        d_norm=jnp.concatenate([ones((1, D)), zeros((1, D))], 0),
        proj_w=bf16(w((D, cfg["c_out"]))),
        proj_b=zeros((1, cfg["c_out"])),
    )


# ----------------------------- main -----------------------------

if __name__ == "__main__":
    cfg = dict(enc_in=4, dec_in=4, c_out=4, d_model=32, n_heads=4, d_ff=64,
               e_layers=2, d_layers=1, seq_len=16, label_len=8, pred_len=8,
               mark_in=4, activation="relu")

    params = init_params(cfg, jax.random.PRNGKey(0))

    kx = jax.random.split(jax.random.PRNGKey(0), 4)
    B = 2
    Ldec = cfg["label_len"] + cfg["pred_len"]
    x_enc = jax.random.normal(kx[0], (B, cfg["seq_len"], cfg["enc_in"]), jnp.float32)
    x_mark_enc = jax.random.normal(kx[1], (B, cfg["seq_len"], cfg["mark_in"]), jnp.float32)
    x_dec = jax.random.normal(kx[2], (B, Ldec, cfg["dec_in"]), jnp.float32)
    x_mark_dec = jax.random.normal(kx[3], (B, Ldec, cfg["mark_in"]), jnp.float32)

    fwd = jax.jit(partial(model_forward, params, cfg))
    out = fwd(x_enc, x_mark_enc, x_dec, x_mark_dec)
    jax.block_until_ready(out)
    assert out.shape == (B, cfg["pred_len"], cfg["c_out"]), out.shape
    assert bool(jnp.all(jnp.isfinite(out)))
    print("KERNEL_OK")
</pallas_src>

<mosaic_0001>
module attributes {stable_mosaic.version = 11 : i64} {
  func.func @_forward_kernel(%arg0: i32, %arg1: memref<1x16x16xf32, #tpu.memory_space<vmem>>, %arg2: memref<1x16x16xf32, #tpu.memory_space<vmem>>, %arg3: memref<16x32xbf16, #tpu.memory_space<vmem>>, %arg4: memref<16x32xf32, #tpu.memory_space<vmem>>, %arg5: memref<16x32xbf16, #tpu.memory_space<vmem>>, %arg6: memref<16x32xf32, #tpu.memory_space<vmem>>, %arg7: memref<2x32x96xbf16, #tpu.memory_space<vmem>>, %arg8: memref<2x1x96xf32, #tpu.memory_space<vmem>>, %arg9: memref<2x32x32xbf16, #tpu.memory_space<vmem>>, %arg10: memref<2x1x32xf32, #tpu.memory_space<vmem>>, %arg11: memref<2x32x64xbf16, #tpu.memory_space<vmem>>, %arg12: memref<2x1x64xf32, #tpu.memory_space<vmem>>, %arg13: memref<2x64x32xbf16, #tpu.memory_space<vmem>>, %arg14: memref<2x1x32xf32, #tpu.memory_space<vmem>>, %arg15: memref<2x4x32xf32, #tpu.memory_space<vmem>>, %arg16: memref<2x32xf32, #tpu.memory_space<vmem>>, %arg17: memref<1x32x96xbf16, #tpu.memory_space<vmem>>, %arg18: memref<1x1x96xf32, #tpu.memory_space<vmem>>, %arg19: memref<1x32x32xbf16, #tpu.memory_space<vmem>>, %arg20: memref<1x1x32xf32, #tpu.memory_space<vmem>>, %arg21: memref<1x32x32xbf16, #tpu.memory_space<vmem>>, %arg22: memref<1x1x32xf32, #tpu.memory_space<vmem>>, %arg23: memref<1x32x64xbf16, #tpu.memory_space<vmem>>, %arg24: memref<1x1x64xf32, #tpu.memory_space<vmem>>, %arg25: memref<1x32x32xbf16, #tpu.memory_space<vmem>>, %arg26: memref<1x1x32xf32, #tpu.memory_space<vmem>>, %arg27: memref<1x32x64xbf16, #tpu.memory_space<vmem>>, %arg28: memref<1x1x64xf32, #tpu.memory_space<vmem>>, %arg29: memref<1x64x32xbf16, #tpu.memory_space<vmem>>, %arg30: memref<1x1x32xf32, #tpu.memory_space<vmem>>, %arg31: memref<1x6x32xf32, #tpu.memory_space<vmem>>, %arg32: memref<2x32xf32, #tpu.memory_space<vmem>>, %arg33: memref<32x4xbf16, #tpu.memory_space<vmem>>, %arg34: memref<1x4xf32, #tpu.memory_space<vmem>>, %arg35: memref<1x8x4xf32, #tpu.memory_space<vmem>>) attributes {dimension_semantics = [#tpu.dimension_semantics<parallel>], iteration_bounds = array<i64: 2>, scalar_prefetch = 0 : i64, scratch_operands = 0 : i64, tpu.core_type = #tpu.core_type<tc>, window_params = [{transform_indices = @transform_0, window_bounds = array<i64: 1, 16, 16>}, {transform_indices = @transform_1, window_bounds = array<i64: 1, 16, 16>}, {pipeline_mode = #tpu.pipeline_mode<synchronous>, transform_indices = @transform_2, window_bounds = array<i64: 16, 32>}, {pipeline_mode = #tpu.pipeline_mode<synchronous>, transform_indices = @transform_3, window_bounds = array<i64: 16, 32>}, {pipeline_mode = #tpu.pipeline_mode<synchronous>, transform_indices = @transform_4, window_bounds = array<i64: 16, 32>}, {pipeline_mode = #tpu.pipeline_mode<synchronous>, transform_indices = @transform_5, window_bounds = array<i64: 16, 32>}, {pipeline_mode = #tpu.pipeline_mode<synchronous>, transform_indices = @transform_6, window_bounds = array<i64: 2, 32, 96>}, {pipeline_mode = #tpu.pipeline_mode<synchronous>, transform_indices = @transform_7, window_bounds = array<i64: 2, 1, 96>}, {pipeline_mode = #tpu.pipeline_mode<synchronous>, transform_indices = @transform_8, window_bounds = array<i64: 2, 32, 32>}, {pipeline_mode = #tpu.pipeline_mode<synchronous>, transform_indices = @transform_9, window_bounds = array<i64: 2, 1, 32>}, {pipeline_mode = #tpu.pipeline_mode<synchronous>, transform_indices = @transform_10, window_bounds = array<i64: 2, 32, 64>}, {pipeline_mode = #tpu.pipeline_mode<synchronous>, transform_indices = @transform_11, window_bounds = array<i64: 2, 1, 64>}, {pipeline_mode = #tpu.pipeline_mode<synchronous>, transform_indices = @transform_12, window_bounds = array<i64: 2, 64, 32>}, {pipeline_mode = #tpu.pipeline_mode<synchronous>, transform_indices = @transform_13, window_bounds = array<i64: 2, 1, 32>}, {pipeline_mode = #tpu.pipeline_mode<synchronous>, transform_indices = @transform_14, window_bounds = array<i64: 2, 4, 32>}, {pipeline_mode = #tpu.pipeline_mode<synchronous>, transform_indices = @transform_15, window_bounds = array<i64: 2, 32>}, {pipeline_mode = #tpu.pipeline_mode<synchronous>, transform_indices = @transform_16, window_bounds = array<i64: 1, 32, 96>}, {pipeline_mode = #tpu.pipeline_mode<synchronous>, transform_indices = @transform_17, window_bounds = array<i64: 1, 1, 96>}, {pipeline_mode = #tpu.pipeline_mode<synchronous>, transform_indices = @transform_18, window_bounds = array<i64: 1, 32, 32>}, {pipeline_mode = #tpu.pipeline_mode<synchronous>, transform_indices = @transform_19, window_bounds = array<i64: 1, 1, 32>}, {pipeline_mode = #tpu.pipeline_mode<synchronous>, transform_indices = @transform_20, window_bounds = array<i64: 1, 32, 32>}, {pipeline_mode = #tpu.pipeline_mode<synchronous>, transform_indices = @transform_21, window_bounds = array<i64: 1, 1, 32>}, {pipeline_mode = #tpu.pipeline_mode<synchronous>, transform_indices = @transform_22, window_bounds = array<i64: 1, 32, 64>}, {pipeline_mode = #tpu.pipeline_mode<synchronous>, transform_indices = @transform_23, window_bounds = array<i64: 1, 1, 64>}, {pipeline_mode = #tpu.pipeline_mode<synchronous>, transform_indices = @transform_24, window_bounds = array<i64: 1, 32, 32>}, {pipeline_mode = #tpu.pipeline_mode<synchronous>, transform_indices = @transform_25, window_bounds = array<i64: 1, 1, 32>}, {pipeline_mode = #tpu.pipeline_mode<synchronous>, transform_indices = @transform_26, window_bounds = array<i64: 1, 32, 64>}, {pipeline_mode = #tpu.pipeline_mode<synchronous>, transform_indices = @transform_27, window_bounds = array<i64: 1, 1, 64>}, {pipeline_mode = #tpu.pipeline_mode<synchronous>, transform_indices = @transform_28, window_bounds = array<i64: 1, 64, 32>}, {pipeline_mode = #tpu.pipeline_mode<synchronous>, transform_indices = @transform_29, window_bounds = array<i64: 1, 1, 32>}, {pipeline_mode = #tpu.pipeline_mode<synchronous>, transform_indices = @transform_30, window_bounds = array<i64: 1, 6, 32>}, {pipeline_mode = #tpu.pipeline_mode<synchronous>, transform_indices = @transform_31, window_bounds = array<i64: 2, 32>}, {pipeline_mode = #tpu.pipeline_mode<synchronous>, transform_indices = @transform_32, window_bounds = array<i64: 32, 4>}, {pipeline_mode = #tpu.pipeline_mode<synchronous>, transform_indices = @transform_33, window_bounds = array<i64: 1, 4>}, {transform_indices = @transform_34, window_bounds = array<i64: 1, 8, 4>}]} {
    %c0 = arith.constant 0 : index
    %c0_0 = arith.constant 0 : index
    %c0_1 = arith.constant 0 : index
    %0 = vector.load %arg1[%c0, %c0_0, %c0_1] : memref<1x16x16xf32, #tpu.memory_space<vmem>>, vector<1x16x16xf32>
    %1 = vector.shape_cast %0 : vector<1x16x16xf32> to vector<16x16xf32>
    %2 = arith.truncf %1 : vector<16x16xf32> to vector<16x16xbf16>
    %c0_2 = arith.constant 0 : index
    %c0_3 = arith.constant 0 : index
    %3 = vector.load %arg3[%c0_2, %c0_3] : memref<16x32xbf16, #tpu.memory_space<vmem>>, vector<16x32xbf16>
    %cst = arith.constant dense<0.000000e+00> : vector<16x32xf32>
    %4 = tpu.matmul %2, %3, %cst {dimension_numbers = #tpu.dot_dimension_numbers<[1], [0], [0], [1], [0, 0, 1, 1], [], []>} : vector<16x16xbf16>, vector<16x32xbf16>, vector<16x32xf32> -> vector<16x32xf32>
    %c0_4 = arith.constant 0 : index
    %c0_5 = arith.constant 0 : index
    %5 = vector.load %arg4[%c0_4, %c0_5] : memref<16x32xf32, #tpu.memory_space<vmem>>, vector<16x32xf32>
    %6 = arith.addf %4, %5 : vector<16x32xf32>
    %c0_6 = arith.constant 0 : index
    %c0_7 = arith.constant 0 : index
    %c0_8 = arith.constant 0 : index
    %7 = vector.load %arg15[%c0_6, %c0_7, %c0_8] : memref<2x4x32xf32, #tpu.memory_space<vmem>>, vector<1x4x32xf32>
    %8 = vector.shape_cast %7 : vector<1x4x32xf32> to vector<4x32xf32>
    %9 = arith.truncf %6 : vector<16x32xf32> to vector<16x32xbf16>
    %c0_9 = arith.constant 0 : index
    %c0_10 = arith.constant 0 : index
    %c0_11 = arith.constant 0 : index
    %10 = vector.load %arg7[%c0_9, %c0_10, %c0_11] : memref<2x32x96xbf16, #tpu.memory_space<vmem>>, vector<1x32x96xbf16>
    %11 = vector.shape_cast %10 : vector<1x32x96xbf16> to vector<32x96xbf16>
    %cst_12 = arith.constant dense<0.000000e+00> : vector<16x96xf32>
    %12 = tpu.matmul %9, %11, %cst_12 {dimension_numbers = #tpu.dot_dimension_numbers<[1], [0], [0], [1], [0, 0, 1, 1], [], []>} : vector<16x32xbf16>, vector<32x96xbf16>, vector<16x96xf32> -> vector<16x96xf32>
    %c0_13 = arith.constant 0 : index
    %c0_14 = arith.constant 0 : index
    %c0_15 = arith.constant 0 : index
    %13 = vector.load %arg8[%c0_13, %c0_14, %c0_15] : memref<2x1x96xf32, #tpu.memory_space<vmem>>, vector<1x1x96xf32>
    %14 = vector.shape_cast %13 : vector<1x1x96xf32> to vector<1x96xf32>
    %15 = vector.broadcast %14 : vector<1x96xf32> to vector<16x96xf32>
    %16 = arith.addf %12, %15 : vector<16x96xf32>
    %17 = vector.extract_strided_slice %16 {offsets = [0, 0], sizes = [16, 32], strides = [1, 1]} : vector<16x96xf32> to vector<16x32xf32>
    %18 = vector.extract_strided_slice %16 {offsets = [0, 32], sizes = [16, 32], strides = [1, 1]} : vector<16x96xf32> to vector<16x32xf32>
    %19 = vector.extract_strided_slice %16 {offsets = [0, 64], sizes = [16, 32], strides = [1, 1]} : vector<16x96xf32> to vector<16x32xf32>
    %c0_16 = arith.constant 0 : index
    %c0_17 = arith.constant 0 : index
    %c0_18 = arith.constant 0 : index
    %20 = vector.load %arg9[%c0_16, %c0_17, %c0_18] : memref<2x32x32xbf16, #tpu.memory_space<vmem>>, vector<1x32x32xbf16>
    %21 = vector.shape_cast %20 : vector<1x32x32xbf16> to vector<32x32xbf16>
    %c0_19 = arith.constant 0 : index
    %c0_20 = arith.constant 0 : index
    %c0_21 = arith.constant 0 : index
    %22 = vector.load %arg10[%c0_19, %c0_20, %c0_21] : memref<2x1x32xf32, #tpu.memory_space<vmem>>, vector<1x1x32xf32>
    %23 = vector.shape_cast %22 : vector<1x1x32xf32> to vector<1x32xf32>
    %24 = arith.truncf %17 : vector<16x32xf32> to vector<16x32xbf16>
    %25 = arith.truncf %18 : vector<16x32xf32> to vector<16x32xbf16>
    %26 = arith.truncf %19 : vector<16x32xf32> to vector<16x32xbf16>
    %27 = vector.extract_strided_slice %24 {offsets = [0, 0], sizes = [16, 8], strides = [1, 1]} : vector<16x32xbf16> to vector<16x8xbf16>
    %28 = vector.extract_strided_slice %25 {offsets = [0, 0], sizes = [16, 8], strides = [1, 1]} : vector<16x32xbf16> to vector<16x8xbf16>
    %29 = vector.extract_strided_slice %26 {offsets = [0, 0], sizes = [16, 8], strides = [1, 1]} : vector<16x32xbf16> to vector<16x8xbf16>
    %cst_22 = arith.constant dense<0.000000e+00> : vector<16x16xf32>
    %30 = tpu.matmul %27, %28, %cst_22 {dimension_numbers = #tpu.dot_dimension_numbers<[1], [1], [0], [0], [0, 0, 1, 0], [], []>} : vector<16x8xbf16>, vector<16x8xbf16>, vector<16x16xf32> -> vector<16x16xf32>
    %cst_23 = arith.constant dense<0xFF800000> : vector<16xf32>
    %31 = vector.multi_reduction <maximumf>, %30, %cst_23 [1] : vector<16x16xf32> to vector<16xf32>
    %32 = vector.shape_cast %31 : vector<16xf32> to vector<16x1xf32>
    %33 = vector.broadcast %32 : vector<16x1xf32> to vector<16x16xf32>
    %34 = arith.subf %30, %33 : vector<16x16xf32>
    %35 = math.exp %34 : vector<16x16xf32>
    %cst_24 = arith.constant dense<0.000000e+00> : vector<16xf32>
    %36 = vector.multi_reduction <add>, %35, %cst_24 [1] : vector<16x16xf32> to vector<16xf32>
    %37 = vector.shape_cast %36 : vector<16xf32> to vector<16x1xf32>
    %38 = tpu.reciprocal %37 {approx = true} : vector<16x1xf32> -> vector<16x1xf32>
    %39 = vector.broadcast %38 : vector<16x1xf32> to vector<16x16xf32>
    %40 = arith.mulf %35, %39 : vector<16x16xf32>
    %41 = arith.truncf %40 : vector<16x16xf32> to vector<16x16xbf16>
    %cst_25 = arith.constant dense<0.000000e+00> : vector<16x8xf32>
    %42 = tpu.matmul %41, %29, %cst_25 {dimension_numbers = #tpu.dot_dimension_numbers<[1], [0], [0], [1], [0, 0, 1, 1], [], []>} : vector<16x16xbf16>, vector<16x8xbf16>, vector<16x8xf32> -> vector<16x8xf32>
    %43 = vector.extract_strided_slice %24 {offsets = [0, 8], sizes = [16, 8], strides = [1, 1]} : vector<16x32xbf16> to vector<16x8xbf16>
    %44 = vector.extract_strided_slice %25 {offsets = [0, 8], sizes = [16, 8], strides = [1, 1]} : vector<16x32xbf16> to vector<16x8xbf16>
    %45 = vector.extract_strided_slice %26 {offsets = [0, 8], sizes = [16, 8], strides = [1, 1]} : vector<16x32xbf16> to vector<16x8xbf16>
    %cst_26 = arith.constant dense<0.000000e+00> : vector<16x16xf32>
    %46 = tpu.matmul %43, %44, %cst_26 {dimension_numbers = #tpu.dot_dimension_numbers<[1], [1], [0], [0], [0, 0, 1, 0], [], []>} : vector<16x8xbf16>, vector<16x8xbf16>, vector<16x16xf32> -> vector<16x16xf32>
    %cst_27 = arith.constant dense<0xFF800000> : vector<16xf32>
    %47 = vector.multi_reduction <maximumf>, %46, %cst_27 [1] : vector<16x16xf32> to vector<16xf32>
    %48 = vector.shape_cast %47 : vector<16xf32> to vector<16x1xf32>
    %49 = vector.broadcast %48 : vector<16x1xf32> to vector<16x16xf32>
    %50 = arith.subf %46, %49 : vector<16x16xf32>
    %51 = math.exp %50 : vector<16x16xf32>
    %cst_28 = arith.constant dense<0.000000e+00> : vector<16xf32>
    %52 = vector.multi_reduction <add>, %51, %cst_28 [1] : vector<16x16xf32> to vector<16xf32>
    %53 = vector.shape_cast %52 : vector<16xf32> to vector<16x1xf32>
    %54 = tpu.reciprocal %53 {approx = true} : vector<16x1xf32> -> vector<16x1xf32>
    %55 = vector.broadcast %54 : vector<16x1xf32> to vector<16x16xf32>
    %56 = arith.mulf %51, %55 : vector<16x16xf32>
    %57 = arith.truncf %56 : vector<16x16xf32> to vector<16x16xbf16>
    %cst_29 = arith.constant dense<0.000000e+00> : vector<16x8xf32>
    %58 = tpu.matmul %57, %45, %cst_29 {dimension_numbers = #tpu.dot_dimension_numbers<[1], [0], [0], [1], [0, 0, 1, 1], [], []>} : vector<16x16xbf16>, vector<16x8xbf16>, vector<16x8xf32> -> vector<16x8xf32>
    %59 = vector.extract_strided_slice %24 {offsets = [0, 16], sizes = [16, 8], strides = [1, 1]} : vector<16x32xbf16> to vector<16x8xbf16>
    %60 = vector.extract_strided_slice %25 {offsets = [0, 16], sizes = [16, 8], strides = [1, 1]} : vector<16x32xbf16> to vector<16x8xbf16>
    %61 = vector.extract_strided_slice %26 {offsets = [0, 16], sizes = [16, 8], strides = [1, 1]} : vector<16x32xbf16> to vector<16x8xbf16>
    %cst_30 = arith.constant dense<0.000000e+00> : vector<16x16xf32>
    %62 = tpu.matmul %59, %60, %cst_30 {dimension_numbers = #tpu.dot_dimension_numbers<[1], [1], [0], [0], [0, 0, 1, 0], [], []>} : vector<16x8xbf16>, vector<16x8xbf16>, vector<16x16xf32> -> vector<16x16xf32>
    %cst_31 = arith.constant dense<0xFF800000> : vector<16xf32>
    %63 = vector.multi_reduction <maximumf>, %62, %cst_31 [1] : vector<16x16xf32> to vector<16xf32>
    %64 = vector.shape_cast %63 : vector<16xf32> to vector<16x1xf32>
    %65 = vector.broadcast %64 : vector<16x1xf32> to vector<16x16xf32>
    %66 = arith.subf %62, %65 : vector<16x16xf32>
    %67 = math.exp %66 : vector<16x16xf32>
    %cst_32 = arith.constant dense<0.000000e+00> : vector<16xf32>
    %68 = vector.multi_reduction <add>, %67, %cst_32 [1] : vector<16x16xf32> to vector<16xf32>
    %69 = vector.shape_cast %68 : vector<16xf32> to vector<16x1xf32>
    %70 = tpu.reciprocal %69 {approx = true} : vector<16x1xf32> -> vector<16x1xf32>
    %71 = vector.broadcast %70 : vector<16x1xf32> to vector<16x16xf32>
    %72 = arith.mulf %67, %71 : vector<16x16xf32>
    %73 = arith.truncf %72 : vector<16x16xf32> to vector<16x16xbf16>
    %cst_33 = arith.constant dense<0.000000e+00> : vector<16x8xf32>
    %74 = tpu.matmul %73, %61, %cst_33 {dimension_numbers = #tpu.dot_dimension_numbers<[1], [0], [0], [1], [0, 0, 1, 1], [], []>} : vector<16x16xbf16>, vector<16x8xbf16>, vector<16x8xf32> -> vector<16x8xf32>
    %75 = vector.extract_strided_slice %24 {offsets = [0, 24], sizes = [16, 8], strides = [1, 1]} : vector<16x32xbf16> to vector<16x8xbf16>
    %76 = vector.extract_strided_slice %25 {offsets = [0, 24], sizes = [16, 8], strides = [1, 1]} : vector<16x32xbf16> to vector<16x8xbf16>
    %77 = vector.extract_strided_slice %26 {offsets = [0, 24], sizes = [16, 8], strides = [1, 1]} : vector<16x32xbf16> to vector<16x8xbf16>
    %cst_34 = arith.constant dense<0.000000e+00> : vector<16x16xf32>
    %78 = tpu.matmul %75, %76, %cst_34 {dimension_numbers = #tpu.dot_dimension_numbers<[1], [1], [0], [0], [0, 0, 1, 0], [], []>} : vector<16x8xbf16>, vector<16x8xbf16>, vector<16x16xf32> -> vector<16x16xf32>
    %cst_35 = arith.constant dense<0xFF800000> : vector<16xf32>
    %79 = vector.multi_reduction <maximumf>, %78, %cst_35 [1] : vector<16x16xf32> to vector<16xf32>
    %80 = vector.shape_cast %79 : vector<16xf32> to vector<16x1xf32>
    %81 = vector.broadcast %80 : vector<16x1xf32> to vector<16x16xf32>
    %82 = arith.subf %78, %81 : vector<16x16xf32>
    %83 = math.exp %82 : vector<16x16xf32>
    %cst_36 = arith.constant dense<0.000000e+00> : vector<16xf32>
    %84 = vector.multi_reduction <add>, %83, %cst_36 [1] : vector<16x16xf32> to vector<16xf32>
    %85 = vector.shape_cast %84 : vector<16xf32> to vector<16x1xf32>
    %86 = tpu.reciprocal %85 {approx = true} : vector<16x1xf32> -> vector<16x1xf32>
    %87 = vector.broadcast %86 : vector<16x1xf32> to vector<16x16xf32>
    %88 = arith.mulf %83, %87 : vector<16x16xf32>
    %89 = arith.truncf %88 : vector<16x16xf32> to vector<16x16xbf16>
    %cst_37 = arith.constant dense<0.000000e+00> : vector<16x8xf32>
    %90 = tpu.matmul %89, %77, %cst_37 {dimension_numbers = #tpu.dot_dimension_numbers<[1], [0], [0], [1], [0, 0, 1, 1], [], []>} : vector<16x16xbf16>, vector<16x8xbf16>, vector<16x8xf32> -> vector<16x8xf32>
    %91 = tpu.concatenate %42, %58, %74, %90 in 1 : vector<16x8xf32>, vector<16x8xf32>, vector<16x8xf32>, vector<16x8xf32> -> vector<16x32xf32>
    %92 = arith.truncf %91 : vector<16x32xf32> to vector<16x32xbf16>
    %cst_38 = arith.constant dense<0.000000e+00> : vector<16x32xf32>
    %93 = tpu.matmul %92, %21, %cst_38 {dimension_numbers = #tpu.dot_dimension_numbers<[1], [0], [0], [1], [0, 0, 1, 1], [], []>} : vector<16x32xbf16>, vector<32x32xbf16>, vector<16x32xf32> -> vector<16x32xf32>
    %94 = vector.broadcast %23 : vector<1x32xf32> to vector<16x32xf32>
    %95 = arith.addf %93, %94 : vector<16x32xf32>
    %96 = arith.addf %6, %95 : vector<16x32xf32>
    %97 = vector.extract_strided_slice %8 {offsets = [0, 0], sizes = [1, 32], strides = [1, 1]} : vector<4x32xf32> to vector<1x32xf32>
    %98 = vector.extract_strided_slice %8 {offsets = [1, 0], sizes = [1, 32], strides = [1, 1]} : vector<4x32xf32> to vector<1x32xf32>
    %cst_39 = arith.constant dense<0.000000e+00> : vector<16xf32>
    %99 = vector.multi_reduction <add>, %96, %cst_39 [1] : vector<16x32xf32> to vector<16xf32>
    %100 = vector.shape_cast %99 : vector<16xf32> to vector<16x1xf32>
    %cst_40 = arith.constant 3.200000e+01 : f32
    %101 = vector.broadcast %cst_40 : f32 to vector<16x1xf32>
    %102 = arith.divf %100, %101 : vector<16x1xf32>
    %103 = vector.broadcast %102 : vector<16x1xf32> to vector<16x32xf32>
    %104 = arith.subf %96, %103 : vector<16x32xf32>
    %105 = arith.mulf %104, %104 : vector<16x32xf32>
    %cst_41 = arith.constant dense<0.000000e+00> : vector<16xf32>
    %106 = vector.multi_reduction <add>, %105, %cst_41 [1] : vector<16x32xf32> to vector<16xf32>
    %107 = vector.shape_cast %106 : vector<16xf32> to vector<16x1xf32>
    %cst_42 = arith.constant 3.200000e+01 : f32
    %108 = vector.broadcast %cst_42 : f32 to vector<16x1xf32>
    %109 = arith.divf %107, %108 : vector<16x1xf32>
    %cst_43 = arith.constant 9.99999974E-6 : f32
    %110 = vector.broadcast %cst_43 : f32 to vector<16x1xf32>
    %111 = arith.addf %109, %110 : vector<16x1xf32>
    %112 = math.rsqrt %111 : vector<16x1xf32>
    %113 = vector.broadcast %112 : vector<16x1xf32> to vector<16x32xf32>
    %114 = arith.mulf %104, %113 : vector<16x32xf32>
    %115 = vector.broadcast %97 : vector<1x32xf32> to vector<16x32xf32>
    %116 = arith.mulf %114, %115 : vector<16x32xf32>
    %117 = vector.broadcast %98 : vector<1x32xf32> to vector<16x32xf32>
    %118 = arith.addf %116, %117 : vector<16x32xf32>
    %119 = arith.truncf %118 : vector<16x32xf32> to vector<16x32xbf16>
    %c0_44 = arith.constant 0 : index
    %c0_45 = arith.constant 0 : index
    %c0_46 = arith.constant 0 : index
    %120 = vector.load %arg11[%c0_44, %c0_45, %c0_46] : memref<2x32x64xbf16, #tpu.memory_space<vmem>>, vector<1x32x64xbf16>
    %121 = vector.shape_cast %120 : vector<1x32x64xbf16> to vector<32x64xbf16>
    %cst_47 = arith.constant dense<0.000000e+00> : vector<16x64xf32>
    %122 = tpu.matmul %119, %121, %cst_47 {dimension_numbers = #tpu.dot_dimension_numbers<[1], [0], [0], [1], [0, 0, 1, 1], [], []>} : vector<16x32xbf16>, vector<32x64xbf16>, vector<16x64xf32> -> vector<16x64xf32>
    %c0_48 = arith.constant 0 : index
    %c0_49 = arith.constant 0 : index
    %c0_50 = arith.constant 0 : index
    %123 = vector.load %arg12[%c0_48, %c0_49, %c0_50] : memref<2x1x64xf32, #tpu.memory_space<vmem>>, vector<1x1x64xf32>
    %124 = vector.shape_cast %123 : vector<1x1x64xf32> to vector<1x64xf32>
    %125 = vector.broadcast %124 : vector<1x64xf32> to vector<16x64xf32>
    %126 = arith.addf %122, %125 : vector<16x64xf32>
    %cst_51 = arith.constant 0.000000e+00 : f32
    %127 = vector.broadcast %cst_51 : f32 to vector<16x64xf32>
    %128 = arith.maximumf %126, %127 : vector<16x64xf32>
    %129 = arith.truncf %128 : vector<16x64xf32> to vector<16x64xbf16>
    %c0_52 = arith.constant 0 : index
    %c0_53 = arith.constant 0 : index
    %c0_54 = arith.constant 0 : index
    %130 = vector.load %arg13[%c0_52, %c0_53, %c0_54] : memref<2x64x32xbf16, #tpu.memory_space<vmem>>, vector<1x64x32xbf16>
    %131 = vector.shape_cast %130 : vector<1x64x32xbf16> to vector<64x32xbf16>
    %cst_55 = arith.constant dense<0.000000e+00> : vector<16x32xf32>
    %132 = tpu.matmul %129, %131, %cst_55 {dimension_numbers = #tpu.dot_dimension_numbers<[1], [0], [0], [1], [0, 0, 1, 1], [], []>} : vector<16x64xbf16>, vector<64x32xbf16>, vector<16x32xf32> -> vector<16x32xf32>
    %c0_56 = arith.constant 0 : index
    %c0_57 = arith.constant 0 : index
    %c0_58 = arith.constant 0 : index
    %133 = vector.load %arg14[%c0_56, %c0_57, %c0_58] : memref<2x1x32xf32, #tpu.memory_space<vmem>>, vector<1x1x32xf32>
    %134 = vector.shape_cast %133 : vector<1x1x32xf32> to vector<1x32xf32>
    %135 = vector.broadcast %134 : vector<1x32xf32> to vector<16x32xf32>
    %136 = arith.addf %132, %135 : vector<16x32xf32>
    %137 = arith.addf %118, %136 : vector<16x32xf32>
    %138 = vector.extract_strided_slice %8 {offsets = [2, 0], sizes = [1, 32], strides = [1, 1]} : vector<4x32xf32> to vector<1x32xf32>
    %139 = vector.extract_strided_slice %8 {offsets = [3, 0], sizes = [1, 32], strides = [1, 1]} : vector<4x32xf32> to vector<1x32xf32>
    %cst_59 = arith.constant dense<0.000000e+00> : vector<16xf32>
    %140 = vector.multi_reduction <add>, %137, %cst_59 [1] : vector<16x32xf32> to vector<16xf32>
    %141 = vector.shape_cast %140 : vector<16xf32> to vector<16x1xf32>
    %cst_60 = arith.constant 3.200000e+01 : f32
    %142 = vector.broadcast %cst_60 : f32 to vector<16x1xf32>
    %143 = arith.divf %141, %142 : vector<16x1xf32>
    %144 = vector.broadcast %143 : vector<16x1xf32> to vector<16x32xf32>
    %145 = arith.subf %137, %144 : vector<16x32xf32>
    %146 = arith.mulf %145, %145 : vector<16x32xf32>
    %cst_61 = arith.constant dense<0.000000e+00> : vector<16xf32>
    %147 = vector.multi_reduction <add>, %146, %cst_61 [1] : vector<16x32xf32> to vector<16xf32>
    %148 = vector.shape_cast %147 : vector<16xf32> to vector<16x1xf32>
    %cst_62 = arith.constant 3.200000e+01 : f32
    %149 = vector.broadcast %cst_62 : f32 to vector<16x1xf32>
    %150 = arith.divf %148, %149 : vector<16x1xf32>
    %cst_63 = arith.constant 9.99999974E-6 : f32
    %151 = vector.broadcast %cst_63 : f32 to vector<16x1xf32>
    %152 = arith.addf %150, %151 : vector<16x1xf32>
    %153 = math.rsqrt %152 : vector<16x1xf32>
    %154 = vector.broadcast %153 : vector<16x1xf32> to vector<16x32xf32>
    %155 = arith.mulf %145, %154 : vector<16x32xf32>
    %156 = vector.broadcast %138 : vector<1x32xf32> to vector<16x32xf32>
    %157 = arith.mulf %155, %156 : vector<16x32xf32>
    %158 = vector.broadcast %139 : vector<1x32xf32> to vector<16x32xf32>
    %159 = arith.addf %157, %158 : vector<16x32xf32>
    %c1 = arith.constant 1 : index
    %c0_64 = arith.constant 0 : index
    %c0_65 = arith.constant 0 : index
    %160 = vector.load %arg15[%c1, %c0_64, %c0_65] : memref<2x4x32xf32, #tpu.memory_space<vmem>>, vector<1x4x32xf32>
    %161 = vector.shape_cast %160 : vector<1x4x32xf32> to vector<4x32xf32>
    %162 = arith.truncf %159 : vector<16x32xf32> to vector<16x32xbf16>
    %c1_66 = arith.constant 1 : index
    %c0_67 = arith.constant 0 : index
    %c0_68 = arith.constant 0 : index
    %163 = vector.load %arg7[%c1_66, %c0_67, %c0_68] : memref<2x32x96xbf16, #tpu.memory_space<vmem>>, vector<1x32x96xbf16>
    %164 = vector.shape_cast %163 : vector<1x32x96xbf16> to vector<32x96xbf16>
    %cst_69 = arith.constant dense<0.000000e+00> : vector<16x96xf32>
    %165 = tpu.matmul %162, %164, %cst_69 {dimension_numbers = #tpu.dot_dimension_numbers<[1], [0], [0], [1], [0, 0, 1, 1], [], []>} : vector<16x32xbf16>, vector<32x96xbf16>, vector<16x96xf32> -> vector<16x96xf32>
    %c1_70 = arith.constant 1 : index
    %c0_71 = arith.constant 0 : index
    %c0_72 = arith.constant 0 : index
    %166 = vector.load %arg8[%c1_70, %c0_71, %c0_72] : memref<2x1x96xf32, #tpu.memory_space<vmem>>, vector<1x1x96xf32>
    %167 = vector.shape_cast %166 : vector<1x1x96xf32> to vector<1x96xf32>
    %168 = vector.broadcast %167 : vector<1x96xf32> to vector<16x96xf32>
    %169 = arith.addf %165, %168 : vector<16x96xf32>
    %170 = vector.extract_strided_slice %169 {offsets = [0, 0], sizes = [16, 32], strides = [1, 1]} : vector<16x96xf32> to vector<16x32xf32>
    %171 = vector.extract_strided_slice %169 {offsets = [0, 32], sizes = [16, 32], strides = [1, 1]} : vector<16x96xf32> to vector<16x32xf32>
    %172 = vector.extract_strided_slice %169 {offsets = [0, 64], sizes = [16, 32], strides = [1, 1]} : vector<16x96xf32> to vector<16x32xf32>
    %c1_73 = arith.constant 1 : index
    %c0_74 = arith.constant 0 : index
    %c0_75 = arith.constant 0 : index
    %173 = vector.load %arg9[%c1_73, %c0_74, %c0_75] : memref<2x32x32xbf16, #tpu.memory_space<vmem>>, vector<1x32x32xbf16>
    %174 = vector.shape_cast %173 : vector<1x32x32xbf16> to vector<32x32xbf16>
    %c1_76 = arith.constant 1 : index
    %c0_77 = arith.constant 0 : index
    %c0_78 = arith.constant 0 : index
    %175 = vector.load %arg10[%c1_76, %c0_77, %c0_78] : memref<2x1x32xf32, #tpu.memory_space<vmem>>, vector<1x1x32xf32>
    %176 = vector.shape_cast %175 : vector<1x1x32xf32> to vector<1x32xf32>
    %177 = arith.truncf %170 : vector<16x32xf32> to vector<16x32xbf16>
    %178 = arith.truncf %171 : vector<16x32xf32> to vector<16x32xbf16>
    %179 = arith.truncf %172 : vector<16x32xf32> to vector<16x32xbf16>
    %180 = vector.extract_strided_slice %177 {offsets = [0, 0], sizes = [16, 8], strides = [1, 1]} : vector<16x32xbf16> to vector<16x8xbf16>
    %181 = vector.extract_strided_slice %178 {offsets = [0, 0], sizes = [16, 8], strides = [1, 1]} : vector<16x32xbf16> to vector<16x8xbf16>
    %182 = vector.extract_strided_slice %179 {offsets = [0, 0], sizes = [16, 8], strides = [1, 1]} : vector<16x32xbf16> to vector<16x8xbf16>
    %cst_79 = arith.constant dense<0.000000e+00> : vector<16x16xf32>
    %183 = tpu.matmul %180, %181, %cst_79 {dimension_numbers = #tpu.dot_dimension_numbers<[1], [1], [0], [0], [0, 0, 1, 0], [], []>} : vector<16x8xbf16>, vector<16x8xbf16>, vector<16x16xf32> -> vector<16x16xf32>
    %cst_80 = arith.constant dense<0xFF800000> : vector<16xf32>
    %184 = vector.multi_reduction <maximumf>, %183, %cst_80 [1] : vector<16x16xf32> to vector<16xf32>
    %185 = vector.shape_cast %184 : vector<16xf32> to vector<16x1xf32>
    %186 = vector.broadcast %185 : vector<16x1xf32> to vector<16x16xf32>
    %187 = arith.subf %183, %186 : vector<16x16xf32>
    %188 = math.exp %187 : vector<16x16xf32>
    %cst_81 = arith.constant dense<0.000000e+00> : vector<16xf32>
    %189 = vector.multi_reduction <add>, %188, %cst_81 [1] : vector<16x16xf32> to vector<16xf32>
    %190 = vector.shape_cast %189 : vector<16xf32> to vector<16x1xf32>
    %191 = tpu.reciprocal %190 {approx = true} : vector<16x1xf32> -> vector<16x1xf32>
    %192 = vector.broadcast %191 : vector<16x1xf32> to vector<16x16xf32>
    %193 = arith.mulf %188, %192 : vector<16x16xf32>
    %194 = arith.truncf %193 : vector<16x16xf32> to vector<16x16xbf16>
    %cst_82 = arith.constant dense<0.000000e+00> : vector<16x8xf32>
    %195 = tpu.matmul %194, %182, %cst_82 {dimension_numbers = #tpu.dot_dimension_numbers<[1], [0], [0], [1], [0, 0, 1, 1], [], []>} : vector<16x16xbf16>, vector<16x8xbf16>, vector<16x8xf32> -> vector<16x8xf32>
    %196 = vector.extract_strided_slice %177 {offsets = [0, 8], sizes = [16, 8], strides = [1, 1]} : vector<16x32xbf16> to vector<16x8xbf16>
    %197 = vector.extract_strided_slice %178 {offsets = [0, 8], sizes = [16, 8], strides = [1, 1]} : vector<16x32xbf16> to vector<16x8xbf16>
    %198 = vector.extract_strided_slice %179 {offsets = [0, 8], sizes = [16, 8], strides = [1, 1]} : vector<16x32xbf16> to vector<16x8xbf16>
    %cst_83 = arith.constant dense<0.000000e+00> : vector<16x16xf32>
    %199 = tpu.matmul %196, %197, %cst_83 {dimension_numbers = #tpu.dot_dimension_numbers<[1], [1], [0], [0], [0, 0, 1, 0], [], []>} : vector<16x8xbf16>, vector<16x8xbf16>, vector<16x16xf32> -> vector<16x16xf32>
    %cst_84 = arith.constant dense<0xFF800000> : vector<16xf32>
    %200 = vector.multi_reduction <maximumf>, %199, %cst_84 [1] : vector<16x16xf32> to vector<16xf32>
    %201 = vector.shape_cast %200 : vector<16xf32> to vector<16x1xf32>
    %202 = vector.broadcast %201 : vector<16x1xf32> to vector<16x16xf32>
    %203 = arith.subf %199, %202 : vector<16x16xf32>
    %204 = math.exp %203 : vector<16x16xf32>
    %cst_85 = arith.constant dense<0.000000e+00> : vector<16xf32>
    %205 = vector.multi_reduction <add>, %204, %cst_85 [1] : vector<16x16xf32> to vector<16xf32>
    %206 = vector.shape_cast %205 : vector<16xf32> to vector<16x1xf32>
    %207 = tpu.reciprocal %206 {approx = true} : vector<16x1xf32> -> vector<16x1xf32>
    %208 = vector.broadcast %207 : vector<16x1xf32> to vector<16x16xf32>
    %209 = arith.mulf %204, %208 : vector<16x16xf32>
    %210 = arith.truncf %209 : vector<16x16xf32> to vector<16x16xbf16>
    %cst_86 = arith.constant dense<0.000000e+00> : vector<16x8xf32>
    %211 = tpu.matmul %210, %198, %cst_86 {dimension_numbers = #tpu.dot_dimension_numbers<[1], [0], [0], [1], [0, 0, 1, 1], [], []>} : vector<16x16xbf16>, vector<16x8xbf16>, vector<16x8xf32> -> vector<16x8xf32>
    %212 = vector.extract_strided_slice %177 {offsets = [0, 16], sizes = [16, 8], strides = [1, 1]} : vector<16x32xbf16> to vector<16x8xbf16>
    %213 = vector.extract_strided_slice %178 {offsets = [0, 16], sizes = [16, 8], strides = [1, 1]} : vector<16x32xbf16> to vector<16x8xbf16>
    %214 = vector.extract_strided_slice %179 {offsets = [0, 16], sizes = [16, 8], strides = [1, 1]} : vector<16x32xbf16> to vector<16x8xbf16>
    %cst_87 = arith.constant dense<0.000000e+00> : vector<16x16xf32>
    %215 = tpu.matmul %212, %213, %cst_87 {dimension_numbers = #tpu.dot_dimension_numbers<[1], [1], [0], [0], [0, 0, 1, 0], [], []>} : vector<16x8xbf16>, vector<16x8xbf16>, vector<16x16xf32> -> vector<16x16xf32>
    %cst_88 = arith.constant dense<0xFF800000> : vector<16xf32>
    %216 = vector.multi_reduction <maximumf>, %215, %cst_88 [1] : vector<16x16xf32> to vector<16xf32>
    %217 = vector.shape_cast %216 : vector<16xf32> to vector<16x1xf32>
    %218 = vector.broadcast %217 : vector<16x1xf32> to vector<16x16xf32>
    %219 = arith.subf %215, %218 : vector<16x16xf32>
    %220 = math.exp %219 : vector<16x16xf32>
    %cst_89 = arith.constant dense<0.000000e+00> : vector<16xf32>
    %221 = vector.multi_reduction <add>, %220, %cst_89 [1] : vector<16x16xf32> to vector<16xf32>
    %222 = vector.shape_cast %221 : vector<16xf32> to vector<16x1xf32>
    %223 = tpu.reciprocal %222 {approx = true} : vector<16x1xf32> -> vector<16x1xf32>
    %224 = vector.broadcast %223 : vector<16x1xf32> to vector<16x16xf32>
    %225 = arith.mulf %220, %224 : vector<16x16xf32>
    %226 = arith.truncf %225 : vector<16x16xf32> to vector<16x16xbf16>
    %cst_90 = arith.constant dense<0.000000e+00> : vector<16x8xf32>
    %227 = tpu.matmul %226, %214, %cst_90 {dimension_numbers = #tpu.dot_dimension_numbers<[1], [0], [0], [1], [0, 0, 1, 1], [], []>} : vector<16x16xbf16>, vector<16x8xbf16>, vector<16x8xf32> -> vector<16x8xf32>
    %228 = vector.extract_strided_slice %177 {offsets = [0, 24], sizes = [16, 8], strides = [1, 1]} : vector<16x32xbf16> to vector<16x8xbf16>
    %229 = vector.extract_strided_slice %178 {offsets = [0, 24], sizes = [16, 8], strides = [1, 1]} : vector<16x32xbf16> to vector<16x8xbf16>
    %230 = vector.extract_strided_slice %179 {offsets = [0, 24], sizes = [16, 8], strides = [1, 1]} : vector<16x32xbf16> to vector<16x8xbf16>
    %cst_91 = arith.constant dense<0.000000e+00> : vector<16x16xf32>
    %231 = tpu.matmul %228, %229, %cst_91 {dimension_numbers = #tpu.dot_dimension_numbers<[1], [1], [0], [0], [0, 0, 1, 0], [], []>} : vector<16x8xbf16>, vector<16x8xbf16>, vector<16x16xf32> -> vector<16x16xf32>
    %cst_92 = arith.constant dense<0xFF800000> : vector<16xf32>
    %232 = vector.multi_reduction <maximumf>, %231, %cst_92 [1] : vector<16x16xf32> to vector<16xf32>
    %233 = vector.shape_cast %232 : vector<16xf32> to vector<16x1xf32>
    %234 = vector.broadcast %233 : vector<16x1xf32> to vector<16x16xf32>
    %235 = arith.subf %231, %234 : vector<16x16xf32>
    %236 = math.exp %235 : vector<16x16xf32>
    %cst_93 = arith.constant dense<0.000000e+00> : vector<16xf32>
    %237 = vector.multi_reduction <add>, %236, %cst_93 [1] : vector<16x16xf32> to vector<16xf32>
    %238 = vector.shape_cast %237 : vector<16xf32> to vector<16x1xf32>
    %239 = tpu.reciprocal %238 {approx = true} : vector<16x1xf32> -> vector<16x1xf32>
    %240 = vector.broadcast %239 : vector<16x1xf32> to vector<16x16xf32>
    %241 = arith.mulf %236, %240 : vector<16x16xf32>
    %242 = arith.truncf %241 : vector<16x16xf32> to vector<16x16xbf16>
    %cst_94 = arith.constant dense<0.000000e+00> : vector<16x8xf32>
    %243 = tpu.matmul %242, %230, %cst_94 {dimension_numbers = #tpu.dot_dimension_numbers<[1], [0], [0], [1], [0, 0, 1, 1], [], []>} : vector<16x16xbf16>, vector<16x8xbf16>, vector<16x8xf32> -> vector<16x8xf32>
    %244 = tpu.concatenate %195, %211, %227, %243 in 1 : vector<16x8xf32>, vector<16x8xf32>, vector<16x8xf32>, vector<16x8xf32> -> vector<16x32xf32>
    %245 = arith.truncf %244 : vector<16x32xf32> to vector<16x32xbf16>
    %cst_95 = arith.constant dense<0.000000e+00> : vector<16x32xf32>
    %246 = tpu.matmul %245, %174, %cst_95 {dimension_numbers = #tpu.dot_dimension_numbers<[1], [0], [0], [1], [0, 0, 1, 1], [], []>} : vector<16x32xbf16>, vector<32x32xbf16>, vector<16x32xf32> -> vector<16x32xf32>
    %247 = vector.broadcast %176 : vector<1x32xf32> to vector<16x32xf32>
    %248 = arith.addf %246, %247 : vector<16x32xf32>
    %249 = arith.addf %159, %248 : vector<16x32xf32>
    %250 = vector.extract_strided_slice %161 {offsets = [0, 0], sizes = [1, 32], strides = [1, 1]} : vector<4x32xf32> to vector<1x32xf32>
    %251 = vector.extract_strided_slice %161 {offsets = [1, 0], sizes = [1, 32], strides = [1, 1]} : vector<4x32xf32> to vector<1x32xf32>
    %cst_96 = arith.constant dense<0.000000e+00> : vector<16xf32>
    %252 = vector.multi_reduction <add>, %249, %cst_96 [1] : vector<16x32xf32> to vector<16xf32>
    %253 = vector.shape_cast %252 : vector<16xf32> to vector<16x1xf32>
    %cst_97 = arith.constant 3.200000e+01 : f32
    %254 = vector.broadcast %cst_97 : f32 to vector<16x1xf32>
    %255 = arith.divf %253, %254 : vector<16x1xf32>
    %256 = vector.broadcast %255 : vector<16x1xf32> to vector<16x32xf32>
    %257 = arith.subf %249, %256 : vector<16x32xf32>
    %258 = arith.mulf %257, %257 : vector<16x32xf32>
    %cst_98 = arith.constant dense<0.000000e+00> : vector<16xf32>
    %259 = vector.multi_reduction <add>, %258, %cst_98 [1] : vector<16x32xf32> to vector<16xf32>
    %260 = vector.shape_cast %259 : vector<16xf32> to vector<16x1xf32>
    %cst_99 = arith.constant 3.200000e+01 : f32
    %261 = vector.broadcast %cst_99 : f32 to vector<16x1xf32>
    %262 = arith.divf %260, %261 : vector<16x1xf32>
    %cst_100 = arith.constant 9.99999974E-6 : f32
    %263 = vector.broadcast %cst_100 : f32 to vector<16x1xf32>
    %264 = arith.addf %262, %263 : vector<16x1xf32>
    %265 = math.rsqrt %264 : vector<16x1xf32>
    %266 = vector.broadcast %265 : vector<16x1xf32> to vector<16x32xf32>
    %267 = arith.mulf %257, %266 : vector<16x32xf32>
    %268 = vector.broadcast %250 : vector<1x32xf32> to vector<16x32xf32>
    %269 = arith.mulf %267, %268 : vector<16x32xf32>
    %270 = vector.broadcast %251 : vector<1x32xf32> to vector<16x32xf32>
    %271 = arith.addf %269, %270 : vector<16x32xf32>
    %272 = arith.truncf %271 : vector<16x32xf32> to vector<16x32xbf16>
    %c1_101 = arith.constant 1 : index
    %c0_102 = arith.constant 0 : index
    %c0_103 = arith.constant 0 : index
    %273 = vector.load %arg11[%c1_101, %c0_102, %c0_103] : memref<2x32x64xbf16, #tpu.memory_space<vmem>>, vector<1x32x64xbf16>
    %274 = vector.shape_cast %273 : vector<1x32x64xbf16> to vector<32x64xbf16>
    %cst_104 = arith.constant dense<0.000000e+00> : vector<16x64xf32>
    %275 = tpu.matmul %272, %274, %cst_104 {dimension_numbers = #tpu.dot_dimension_numbers<[1], [0], [0], [1], [0, 0, 1, 1], [], []>} : vector<16x32xbf16>, vector<32x64xbf16>, vector<16x64xf32> -> vector<16x64xf32>
    %c1_105 = arith.constant 1 : index
    %c0_106 = arith.constant 0 : index
    %c0_107 = arith.constant 0 : index
    %276 = vector.load %arg12[%c1_105, %c0_106, %c0_107] : memref<2x1x64xf32, #tpu.memory_space<vmem>>, vector<1x1x64xf32>
    %277 = vector.shape_cast %276 : vector<1x1x64xf32> to vector<1x64xf32>
    %278 = vector.broadcast %277 : vector<1x64xf32> to vector<16x64xf32>
    %279 = arith.addf %275, %278 : vector<16x64xf32>
    %cst_108 = arith.constant 0.000000e+00 : f32
    %280 = vector.broadcast %cst_108 : f32 to vector<16x64xf32>
    %281 = arith.maximumf %279, %280 : vector<16x64xf32>
    %282 = arith.truncf %281 : vector<16x64xf32> to vector<16x64xbf16>
    %c1_109 = arith.constant 1 : index
    %c0_110 = arith.constant 0 : index
    %c0_111 = arith.constant 0 : index
    %283 = vector.load %arg13[%c1_109, %c0_110, %c0_111] : memref<2x64x32xbf16, #tpu.memory_space<vmem>>, vector<1x64x32xbf16>
    %284 = vector.shape_cast %283 : vector<1x64x32xbf16> to vector<64x32xbf16>
    %cst_112 = arith.constant dense<0.000000e+00> : vector<16x32xf32>
    %285 = tpu.matmul %282, %284, %cst_112 {dimension_numbers = #tpu.dot_dimension_numbers<[1], [0], [0], [1], [0, 0, 1, 1], [], []>} : vector<16x64xbf16>, vector<64x32xbf16>, vector<16x32xf32> -> vector<16x32xf32>
    %c1_113 = arith.constant 1 : index
    %c0_114 = arith.constant 0 : index
    %c0_115 = arith.constant 0 : index
    %286 = vector.load %arg14[%c1_113, %c0_114, %c0_115] : memref<2x1x32xf32, #tpu.memory_space<vmem>>, vector<1x1x32xf32>
    %287 = vector.shape_cast %286 : vector<1x1x32xf32> to vector<1x32xf32>
    %288 = vector.broadcast %287 : vector<1x32xf32> to vector<16x32xf32>
    %289 = arith.addf %285, %288 : vector<16x32xf32>
    %290 = arith.addf %271, %289 : vector<16x32xf32>
    %291 = vector.extract_strided_slice %161 {offsets = [2, 0], sizes = [1, 32], strides = [1, 1]} : vector<4x32xf32> to vector<1x32xf32>
    %292 = vector.extract_strided_slice %161 {offsets = [3, 0], sizes = [1, 32], strides = [1, 1]} : vector<4x32xf32> to vector<1x32xf32>
    %cst_116 = arith.constant dense<0.000000e+00> : vector<16xf32>
    %293 = vector.multi_reduction <add>, %290, %cst_116 [1] : vector<16x32xf32> to vector<16xf32>
    %294 = vector.shape_cast %293 : vector<16xf32> to vector<16x1xf32>
    %cst_117 = arith.constant 3.200000e+01 : f32
    %295 = vector.broadcast %cst_117 : f32 to vector<16x1xf32>
    %296 = arith.divf %294, %295 : vector<16x1xf32>
    %297 = vector.broadcast %296 : vector<16x1xf32> to vector<16x32xf32>
    %298 = arith.subf %290, %297 : vector<16x32xf32>
    %299 = arith.mulf %298, %298 : vector<16x32xf32>
    %cst_118 = arith.constant dense<0.000000e+00> : vector<16xf32>
    %300 = vector.multi_reduction <add>, %299, %cst_118 [1] : vector<16x32xf32> to vector<16xf32>
    %301 = vector.shape_cast %300 : vector<16xf32> to vector<16x1xf32>
    %cst_119 = arith.constant 3.200000e+01 : f32
    %302 = vector.broadcast %cst_119 : f32 to vector<16x1xf32>
    %303 = arith.divf %301, %302 : vector<16x1xf32>
    %cst_120 = arith.constant 9.99999974E-6 : f32
    %304 = vector.broadcast %cst_120 : f32 to vector<16x1xf32>
    %305 = arith.addf %303, %304 : vector<16x1xf32>
    %306 = math.rsqrt %305 : vector<16x1xf32>
    %307 = vector.broadcast %306 : vector<16x1xf32> to vector<16x32xf32>
    %308 = arith.mulf %298, %307 : vector<16x32xf32>
    %309 = vector.broadcast %291 : vector<1x32xf32> to vector<16x32xf32>
    %310 = arith.mulf %308, %309 : vector<16x32xf32>
    %311 = vector.broadcast %292 : vector<1x32xf32> to vector<16x32xf32>
    %312 = arith.addf %310, %311 : vector<16x32xf32>
    %c0_121 = arith.constant 0 : index
    %c0_122 = arith.constant 0 : index
    %313 = vector.load %arg16[%c0_121, %c0_122] : memref<2x32xf32, #tpu.memory_space<vmem>>, vector<1x32xf32>
    %c1_123 = arith.constant 1 : index
    %c0_124 = arith.constant 0 : index
    %314 = vector.load %arg16[%c1_123, %c0_124] : memref<2x32xf32, #tpu.memory_space<vmem>>, vector<1x32xf32>
    %cst_125 = arith.constant dense<0.000000e+00> : vector<16xf32>
    %315 = vector.multi_reduction <add>, %312, %cst_125 [1] : vector<16x32xf32> to vector<16xf32>
    %316 = vector.shape_cast %315 : vector<16xf32> to vector<16x1xf32>
    %cst_126 = arith.constant 3.200000e+01 : f32
    %317 = vector.broadcast %cst_126 : f32 to vector<16x1xf32>
    %318 = arith.divf %316, %317 : vector<16x1xf32>
    %319 = vector.broadcast %318 : vector<16x1xf32> to vector<16x32xf32>
    %320 = arith.subf %312, %319 : vector<16x32xf32>
    %321 = arith.mulf %320, %320 : vector<16x32xf32>
    %cst_127 = arith.constant dense<0.000000e+00> : vector<16xf32>
    %322 = vector.multi_reduction <add>, %321, %cst_127 [1] : vector<16x32xf32> to vector<16xf32>
    %323 = vector.shape_cast %322 : vector<16xf32> to vector<16x1xf32>
    %cst_128 = arith.constant 3.200000e+01 : f32
    %324 = vector.broadcast %cst_128 : f32 to vector<16x1xf32>
    %325 = arith.divf %323, %324 : vector<16x1xf32>
    %cst_129 = arith.constant 9.99999974E-6 : f32
    %326 = vector.broadcast %cst_129 : f32 to vector<16x1xf32>
    %327 = arith.addf %325, %326 : vector<16x1xf32>
    %328 = math.rsqrt %327 : vector<16x1xf32>
    %329 = vector.broadcast %328 : vector<16x1xf32> to vector<16x32xf32>
    %330 = arith.mulf %320, %329 : vector<16x32xf32>
    %331 = vector.broadcast %313 : vector<1x32xf32> to vector<16x32xf32>
    %332 = arith.mulf %330, %331 : vector<16x32xf32>
    %333 = vector.broadcast %314 : vector<1x32xf32> to vector<16x32xf32>
    %334 = arith.addf %332, %333 : vector<16x32xf32>
    %335 = arith.truncf %334 : vector<16x32xf32> to vector<16x32xbf16>
    %c0_130 = arith.constant 0 : index
    %c0_131 = arith.constant 0 : index
    %c0_132 = arith.constant 0 : index
    %336 = vector.load %arg2[%c0_130, %c0_131, %c0_132] : memref<1x16x16xf32, #tpu.memory_space<vmem>>, vector<1x16x16xf32>
    %337 = vector.shape_cast %336 : vector<1x16x16xf32> to vector<16x16xf32>
    %338 = arith.truncf %337 : vector<16x16xf32> to vector<16x16xbf16>
    %c0_133 = arith.constant 0 : index
    %c0_134 = arith.constant 0 : index
    %339 = vector.load %arg5[%c0_133, %c0_134] : memref<16x32xbf16, #tpu.memory_space<vmem>>, vector<16x32xbf16>
    %cst_135 = arith.constant dense<0.000000e+00> : vector<16x32xf32>
    %340 = tpu.matmul %338, %339, %cst_135 {dimension_numbers = #tpu.dot_dimension_numbers<[1], [0], [0], [1], [0, 0, 1, 1], [], []>} : vector<16x16xbf16>, vector<16x32xbf16>, vector<16x32xf32> -> vector<16x32xf32>
    %c0_136 = arith.constant 0 : index
    %c0_137 = arith.constant 0 : index
    %341 = vector.load %arg6[%c0_136, %c0_137] : memref<16x32xf32, #tpu.memory_space<vmem>>, vector<16x32xf32>
    %342 = arith.addf %340, %341 : vector<16x32xf32>
    %c0_138 = arith.constant 0 : index
    %c0_139 = arith.constant 0 : index
    %c0_140 = arith.constant 0 : index
    %343 = vector.load %arg31[%c0_138, %c0_139, %c0_140] : memref<1x6x32xf32, #tpu.memory_space<vmem>>, vector<1x6x32xf32>
    %344 = vector.shape_cast %343 : vector<1x6x32xf32> to vector<6x32xf32>
    %345 = arith.truncf %342 : vector<16x32xf32> to vector<16x32xbf16>
    %c0_141 = arith.constant 0 : index
    %c0_142 = arith.constant 0 : index
    %c0_143 = arith.constant 0 : index
    %346 = vector.load %arg17[%c0_141, %c0_142, %c0_143] : memref<1x32x96xbf16, #tpu.memory_space<vmem>>, vector<1x32x96xbf16>
    %347 = vector.shape_cast %346 : vector<1x32x96xbf16> to vector<32x96xbf16>
    %cst_144 = arith.constant dense<0.000000e+00> : vector<16x96xf32>
    %348 = tpu.matmul %345, %347, %cst_144 {dimension_numbers = #tpu.dot_dimension_numbers<[1], [0], [0], [1], [0, 0, 1, 1], [], []>} : vector<16x32xbf16>, vector<32x96xbf16>, vector<16x96xf32> -> vector<16x96xf32>
    %c0_145 = arith.constant 0 : index
    %c0_146 = arith.constant 0 : index
    %c0_147 = arith.constant 0 : index
    %349 = vector.load %arg18[%c0_145, %c0_146, %c0_147] : memref<1x1x96xf32, #tpu.memory_space<vmem>>, vector<1x1x96xf32>
    %350 = vector.shape_cast %349 : vector<1x1x96xf32> to vector<1x96xf32>
    %351 = vector.broadcast %350 : vector<1x96xf32> to vector<16x96xf32>
    %352 = arith.addf %348, %351 : vector<16x96xf32>
    %353 = vector.extract_strided_slice %352 {offsets = [0, 0], sizes = [16, 32], strides = [1, 1]} : vector<16x96xf32> to vector<16x32xf32>
    %354 = vector.extract_strided_slice %352 {offsets = [0, 32], sizes = [16, 32], strides = [1, 1]} : vector<16x96xf32> to vector<16x32xf32>
    %355 = vector.extract_strided_slice %352 {offsets = [0, 64], sizes = [16, 32], strides = [1, 1]} : vector<16x96xf32> to vector<16x32xf32>
    %c0_148 = arith.constant 0 : index
    %c0_149 = arith.constant 0 : index
    %c0_150 = arith.constant 0 : index
    %356 = vector.load %arg19[%c0_148, %c0_149, %c0_150] : memref<1x32x32xbf16, #tpu.memory_space<vmem>>, vector<1x32x32xbf16>
    %357 = vector.shape_cast %356 : vector<1x32x32xbf16> to vector<32x32xbf16>
    %c0_151 = arith.constant 0 : index
    %c0_152 = arith.constant 0 : index
    %c0_153 = arith.constant 0 : index
    %358 = vector.load %arg20[%c0_151, %c0_152, %c0_153] : memref<1x1x32xf32, #tpu.memory_space<vmem>>, vector<1x1x32xf32>
    %359 = vector.shape_cast %358 : vector<1x1x32xf32> to vector<1x32xf32>
    %360 = tpu.iota {dimensions = array<i32: 0>} : vector<16x16xi32>
    %361 = tpu.iota {dimensions = array<i32: 1>} : vector<16x16xi32>
    %362 = arith.cmpi sle, %361, %360 : vector<16x16xi32>
    %363 = arith.truncf %353 : vector<16x32xf32> to vector<16x32xbf16>
    %364 = arith.truncf %354 : vector<16x32xf32> to vector<16x32xbf16>
    %365 = arith.truncf %355 : vector<16x32xf32> to vector<16x32xbf16>
    %366 = vector.extract_strided_slice %363 {offsets = [0, 0], sizes = [16, 8], strides = [1, 1]} : vector<16x32xbf16> to vector<16x8xbf16>
    %367 = vector.extract_strided_slice %364 {offsets = [0, 0], sizes = [16, 8], strides = [1, 1]} : vector<16x32xbf16> to vector<16x8xbf16>
    %368 = vector.extract_strided_slice %365 {offsets = [0, 0], sizes = [16, 8], strides = [1, 1]} : vector<16x32xbf16> to vector<16x8xbf16>
    %cst_154 = arith.constant dense<0.000000e+00> : vector<16x16xf32>
    %369 = tpu.matmul %366, %367, %cst_154 {dimension_numbers = #tpu.dot_dimension_numbers<[1], [1], [0], [0], [0, 0, 1, 0], [], []>} : vector<16x8xbf16>, vector<16x8xbf16>, vector<16x16xf32> -> vector<16x16xf32>
    %cst_155 = arith.constant -1.000000e+30 : f32
    %370 = vector.broadcast %cst_155 : f32 to vector<16x16xf32>
    %371 = arith.select %362, %369, %370 : vector<16x16xi1>, vector<16x16xf32>
    %cst_156 = arith.constant dense<0xFF800000> : vector<16xf32>
    %372 = vector.multi_reduction <maximumf>, %371, %cst_156 [1] : vector<16x16xf32> to vector<16xf32>
    %373 = vector.shape_cast %372 : vector<16xf32> to vector<16x1xf32>
    %374 = vector.broadcast %373 : vector<16x1xf32> to vector<16x16xf32>
    %375 = arith.subf %371, %374 : vector<16x16xf32>
    %376 = math.exp %375 : vector<16x16xf32>
    %cst_157 = arith.constant dense<0.000000e+00> : vector<16xf32>
    %377 = vector.multi_reduction <add>, %376, %cst_157 [1] : vector<16x16xf32> to vector<16xf32>
    %378 = vector.shape_cast %377 : vector<16xf32> to vector<16x1xf32>
    %379 = tpu.reciprocal %378 {approx = true} : vector<16x1xf32> -> vector<16x1xf32>
    %380 = vector.broadcast %379 : vector<16x1xf32> to vector<16x16xf32>
    %381 = arith.mulf %376, %380 : vector<16x16xf32>
    %382 = arith.truncf %381 : vector<16x16xf32> to vector<16x16xbf16>
    %cst_158 = arith.constant dense<0.000000e+00> : vector<16x8xf32>
    %383 = tpu.matmul %382, %368, %cst_158 {dimension_numbers = #tpu.dot_dimension_numbers<[1], [0], [0], [1], [0, 0, 1, 1], [], []>} : vector<16x16xbf16>, vector<16x8xbf16>, vector<16x8xf32> -> vector<16x8xf32>
    %384 = vector.extract_strided_slice %363 {offsets = [0, 8], sizes = [16, 8], strides = [1, 1]} : vector<16x32xbf16> to vector<16x8xbf16>
    %385 = vector.extract_strided_slice %364 {offsets = [0, 8], sizes = [16, 8], strides = [1, 1]} : vector<16x32xbf16> to vector<16x8xbf16>
    %386 = vector.extract_strided_slice %365 {offsets = [0, 8], sizes = [16, 8], strides = [1, 1]} : vector<16x32xbf16> to vector<16x8xbf16>
    %cst_159 = arith.constant dense<0.000000e+00> : vector<16x16xf32>
    %387 = tpu.matmul %384, %385, %cst_159 {dimension_numbers = #tpu.dot_dimension_numbers<[1], [1], [0], [0], [0, 0, 1, 0], [], []>} : vector<16x8xbf16>, vector<16x8xbf16>, vector<16x16xf32> -> vector<16x16xf32>
    %cst_160 = arith.constant -1.000000e+30 : f32
    %388 = vector.broadcast %cst_160 : f32 to vector<16x16xf32>
    %389 = arith.select %362, %387, %388 : vector<16x16xi1>, vector<16x16xf32>
    %cst_161 = arith.constant dense<0xFF800000> : vector<16xf32>
    %390 = vector.multi_reduction <maximumf>, %389, %cst_161 [1] : vector<16x16xf32> to vector<16xf32>
    %391 = vector.shape_cast %390 : vector<16xf32> to vector<16x1xf32>
    %392 = vector.broadcast %391 : vector<16x1xf32> to vector<16x16xf32>
    %393 = arith.subf %389, %392 : vector<16x16xf32>
    %394 = math.exp %393 : vector<16x16xf32>
    %cst_162 = arith.constant dense<0.000000e+00> : vector<16xf32>
    %395 = vector.multi_reduction <add>, %394, %cst_162 [1] : vector<16x16xf32> to vector<16xf32>
    %396 = vector.shape_cast %395 : vector<16xf32> to vector<16x1xf32>
    %397 = tpu.reciprocal %396 {approx = true} : vector<16x1xf32> -> vector<16x1xf32>
    %398 = vector.broadcast %397 : vector<16x1xf32> to vector<16x16xf32>
    %399 = arith.mulf %394, %398 : vector<16x16xf32>
    %400 = arith.truncf %399 : vector<16x16xf32> to vector<16x16xbf16>
    %cst_163 = arith.constant dense<0.000000e+00> : vector<16x8xf32>
    %401 = tpu.matmul %400, %386, %cst_163 {dimension_numbers = #tpu.dot_dimension_numbers<[1], [0], [0], [1], [0, 0, 1, 1], [], []>} : vector<16x16xbf16>, vector<16x8xbf16>, vector<16x8xf32> -> vector<16x8xf32>
    %402 = vector.extract_strided_slice %363 {offsets = [0, 16], sizes = [16, 8], strides = [1, 1]} : vector<16x32xbf16> to vector<16x8xbf16>
    %403 = vector.extract_strided_slice %364 {offsets = [0, 16], sizes = [16, 8], strides = [1, 1]} : vector<16x32xbf16> to vector<16x8xbf16>
    %404 = vector.extract_strided_slice %365 {offsets = [0, 16], sizes = [16, 8], strides = [1, 1]} : vector<16x32xbf16> to vector<16x8xbf16>
    %cst_164 = arith.constant dense<0.000000e+00> : vector<16x16xf32>
    %405 = tpu.matmul %402, %403, %cst_164 {dimension_numbers = #tpu.dot_dimension_numbers<[1], [1], [0], [0], [0, 0, 1, 0], [], []>} : vector<16x8xbf16>, vector<16x8xbf16>, vector<16x16xf32> -> vector<16x16xf32>
    %cst_165 = arith.constant -1.000000e+30 : f32
    %406 = vector.broadcast %cst_165 : f32 to vector<16x16xf32>
    %407 = arith.select %362, %405, %406 : vector<16x16xi1>, vector<16x16xf32>
    %cst_166 = arith.constant dense<0xFF800000> : vector<16xf32>
    %408 = vector.multi_reduction <maximumf>, %407, %cst_166 [1] : vector<16x16xf32> to vector<16xf32>
    %409 = vector.shape_cast %408 : vector<16xf32> to vector<16x1xf32>
    %410 = vector.broadcast %409 : vector<16x1xf32> to vector<16x16xf32>
    %411 = arith.subf %407, %410 : vector<16x16xf32>
    %412 = math.exp %411 : vector<16x16xf32>
    %cst_167 = arith.constant dense<0.000000e+00> : vector<16xf32>
    %413 = vector.multi_reduction <add>, %412, %cst_167 [1] : vector<16x16xf32> to vector<16xf32>
    %414 = vector.shape_cast %413 : vector<16xf32> to vector<16x1xf32>
    %415 = tpu.reciprocal %414 {approx = true} : vector<16x1xf32> -> vector<16x1xf32>
    %416 = vector.broadcast %415 : vector<16x1xf32> to vector<16x16xf32>
    %417 = arith.mulf %412, %416 : vector<16x16xf32>
    %418 = arith.truncf %417 : vector<16x16xf32> to vector<16x16xbf16>
    %cst_168 = arith.constant dense<0.000000e+00> : vector<16x8xf32>
    %419 = tpu.matmul %418, %404, %cst_168 {dimension_numbers = #tpu.dot_dimension_numbers<[1], [0], [0], [1], [0, 0, 1, 1], [], []>} : vector<16x16xbf16>, vector<16x8xbf16>, vector<16x8xf32> -> vector<16x8xf32>
    %420 = vector.extract_strided_slice %363 {offsets = [0, 24], sizes = [16, 8], strides = [1, 1]} : vector<16x32xbf16> to vector<16x8xbf16>
    %421 = vector.extract_strided_slice %364 {offsets = [0, 24], sizes = [16, 8], strides = [1, 1]} : vector<16x32xbf16> to vector<16x8xbf16>
    %422 = vector.extract_strided_slice %365 {offsets = [0, 24], sizes = [16, 8], strides = [1, 1]} : vector<16x32xbf16> to vector<16x8xbf16>
    %cst_169 = arith.constant dense<0.000000e+00> : vector<16x16xf32>
    %423 = tpu.matmul %420, %421, %cst_169 {dimension_numbers = #tpu.dot_dimension_numbers<[1], [1], [0], [0], [0, 0, 1, 0], [], []>} : vector<16x8xbf16>, vector<16x8xbf16>, vector<16x16xf32> -> vector<16x16xf32>
    %cst_170 = arith.constant -1.000000e+30 : f32
    %424 = vector.broadcast %cst_170 : f32 to vector<16x16xf32>
    %425 = arith.select %362, %423, %424 : vector<16x16xi1>, vector<16x16xf32>
    %cst_171 = arith.constant dense<0xFF800000> : vector<16xf32>
    %426 = vector.multi_reduction <maximumf>, %425, %cst_171 [1] : vector<16x16xf32> to vector<16xf32>
    %427 = vector.shape_cast %426 : vector<16xf32> to vector<16x1xf32>
    %428 = vector.broadcast %427 : vector<16x1xf32> to vector<16x16xf32>
    %429 = arith.subf %425, %428 : vector<16x16xf32>
    %430 = math.exp %429 : vector<16x16xf32>
    %cst_172 = arith.constant dense<0.000000e+00> : vector<16xf32>
    %431 = vector.multi_reduction <add>, %430, %cst_172 [1] : vector<16x16xf32> to vector<16xf32>
    %432 = vector.shape_cast %431 : vector<16xf32> to vector<16x1xf32>
    %433 = tpu.reciprocal %432 {approx = true} : vector<16x1xf32> -> vector<16x1xf32>
    %434 = vector.broadcast %433 : vector<16x1xf32> to vector<16x16xf32>
    %435 = arith.mulf %430, %434 : vector<16x16xf32>
    %436 = arith.truncf %435 : vector<16x16xf32> to vector<16x16xbf16>
    %cst_173 = arith.constant dense<0.000000e+00> : vector<16x8xf32>
    %437 = tpu.matmul %436, %422, %cst_173 {dimension_numbers = #tpu.dot_dimension_numbers<[1], [0], [0], [1], [0, 0, 1, 1], [], []>} : vector<16x16xbf16>, vector<16x8xbf16>, vector<16x8xf32> -> vector<16x8xf32>
    %438 = tpu.concatenate %383, %401, %419, %437 in 1 : vector<16x8xf32>, vector<16x8xf32>, vector<16x8xf32>, vector<16x8xf32> -> vector<16x32xf32>
    %439 = arith.truncf %438 : vector<16x32xf32> to vector<16x32xbf16>
    %cst_174 = arith.constant dense<0.000000e+00> : vector<16x32xf32>
    %440 = tpu.matmul %439, %357, %cst_174 {dimension_numbers = #tpu.dot_dimension_numbers<[1], [0], [0], [1], [0, 0, 1, 1], [], []>} : vector<16x32xbf16>, vector<32x32xbf16>, vector<16x32xf32> -> vector<16x32xf32>
    %441 = vector.broadcast %359 : vector<1x32xf32> to vector<16x32xf32>
    %442 = arith.addf %440, %441 : vector<16x32xf32>
    %443 = arith.addf %342, %442 : vector<16x32xf32>
    %444 = vector.extract_strided_slice %344 {offsets = [0, 0], sizes = [1, 32], strides = [1, 1]} : vector<6x32xf32> to vector<1x32xf32>
    %445 = vector.extract_strided_slice %344 {offsets = [1, 0], sizes = [1, 32], strides = [1, 1]} : vector<6x32xf32> to vector<1x32xf32>
    %cst_175 = arith.constant dense<0.000000e+00> : vector<16xf32>
    %446 = vector.multi_reduction <add>, %443, %cst_175 [1] : vector<16x32xf32> to vector<16xf32>
    %447 = vector.shape_cast %446 : vector<16xf32> to vector<16x1xf32>
    %cst_176 = arith.constant 3.200000e+01 : f32
    %448 = vector.broadcast %cst_176 : f32 to vector<16x1xf32>
    %449 = arith.divf %447, %448 : vector<16x1xf32>
    %450 = vector.broadcast %449 : vector<16x1xf32> to vector<16x32xf32>
    %451 = arith.subf %443, %450 : vector<16x32xf32>
    %452 = arith.mulf %451, %451 : vector<16x32xf32>
    %cst_177 = arith.constant dense<0.000000e+00> : vector<16xf32>
    %453 = vector.multi_reduction <add>, %452, %cst_177 [1] : vector<16x32xf32> to vector<16xf32>
    %454 = vector.shape_cast %453 : vector<16xf32> to vector<16x1xf32>
    %cst_178 = arith.constant 3.200000e+01 : f32
    %455 = vector.broadcast %cst_178 : f32 to vector<16x1xf32>
    %456 = arith.divf %454, %455 : vector<16x1xf32>
    %cst_179 = arith.constant 9.99999974E-6 : f32
    %457 = vector.broadcast %cst_179 : f32 to vector<16x1xf32>
    %458 = arith.addf %456, %457 : vector<16x1xf32>
    %459 = math.rsqrt %458 : vector<16x1xf32>
    %460 = vector.broadcast %459 : vector<16x1xf32> to vector<16x32xf32>
    %461 = arith.mulf %451, %460 : vector<16x32xf32>
    %462 = vector.broadcast %444 : vector<1x32xf32> to vector<16x32xf32>
    %463 = arith.mulf %461, %462 : vector<16x32xf32>
    %464 = vector.broadcast %445 : vector<1x32xf32> to vector<16x32xf32>
    %465 = arith.addf %463, %464 : vector<16x32xf32>
    %466 = arith.truncf %465 : vector<16x32xf32> to vector<16x32xbf16>
    %c0_180 = arith.constant 0 : index
    %c0_181 = arith.constant 0 : index
    %c0_182 = arith.constant 0 : index
    %467 = vector.load %arg21[%c0_180, %c0_181, %c0_182] : memref<1x32x32xbf16, #tpu.memory_space<vmem>>, vector<1x32x32xbf16>
    %468 = vector.shape_cast %467 : vector<1x32x32xbf16> to vector<32x32xbf16>
    %cst_183 = arith.constant dense<0.000000e+00> : vector<16x32xf32>
    %469 = tpu.matmul %466, %468, %cst_183 {dimension_numbers = #tpu.dot_dimension_numbers<[1], [0], [0], [1], [0, 0, 1, 1], [], []>} : vector<16x32xbf16>, vector<32x32xbf16>, vector<16x32xf32> -> vector<16x32xf32>
    %c0_184 = arith.constant 0 : index
    %c0_185 = arith.constant 0 : index
    %c0_186 = arith.constant 0 : index
    %470 = vector.load %arg22[%c0_184, %c0_185, %c0_186] : memref<1x1x32xf32, #tpu.memory_space<vmem>>, vector<1x1x32xf32>
    %471 = vector.shape_cast %470 : vector<1x1x32xf32> to vector<1x32xf32>
    %472 = vector.broadcast %471 : vector<1x32xf32> to vector<16x32xf32>
    %473 = arith.addf %469, %472 : vector<16x32xf32>
    %c0_187 = arith.constant 0 : index
    %c0_188 = arith.constant 0 : index
    %c0_189 = arith.constant 0 : index
    %474 = vector.load %arg23[%c0_187, %c0_188, %c0_189] : memref<1x32x64xbf16, #tpu.memory_space<vmem>>, vector<1x32x64xbf16>
    %475 = vector.shape_cast %474 : vector<1x32x64xbf16> to vector<32x64xbf16>
    %cst_190 = arith.constant dense<0.000000e+00> : vector<16x64xf32>
    %476 = tpu.matmul %335, %475, %cst_190 {dimension_numbers = #tpu.dot_dimension_numbers<[1], [0], [0], [1], [0, 0, 1, 1], [], []>} : vector<16x32xbf16>, vector<32x64xbf16>, vector<16x64xf32> -> vector<16x64xf32>
    %c0_191 = arith.constant 0 : index
    %c0_192 = arith.constant 0 : index
    %c0_193 = arith.constant 0 : index
    %477 = vector.load %arg24[%c0_191, %c0_192, %c0_193] : memref<1x1x64xf32, #tpu.memory_space<vmem>>, vector<1x1x64xf32>
    %478 = vector.shape_cast %477 : vector<1x1x64xf32> to vector<1x64xf32>
    %479 = vector.broadcast %478 : vector<1x64xf32> to vector<16x64xf32>
    %480 = arith.addf %476, %479 : vector<16x64xf32>
    %481 = vector.extract_strided_slice %480 {offsets = [0, 0], sizes = [16, 32], strides = [1, 1]} : vector<16x64xf32> to vector<16x32xf32>
    %482 = vector.extract_strided_slice %480 {offsets = [0, 32], sizes = [16, 32], strides = [1, 1]} : vector<16x64xf32> to vector<16x32xf32>
    %c0_194 = arith.constant 0 : index
    %c0_195 = arith.constant 0 : index
    %c0_196 = arith.constant 0 : index
    %483 = vector.load %arg25[%c0_194, %c0_195, %c0_196] : memref<1x32x32xbf16, #tpu.memory_space<vmem>>, vector<1x32x32xbf16>
    %484 = vector.shape_cast %483 : vector<1x32x32xbf16> to vector<32x32xbf16>
    %c0_197 = arith.constant 0 : index
    %c0_198 = arith.constant 0 : index
    %c0_199 = arith.constant 0 : index
    %485 = vector.load %arg26[%c0_197, %c0_198, %c0_199] : memref<1x1x32xf32, #tpu.memory_space<vmem>>, vector<1x1x32xf32>
    %486 = vector.shape_cast %485 : vector<1x1x32xf32> to vector<1x32xf32>
    %487 = arith.truncf %473 : vector<16x32xf32> to vector<16x32xbf16>
    %488 = arith.truncf %481 : vector<16x32xf32> to vector<16x32xbf16>
    %489 = arith.truncf %482 : vector<16x32xf32> to vector<16x32xbf16>
    %490 = vector.extract_strided_slice %487 {offsets = [0, 0], sizes = [16, 8], strides = [1, 1]} : vector<16x32xbf16> to vector<16x8xbf16>
    %491 = vector.extract_strided_slice %488 {offsets = [0, 0], sizes = [16, 8], strides = [1, 1]} : vector<16x32xbf16> to vector<16x8xbf16>
    %492 = vector.extract_strided_slice %489 {offsets = [0, 0], sizes = [16, 8], strides = [1, 1]} : vector<16x32xbf16> to vector<16x8xbf16>
    %cst_200 = arith.constant dense<0.000000e+00> : vector<16x16xf32>
    %493 = tpu.matmul %490, %491, %cst_200 {dimension_numbers = #tpu.dot_dimension_numbers<[1], [1], [0], [0], [0, 0, 1, 0], [], []>} : vector<16x8xbf16>, vector<16x8xbf16>, vector<16x16xf32> -> vector<16x16xf32>
    %cst_201 = arith.constant dense<0xFF800000> : vector<16xf32>
    %494 = vector.multi_reduction <maximumf>, %493, %cst_201 [1] : vector<16x16xf32> to vector<16xf32>
    %495 = vector.shape_cast %494 : vector<16xf32> to vector<16x1xf32>
    %496 = vector.broadcast %495 : vector<16x1xf32> to vector<16x16xf32>
    %497 = arith.subf %493, %496 : vector<16x16xf32>
    %498 = math.exp %497 : vector<16x16xf32>
    %cst_202 = arith.constant dense<0.000000e+00> : vector<16xf32>
    %499 = vector.multi_reduction <add>, %498, %cst_202 [1] : vector<16x16xf32> to vector<16xf32>
    %500 = vector.shape_cast %499 : vector<16xf32> to vector<16x1xf32>
    %501 = tpu.reciprocal %500 {approx = true} : vector<16x1xf32> -> vector<16x1xf32>
    %502 = vector.broadcast %501 : vector<16x1xf32> to vector<16x16xf32>
    %503 = arith.mulf %498, %502 : vector<16x16xf32>
    %504 = arith.truncf %503 : vector<16x16xf32> to vector<16x16xbf16>
    %cst_203 = arith.constant dense<0.000000e+00> : vector<16x8xf32>
    %505 = tpu.matmul %504, %492, %cst_203 {dimension_numbers = #tpu.dot_dimension_numbers<[1], [0], [0], [1], [0, 0, 1, 1], [], []>} : vector<16x16xbf16>, vector<16x8xbf16>, vector<16x8xf32> -> vector<16x8xf32>
    %506 = vector.extract_strided_slice %487 {offsets = [0, 8], sizes = [16, 8], strides = [1, 1]} : vector<16x32xbf16> to vector<16x8xbf16>
    %507 = vector.extract_strided_slice %488 {offsets = [0, 8], sizes = [16, 8], strides = [1, 1]} : vector<16x32xbf16> to vector<16x8xbf16>
    %508 = vector.extract_strided_slice %489 {offsets = [0, 8], sizes = [16, 8], strides = [1, 1]} : vector<16x32xbf16> to vector<16x8xbf16>
    %cst_204 = arith.constant dense<0.000000e+00> : vector<16x16xf32>
    %509 = tpu.matmul %506, %507, %cst_204 {dimension_numbers = #tpu.dot_dimension_numbers<[1], [1], [0], [0], [0, 0, 1, 0], [], []>} : vector<16x8xbf16>, vector<16x8xbf16>, vector<16x16xf32> -> vector<16x16xf32>
    %cst_205 = arith.constant dense<0xFF800000> : vector<16xf32>
    %510 = vector.multi_reduction <maximumf>, %509, %cst_205 [1] : vector<16x16xf32> to vector<16xf32>
    %511 = vector.shape_cast %510 : vector<16xf32> to vector<16x1xf32>
    %512 = vector.broadcast %511 : vector<16x1xf32> to vector<16x16xf32>
    %513 = arith.subf %509, %512 : vector<16x16xf32>
    %514 = math.exp %513 : vector<16x16xf32>
    %cst_206 = arith.constant dense<0.000000e+00> : vector<16xf32>
    %515 = vector.multi_reduction <add>, %514, %cst_206 [1] : vector<16x16xf32> to vector<16xf32>
    %516 = vector.shape_cast %515 : vector<16xf32> to vector<16x1xf32>
    %517 = tpu.reciprocal %516 {approx = true} : vector<16x1xf32> -> vector<16x1xf32>
    %518 = vector.broadcast %517 : vector<16x1xf32> to vector<16x16xf32>
    %519 = arith.mulf %514, %518 : vector<16x16xf32>
    %520 = arith.truncf %519 : vector<16x16xf32> to vector<16x16xbf16>
    %cst_207 = arith.constant dense<0.000000e+00> : vector<16x8xf32>
    %521 = tpu.matmul %520, %508, %cst_207 {dimension_numbers = #tpu.dot_dimension_numbers<[1], [0], [0], [1], [0, 0, 1, 1], [], []>} : vector<16x16xbf16>, vector<16x8xbf16>, vector<16x8xf32> -> vector<16x8xf32>
    %522 = vector.extract_strided_slice %487 {offsets = [0, 16], sizes = [16, 8], strides = [1, 1]} : vector<16x32xbf16> to vector<16x8xbf16>
    %523 = vector.extract_strided_slice %488 {offsets = [0, 16], sizes = [16, 8], strides = [1, 1]} : vector<16x32xbf16> to vector<16x8xbf16>
    %524 = vector.extract_strided_slice %489 {offsets = [0, 16], sizes = [16, 8], strides = [1, 1]} : vector<16x32xbf16> to vector<16x8xbf16>
    %cst_208 = arith.constant dense<0.000000e+00> : vector<16x16xf32>
    %525 = tpu.matmul %522, %523, %cst_208 {dimension_numbers = #tpu.dot_dimension_numbers<[1], [1], [0], [0], [0, 0, 1, 0], [], []>} : vector<16x8xbf16>, vector<16x8xbf16>, vector<16x16xf32> -> vector<16x16xf32>
    %cst_209 = arith.constant dense<0xFF800000> : vector<16xf32>
    %526 = vector.multi_reduction <maximumf>, %525, %cst_209 [1] : vector<16x16xf32> to vector<16xf32>
    %527 = vector.shape_cast %526 : vector<16xf32> to vector<16x1xf32>
    %528 = vector.broadcast %527 : vector<16x1xf32> to vector<16x16xf32>
    %529 = arith.subf %525, %528 : vector<16x16xf32>
    %530 = math.exp %529 : vector<16x16xf32>
    %cst_210 = arith.constant dense<0.000000e+00> : vector<16xf32>
    %531 = vector.multi_reduction <add>, %530, %cst_210 [1] : vector<16x16xf32> to vector<16xf32>
    %532 = vector.shape_cast %531 : vector<16xf32> to vector<16x1xf32>
    %533 = tpu.reciprocal %532 {approx = true} : vector<16x1xf32> -> vector<16x1xf32>
    %534 = vector.broadcast %533 : vector<16x1xf32> to vector<16x16xf32>
    %535 = arith.mulf %530, %534 : vector<16x16xf32>
    %536 = arith.truncf %535 : vector<16x16xf32> to vector<16x16xbf16>
    %cst_211 = arith.constant dense<0.000000e+00> : vector<16x8xf32>
    %537 = tpu.matmul %536, %524, %cst_211 {dimension_numbers = #tpu.dot_dimension_numbers<[1], [0], [0], [1], [0, 0, 1, 1], [], []>} : vector<16x16xbf16>, vector<16x8xbf16>, vector<16x8xf32> -> vector<16x8xf32>
    %538 = vector.extract_strided_slice %487 {offsets = [0, 24], sizes = [16, 8], strides = [1, 1]} : vector<16x32xbf16> to vector<16x8xbf16>
    %539 = vector.extract_strided_slice %488 {offsets = [0, 24], sizes = [16, 8], strides = [1, 1]} : vector<16x32xbf16> to vector<16x8xbf16>
    %540 = vector.extract_strided_slice %489 {offsets = [0, 24], sizes = [16, 8], strides = [1, 1]} : vector<16x32xbf16> to vector<16x8xbf16>
    %cst_212 = arith.constant dense<0.000000e+00> : vector<16x16xf32>
    %541 = tpu.matmul %538, %539, %cst_212 {dimension_numbers = #tpu.dot_dimension_numbers<[1], [1], [0], [0], [0, 0, 1, 0], [], []>} : vector<16x8xbf16>, vector<16x8xbf16>, vector<16x16xf32> -> vector<16x16xf32>
    %cst_213 = arith.constant dense<0xFF800000> : vector<16xf32>
    %542 = vector.multi_reduction <maximumf>, %541, %cst_213 [1] : vector<16x16xf32> to vector<16xf32>
    %543 = vector.shape_cast %542 : vector<16xf32> to vector<16x1xf32>
    %544 = vector.broadcast %543 : vector<16x1xf32> to vector<16x16xf32>
    %545 = arith.subf %541, %544 : vector<16x16xf32>
    %546 = math.exp %545 : vector<16x16xf32>
    %cst_214 = arith.constant dense<0.000000e+00> : vector<16xf32>
    %547 = vector.multi_reduction <add>, %546, %cst_214 [1] : vector<16x16xf32> to vector<16xf32>
    %548 = vector.shape_cast %547 : vector<16xf32> to vector<16x1xf32>
    %549 = tpu.reciprocal %548 {approx = true} : vector<16x1xf32> -> vector<16x1xf32>
    %550 = vector.broadcast %549 : vector<16x1xf32> to vector<16x16xf32>
    %551 = arith.mulf %546, %550 : vector<16x16xf32>
    %552 = arith.truncf %551 : vector<16x16xf32> to vector<16x16xbf16>
    %cst_215 = arith.constant dense<0.000000e+00> : vector<16x8xf32>
    %553 = tpu.matmul %552, %540, %cst_215 {dimension_numbers = #tpu.dot_dimension_numbers<[1], [0], [0], [1], [0, 0, 1, 1], [], []>} : vector<16x16xbf16>, vector<16x8xbf16>, vector<16x8xf32> -> vector<16x8xf32>
    %554 = tpu.concatenate %505, %521, %537, %553 in 1 : vector<16x8xf32>, vector<16x8xf32>, vector<16x8xf32>, vector<16x8xf32> -> vector<16x32xf32>
    %555 = arith.truncf %554 : vector<16x32xf32> to vector<16x32xbf16>
    %cst_216 = arith.constant dense<0.000000e+00> : vector<16x32xf32>
    %556 = tpu.matmul %555, %484, %cst_216 {dimension_numbers = #tpu.dot_dimension_numbers<[1], [0], [0], [1], [0, 0, 1, 1], [], []>} : vector<16x32xbf16>, vector<32x32xbf16>, vector<16x32xf32> -> vector<16x32xf32>
    %557 = vector.broadcast %486 : vector<1x32xf32> to vector<16x32xf32>
    %558 = arith.addf %556, %557 : vector<16x32xf32>
    %559 = arith.addf %465, %558 : vector<16x32xf32>
    %560 = vector.extract_strided_slice %344 {offsets = [2, 0], sizes = [1, 32], strides = [1, 1]} : vector<6x32xf32> to vector<1x32xf32>
    %561 = vector.extract_strided_slice %344 {offsets = [3, 0], sizes = [1, 32], strides = [1, 1]} : vector<6x32xf32> to vector<1x32xf32>
    %cst_217 = arith.constant dense<0.000000e+00> : vector<16xf32>
    %562 = vector.multi_reduction <add>, %559, %cst_217 [1] : vector<16x32xf32> to vector<16xf32>
    %563 = vector.shape_cast %562 : vector<16xf32> to vector<16x1xf32>
    %cst_218 = arith.constant 3.200000e+01 : f32
    %564 = vector.broadcast %cst_218 : f32 to vector<16x1xf32>
    %565 = arith.divf %563, %564 : vector<16x1xf32>
    %566 = vector.broadcast %565 : vector<16x1xf32> to vector<16x32xf32>
    %567 = arith.subf %559, %566 : vector<16x32xf32>
    %568 = arith.mulf %567, %567 : vector<16x32xf32>
    %cst_219 = arith.constant dense<0.000000e+00> : vector<16xf32>
    %569 = vector.multi_reduction <add>, %568, %cst_219 [1] : vector<16x32xf32> to vector<16xf32>
    %570 = vector.shape_cast %569 : vector<16xf32> to vector<16x1xf32>
    %cst_220 = arith.constant 3.200000e+01 : f32
    %571 = vector.broadcast %cst_220 : f32 to vector<16x1xf32>
    %572 = arith.divf %570, %571 : vector<16x1xf32>
    %cst_221 = arith.constant 9.99999974E-6 : f32
    %573 = vector.broadcast %cst_221 : f32 to vector<16x1xf32>
    %574 = arith.addf %572, %573 : vector<16x1xf32>
    %575 = math.rsqrt %574 : vector<16x1xf32>
    %576 = vector.broadcast %575 : vector<16x1xf32> to vector<16x32xf32>
    %577 = arith.mulf %567, %576 : vector<16x32xf32>
    %578 = vector.broadcast %560 : vector<1x32xf32> to vector<16x32xf32>
    %579 = arith.mulf %577, %578 : vector<16x32xf32>
    %580 = vector.broadcast %561 : vector<1x32xf32> to vector<16x32xf32>
    %581 = arith.addf %579, %580 : vector<16x32xf32>
    %582 = arith.truncf %581 : vector<16x32xf32> to vector<16x32xbf16>
    %c0_222 = arith.constant 0 : index
    %c0_223 = arith.constant 0 : index
    %c0_224 = arith.constant 0 : index
    %583 = vector.load %arg27[%c0_222, %c0_223, %c0_224] : memref<1x32x64xbf16, #tpu.memory_space<vmem>>, vector<1x32x64xbf16>
    %584 = vector.shape_cast %583 : vector<1x32x64xbf16> to vector<32x64xbf16>
    %cst_225 = arith.constant dense<0.000000e+00> : vector<16x64xf32>
    %585 = tpu.matmul %582, %584, %cst_225 {dimension_numbers = #tpu.dot_dimension_numbers<[1], [0], [0], [1], [0, 0, 1, 1], [], []>} : vector<16x32xbf16>, vector<32x64xbf16>, vector<16x64xf32> -> vector<16x64xf32>
    %c0_226 = arith.constant 0 : index
    %c0_227 = arith.constant 0 : index
    %c0_228 = arith.constant 0 : index
    %586 = vector.load %arg28[%c0_226, %c0_227, %c0_228] : memref<1x1x64xf32, #tpu.memory_space<vmem>>, vector<1x1x64xf32>
    %587 = vector.shape_cast %586 : vector<1x1x64xf32> to vector<1x64xf32>
    %588 = vector.broadcast %587 : vector<1x64xf32> to vector<16x64xf32>
    %589 = arith.addf %585, %588 : vector<16x64xf32>
    %cst_229 = arith.constant 0.000000e+00 : f32
    %590 = vector.broadcast %cst_229 : f32 to vector<16x64xf32>
    %591 = arith.maximumf %589, %590 : vector<16x64xf32>
    %592 = arith.truncf %591 : vector<16x64xf32> to vector<16x64xbf16>
    %c0_230 = arith.constant 0 : index
    %c0_231 = arith.constant 0 : index
    %c0_232 = arith.constant 0 : index
    %593 = vector.load %arg29[%c0_230, %c0_231, %c0_232] : memref<1x64x32xbf16, #tpu.memory_space<vmem>>, vector<1x64x32xbf16>
    %594 = vector.shape_cast %593 : vector<1x64x32xbf16> to vector<64x32xbf16>
    %cst_233 = arith.constant dense<0.000000e+00> : vector<16x32xf32>
    %595 = tpu.matmul %592, %594, %cst_233 {dimension_numbers = #tpu.dot_dimension_numbers<[1], [0], [0], [1], [0, 0, 1, 1], [], []>} : vector<16x64xbf16>, vector<64x32xbf16>, vector<16x32xf32> -> vector<16x32xf32>
    %c0_234 = arith.constant 0 : index
    %c0_235 = arith.constant 0 : index
    %c0_236 = arith.constant 0 : index
    %596 = vector.load %arg30[%c0_234, %c0_235, %c0_236] : memref<1x1x32xf32, #tpu.memory_space<vmem>>, vector<1x1x32xf32>
    %597 = vector.shape_cast %596 : vector<1x1x32xf32> to vector<1x32xf32>
    %598 = vector.broadcast %597 : vector<1x32xf32> to vector<16x32xf32>
    %599 = arith.addf %595, %598 : vector<16x32xf32>
    %600 = arith.addf %581, %599 : vector<16x32xf32>
    %601 = vector.extract_strided_slice %344 {offsets = [4, 0], sizes = [1, 32], strides = [1, 1]} : vector<6x32xf32> to vector<1x32xf32>
    %602 = vector.extract_strided_slice %344 {offsets = [5, 0], sizes = [1, 32], strides = [1, 1]} : vector<6x32xf32> to vector<1x32xf32>
    %cst_237 = arith.constant dense<0.000000e+00> : vector<16xf32>
    %603 = vector.multi_reduction <add>, %600, %cst_237 [1] : vector<16x32xf32> to vector<16xf32>
    %604 = vector.shape_cast %603 : vector<16xf32> to vector<16x1xf32>
    %cst_238 = arith.constant 3.200000e+01 : f32
    %605 = vector.broadcast %cst_238 : f32 to vector<16x1xf32>
    %606 = arith.divf %604, %605 : vector<16x1xf32>
    %607 = vector.broadcast %606 : vector<16x1xf32> to vector<16x32xf32>
    %608 = arith.subf %600, %607 : vector<16x32xf32>
    %609 = arith.mulf %608, %608 : vector<16x32xf32>
    %cst_239 = arith.constant dense<0.000000e+00> : vector<16xf32>
    %610 = vector.multi_reduction <add>, %609, %cst_239 [1] : vector<16x32xf32> to vector<16xf32>
    %611 = vector.shape_cast %610 : vector<16xf32> to vector<16x1xf32>
    %cst_240 = arith.constant 3.200000e+01 : f32
    %612 = vector.broadcast %cst_240 : f32 to vector<16x1xf32>
    %613 = arith.divf %611, %612 : vector<16x1xf32>
    %cst_241 = arith.constant 9.99999974E-6 : f32
    %614 = vector.broadcast %cst_241 : f32 to vector<16x1xf32>
    %615 = arith.addf %613, %614 : vector<16x1xf32>
    %616 = math.rsqrt %615 : vector<16x1xf32>
    %617 = vector.broadcast %616 : vector<16x1xf32> to vector<16x32xf32>
    %618 = arith.mulf %608, %617 : vector<16x32xf32>
    %619 = vector.broadcast %601 : vector<1x32xf32> to vector<16x32xf32>
    %620 = arith.mulf %618, %619 : vector<16x32xf32>
    %621 = vector.broadcast %602 : vector<1x32xf32> to vector<16x32xf32>
    %622 = arith.addf %620, %621 : vector<16x32xf32>
    %623 = vector.extract_strided_slice %622 {offsets = [8, 0], sizes = [8, 32], strides = [1, 1]} : vector<16x32xf32> to vector<8x32xf32>
    %c0_242 = arith.constant 0 : index
    %c0_243 = arith.constant 0 : index
    %624 = vector.load %arg32[%c0_242, %c0_243] : memref<2x32xf32, #tpu.memory_space<vmem>>, vector<1x32xf32>
    %c1_244 = arith.constant 1 : index
    %c0_245 = arith.constant 0 : index
    %625 = vector.load %arg32[%c1_244, %c0_245] : memref<2x32xf32, #tpu.memory_space<vmem>>, vector<1x32xf32>
    %cst_246 = arith.constant dense<0.000000e+00> : vector<8xf32>
    %626 = vector.multi_reduction <add>, %623, %cst_246 [1] : vector<8x32xf32> to vector<8xf32>
    %627 = vector.shape_cast %626 : vector<8xf32> to vector<8x1xf32>
    %cst_247 = arith.constant 3.200000e+01 : f32
    %628 = vector.broadcast %cst_247 : f32 to vector<8x1xf32>
    %629 = arith.divf %627, %628 : vector<8x1xf32>
    %630 = vector.broadcast %629 : vector<8x1xf32> to vector<8x32xf32>
    %631 = arith.subf %623, %630 : vector<8x32xf32>
    %632 = arith.mulf %631, %631 : vector<8x32xf32>
    %cst_248 = arith.constant dense<0.000000e+00> : vector<8xf32>
    %633 = vector.multi_reduction <add>, %632, %cst_248 [1] : vector<8x32xf32> to vector<8xf32>
    %634 = vector.shape_cast %633 : vector<8xf32> to vector<8x1xf32>
    %cst_249 = arith.constant 3.200000e+01 : f32
    %635 = vector.broadcast %cst_249 : f32 to vector<8x1xf32>
    %636 = arith.divf %634, %635 : vector<8x1xf32>
    %cst_250 = arith.constant 9.99999974E-6 : f32
    %637 = vector.broadcast %cst_250 : f32 to vector<8x1xf32>
    %638 = arith.addf %636, %637 : vector<8x1xf32>
    %639 = math.rsqrt %638 : vector<8x1xf32>
    %640 = vector.broadcast %639 : vector<8x1xf32> to vector<8x32xf32>
    %641 = arith.mulf %631, %640 : vector<8x32xf32>
    %642 = vector.broadcast %624 : vector<1x32xf32> to vector<8x32xf32>
    %643 = arith.mulf %641, %642 : vector<8x32xf32>
    %644 = vector.broadcast %625 : vector<1x32xf32> to vector<8x32xf32>
    %645 = arith.addf %643, %644 : vector<8x32xf32>
    %646 = arith.truncf %645 : vector<8x32xf32> to vector<8x32xbf16>
    %c0_251 = arith.constant 0 : index
    %c0_252 = arith.constant 0 : index
    %647 = vector.load %arg33[%c0_251, %c0_252] : memref<32x4xbf16, #tpu.memory_space<vmem>>, vector<32x4xbf16>
    %cst_253 = arith.constant dense<0.000000e+00> : vector<8x4xf32>
    %648 = tpu.matmul %646, %647, %cst_253 {dimension_numbers = #tpu.dot_dimension_numbers<[1], [0], [0], [1], [0, 0, 1, 1], [], []>} : vector<8x32xbf16>, vector<32x4xbf16>, vector<8x4xf32> -> vector<8x4xf32>
    %c0_254 = arith.constant 0 : index
    %c0_255 = arith.constant 0 : index
    %649 = vector.load %arg34[%c0_254, %c0_255] : memref<1x4xf32, #tpu.memory_space<vmem>>, vector<1x4xf32>
    %650 = vector.broadcast %649 : vector<1x4xf32> to vector<8x4xf32>
    %651 = arith.addf %648, %650 : vector<8x4xf32>
    %c0_256 = arith.constant 0 : index
    %c0_257 = arith.constant 0 : index
    %c0_258 = arith.constant 0 : index
    %652 = vector.load %arg35[%c0_256, %c0_257, %c0_258] : memref<1x8x4xf32, #tpu.memory_space<vmem>>, vector<1x8x4xf32>
    %653 = vector.shape_cast %652 : vector<1x8x4xf32> to vector<8x4xf32>
    %654 = vector.shape_cast %651 : vector<8x4xf32> to vector<1x8x4xf32>
    tpu.vector_store %arg35[%c0_256, %c0_257, %c0_258], %654 {strides = array<i32>} : memref<1x8x4xf32, #tpu.memory_space<vmem>>, vector<1x8x4xf32>,
    return
  }
  func.func @transform_0(%arg0: i32) -> (i32, i32, i32) {
    %c0_i32 = arith.constant 0 : i32
    %c0_i32_0 = arith.constant 0 : i32
    %c0_i32_1 = arith.constant 0 : i32
    return %arg0, %c0_i32, %c0_i32_0 : i32, i32, i32
  }
  func.func @transform_1(%arg0: i32) -> (i32, i32, i32) {
    %c0_i32 = arith.constant 0 : i32
    %c0_i32_0 = arith.constant 0 : i32
    %c0_i32_1 = arith.constant 0 : i32
    return %arg0, %c0_i32, %c0_i32_0 : i32, i32, i32
  }
  func.func @transform_2(%arg0: i32) -> (i32, i32) {
    %c0_i32 = arith.constant 0 : i32
    %c0_i32_0 = arith.constant 0 : i32
    %c0_i32_1 = arith.constant 0 : i32
    return %c0_i32, %c0_i32_0 : i32, i32
  }
  func.func @transform_3(%arg0: i32) -> (i32, i32) {
    %c0_i32 = arith.constant 0 : i32
    %c0_i32_0 = arith.constant 0 : i32
    %c0_i32_1 = arith.constant 0 : i32
    return %c0_i32, %c0_i32_0 : i32, i32
  }
  func.func @transform_4(%arg0: i32) -> (i32, i32) {
    %c0_i32 = arith.constant 0 : i32
    %c0_i32_0 = arith.constant 0 : i32
    %c0_i32_1 = arith.constant 0 : i32
    return %c0_i32, %c0_i32_0 : i32, i32
  }
  func.func @transform_5(%arg0: i32) -> (i32, i32) {
    %c0_i32 = arith.constant 0 : i32
    %c0_i32_0 = arith.constant 0 : i32
    %c0_i32_1 = arith.constant 0 : i32
    return %c0_i32, %c0_i32_0 : i32, i32
  }
  func.func @transform_6(%arg0: i32) -> (i32, i32, i32) {
    %c0_i32 = arith.constant 0 : i32
    %c0_i32_0 = arith.constant 0 : i32
    %c0_i32_1 = arith.constant 0 : i32
    %c0_i32_2 = arith.constant 0 : i32
    return %c0_i32, %c0_i32_0, %c0_i32_1 : i32, i32, i32
  }
  func.func @transform_7(%arg0: i32) -> (i32, i32, i32) {
    %c0_i32 = arith.constant 0 : i32
    %c0_i32_0 = arith.constant 0 : i32
    %c0_i32_1 = arith.constant 0 : i32
    %c0_i32_2 = arith.constant 0 : i32
    return %c0_i32, %c0_i32_0, %c0_i32_1 : i32, i32, i32
  }
  func.func @transform_8(%arg0: i32) -> (i32, i32, i32) {
    %c0_i32 = arith.constant 0 : i32
    %c0_i32_0 = arith.constant 0 : i32
    %c0_i32_1 = arith.constant 0 : i32
    %c0_i32_2 = arith.constant 0 : i32
    return %c0_i32, %c0_i32_0, %c0_i32_1 : i32, i32, i32
  }
  func.func @transform_9(%arg0: i32) -> (i32, i32, i32) {
    %c0_i32 = arith.constant 0 : i32
    %c0_i32_0 = arith.constant 0 : i32
    %c0_i32_1 = arith.constant 0 : i32
    %c0_i32_2 = arith.constant 0 : i32
    return %c0_i32, %c0_i32_0, %c0_i32_1 : i32, i32, i32
  }
  func.func @transform_10(%arg0: i32) -> (i32, i32, i32) {
    %c0_i32 = arith.constant 0 : i32
    %c0_i32_0 = arith.constant 0 : i32
    %c0_i32_1 = arith.constant 0 : i32
    %c0_i32_2 = arith.constant 0 : i32
    return %c0_i32, %c0_i32_0, %c0_i32_1 : i32, i32, i32
  }
  func.func @transform_11(%arg0: i32) -> (i32, i32, i32) {
    %c0_i32 = arith.constant 0 : i32
    %c0_i32_0 = arith.constant 0 : i32
    %c0_i32_1 = arith.constant 0 : i32
    %c0_i32_2 = arith.constant 0 : i32
    return %c0_i32, %c0_i32_0, %c0_i32_1 : i32, i32, i32
  }
  func.func @transform_12(%arg0: i32) -> (i32, i32, i32) {
    %c0_i32 = arith.constant 0 : i32
    %c0_i32_0 = arith.constant 0 : i32
    %c0_i32_1 = arith.constant 0 : i32
    %c0_i32_2 = arith.constant 0 : i32
    return %c0_i32, %c0_i32_0, %c0_i32_1 : i32, i32, i32
  }
  func.func @transform_13(%arg0: i32) -> (i32, i32, i32) {
    %c0_i32 = arith.constant 0 : i32
    %c0_i32_0 = arith.constant 0 : i32
    %c0_i32_1 = arith.constant 0 : i32
    %c0_i32_2 = arith.constant 0 : i32
    return %c0_i32, %c0_i32_0, %c0_i32_1 : i32, i32, i32
  }
  func.func @transform_14(%arg0: i32) -> (i32, i32, i32) {
    %c0_i32 = arith.constant 0 : i32
    %c0_i32_0 = arith.constant 0 : i32
    %c0_i32_1 = arith.constant 0 : i32
    %c0_i32_2 = arith.constant 0 : i32
    return %c0_i32, %c0_i32_0, %c0_i32_1 : i32, i32, i32
  }
  func.func @transform_15(%arg0: i32) -> (i32, i32) {
    %c0_i32 = arith.constant 0 : i32
    %c0_i32_0 = arith.constant 0 : i32
    %c0_i32_1 = arith.constant 0 : i32
    return %c0_i32, %c0_i32_0 : i32, i32
  }
  func.func @transform_16(%arg0: i32) -> (i32, i32, i32) {
    %c0_i32 = arith.constant 0 : i32
    %c0_i32_0 = arith.constant 0 : i32
    %c0_i32_1 = arith.constant 0 : i32
    %c0_i32_2 = arith.constant 0 : i32
    return %c0_i32, %c0_i32_0, %c0_i32_1 : i32, i32, i32
  }
  func.func @transform_17(%arg0: i32) -> (i32, i32, i32) {
    %c0_i32 = arith.constant 0 : i32
    %c0_i32_0 = arith.constant 0 : i32
    %c0_i32_1 = arith.constant 0 : i32
    %c0_i32_2 = arith.constant 0 : i32
    return %c0_i32, %c0_i32_0, %c0_i32_1 : i32, i32, i32
  }
  func.func @transform_18(%arg0: i32) -> (i32, i32, i32) {
    %c0_i32 = arith.constant 0 : i32
    %c0_i32_0 = arith.constant 0 : i32
    %c0_i32_1 = arith.constant 0 : i32
    %c0_i32_2 = arith.constant 0 : i32
    return %c0_i32, %c0_i32_0, %c0_i32_1 : i32, i32, i32
  }
  func.func @transform_19(%arg0: i32) -> (i32, i32, i32) {
    %c0_i32 = arith.constant 0 : i32
    %c0_i32_0 = arith.constant 0 : i32
    %c0_i32_1 = arith.constant 0 : i32
    %c0_i32_2 = arith.constant 0 : i32
    return %c0_i32, %c0_i32_0, %c0_i32_1 : i32, i32, i32
  }
  func.func @transform_20(%arg0: i32) -> (i32, i32, i32) {
    %c0_i32 = arith.constant 0 : i32
    %c0_i32_0 = arith.constant 0 : i32
    %c0_i32_1 = arith.constant 0 : i32
    %c0_i32_2 = arith.constant 0 : i32
    return %c0_i32, %c0_i32_0, %c0_i32_1 : i32, i32, i32
  }
  func.func @transform_21(%arg0: i32) -> (i32, i32, i32) {
    %c0_i32 = arith.constant 0 : i32
    %c0_i32_0 = arith.constant 0 : i32
    %c0_i32_1 = arith.constant 0 : i32
    %c0_i32_2 = arith.constant 0 : i32
    return %c0_i32, %c0_i32_0, %c0_i32_1 : i32, i32, i32
  }
  func.func @transform_22(%arg0: i32) -> (i32, i32, i32) {
    %c0_i32 = arith.constant 0 : i32
    %c0_i32_0 = arith.constant 0 : i32
    %c0_i32_1 = arith.constant 0 : i32
    %c0_i32_2 = arith.constant 0 : i32
    return %c0_i32, %c0_i32_0, %c0_i32_1 : i32, i32, i32
  }
  func.func @transform_23(%arg0: i32) -> (i32, i32, i32) {
    %c0_i32 = arith.constant 0 : i32
    %c0_i32_0 = arith.constant 0 : i32
    %c0_i32_1 = arith.constant 0 : i32
    %c0_i32_2 = arith.constant 0 : i32
    return %c0_i32, %c0_i32_0, %c0_i32_1 : i32, i32, i32
  }
  func.func @transform_24(%arg0: i32) -> (i32, i32, i32) {
    %c0_i32 = arith.constant 0 : i32
    %c0_i32_0 = arith.constant 0 : i32
    %c0_i32_1 = arith.constant 0 : i32
    %c0_i32_2 = arith.constant 0 : i32
    return %c0_i32, %c0_i32_0, %c0_i32_1 : i32, i32, i32
  }
  func.func @transform_25(%arg0: i32) -> (i32, i32, i32) {
    %c0_i32 = arith.constant 0 : i32
    %c0_i32_0 = arith.constant 0 : i32
    %c0_i32_1 = arith.constant 0 : i32
    %c0_i32_2 = arith.constant 0 : i32
    return %c0_i32, %c0_i32_0, %c0_i32_1 : i32, i32, i32
  }
  func.func @transform_26(%arg0: i32) -> (i32, i32, i32) {
    %c0_i32 = arith.constant 0 : i32
    %c0_i32_0 = arith.constant 0 : i32
    %c0_i32_1 = arith.constant 0 : i32
    %c0_i32_2 = arith.constant 0 : i32
    return %c0_i32, %c0_i32_0, %c0_i32_1 : i32, i32, i32
  }
  func.func @transform_27(%arg0: i32) -> (i32, i32, i32) {
    %c0_i32 = arith.constant 0 : i32
    %c0_i32_0 = arith.constant 0 : i32
    %c0_i32_1 = arith.constant 0 : i32
    %c0_i32_2 = arith.constant 0 : i32
    return %c0_i32, %c0_i32_0, %c0_i32_1 : i32, i32, i32
  }
  func.func @transform_28(%arg0: i32) -> (i32, i32, i32) {
    %c0_i32 = arith.constant 0 : i32
    %c0_i32_0 = arith.constant 0 : i32
    %c0_i32_1 = arith.constant 0 : i32
    %c0_i32_2 = arith.constant 0 : i32
    return %c0_i32, %c0_i32_0, %c0_i32_1 : i32, i32, i32
  }
  func.func @transform_29(%arg0: i32) -> (i32, i32, i32) {
    %c0_i32 = arith.constant 0 : i32
    %c0_i32_0 = arith.constant 0 : i32
    %c0_i32_1 = arith.constant 0 : i32
    %c0_i32_2 = arith.constant 0 : i32
    return %c0_i32, %c0_i32_0, %c0_i32_1 : i32, i32, i32
  }
  func.func @transform_30(%arg0: i32) -> (i32, i32, i32) {
    %c0_i32 = arith.constant 0 : i32
    %c0_i32_0 = arith.constant 0 : i32
    %c0_i32_1 = arith.constant 0 : i32
    %c0_i32_2 = arith.constant 0 : i32
    return %c0_i32, %c0_i32_0, %c0_i32_1 : i32, i32, i32
  }
  func.func @transform_31(%arg0: i32) -> (i32, i32) {
    %c0_i32 = arith.constant 0 : i32
    %c0_i32_0 = arith.constant 0 : i32
    %c0_i32_1 = arith.constant 0 : i32
    return %c0_i32, %c0_i32_0 : i32, i32
  }
  func.func @transform_32(%arg0: i32) -> (i32, i32) {
    %c0_i32 = arith.constant 0 : i32
    %c0_i32_0 = arith.constant 0 : i32
    %c0_i32_1 = arith.constant 0 : i32
    return %c0_i32, %c0_i32_0 : i32, i32
  }
  func.func @transform_33(%arg0: i32) -> (i32, i32) {
    %c0_i32 = arith.constant 0 : i32
    %c0_i32_0 = arith.constant 0 : i32
    %c0_i32_1 = arith.constant 0 : i32
    return %c0_i32, %c0_i32_0 : i32, i32
  }
  func.func @transform_34(%arg0: i32) -> (i32, i32, i32) {
    %c0_i32 = arith.constant 0 : i32
    %c0_i32_0 = arith.constant 0 : i32
    %c0_i32_1 = arith.constant 0 : i32
    return %arg0, %c0_i32, %c0_i32_0 : i32, i32, i32
  }
}

</mosaic_0001>

<llo_original>
// kernel: model_forward.1
$region0: #{model_forward.1}
  #allocation0 [shape = 'u32[]', space=smem, size = 0x4, offset = 0x4, fixed_abs, tag = 'smem constant byte address 0x4 - core index']
  #allocation1 [shape = 'u32[144,128]{1,0:T(1,128)}', space=vmem, size = 0x12000, scoped, tag = 'internal scratch']
  %s0 = inlined_call_operand.smem [shape: u32[35], index: -1, kind: input, shape index: {}]
  %s1 = sld [smem:[%s0]]
  %s2 = scalar_lea.smem %s0, 1
  %s3 = sld [smem:[%s2]]
  %s4 = scalar_lea.smem %s0, 2
  %s5 = sld [smem:[%s4]]
  %s6 = scalar_lea.smem %s0, 3
  %s7 = sld [smem:[%s6]]
  %s8 = scalar_lea.smem %s0, 4
  %s9 = sld [smem:[%s8]]
  %s10 = scalar_lea.smem %s0, 5
  %s11 = sld [smem:[%s10]]
  %s12 = scalar_lea.smem %s0, 6
  %s13 = sld [smem:[%s12]]
  %s14 = scalar_lea.smem %s0, 7
  %s15 = sld [smem:[%s14]]
  %s16 = scalar_lea.smem %s0, 8
  %s17 = sld [smem:[%s16]]
  %s18 = scalar_lea.smem %s0, 9
  %s19 = sld [smem:[%s18]]
  %s20 = scalar_lea.smem %s0, 10
  %s21 = sld [smem:[%s20]]
  %s22 = scalar_lea.smem %s0, 11
  %s23 = sld [smem:[%s22]]
  %s24 = scalar_lea.smem %s0, 12
  %s25 = sld [smem:[%s24]]
  %s26 = scalar_lea.smem %s0, 13
  %s27 = sld [smem:[%s26]]
  %s28 = scalar_lea.smem %s0, 14
  %s29 = sld [smem:[%s28]]
  %s30 = scalar_lea.smem %s0, 15
  %s31 = sld [smem:[%s30]]
  %s32 = scalar_lea.smem %s0, 16
  %s33 = sld [smem:[%s32]]
  %s34 = scalar_lea.smem %s0, 17
  %s35 = sld [smem:[%s34]]
  %s36 = scalar_lea.smem %s0, 18
  %s37 = sld [smem:[%s36]]
  %s38 = scalar_lea.smem %s0, 19
  %s39 = sld [smem:[%s38]]
  %s40 = scalar_lea.smem %s0, 20
  %s41 = sld [smem:[%s40]]
  %s42 = scalar_lea.smem %s0, 21
  %s43 = sld [smem:[%s42]]
  %s44 = scalar_lea.smem %s0, 22
  %s45 = sld [smem:[%s44]]
  %s46 = scalar_lea.smem %s0, 23
  %s47 = sld [smem:[%s46]]
  %s48 = scalar_lea.smem %s0, 24
  %s49 = sld [smem:[%s48]]
  %s50 = scalar_lea.smem %s0, 25
  %s51 = sld [smem:[%s50]]
  %s52 = scalar_lea.smem %s0, 26
  %s53 = sld [smem:[%s52]]
  %s54 = scalar_lea.smem %s0, 27
  %s55 = sld [smem:[%s54]]
  %s56 = scalar_lea.smem %s0, 28
  %s57 = sld [smem:[%s56]]
  %s58 = scalar_lea.smem %s0, 29
  %s59 = sld [smem:[%s58]]
  %s60 = scalar_lea.smem %s0, 30
  %s61 = sld [smem:[%s60]]
  %s62 = scalar_lea.smem %s0, 31
  %s63 = sld [smem:[%s62]]
  %s64 = scalar_lea.smem %s0, 32
  %s65 = sld [smem:[%s64]]
  %s66 = scalar_lea.smem %s0, 33
  %s67 = sld [smem:[%s66]]
  %s68 = scalar_lea.smem %s0, 34
  %s69 = sld [smem:[%s68]]
  %s70 = sld [smem:[#allocation0]]
  $region169: #{model_forward.1} parent=0
    _
  %s72 = ssub.s32 1, %s70
  %s73 = scalar_select 0, %s72, %s70
  loop: start=0, step=1, limit=4
  $region2: #{model_forward.1} parent=0 // loop_pre_header
    _
  $region3: #{model_forward.1} parent=0 // loop_header
    %s75 = sphi 0, %s79
    %p76 = scmp.ge.s32.totalorder %s75, 4
    %s85 = sphi 0, %s87
    %s88 = sphi 0, %s85
    %s89 = sphi 0, %s88
    %s105 = sphi 0, %s89
    %s111 = sphi 0, %s113
    %s114 = sphi 0, %s111
    %s115 = sphi 0, %s114
    %s131 = sphi 0, %s115
    %s135 = sphi 0, %s135
    %s137 = sphi 0, %s135
    %s138 = sphi 0, %s137
    %s152 = sphi 0, %s138
    %s156 = sphi 0, %s156
    %s158 = sphi 0, %s156
    %s159 = sphi 0, %s158
    %s173 = sphi 0, %s159
    %s177 = sphi 0, %s177
    %s179 = sphi 0, %s177
    %s180 = sphi 0, %s179
    %s194 = sphi 0, %s180
    %s198 = sphi 0, %s198
    %s200 = sphi 0, %s198
    %s201 = sphi 0, %s200
    %s215 = sphi 0, %s201
    %s219 = sphi 0, %s219
    %s221 = sphi 0, %s219
    %s222 = sphi 0, %s221
    %s236 = sphi 0, %s222
    %s240 = sphi 0, %s240
    %s242 = sphi 0, %s240
    %s243 = sphi 0, %s242
    %s257 = sphi 0, %s243
    %s261 = sphi 0, %s261
    %s263 = sphi 0, %s261
    %s264 = sphi 0, %s263
    %s278 = sphi 0, %s264
    %s282 = sphi 0, %s282
    %s284 = sphi 0, %s282
    %s285 = sphi 0, %s284
    %s299 = sphi 0, %s285
    %s303 = sphi 0, %s303
    %s305 = sphi 0, %s303
    %s306 = sphi 0, %s305
    %s320 = sphi 0, %s306
    %s324 = sphi 0, %s324
    %s326 = sphi 0, %s324
    %s327 = sphi 0, %s326
    %s341 = sphi 0, %s327
    %s345 = sphi 0, %s345
    %s347 = sphi 0, %s345
    %s348 = sphi 0, %s347
    %s362 = sphi 0, %s348
    %s366 = sphi 0, %s366
    %s368 = sphi 0, %s366
    %s369 = sphi 0, %s368
    %s383 = sphi 0, %s369
    %s387 = sphi 0, %s387
    %s389 = sphi 0, %s387
    %s390 = sphi 0, %s389
    %s404 = sphi 0, %s390
    %s408 = sphi 0, %s408
    %s410 = sphi 0, %s408
    %s411 = sphi 0, %s410
    %s425 = sphi 0, %s411
    %s429 = sphi 0, %s429
    %s431 = sphi 0, %s429
    %s432 = sphi 0, %s431
    %s446 = sphi 0, %s432
    %s450 = sphi 0, %s450
    %s452 = sphi 0, %s450
    %s453 = sphi 0, %s452
    %s467 = sphi 0, %s453
    %s471 = sphi 0, %s471
    %s473 = sphi 0, %s471
    %s474 = sphi 0, %s473
    %s488 = sphi 0, %s474
    %s492 = sphi 0, %s492
    %s494 = sphi 0, %s492
    %s495 = sphi 0, %s494
    %s509 = sphi 0, %s495
    %s513 = sphi 0, %s513
    %s515 = sphi 0, %s513
    %s516 = sphi 0, %s515
    %s530 = sphi 0, %s516
    %s534 = sphi 0, %s534
    %s536 = sphi 0, %s534
    %s537 = sphi 0, %s536
    %s551 = sphi 0, %s537
    %s555 = sphi 0, %s555
    %s557 = sphi 0, %s555
    %s558 = sphi 0, %s557
    %s572 = sphi 0, %s558
    %s576 = sphi 0, %s576
    %s578 = sphi 0, %s576
    %s579 = sphi 0, %s578
    %s593 = sphi 0, %s579
    %s597 = sphi 0, %s597
    %s599 = sphi 0, %s597
    %s600 = sphi 0, %s599
    %s614 = sphi 0, %s600
    %s618 = sphi 0, %s618
    %s620 = sphi 0, %s618
    %s621 = sphi 0, %s620
    %s635 = sphi 0, %s621
    %s639 = sphi 0, %s639
    %s641 = sphi 0, %s639
    %s642 = sphi 0, %s641
    %s656 = sphi 0, %s642
    %s660 = sphi 0, %s660
    %s662 = sphi 0, %s660
    %s663 = sphi 0, %s662
    %s677 = sphi 0, %s663
    %s681 = sphi 0, %s681
    %s683 = sphi 0, %s681
    %s684 = sphi 0, %s683
    %s698 = sphi 0, %s684
    %s702 = sphi 0, %s702
    %s704 = sphi 0, %s702
    %s705 = sphi 0, %s704
    %s719 = sphi 0, %s705
    %s723 = sphi 0, %s723
    %s725 = sphi 0, %s723
    %s726 = sphi 0, %s725
    %s740 = sphi 0, %s726
    %s744 = sphi 0, %s744
    %s746 = sphi 0, %s744
    %s747 = sphi 0, %s746
    %s761 = sphi 0, %s747
    %s765 = sphi 0, %s765
    %s767 = sphi 0, %s765
    %s768 = sphi 0, %s767
    %s782 = sphi 0, %s768
    %s786 = sphi 0, %s786
    %s788 = sphi 0, %s786
    %s789 = sphi 0, %s788
    %s803 = sphi 0, %s789
    %s809 = sphi 0, %s811
    %s812 = sphi 0, %s809
    %s813 = sphi 0, %s812
    %s829 = sphi 0, %s813
  $region4: #{model_forward.1} parent=0 // loop_header_branch
    %78 = sbr.rel (%p76) target = $region8
  $region5: #{model_forward.1} parent=0 // loop_body
    %s80 = ssub.s32 %s75, 1
    %s81 = ssub.s32 %s75, 2
    %s82 = sadd.s32 %s75, 1
    %s83 = ssub.s32 %s75, %s82
    %p84 = scmp.eq.s32.totalorder %s83, 0
    %s86 = sadd.s32 %s85, 1
    %s87 = scalar_select %p84, %s85, %s86
    %p90 = pneg %p84
    %p91 = scmp.eq.s32.totalorder %s75, 1
    %p92 = por %p90, %p91
    %p93 = scmp.ne.s32.totalorder %s85, %s88
    %p94 = scmp.eq.s32.totalorder %s75, 0
    %p95 = por %p93, %p94
    %p96 = scmp.ne.s32.totalorder %s85, %s88
    %p97 = scmp.eq.s32.totalorder %s80, 1
    %p98 = por %p96, %p97
    %p99 = scmp.ne.s32.totalorder %s88, %s89
    %p100 = scmp.eq.s32.totalorder %s80, 0
    %p101 = por %p99, %p100
    %p102 = scmp.ne.s32.totalorder %s88, %s89
    %p103 = scmp.eq.s32.totalorder %s81, 1
    %p104 = por %p102, %p103
    %p106 = scmp.ne.s32.totalorder %s89, %s105
    %p107 = scmp.eq.s32.totalorder %s81, 0
    %p108 = por %p106, %p107
    %s109 = ssub.s32 %s75, %s82
    %p110 = scmp.eq.s32.totalorder %s109, 0
    %s112 = sadd.s32 %s111, 1
    %s113 = scalar_select %p110, %s111, %s112
    %p116 = pneg %p110
    %p117 = scmp.eq.s32.totalorder %s75, 1
    %p118 = por %p116, %p117
    %p119 = scmp.ne.s32.totalorder %s111, %s114
    %p120 = scmp.eq.s32.totalorder %s75, 0
    %p121 = por %p119, %p120
    %p122 = scmp.ne.s32.totalorder %s111, %s114
    %p123 = scmp.eq.s32.totalorder %s80, 1
    %p124 = por %p122, %p123
    %p125 = scmp.ne.s32.totalorder %s114, %s115
    %p126 = scmp.eq.s32.totalorder %s80, 0
    %p127 = por %p125, %p126
    %p128 = scmp.ne.s32.totalorder %s114, %s115
    %p129 = scmp.eq.s32.totalorder %s81, 1
    %p130 = por %p128, %p129
    %p132 = scmp.ne.s32.totalorder %s115, %s131
    %p133 = scmp.eq.s32.totalorder %s81, 0
    %p134 = por %p132, %p133
    %s136 = sadd.s32 %s135, 1
    %p139 = scmp.eq.s32.totalorder %s75, 1
    %p140 = scmp.ne.s32.totalorder %s135, %s137
    %p141 = scmp.eq.s32.totalorder %s75, 0
    %p142 = por %p140, %p141
    %p143 = scmp.ne.s32.totalorder %s135, %s137
    %p144 = scmp.eq.s32.totalorder %s80, 1
    %p145 = por %p143, %p144
    %p146 = scmp.ne.s32.totalorder %s137, %s138
    %p147 = scmp.eq.s32.totalorder %s80, 0
    %p148 = por %p146, %p147
    %p149 = scmp.ne.s32.totalorder %s137, %s138
    %p150 = scmp.eq.s32.totalorder %s81, 1
    %p151 = por %p149, %p150
    %p153 = scmp.ne.s32.totalorder %s138, %s152
    %p154 = scmp.eq.s32.totalorder %s81, 0
    %p155 = por %p153, %p154
    %s157 = sadd.s32 %s156, 1
    %p160 = scmp.eq.s32.totalorder %s75, 1
    %p161 = scmp.ne.s32.totalorder %s156, %s158
    %p162 = scmp.eq.s32.totalorder %s75, 0
    %p163 = por %p161, %p162
    %p164 = scmp.ne.s32.totalorder %s156, %s158
    %p165 = scmp.eq.s32.totalorder %s80, 1
    %p166 = por %p164, %p165
    %p167 = scmp.ne.s32.totalorder %s158, %s159
    %p168 = scmp.eq.s32.totalorder %s80, 0
    %p169 = por %p167, %p168
    %p170 = scmp.ne.s32.totalorder %s158, %s159
    %p171 = scmp.eq.s32.totalorder %s81, 1
    %p172 = por %p170, %p171
    %p174 = scmp.ne.s32.totalorder %s159, %s173
    %p175 = scmp.eq.s32.totalorder %s81, 0
    %p176 = por %p174, %p175
    %s178 = sadd.s32 %s177, 1
    %p181 = scmp.eq.s32.totalorder %s75, 1
    %p182 = scmp.ne.s32.totalorder %s177, %s179
    %p183 = scmp.eq.s32.totalorder %s75, 0
    %p184 = por %p182, %p183
    %p185 = scmp.ne.s32.totalorder %s177, %s179
    %p186 = scmp.eq.s32.totalorder %s80, 1
    %p187 = por %p185, %p186
    %p188 = scmp.ne.s32.totalorder %s179, %s180
    %p189 = scmp.eq.s32.totalorder %s80, 0
    %p190 = por %p188, %p189
    %p191 = scmp.ne.s32.totalorder %s179, %s180
    %p192 = scmp.eq.s32.totalorder %s81, 1
    %p193 = por %p191, %p192
    %p195 = scmp.ne.s32.totalorder %s180, %s194
    %p196 = scmp.eq.s32.totalorder %s81, 0
    %p197 = por %p195, %p196
    %s199 = sadd.s32 %s198, 1
    %p202 = scmp.eq.s32.totalorder %s75, 1
    %p203 = scmp.ne.s32.totalorder %s198, %s200
    %p204 = scmp.eq.s32.totalorder %s75, 0
    %p205 = por %p203, %p204
    %p206 = scmp.ne.s32.totalorder %s198, %s200
    %p207 = scmp.eq.s32.totalorder %s80, 1
    %p208 = por %p206, %p207
    %p209 = scmp.ne.s32.totalorder %s200, %s201
    %p210 = scmp.eq.s32.totalorder %s80, 0
    %p211 = por %p209, %p210
    %p212 = scmp.ne.s32.totalorder %s200, %s201
    %p213 = scmp.eq.s32.totalorder %s81, 1
    %p214 = por %p212, %p213
    %p216 = scmp.ne.s32.totalorder %s201, %s215
    %p217 = scmp.eq.s32.totalorder %s81, 0
    %p218 = por %p216, %p217
    %s220 = sadd.s32 %s219, 1
    %p223 = scmp.eq.s32.totalorder %s75, 1
    %p224 = scmp.ne.s32.totalorder %s219, %s221
    %p225 = scmp.eq.s32.totalorder %s75, 0
    %p226 = por %p224, %p225
    %p227 = scmp.ne.s32.totalorder %s219, %s221
    %p228 = scmp.eq.s32.totalorder %s80, 1
    %p229 = por %p227, %p228
    %p230 = scmp.ne.s32.totalorder %s221, %s222
    %p231 = scmp.eq.s32.totalorder %s80, 0
    %p232 = por %p230, %p231
    %p233 = scmp.ne.s32.totalorder %s221, %s222
    %p234 = scmp.eq.s32.totalorder %s81, 1
    %p235 = por %p233, %p234
    %p237 = scmp.ne.s32.totalorder %s222, %s236
    %p238 = scmp.eq.s32.totalorder %s81, 0
    %p239 = por %p237, %p238
    %s241 = sadd.s32 %s240, 1
    %p244 = scmp.eq.s32.totalorder %s75, 1
    %p245 = scmp.ne.s32.totalorder %s240, %s242
    %p246 = scmp.eq.s32.totalorder %s75, 0
    %p247 = por %p245, %p246
    %p248 = scmp.ne.s32.totalorder %s240, %s242
    %p249 = scmp.eq.s32.totalorder %s80, 1
    %p250 = por %p248, %p249
    %p251 = scmp.ne.s32.totalorder %s242, %s243
    %p252 = scmp.eq.s32.totalorder %s80, 0
    %p253 = por %p251, %p252
    %p254 = scmp.ne.s32.totalorder %s242, %s243
    %p255 = scmp.eq.s32.totalorder %s81, 1
    %p256 = por %p254, %p255
    %p258 = scmp.ne.s32.totalorder %s243, %s257
    %p259 = scmp.eq.s32.totalorder %s81, 0
    %p260 = por %p258, %p259
    %s262 = sadd.s32 %s261, 1
    %p265 = scmp.eq.s32.totalorder %s75, 1
    %p266 = scmp.ne.s32.totalorder %s261, %s263
    %p267 = scmp.eq.s32.totalorder %s75, 0
    %p268 = por %p266, %p267
    %p269 = scmp.ne.s32.totalorder %s261, %s263
    %p270 = scmp.eq.s32.totalorder %s80, 1
    %p271 = por %p269, %p270
    %p272 = scmp.ne.s32.totalorder %s263, %s264
    %p273 = scmp.eq.s32.totalorder %s80, 0
    %p274 = por %p272, %p273
    %p275 = scmp.ne.s32.totalorder %s263, %s264
    %p276 = scmp.eq.s32.totalorder %s81, 1
    %p277 = por %p275, %p276
    %p279 = scmp.ne.s32.totalorder %s264, %s278
    %p280 = scmp.eq.s32.totalorder %s81, 0
    %p281 = por %p279, %p280
    %s283 = sadd.s32 %s282, 1
    %p286 = scmp.eq.s32.totalorder %s75, 1
    %p287 = scmp.ne.s32.totalorder %s282, %s284
    %p288 = scmp.eq.s32.totalorder %s75, 0
    %p289 = por %p287, %p288
    %p290 = scmp.ne.s32.totalorder %s282, %s284
    %p291 = scmp.eq.s32.totalorder %s80, 1
    %p292 = por %p290, %p291
    %p293 = scmp.ne.s32.totalorder %s284, %s285
    %p294 = scmp.eq.s32.totalorder %s80, 0
    %p295 = por %p293, %p294
    %p296 = scmp.ne.s32.totalorder %s284, %s285
    %p297 = scmp.eq.s32.totalorder %s81, 1
    %p298 = por %p296, %p297
    %p300 = scmp.ne.s32.totalorder %s285, %s299
    %p301 = scmp.eq.s32.totalorder %s81, 0
    %p302 = por %p300, %p301
    %s304 = sadd.s32 %s303, 1
    %p307 = scmp.eq.s32.totalorder %s75, 1
    %p308 = scmp.ne.s32.totalorder %s303, %s305
    %p309 = scmp.eq.s32.totalorder %s75, 0
    %p310 = por %p308, %p309
    %p311 = scmp.ne.s32.totalorder %s303, %s305
    %p312 = scmp.eq.s32.totalorder %s80, 1
    %p313 = por %p311, %p312
    %p314 = scmp.ne.s32.totalorder %s305, %s306
    %p315 = scmp.eq.s32.totalorder %s80, 0
    %p316 = por %p314, %p315
    %p317 = scmp.ne.s32.totalorder %s305, %s306
    %p318 = scmp.eq.s32.totalorder %s81, 1
    %p319 = por %p317, %p318
    %p321 = scmp.ne.s32.totalorder %s306, %s320
    %p322 = scmp.eq.s32.totalorder %s81, 0
    %p323 = por %p321, %p322
    %s325 = sadd.s32 %s324, 1
    %p328 = scmp.eq.s32.totalorder %s75, 1
    %p329 = scmp.ne.s32.totalorder %s324, %s326
    %p330 = scmp.eq.s32.totalorder %s75, 0
    %p331 = por %p329, %p330
    %p332 = scmp.ne.s32.totalorder %s324, %s326
    %p333 = scmp.eq.s32.totalorder %s80, 1
    %p334 = por %p332, %p333
    %p335 = scmp.ne.s32.totalorder %s326, %s327
    %p336 = scmp.eq.s32.totalorder %s80, 0
    %p337 = por %p335, %p336
    %p338 = scmp.ne.s32.totalorder %s326, %s327
    %p339 = scmp.eq.s32.totalorder %s81, 1
    %p340 = por %p338, %p339
    %p342 = scmp.ne.s32.totalorder %s327, %s341
    %p343 = scmp.eq.s32.totalorder %s81, 0
    %p344 = por %p342, %p343
    %s346 = sadd.s32 %s345, 1
    %p349 = scmp.eq.s32.totalorder %s75, 1
    %p350 = scmp.ne.s32.totalorder %s345, %s347
    %p351 = scmp.eq.s32.totalorder %s75, 0
    %p352 = por %p350, %p351
    %p353 = scmp.ne.s32.totalorder %s345, %s347
    %p354 = scmp.eq.s32.totalorder %s80, 1
    %p355 = por %p353, %p354
    %p356 = scmp.ne.s32.totalorder %s347, %s348
    %p357 = scmp.eq.s32.totalorder %s80, 0
    %p358 = por %p356, %p357
    %p359 = scmp.ne.s32.totalorder %s347, %s348
    %p360 = scmp.eq.s32.totalorder %s81, 1
    %p361 = por %p359, %p360
    %p363 = scmp.ne.s32.totalorder %s348, %s362
    %p364 = scmp.eq.s32.totalorder %s81, 0
    %p365 = por %p363, %p364
    %s367 = sadd.s32 %s366, 1
    %p370 = scmp.eq.s32.totalorder %s75, 1
    %p371 = scmp.ne.s32.totalorder %s366, %s368
    %p372 = scmp.eq.s32.totalorder %s75, 0
    %p373 = por %p371, %p372
    %p374 = scmp.ne.s32.totalorder %s366, %s368
    %p375 = scmp.eq.s32.totalorder %s80, 1
    %p376 = por %p374, %p375
    %p377 = scmp.ne.s32.totalorder %s368, %s369
    %p378 = scmp.eq.s32.totalorder %s80, 0
    %p379 = por %p377, %p378
    %p380 = scmp.ne.s32.totalorder %s368, %s369
    %p381 = scmp.eq.s32.totalorder %s81, 1
    %p382 = por %p380, %p381
    %p384 = scmp.ne.s32.totalorder %s369, %s383
    %p385 = scmp.eq.s32.totalorder %s81, 0
    %p386 = por %p384, %p385
    %s388 = sadd.s32 %s387, 1
    %p391 = scmp.eq.s32.totalorder %s75, 1
    %p392 = scmp.ne.s32.totalorder %s387, %s389
    %p393 = scmp.eq.s32.totalorder %s75, 0
    %p394 = por %p392, %p393
    %p395 = scmp.ne.s32.totalorder %s387, %s389
    %p396 = scmp.eq.s32.totalorder %s80, 1
    %p397 = por %p395, %p396
    %p398 = scmp.ne.s32.totalorder %s389, %s390
    %p399 = scmp.eq.s32.totalorder %s80, 0
    %p400 = por %p398, %p399
    %p401 = scmp.ne.s32.totalorder %s389, %s390
    %p402 = scmp.eq.s32.totalorder %s81, 1
    %p403 = por %p401, %p402
    %p405 = scmp.ne.s32.totalorder %s390, %s404
    %p406 = scmp.eq.s32.totalorder %s81, 0
    %p407 = por %p405, %p406
    %s409 = sadd.s32 %s408, 1
    %p412 = scmp.eq.s32.totalorder %s75, 1
    %p413 = scmp.ne.s32.totalorder %s408, %s410
    %p414 = scmp.eq.s32.totalorder %s75, 0
    %p415 = por %p413, %p414
    %p416 = scmp.ne.s32.totalorder %s408, %s410
    %p417 = scmp.eq.s32.totalorder %s80, 1
    %p418 = por %p416, %p417
    %p419 = scmp.ne.s32.totalorder %s410, %s411
    %p420 = scmp.eq.s32.totalorder %s80, 0
    %p421 = por %p419, %p420
    %p422 = scmp.ne.s32.totalorder %s410, %s411
    %p423 = scmp.eq.s32.totalorder %s81, 1
    %p424 = por %p422, %p423
    %p426 = scmp.ne.s32.totalorder %s411, %s425
    %p427 = scmp.eq.s32.totalorder %s81, 0
    %p428 = por %p426, %p427
    %s430 = sadd.s32 %s429, 1
    %p433 = scmp.eq.s32.totalorder %s75, 1
    %p434 = scmp.ne.s32.totalorder %s429, %s431
    %p435 = scmp.eq.s32.totalorder %s75, 0
    %p436 = por %p434, %p435
    %p437 = scmp.ne.s32.totalorder %s429, %s431
    %p438 = scmp.eq.s32.totalorder %s80, 1
    %p439 = por %p437, %p438
    %p440 = scmp.ne.s32.totalorder %s431, %s432
    %p441 = scmp.eq.s32.totalorder %s80, 0
    %p442 = por %p440, %p441
    %p443 = scmp.ne.s32.totalorder %s431, %s432
    %p444 = scmp.eq.s32.totalorder %s81, 1
    %p445 = por %p443, %p444
    %p447 = scmp.ne.s32.totalorder %s432, %s446
    %p448 = scmp.eq.s32.totalorder %s81, 0
    %p449 = por %p447, %p448
    %s451 = sadd.s32 %s450, 1
    %p454 = scmp.eq.s32.totalorder %s75, 1
    %p455 = scmp.ne.s32.totalorder %s450, %s452
    %p456 = scmp.eq.s32.totalorder %s75, 0
    %p457 = por %p455, %p456
    %p458 = scmp.ne.s32.totalorder %s450, %s452
    %p459 = scmp.eq.s32.totalorder %s80, 1
    %p460 = por %p458, %p459
    %p461 = scmp.ne.s32.totalorder %s452, %s453
    %p462 = scmp.eq.s32.totalorder %s80, 0
    %p463 = por %p461, %p462
    %p464 = scmp.ne.s32.totalorder %s452, %s453
    %p465 = scmp.eq.s32.totalorder %s81, 1
    %p466 = por %p464, %p465
    %p468 = scmp.ne.s32.totalorder %s453, %s467
    %p469 = scmp.eq.s32.totalorder %s81, 0
    %p470 = por %p468, %p469
    %s472 = sadd.s32 %s471, 1
    %p475 = scmp.eq.s32.totalorder %s75, 1
    %p476 = scmp.ne.s32.totalorder %s471, %s473
    %p477 = scmp.eq.s32.totalorder %s75, 0
    %p478 = por %p476, %p477
    %p479 = scmp.ne.s32.totalorder %s471, %s473
    %p480 = scmp.eq.s32.totalorder %s80, 1
    %p481 = por %p479, %p480
    %p482 = scmp.ne.s32.totalorder %s473, %s474
    %p483 = scmp.eq.s32.totalorder %s80, 0
    %p484 = por %p482, %p483
    %p485 = scmp.ne.s32.totalorder %s473, %s474
    %p486 = scmp.eq.s32.totalorder %s81, 1
    %p487 = por %p485, %p486
    %p489 = scmp.ne.s32.totalorder %s474, %s488
    %p490 = scmp.eq.s32.totalorder %s81, 0
    %p491 = por %p489, %p490
    %s493 = sadd.s32 %s492, 1
    %p496 = scmp.eq.s32.totalorder %s75, 1
    %p497 = scmp.ne.s32.totalorder %s492, %s494
    %p498 = scmp.eq.s32.totalorder %s75, 0
    %p499 = por %p497, %p498
    %p500 = scmp.ne.s32.totalorder %s492, %s494
    %p501 = scmp.eq.s32.totalorder %s80, 1
    %p502 = por %p500, %p501
    %p503 = scmp.ne.s32.totalorder %s494, %s495
    %p504 = scmp.eq.s32.totalorder %s80, 0
    %p505 = por %p503, %p504
    %p506 = scmp.ne.s32.totalorder %s494, %s495
    %p507 = scmp.eq.s32.totalorder %s81, 1
    %p508 = por %p506, %p507
    %p510 = scmp.ne.s32.totalorder %s495, %s509
    %p511 = scmp.eq.s32.totalorder %s81, 0
    %p512 = por %p510, %p511
    %s514 = sadd.s32 %s513, 1
    %p517 = scmp.eq.s32.totalorder %s75, 1
    %p518 = scmp.ne.s32.totalorder %s513, %s515
    %p519 = scmp.eq.s32.totalorder %s75, 0
    %p520 = por %p518, %p519
    %p521 = scmp.ne.s32.totalorder %s513, %s515
    %p522 = scmp.eq.s32.totalorder %s80, 1
    %p523 = por %p521, %p522
    %p524 = scmp.ne.s32.totalorder %s515, %s516
    %p525 = scmp.eq.s32.totalorder %s80, 0
    %p526 = por %p524, %p525
    %p527 = scmp.ne.s32.totalorder %s515, %s516
    %p528 = scmp.eq.s32.totalorder %s81, 1
    %p529 = por %p527, %p528
    %p531 = scmp.ne.s32.totalorder %s516, %s530
    %p532 = scmp.eq.s32.totalorder %s81, 0
    %p533 = por %p531, %p532
    %s535 = sadd.s32 %s534, 1
    %p538 = scmp.eq.s32.totalorder %s75, 1
    %p539 = scmp.ne.s32.totalorder %s534, %s536
    %p540 = scmp.eq.s32.totalorder %s75, 0
    %p541 = por %p539, %p540
    %p542 = scmp.ne.s32.totalorder %s534, %s536
    %p543 = scmp.eq.s32.totalorder %s80, 1
    %p544 = por %p542, %p543
    %p545 = scmp.ne.s32.totalorder %s536, %s537
    %p546 = scmp.eq.s32.totalorder %s80, 0
    %p547 = por %p545, %p546
    %p548 = scmp.ne.s32.totalorder %s536, %s537
    %p549 = scmp.eq.s32.totalorder %s81, 1
    %p550 = por %p548, %p549
    %p552 = scmp.ne.s32.totalorder %s537, %s551
    %p553 = scmp.eq.s32.totalorder %s81, 0
    %p554 = por %p552, %p553
    %s556 = sadd.s32 %s555, 1
    %p559 = scmp.eq.s32.totalorder %s75, 1
    %p560 = scmp.ne.s32.totalorder %s555, %s557
    %p561 = scmp.eq.s32.totalorder %s75, 0
    %p562 = por %p560, %p561
    %p563 = scmp.ne.s32.totalorder %s555, %s557
    %p564 = scmp.eq.s32.totalorder %s80, 1
    %p565 = por %p563, %p564
    %p566 = scmp.ne.s32.totalorder %s557, %s558
    %p567 = scmp.eq.s32.totalorder %s80, 0
    %p568 = por %p566, %p567
    %p569 = scmp.ne.s32.totalorder %s557, %s558
    %p570 = scmp.eq.s32.totalorder %s81, 1
    %p571 = por %p569, %p570
    %p573 = scmp.ne.s32.totalorder %s558, %s572
    %p574 = scmp.eq.s32.totalorder %s81, 0
    %p575 = por %p573, %p574
    %s577 = sadd.s32 %s576, 1
    %p580 = scmp.eq.s32.totalorder %s75, 1
    %p581 = scmp.ne.s32.totalorder %s576, %s578
    %p582 = scmp.eq.s32.totalorder %s75, 0
    %p583 = por %p581, %p582
    %p584 = scmp.ne.s32.totalorder %s576, %s578
    %p585 = scmp.eq.s32.totalorder %s80, 1
    %p586 = por %p584, %p585
    %p587 = scmp.ne.s32.totalorder %s578, %s579
    %p588 = scmp.eq.s32.totalorder %s80, 0
    %p589 = por %p587, %p588
    %p590 = scmp.ne.s32.totalorder %s578, %s579
    %p591 = scmp.eq.s32.totalorder %s81, 1
    %p592 = por %p590, %p591
    %p594 = scmp.ne.s32.totalorder %s579, %s593
    %p595 = scmp.eq.s32.totalorder %s81, 0
    %p596 = por %p594, %p595
    %s598 = sadd.s32 %s597, 1
    %p601 = scmp.eq.s32.totalorder %s75, 1
    %p602 = scmp.ne.s32.totalorder %s597, %s599
    %p603 = scmp.eq.s32.totalorder %s75, 0
    %p604 = por %p602, %p603
    %p605 = scmp.ne.s32.totalorder %s597, %s599
    %p606 = scmp.eq.s32.totalorder %s80, 1
    %p607 = por %p605, %p606
    %p608 = scmp.ne.s32.totalorder %s599, %s600
    %p609 = scmp.eq.s32.totalorder %s80, 0
    %p610 = por %p608, %p609
    %p611 = scmp.ne.s32.totalorder %s599, %s600
    %p612 = scmp.eq.s32.totalorder %s81, 1
    %p613 = por %p611, %p612
    %p615 = scmp.ne.s32.totalorder %s600, %s614
    %p616 = scmp.eq.s32.totalorder %s81, 0
    %p617 = por %p615, %p616
    %s619 = sadd.s32 %s618, 1
    %p622 = scmp.eq.s32.totalorder %s75, 1
    %p623 = scmp.ne.s32.totalorder %s618, %s620
    %p624 = scmp.eq.s32.totalorder %s75, 0
    %p625 = por %p623, %p624
    %p626 = scmp.ne.s32.totalorder %s618, %s620
    %p627 = scmp.eq.s32.totalorder %s80, 1
    %p628 = por %p626, %p627
    %p629 = scmp.ne.s32.totalorder %s620, %s621
    %p630 = scmp.eq.s32.totalorder %s80, 0
    %p631 = por %p629, %p630
    %p632 = scmp.ne.s32.totalorder %s620, %s621
    %p633 = scmp.eq.s32.totalorder %s81, 1
    %p634 = por %p632, %p633
    %p636 = scmp.ne.s32.totalorder %s621, %s635
    %p637 = scmp.eq.s32.totalorder %s81, 0
    %p638 = por %p636, %p637
    %s640 = sadd.s32 %s639, 1
    %p643 = scmp.eq.s32.totalorder %s75, 1
    %p644 = scmp.ne.s32.totalorder %s639, %s641
    %p645 = scmp.eq.s32.totalorder %s75, 0
    %p646 = por %p644, %p645
    %p647 = scmp.ne.s32.totalorder %s639, %s641
    %p648 = scmp.eq.s32.totalorder %s80, 1
    %p649 = por %p647, %p648
    %p650 = scmp.ne.s32.totalorder %s641, %s642
    %p651 = scmp.eq.s32.totalorder %s80, 0
    %p652 = por %p650, %p651
    %p653 = scmp.ne.s32.totalorder %s641, %s642
    %p654 = scmp.eq.s32.totalorder %s81, 1
    %p655 = por %p653, %p654
    %p657 = scmp.ne.s32.totalorder %s642, %s656
    %p658 = scmp.eq.s32.totalorder %s81, 0
    %p659 = por %p657, %p658
    %s661 = sadd.s32 %s660, 1
    %p664 = scmp.eq.s32.totalorder %s75, 1
    %p665 = scmp.ne.s32.totalorder %s660, %s662
    %p666 = scmp.eq.s32.totalorder %s75, 0
    %p667 = por %p665, %p666
    %p668 = scmp.ne.s32.totalorder %s660, %s662
    %p669 = scmp.eq.s32.totalorder %s80, 1
    %p670 = por %p668, %p669
    %p671 = scmp.ne.s32.totalorder %s662, %s663
    %p672 = scmp.eq.s32.totalorder %s80, 0
    %p673 = por %p671, %p672
    %p674 = scmp.ne.s32.totalorder %s662, %s663
    %p675 = scmp.eq.s32.totalorder %s81, 1
    %p676 = por %p674, %p675
    %p678 = scmp.ne.s32.totalorder %s663, %s677
    %p679 = scmp.eq.s32.totalorder %s81, 0
    %p680 = por %p678, %p679
    %s682 = sadd.s32 %s681, 1
    %p685 = scmp.eq.s32.totalorder %s75, 1
    %p686 = scmp.ne.s32.totalorder %s681, %s683
    %p687 = scmp.eq.s32.totalorder %s75, 0
    %p688 = por %p686, %p687
    %p689 = scmp.ne.s32.totalorder %s681, %s683
    %p690 = scmp.eq.s32.totalorder %s80, 1
    %p691 = por %p689, %p690
    %p692 = scmp.ne.s32.totalorder %s683, %s684
    %p693 = scmp.eq.s32.totalorder %s80, 0
    %p694 = por %p692, %p693
    %p695 = scmp.ne.s32.totalorder %s683, %s684
    %p696 = scmp.eq.s32.totalorder %s81, 1
    %p697 = por %p695, %p696
    %p699 = scmp.ne.s32.totalorder %s684, %s698
    %p700 = scmp.eq.s32.totalorder %s81, 0
    %p701 = por %p699, %p700
    %s703 = sadd.s32 %s702, 1
    %p706 = scmp.eq.s32.totalorder %s75, 1
    %p707 = scmp.ne.s32.totalorder %s702, %s704
    %p708 = scmp.eq.s32.totalorder %s75, 0
    %p709 = por %p707, %p708
    %p710 = scmp.ne.s32.totalorder %s702, %s704
    %p711 = scmp.eq.s32.totalorder %s80, 1
    %p712 = por %p710, %p711
    %p713 = scmp.ne.s32.totalorder %s704, %s705
    %p714 = scmp.eq.s32.totalorder %s80, 0
    %p715 = por %p713, %p714
    %p716 = scmp.ne.s32.totalorder %s704, %s705
    %p717 = scmp.eq.s32.totalorder %s81, 1
    %p718 = por %p716, %p717
    %p720 = scmp.ne.s32.totalorder %s705, %s719
    %p721 = scmp.eq.s32.totalorder %s81, 0
    %p722 = por %p720, %p721
    %s724 = sadd.s32 %s723, 1
    %p727 = scmp.eq.s32.totalorder %s75, 1
    %p728 = scmp.ne.s32.totalorder %s723, %s725
    %p729 = scmp.eq.s32.totalorder %s75, 0
    %p730 = por %p728, %p729
    %p731 = scmp.ne.s32.totalorder %s723, %s725
    %p732 = scmp.eq.s32.totalorder %s80, 1
    %p733 = por %p731, %p732
    %p734 = scmp.ne.s32.totalorder %s725, %s726
    %p735 = scmp.eq.s32.totalorder %s80, 0
    %p736 = por %p734, %p735
    %p737 = scmp.ne.s32.totalorder %s725, %s726
    %p738 = scmp.eq.s32.totalorder %s81, 1
    %p739 = por %p737, %p738
    %p741 = scmp.ne.s32.totalorder %s726, %s740
    %p742 = scmp.eq.s32.totalorder %s81, 0
    %p743 = por %p741, %p742
    %s745 = sadd.s32 %s744, 1
    %p748 = scmp.eq.s32.totalorder %s75, 1
    %p749 = scmp.ne.s32.totalorder %s744, %s746
    %p750 = scmp.eq.s32.totalorder %s75, 0
    %p751 = por %p749, %p750
    %p752 = scmp.ne.s32.totalorder %s744, %s746
    %p753 = scmp.eq.s32.totalorder %s80, 1
    %p754 = por %p752, %p753
    %p755 = scmp.ne.s32.totalorder %s746, %s747
    %p756 = scmp.eq.s32.totalorder %s80, 0
    %p757 = por %p755, %p756
    %p758 = scmp.ne.s32.totalorder %s746, %s747
    %p759 = scmp.eq.s32.totalorder %s81, 1
    %p760 = por %p758, %p759
    %p762 = scmp.ne.s32.totalorder %s747, %s761
    %p763 = scmp.eq.s32.totalorder %s81, 0
    %p764 = por %p762, %p763
    %s766 = sadd.s32 %s765, 1
    %p769 = scmp.eq.s32.totalorder %s75, 1
    %p770 = scmp.ne.s32.totalorder %s765, %s767
    %p771 = scmp.eq.s32.totalorder %s75, 0
    %p772 = por %p770, %p771
    %p773 = scmp.ne.s32.totalorder %s765, %s767
    %p774 = scmp.eq.s32.totalorder %s80, 1
    %p775 = por %p773, %p774
    %p776 = scmp.ne.s32.totalorder %s767, %s768
    %p777 = scmp.eq.s32.totalorder %s80, 0
    %p778 = por %p776, %p777
    %p779 = scmp.ne.s32.totalorder %s767, %s768
    %p780 = scmp.eq.s32.totalorder %s81, 1
    %p781 = por %p779, %p780
    %p783 = scmp.ne.s32.totalorder %s768, %s782
    %p784 = scmp.eq.s32.totalorder %s81, 0
    %p785 = por %p783, %p784
    %s787 = sadd.s32 %s786, 1
    %p790 = scmp.eq.s32.totalorder %s75, 1
    %p791 = scmp.ne.s32.totalorder %s786, %s788
    %p792 = scmp.eq.s32.totalorder %s75, 0
    %p793 = por %p791, %p792
    %p794 = scmp.ne.s32.totalorder %s786, %s788
    %p795 = scmp.eq.s32.totalorder %s80, 1
    %p796 = por %p794, %p795
    %p797 = scmp.ne.s32.totalorder %s788, %s789
    %p798 = scmp.eq.s32.totalorder %s80, 0
    %p799 = por %p797, %p798
    %p800 = scmp.ne.s32.totalorder %s788, %s789
    %p801 = scmp.eq.s32.totalorder %s81, 1
    %p802 = por %p800, %p801
    %p804 = scmp.ne.s32.totalorder %s789, %s803
    %p805 = scmp.eq.s32.totalorder %s81, 0
    %p806 = por %p804, %p805
    %s807 = ssub.s32 %s75, %s82
    %p808 = scmp.eq.s32.totalorder %s807, 0
    %s810 = sadd.s32 %s809, 1
    %s811 = scalar_select %p808, %s809, %s810
    %p814 = pneg %p808
    %p815 = scmp.eq.s32.totalorder %s75, 1
    %p816 = por %p814, %p815
    %p817 = scmp.ne.s32.totalorder %s809, %s812
    %p818 = scmp.eq.s32.totalorder %s75, 0
    %p819 = por %p817, %p818
    %p820 = scmp.ne.s32.totalorder %s809, %s812
    %p821 = scmp.eq.s32.totalorder %s80, 1
    %p822 = por %p820, %p821
    %p823 = scmp.ne.s32.totalorder %s812, %s813
    %p824 = scmp.eq.s32.totalorder %s80, 0
    %p825 = por %p823, %p824
    %p826 = scmp.ne.s32.totalorder %s812, %s813
    %p827 = scmp.eq.s32.totalorder %s81, 1
    %p828 = por %p826, %p827
    %p830 = scmp.ne.s32.totalorder %s813, %s829
    %p831 = scmp.eq.s32.totalorder %s81, 0
    %p832 = por %p830, %p831
    %p833 = scmp.le.s32.totalorder 1, %s75
    %p834 = scmp.lt.s32.totalorder %s75, 3
    %p835 = pnand %p833, %p834
    %p836 = pneg %p835
    // Predicated region
    $region9: #{model_forward.1} parent=5 // pred_check
      _
    $region10: #{model_forward.1} parent=5 // pred_check_branch
      %838 = sbr.rel (%p835) target = $region12
    $region11: #{model_forward.1} parent=5 // pred_region
      %s839 = ssub.s32 %s75, 1
      // Predicated region
      $region13: #{model_forward.1} parent=11 // pred_check
        %p840 = pneg %p148
      $region14: #{model_forward.1} parent=11 // pred_check_branch
        %842 = sbr.rel (%p840) target = $region16
      $region15: #{model_forward.1} parent=11 // pred_region
        _
      $region16: #{model_forward.1} parent=11 // pred_fallthru
        _
      // Predicated region
      $region17: #{model_forward.1} parent=11 // pred_check
        %p843 = pneg %p169
      $region18: #{model_forward.1} parent=11 // pred_check_branch
        %845 = sbr.rel (%p843) target = $region20
      $region19: #{model_forward.1} parent=11 // pred_region
        _
      $region20: #{model_forward.1} parent=11 // pred_fallthru
        _
      // Predicated region
      $region21: #{model_forward.1} parent=11 // pred_check
        %p846 = pneg %p190
      $region22: #{model_forward.1} parent=11 // pred_check_branch
        %848 = sbr.rel (%p846) target = $region24
      $region23: #{model_forward.1} parent=11 // pred_region
        _
      $region24: #{model_forward.1} parent=11 // pred_fallthru
        _
      // Predicated region
      $region25: #{model_forward.1} parent=11 // pred_check
        %p849 = pneg %p211
      $region26: #{model_forward.1} parent=11 // pred_check_branch
        %851 = sbr.rel (%p849) target = $region28
      $region27: #{model_forward.1} parent=11 // pred_region
        _
      $region28: #{model_forward.1} parent=11 // pred_fallthru
        _
      // Predicated region
      $region29: #{model_forward.1} parent=11 // pred_check
        %p852 = pneg %p232
      $region30: #{model_forward.1} parent=11 // pred_check_branch
        %854 = sbr.rel (%p852) target = $region32
      $region31: #{model_forward.1} parent=11 // pred_region
        _
      $region32: #{model_forward.1} parent=11 // pred_fallthru
        _
      // Predicated region
      $region33: #{model_forward.1} parent=11 // pred_check
        %p855 = pneg %p253
      $region34: #{model_forward.1} parent=11 // pred_check_branch
        %857 = sbr.rel (%p855) target = $region36
      $region35: #{model_forward.1} parent=11 // pred_region
        _
      $region36: #{model_forward.1} parent=11 // pred_fallthru
        _
      // Predicated region
      $region37: #{model_forward.1} parent=11 // pred_check
        %p858 = pneg %p274
      $region38: #{model_forward.1} parent=11 // pred_check_branch
        %860 = sbr.rel (%p858) target = $region40
      $region39: #{model_forward.1} parent=11 // pred_region
        _
      $region40: #{model_forward.1} parent=11 // pred_fallthru
        _
      // Predicated region
      $region41: #{model_forward.1} parent=11 // pred_check
        %p861 = pneg %p295
      $region42: #{model_forward.1} parent=11 // pred_check_branch
        %863 = sbr.rel (%p861) target = $region44
      $region43: #{model_forward.1} parent=11 // pred_region
        _
      $region44: #{model_forward.1} parent=11 // pred_fallthru
        _
      // Predicated region
      $region45: #{model_forward.1} parent=11 // pred_check
        %p864 = pneg %p316
      $region46: #{model_forward.1} parent=11 // pred_check_branch
        %866 = sbr.rel (%p864) target = $region48
      $region47: #{model_forward.1} parent=11 // pred_region
        _
      $region48: #{model_forward.1} parent=11 // pred_fallthru
        _
      // Predicated region
      $region49: #{model_forward.1} parent=11 // pred_check
        %p867 = pneg %p337
      $region50: #{model_forward.1} parent=11 // pred_check_branch
        %869 = sbr.rel (%p867) target = $region52
      $region51: #{model_forward.1} parent=11 // pred_region
        _
      $region52: #{model_forward.1} parent=11 // pred_fallthru
        _
      // Predicated region
      $region53: #{model_forward.1} parent=11 // pred_check
        %p870 = pneg %p358
      $region54: #{model_forward.1} parent=11 // pred_check_branch
        %872 = sbr.rel (%p870) target = $region56
      $region55: #{model_forward.1} parent=11 // pred_region
        _
      $region56: #{model_forward.1} parent=11 // pred_fallthru
        _
      // Predicated region
      $region57: #{model_forward.1} parent=11 // pred_check
        %p873 = pneg %p379
      $region58: #{model_forward.1} parent=11 // pred_check_branch
        %875 = sbr.rel (%p873) target = $region60
      $region59: #{model_forward.1} parent=11 // pred_region
        _
      $region60: #{model_forward.1} parent=11 // pred_fallthru
        _
      // Predicated region
      $region61: #{model_forward.1} parent=11 // pred_check
        %p876 = pneg %p400
      $region62: #{model_forward.1} parent=11 // pred_check_branch
        %878 = sbr.rel (%p876) target = $region64
      $region63: #{model_forward.1} parent=11 // pred_region
        _
      $region64: #{model_forward.1} parent=11 // pred_fallthru
        _
      // Predicated region
      $region65: #{model_forward.1} parent=11 // pred_check
        %p879 = pneg %p421
      $region66: #{model_forward.1} parent=11 // pred_check_branch
        %881 = sbr.rel (%p879) target = $region68
      $region67: #{model_forward.1} parent=11 // pred_region
        _
      $region68: #{model_forward.1} parent=11 // pred_fallthru
        _
      // Predicated region
      $region69: #{model_forward.1} parent=11 // pred_check
        %p882 = pneg %p442
      $region70: #{model_forward.1} parent=11 // pred_check_branch
        %884 = sbr.rel (%p882) target = $region72
      $region71: #{model_forward.1} parent=11 // pred_region
        _
      $region72: #{model_forward.1} parent=11 // pred_fallthru
        _
      // Predicated region
      $region73: #{model_forward.1} parent=11 // pred_check
        %p885 = pneg %p463
      $region74: #{model_forward.1} parent=11 // pred_check_branch
        %887 = sbr.rel (%p885) target = $region76
      $region75: #{model_forward.1} parent=11 // pred_region
        _
      $region76: #{model_forward.1} parent=11 // pred_fallthru
        _
      // Predicated region
      $region77: #{model_forward.1} parent=11 // pred_check
        %p888 = pneg %p484
      $region78: #{model_forward.1} parent=11 // pred_check_branch
        %890 = sbr.rel (%p888) target = $region80
      $region79: #{model_forward.1} parent=11 // pred_region
        _
      $region80: #{model_forward.1} parent=11 // pred_fallthru
        _
      // Predicated region
      $region81: #{model_forward.1} parent=11 // pred_check
        %p891 = pneg %p505
      $region82: #{model_forward.1} parent=11 // pred_check_branch
        %893 = sbr.rel (%p891) target = $region84
      $region83: #{model_forward.1} parent=11 // pred_region
        _
      $region84: #{model_forward.1} parent=11 // pred_fallthru
        _
      // Predicated region
      $region85: #{model_forward.1} parent=11 // pred_check
        %p894 = pneg %p526
      $region86: #{model_forward.1} parent=11 // pred_check_branch
        %896 = sbr.rel (%p894) target = $region88
      $region87: #{model_forward.1} parent=11 // pred_region
        _
      $region88: #{model_forward.1} parent=11 // pred_fallthru
        _
      // Predicated region
      $region89: #{model_forward.1} parent=11 // pred_check
        %p897 = pneg %p547
      $region90: #{model_forward.1} parent=11 // pred_check_branch
        %899 = sbr.rel (%p897) target = $region92
      $region91: #{model_forward.1} parent=11 // pred_region
        _
      $region92: #{model_forward.1} parent=11 // pred_fallthru
        _
      // Predicated region
      $region93: #{model_forward.1} parent=11 // pred_check
        %p900 = pneg %p568
      $region94: #{model_forward.1} parent=11 // pred_check_branch
        %902 = sbr.rel (%p900) target = $region96
      $region95: #{model_forward.1} parent=11 // pred_region
        _
      $region96: #{model_forward.1} parent=11 // pred_fallthru
        _
      // Predicated region
      $region97: #{model_forward.1} parent=11 // pred_check
        %p903 = pneg %p589
      $region98: #{model_forward.1} parent=11 // pred_check_branch
        %905 = sbr.rel (%p903) target = $region100
      $region99: #{model_forward.1} parent=11 // pred_region
        _
      $region100: #{model_forward.1} parent=11 // pred_fallthru
        _
      // Predicated region
      $region101: #{model_forward.1} parent=11 // pred_check
        %p906 = pneg %p610
      $region102: #{model_forward.1} parent=11 // pred_check_branch
        %908 = sbr.rel (%p906) target = $region104
      $region103: #{model_forward.1} parent=11 // pred_region
        _
      $region104: #{model_forward.1} parent=11 // pred_fallthru
        _
      // Predicated region
      $region105: #{model_forward.1} parent=11 // pred_check
        %p909 = pneg %p631
      $region106: #{model_forward.1} parent=11 // pred_check_branch
        %911 = sbr.rel (%p909) target = $region108
      $region107: #{model_forward.1} parent=11 // pred_region
        _
      $region108: #{model_forward.1} parent=11 // pred_fallthru
        _
      // Predicated region
      $region109: #{model_forward.1} parent=11 // pred_check
        %p912 = pneg %p652
      $region110: #{model_forward.1} parent=11 // pred_check_branch
        %914 = sbr.rel (%p912) target = $region112
      $region111: #{model_forward.1} parent=11 // pred_region
        _
      $region112: #{model_forward.1} parent=11 // pred_fallthru
        _
      // Predicated region
      $region113: #{model_forward.1} parent=11 // pred_check
        %p915 = pneg %p673
      $region114: #{model_forward.1} parent=11 // pred_check_branch
        %917 = sbr.rel (%p915) target = $region116
      $region115: #{model_forward.1} parent=11 // pred_region
        _
      $region116: #{model_forward.1} parent=11 // pred_fallthru
        _
      // Predicated region
      $region117: #{model_forward.1} parent=11 // pred_check
        %p918 = pneg %p694
      $region118: #{model_forward.1} parent=11 // pred_check_branch
        %920 = sbr.rel (%p918) target = $region120
      $region119: #{model_forward.1} parent=11 // pred_region
        _
      $region120: #{model_forward.1} parent=11 // pred_fallthru
        _
      // Predicated region
      $region121: #{model_forward.1} parent=11 // pred_check
        %p921 = pneg %p715
      $region122: #{model_forward.1} parent=11 // pred_check_branch
        %923 = sbr.rel (%p921) target = $region124
      $region123: #{model_forward.1} parent=11 // pred_region
        _
      $region124: #{model_forward.1} parent=11 // pred_fallthru
        _
      // Predicated region
      $region125: #{model_forward.1} parent=11 // pred_check
        %p924 = pneg %p736
      $region126: #{model_forward.1} parent=11 // pred_check_branch
        %926 = sbr.rel (%p924) target = $region128
      $region127: #{model_forward.1} parent=11 // pred_region
        _
      $region128: #{model_forward.1} parent=11 // pred_fallthru
        _
      // Predicated region
      $region129: #{model_forward.1} parent=11 // pred_check
        %p927 = pneg %p757
      $region130: #{model_forward.1} parent=11 // pred_check_branch
        %929 = sbr.rel (%p927) target = $region132
      $region131: #{model_forward.1} parent=11 // pred_region
        _
      $region132: #{model_forward.1} parent=11 // pred_fallthru
        _
      // Predicated region
      $region133: #{model_forward.1} parent=11 // pred_check
        %p930 = pneg %p778
      $region134: #{model_forward.1} parent=11 // pred_check_branch
        %932 = sbr.rel (%p930) target = $region136
      $region135: #{model_forward.1} parent=11 // pred_region
        _
      $region136: #{model_forward.1} parent=11 // pred_fallthru
        _
      // Predicated region
      $region137: #{model_forward.1} parent=11 // pred_check
        %p933 = pneg %p799
      $region138: #{model_forward.1} parent=11 // pred_check_branch
        %935 = sbr.rel (%p933) target = $region140
      $region139: #{model_forward.1} parent=11 // pred_region
        _
      $region140: #{model_forward.1} parent=11 // pred_fallthru
        _
    $region12: #{model_forward.1} parent=5 // pred_fallthru
      _
    %p936 = scmp.lt.s32.totalorder %s75, 2
    // Predicated region
    $region141: #{model_forward.1} parent=5 // pred_check
      %p937 = pneg %p936
    $region142: #{model_forward.1} parent=5 // pred_check_branch
      %939 = sbr.rel (%p937) target = $region144
    $region143: #{model_forward.1} parent=5 // pred_region
      // Predicated region
      $region145: #{model_forward.1} parent=143 // pred_check
        %p940 = pneg %p95
      $region146: #{model_forward.1} parent=143 // pred_check_branch
        %942 = sbr.rel (%p940) target = $region148
      $region147: #{model_forward.1} parent=143 // pred_region
        %p943 = scmp.lt.s32.totalorder %s75, 1
        %s944 = scalar_select %p943, %s75, 1
        %s945 = smul.addr %s944, 2
        %s946 = smul.addr %s945, 8
        %s947 = scalar_lea.vmem %s1, %s946
      $region148: #{model_forward.1} parent=143 // pred_fallthru
        _
      // Predicated region
      $region149: #{model_forward.1} parent=143 // pred_check
        %p948 = pneg %p121
      $region150: #{model_forward.1} parent=143 // pred_check_branch
        %950 = sbr.rel (%p948) target = $region152
      $region151: #{model_forward.1} parent=143 // pred_region
        %p951 = scmp.lt.s32.totalorder %s75, 1
        %s952 = scalar_select %p951, %s75, 1
        %s953 = smul.addr %s952, 2
        %s954 = smul.addr %s953, 8
        %s955 = scalar_lea.vmem %s3, %s954
      $region152: #{model_forward.1} parent=143 // pred_fallthru
        _
    $region144: #{model_forward.1} parent=5 // pred_fallthru
      _
    %p956 = scmp.le.s32.totalorder 1, %s75
    %p957 = scmp.lt.s32.totalorder %s75, 3
    %p958 = pnand %p956, %p957
    %p959 = pneg %p958
    // Predicated region
    $region153: #{model_forward.1} parent=5 // pred_check
      _
    $region154: #{model_forward.1} parent=5 // pred_check_branch
      %961 = sbr.rel (%p958) target = $region156
    $region155: #{model_forward.1} parent=5 // pred_region
      %s962 = ssub.s32 %s75, 1
      %p963 = scmp.lt.s32.totalorder %s80, 1
      %s964 = scalar_select %p963, %s80, 1
      %s965 = smul.addr %s964, 2
      %s966 = smul.addr %s965, 8
      %s967 = scalar_lea.vmem %s1, %s966
      %p968 = pneg %p101
      %p969 = pneg %p98
      %p970 = scmp.lt.s32.totalorder %s80, 1
      %s971 = scalar_select %p970, %s80, 1
      %s972 = smul.addr %s971, 2
      %s973 = smul.addr %s972, 8
      %s974 = scalar_lea.vmem %s3, %s973
      %p975 = pneg %p127
      %p976 = pneg %p124
      %p977 = pneg %p148
      %p978 = pneg %p145
      %p979 = pneg %p169
      %p980 = pneg %p166
      %p981 = pneg %p190
      %p982 = pneg %p187
      %p983 = pneg %p211
      %p984 = pneg %p208
      %p985 = pneg %p232
      %p986 = pneg %p229
      %p987 = pneg %p253
      %p988 = pneg %p250
      %p989 = pneg %p274
      %p990 = pneg %p271
      %p991 = pneg %p295
      %p992 = pneg %p292
      %p993 = pneg %p316
      %p994 = pneg %p313
      %p995 = pneg %p337
      %p996 = pneg %p334
      %p997 = pneg %p358
      %p998 = pneg %p355
      %p999 = pneg %p379
      %p1000 = pneg %p376
      %p1001 = pneg %p400
      %p1002 = pneg %p397
      %p1003 = pneg %p421
      %p1004 = pneg %p418
      %p1005 = pneg %p442
      %p1006 = pneg %p439
      %p1007 = pneg %p463
      %p1008 = pneg %p460
      %p1009 = pneg %p484
      %p1010 = pneg %p481
      %p1011 = pneg %p505
      %p1012 = pneg %p502
      %p1013 = pneg %p526
      %p1014 = pneg %p523
      %p1015 = pneg %p547
      %p1016 = pneg %p544
      %p1017 = pneg %p568
      %p1018 = pneg %p565
      %p1019 = pneg %p589
      %p1020 = pneg %p586
      %p1021 = pneg %p610
      %p1022 = pneg %p607
      %p1023 = pneg %p631
      %p1024 = pneg %p628
      %p1025 = pneg %p652
      %p1026 = pneg %p649
      %p1027 = pneg %p673
      %p1028 = pneg %p670
      %p1029 = pneg %p694
      %p1030 = pneg %p691
      %p1031 = pneg %p715
      %p1032 = pneg %p712
      %p1033 = pneg %p736
      %p1034 = pneg %p733
      %p1035 = pneg %p757
      %p1036 = pneg %p754
      %p1037 = pneg %p778
      %p1038 = pneg %p775
      %p1039 = pneg %p799
      %p1040 = pneg %p796
      %p1041 = pneg %p825
      %p1042 = pneg %p822
      %p1043 = scmp.lt.s32.totalorder %s80, 1
      %s1044 = scalar_select %p1043, %s80, 1
      %s1045 = smul.addr %s1044, 8
      %s1046 = scalar_lea.vmem %s69, %s1045
      %p1047 = scmp.lt.s32.totalorder %s80, 1
      %s1048 = scalar_select %p1047, %s80, 1
      %s1049 = smul.addr %s1048, 2
      %s1050 = smul.addr %s1049, 8
      %s1051 = scalar_lea.vmem %s1, %s1050
      %p1052 = scmp.lt.s32.totalorder %s80, 1
      %s1053 = scalar_select %p1052, %s80, 1
      %s1054 = smul.addr %s1053, 2
      %s1055 = smul.addr %s1054, 8
      %s1056 = scalar_lea.vmem %s3, %s1055
      %p1057 = scmp.lt.s32.totalorder %s80, 1
      %s1058 = scalar_select %p1057, %s80, 1
      %s1059 = smul.addr %s1058, 8
      %s1060 = scalar_lea.vmem %s69, %s1059
      %v1062 = vld [vmem:[%s1051] sm:$0xff]
      %v1063 = vld [vmem:[%s1051 + $0x8] sm:$0xff]
      %v1064 = vpack.c.bf16 %v1063, %v1062
      %v1065 = vld [vmem:[%s5] sm:$0xf]
      %v1066 = vld [vmem:[%s5 + $0x4] sm:$0xf]
      %v1067 = vld [vmem:[%s7] sm:$0xff]
      %v1068 = vld [vmem:[%s7 + $0x8] sm:$0xff]
      %v1071 = vunpack.c.l.b16 %v1065
      %v1072 = vunpack.c.l.b16 %v1066
      %v1073 = vpack.c.b16 %v1072, %v1071
      %vm1075 = vcmask 130048
      %v1077 = vsel %vm1075, %v1064, 0
      %1079 = vmatprep.subr.bf16.mxu0 0
      %1080 = vmatpush1.bf16.msra.mxu0 %v1073
      %1081 = vmatprep.subr.bf16.mxu0 0
      %1082 = vmatpush1.bf16.msra.mxu0 0
      %1083 = vmatprep.subr.bf16.mxu0 0
      %1084 = vmatpush1.bf16.msra.mxu0 0
      %1085 = vmatprep.subr.bf16.mxu0 0
      %1086 = vmatpush1.bf16.msra.mxu0 0
      %1087 = vmatprep.subr.bf16.mxu0 0
      %1088 = vmatpush1.bf16.msra.mxu0 0
      %1089 = vmatprep.subr.bf16.mxu0 0
      %1090 = vmatpush1.bf16.msra.mxu0 0
      %1091 = vmatprep.subr.bf16.mxu0 0
      %1092 = vmatpush1.bf16.msra.mxu0 0
      %1093 = vmatprep.subr.bf16.mxu0 0
      %1094 = vmatpush1.bf16.msra.mxu0 0
      %1095 = vmatprep.subr.bf16.mxu0 0
      %1096 = vmatpush1.bf16.msra.mxu0 0
      %1097 = vmatprep.subr.bf16.mxu0 0
      %1098 = vmatpush1.bf16.msra.mxu0 0
      %1099 = vmatprep.subr.bf16.mxu0 0
      %1100 = vmatpush1.bf16.msra.mxu0 0
      %1101 = vmatprep.subr.bf16.mxu0 0
      %1102 = vmatpush1.bf16.msra.mxu0 0
      %1103 = vmatprep.subr.bf16.mxu0 0
      %1104 = vmatpush1.bf16.msra.mxu0 0
      %1105 = vmatprep.subr.bf16.mxu0 0
      %1106 = vmatpush1.bf16.msra.mxu0 0
      %1107 = vmatprep.subr.bf16.mxu0 0
      %1108 = vmatpush1.bf16.msra.mxu0 0
      %1109 = vmatprep.subr.bf16.mxu0 0
      %1110 = vmatpush1.bf16.msra.mxu0 0
      %1111 = vmatprep.mubr.bf16.mxu0 0
      %1112 = vmatmul.mubr.bf16.gmra.mrb[0].mxu0 %v1077
      %v1113 = vpop.f32.mrb[0].mxu0
      %v1114 = vadd.f32 %v1067, %v1113
      %v1115 = vpop.f32.mrb[0].mxu0
      %v1116 = vpop.f32.mrb[0].mxu0
      %v1117 = vadd.f32 %v1068, %v1116
      %v1118 = vpop.f32.mrb[0].mxu0
      %1119 = vdwg.mxu0
      %v1120 = vld [vmem:[%s29] sm:$0xf]
      %v1121 = vpack.c.bf16 %v1117, %v1114
      %v1122 = vld [vmem:[%s13] sm:$0xf]
      %v1123 = vld [vmem:[%s13 + $0x4] sm:$0xf]
      %v1124 = vld [vmem:[%s13 + $0x8] sm:$0xf]
      %v1125 = vld [vmem:[%s13 + $0xc] sm:$0xf]
      %v1126 = vld [vmem:[%s15] sm:$0x1]
      %v1128 = vlaneseq
      %v1129 = vshrl.u32 %v1128, 7
      %v1130 = vsub.s32 0, %v1129
      %v1131 = vrot.slane %v1126, %v1130
      %v1137 = vunpack.c.l.b16 %v1122
      %v1138 = vunpack.c.l.b16 %v1123
      %v1139 = vunpack.c.l.b16 %v1124
      %v1140 = vunpack.c.l.b16 %v1125
      %v1141 = vpack.c.b16 %v1138, %v1137
      %v1142 = vpack.c.b16 %v1140, %v1139
      %vm1145 = vcmask 261120
      %v1147 = vsel %vm1145, %v1121, 0
      %1149 = vmatprep.subr.bf16.mxu0 0
      %1150 = vmatpush1.bf16.msra.mxu0 %v1141
      %1151 = vmatprep.subr.bf16.mxu0 0
      %1152 = vmatpush1.bf16.msra.mxu0 %v1142
      %1153 = vmatprep.subr.bf16.mxu0 0
      %1154 = vmatpush1.bf16.msra.mxu0 0
      %1155 = vmatprep.subr.bf16.mxu0 0
      %1156 = vmatpush1.bf16.msra.mxu0 0
      %1157 = vmatprep.subr.bf16.mxu0 0
      %1158 = vmatpush1.bf16.msra.mxu0 0
      %1159 = vmatprep.subr.bf16.mxu0 0
      %1160 = vmatpush1.bf16.msra.mxu0 0
      %1161 = vmatprep.subr.bf16.mxu0 0
      %1162 = vmatpush1.bf16.msra.mxu0 0
      %1163 = vmatprep.subr.bf16.mxu0 0
      %1164 = vmatpush1.bf16.msra.mxu0 0
      %1165 = vmatprep.subr.bf16.mxu0 0
      %1166 = vmatpush1.bf16.msra.mxu0 0
      %1167 = vmatprep.subr.bf16.mxu0 0
      %1168 = vmatpush1.bf16.msra.mxu0 0
      %1169 = vmatprep.subr.bf16.mxu0 0
      %1170 = vmatpush1.bf16.msra.mxu0 0
      %1171 = vmatprep.subr.bf16.mxu0 0
      %1172 = vmatpush1.bf16.msra.mxu0 0
      %1173 = vmatprep.subr.bf16.mxu0 0
      %1174 = vmatpush1.bf16.msra.mxu0 0
      %1175 = vmatprep.subr.bf16.mxu0 0
      %1176 = vmatpush1.bf16.msra.mxu0 0
      %1177 = vmatprep.subr.bf16.mxu0 0
      %1178 = vmatpush1.bf16.msra.mxu0 0
      %1179 = vmatprep.subr.bf16.mxu0 0
      %1180 = vmatpush1.bf16.msra.mxu0 0
      %1181 = vmatprep.mubr.bf16.mxu0 0
      %1182 = vmatmul.mubr.bf16.gmra.mrb[0].mxu0 %v1147
      %v1183 = vpop.f32.mrb[0].mxu0
      %v1184 = vadd.f32 %v1131, %v1183
      %v1185 = vpop.f32.mrb[0].mxu0
      %v1186 = vpop.f32.mrb[0].mxu0
      %v1187 = vadd.f32 %v1131, %v1186
      %v1188 = vpop.f32.mrb[0].mxu0
      %1189 = vdwg.mxu0
      %v1190 = vld [vmem:[%s17] sm:$0xf]
      %v1191 = vld [vmem:[%s17 + $0x4] sm:$0xf]
      %v1192 = vld [vmem:[%s17 + $0x8] sm:$0xf]
      %v1193 = vld [vmem:[%s17 + $0xc] sm:$0xf]
      %v1194 = vld [vmem:[%s19] sm:$0x1]
      %v1195 = vpack.c.bf16 %v1187, %v1184
      %1197 = vrot.lane.b32.xlu0 %v1195, 96
      %v1198 = vpop.permute.xlu0 %1197
      %vm1199 = vcmask 64512
      %v1201 = vsel %vm1199, %v1195, 0
      %v1204 = vsel %vm1199, %v1198, 0
      %1206 = vmatprep.subr.bf16.mxu0 0
      %1207 = vmatpush1.bf16.xpose.msra.mxu0 %v1204
      %1208 = vmatprep.subr.bf16.mxu0 0
      %1209 = vmatpush1.bf16.xpose.msra.mxu0 0
      %1210 = vmatprep.subr.bf16.mxu0 0
      %1211 = vmatpush1.bf16.xpose.msra.mxu0 0
      %1212 = vmatprep.subr.bf16.mxu0 0
      %1213 = vmatpush1.bf16.xpose.msra.mxu0 0
      %1214 = vmatprep.subr.bf16.mxu0 0
      %1215 = vmatpush1.bf16.xpose.msra.mxu0 0
      %1216 = vmatprep.subr.bf16.mxu0 0
      %1217 = vmatpush1.bf16.xpose.msra.mxu0 0
      %1218 = vmatprep.subr.bf16.mxu0 0
      %1219 = vmatpush1.bf16.xpose.msra.mxu0 0
      %1220 = vmatprep.subr.bf16.mxu0 0
      %1221 = vmatpush1.bf16.xpose.msra.mxu0 0
      %1222 = vmatprep.subr.bf16.mxu0 0
      %1223 = vmatpush1.bf16.xpose.msra.mxu0 0
      %1224 = vmatprep.subr.bf16.mxu0 0
      %1225 = vmatpush1.bf16.xpose.msra.mxu0 0
      %1226 = vmatprep.subr.bf16.mxu0 0
      %1227 = vmatpush1.bf16.xpose.msra.mxu0 0
      %1228 = vmatprep.subr.bf16.mxu0 0
      %1229 = vmatpush1.bf16.xpose.msra.mxu0 0
      %1230 = vmatprep.subr.bf16.mxu0 0
      %1231 = vmatpush1.bf16.xpose.msra.mxu0 0
      %1232 = vmatprep.subr.bf16.mxu0 0
      %1233 = vmatpush1.bf16.xpose.msra.mxu0 0
      %1234 = vmatprep.subr.bf16.mxu0 0
      %1235 = vmatpush1.bf16.xpose.msra.mxu0 0
      %1236 = vmatprep.subr.bf16.mxu0 0
      %1237 = vmatpush1.bf16.xpose.msra.mxu0 0
      %1238 = vmatprep.mubr.bf16.mxu0 0
      %1239 = vmatmul.mubr.bf16.gmra.mrb[0].mxu0 %v1201
      %v1240 = vpop.f32.mrb[0].mxu0
      %v1241 = vadd.f32 0.0, %v1240
      %v1242 = vpop.f32.mrb[0].mxu0
      %v1243 = vpop.f32.mrb[0].mxu0
      %v1244 = vadd.f32 0.0, %v1243
      %v1245 = vpop.f32.mrb[0].mxu0
      %1246 = vdwg.mxu0
      %v1247 = vsel %vm1075, %v1241, -inf
      %1248 = vmax.xlane.f32.xlu0 %v1247
      %v1249 = vpop.xlane.xlu0 %1248
      %v1250 = vsel %vm1075, %v1244, -inf
      %1251 = vmax.xlane.f32.xlu0 %v1250
      %v1252 = vpop.xlane.xlu0 %1251
      %v1253 = vsub.f32 %v1241, %v1249
      %v1254 = vsub.f32 %v1244, %v1252
      %v1255 = vmul.f32 %v1253, 1.442695
      %v1256 = vpow.pop %v1255
      %v1257 = vmul.f32 %v1254, 1.442695
      %v1258 = vpow.pop %v1257
      %v1259 = vsel %vm1075, %v1256, 0.0
      %1260 = vadd.xlane.f32.xlu0 %v1259
      %v1261 = vpop.xlane.xlu0 %1260
      %v1262 = vsel %vm1075, %v1258, 0.0
      %1263 = vadd.xlane.f32.xlu0 %v1262
      %v1264 = vpop.xlane.xlu0 %1263
      %v1265 = vrcp.pop %v1261
      %v1266 = vrcp.pop %v1264
      %v1267 = vmul.f32 %v1256, %v1265
      %v1268 = vmul.f32 %v1258, %v1266
      %v1269 = vpack.c.bf16 %v1268, %v1267
      %1270 = vrot.lane.b32.xlu0 %v1195, 64
      %v1271 = vpop.permute.xlu0 %1270
      %v1274 = vsel %vm1075, %v1269, 0
      %1276 = vmatprep.subr.bf16.mxu0 0
      %1277 = vmatpush1.bf16.msra.mxu0 %v1271
      %1278 = vmatprep.subr.bf16.mxu0 0
      %1279 = vmatpush1.bf16.msra.mxu0 0
      %1280 = vmatprep.subr.bf16.mxu0 0
      %1281 = vmatpush1.bf16.msra.mxu0 0
      %1282 = vmatprep.subr.bf16.mxu0 0
      %1283 = vmatpush1.bf16.msra.mxu0 0
      %1284 = vmatprep.subr.bf16.mxu0 0
      %1285 = vmatpush1.bf16.msra.mxu0 0
      %1286 = vmatprep.subr.bf16.mxu0 0
      %1287 = vmatpush1.bf16.msra.mxu0 0
      %1288 = vmatprep.subr.bf16.mxu0 0
      %1289 = vmatpush1.bf16.msra.mxu0 0
      %1290 = vmatprep.subr.bf16.mxu0 0
      %1291 = vmatpush1.bf16.msra.mxu0 0
      %1292 = vmatprep.subr.bf16.mxu0 0
      %1293 = vmatpush1.bf16.msra.mxu0 0
      %1294 = vmatprep.subr.bf16.mxu0 0
      %1295 = vmatpush1.bf16.msra.mxu0 0
      %1296 = vmatprep.subr.bf16.mxu0 0
      %1297 = vmatpush1.bf16.msra.mxu0 0
      %1298 = vmatprep.subr.bf16.mxu0 0
      %1299 = vmatpush1.bf16.msra.mxu0 0
      %1300 = vmatprep.subr.bf16.mxu0 0
      %1301 = vmatpush1.bf16.msra.mxu0 0
      %1302 = vmatprep.subr.bf16.mxu0 0
      %1303 = vmatpush1.bf16.msra.mxu0 0
      %1304 = vmatprep.subr.bf16.mxu0 0
      %1305 = vmatpush1.bf16.msra.mxu0 0
      %1306 = vmatprep.subr.bf16.mxu0 0
      %1307 = vmatpush1.bf16.msra.mxu0 0
      %1308 = vmatprep.mubr.bf16.mxu0 0
      %1309 = vmatmul.mubr.bf16.gmra.mrb[0].mxu0 %v1274
      %v1310 = vpop.f32.mrb[0].mxu0
      %v1311 = vadd.f32 0.0, %v1310
      %v1312 = vpop.f32.mrb[0].mxu0
      %v1313 = vpop.f32.mrb[0].mxu0
      %v1314 = vadd.f32 0.0, %v1313
      %v1315 = vpop.f32.mrb[0].mxu0
      %1316 = vdwg.mxu0
      %1317 = vrot.lane.b32.xlu0 %v1195, 120
      %v1318 = vpop.permute.xlu0 %1317
      %1319 = vrot.lane.b32.xlu0 %v1195, 88
      %v1320 = vpop.permute.xlu0 %1319
      %v1322 = vsel %vm1199, %v1318, 0
      %v1325 = vsel %vm1199, %v1320, 0
      %1327 = vmatprep.subr.bf16.mxu0 0
      %1328 = vmatpush1.bf16.xpose.msra.mxu0 %v1325
      %1329 = vmatprep.subr.bf16.mxu0 0
      %1330 = vmatpush1.bf16.xpose.msra.mxu0 0
      %1331 = vmatprep.subr.bf16.mxu0 0
      %1332 = vmatpush1.bf16.xpose.msra.mxu0 0
      %1333 = vmatprep.subr.bf16.mxu0 0
      %1334 = vmatpush1.bf16.xpose.msra.mxu0 0
      %1335 = vmatprep.subr.bf16.mxu0 0
      %1336 = vmatpush1.bf16.xpose.msra.mxu0 0
      %1337 = vmatprep.subr.bf16.mxu0 0
      %1338 = vmatpush1.bf16.xpose.msra.mxu0 0
      %1339 = vmatprep.subr.bf16.mxu0 0
      %1340 = vmatpush1.bf16.xpose.msra.mxu0 0
      %1341 = vmatprep.subr.bf16.mxu0 0
      %1342 = vmatpush1.bf16.xpose.msra.mxu0 0
      %1343 = vmatprep.subr.bf16.mxu0 0
      %1344 = vmatpush1.bf16.xpose.msra.mxu0 0
      %1345 = vmatprep.subr.bf16.mxu0 0
      %1346 = vmatpush1.bf16.xpose.msra.mxu0 0
      %1347 = vmatprep.subr.bf16.mxu0 0
      %1348 = vmatpush1.bf16.xpose.msra.mxu0 0
      %1349 = vmatprep.subr.bf16.mxu0 0
      %1350 = vmatpush1.bf16.xpose.msra.mxu0 0
      %1351 = vmatprep.subr.bf16.mxu0 0
      %1352 = vmatpush1.bf16.xpose.msra.mxu0 0
      %1353 = vmatprep.subr.bf16.mxu0 0
      %1354 = vmatpush1.bf16.xpose.msra.mxu0 0
      %1355 = vmatprep.subr.bf16.mxu0 0
      %1356 = vmatpush1.bf16.xpose.msra.mxu0 0
      %1357 = vmatprep.subr.bf16.mxu0 0
      %1358 = vmatpush1.bf16.xpose.msra.mxu0 0
      %1359 = vmatprep.mubr.bf16.mxu0 0
      %1360 = vmatmul.mubr.bf16.gmra.mrb[0].mxu0 %v1322
      %v1361 = vpop.f32.mrb[0].mxu0
      %v1362 = vadd.f32 0.0, %v1361
      %v1363 = vpop.f32.mrb[0].mxu0
      %v1364 = vpop.f32.mrb[0].mxu0
      %v1365 = vadd.f32 0.0, %v1364
      %v1366 = vpop.f32.mrb[0].mxu0
      %1367 = vdwg.mxu0
      %v1368 = vsel %vm1075, %v1362, -inf
      %1369 = vmax.xlane.f32.xlu0 %v1368
      %v1370 = vpop.xlane.xlu0 %1369
      %v1371 = vsel %vm1075, %v1365, -inf
      %1372 = vmax.xlane.f32.xlu0 %v1371
      %v1373 = vpop.xlane.xlu0 %1372
      %v1374 = vsub.f32 %v1362, %v1370
      %v1375 = vsub.f32 %v1365, %v1373
      %v1376 = vmul.f32 %v1374, 1.442695
      %v1377 = vpow.pop %v1376
      %v1378 = vmul.f32 %v1375, 1.442695
      %v1379 = vpow.pop %v1378
      %v1380 = vsel %vm1075, %v1377, 0.0
      %1381 = vadd.xlane.f32.xlu0 %v1380
      %v1382 = vpop.xlane.xlu0 %1381
      %v1383 = vsel %vm1075, %v1379, 0.0
      %1384 = vadd.xlane.f32.xlu0 %v1383
      %v1385 = vpop.xlane.xlu0 %1384
      %v1386 = vrcp.pop %v1382
      %v1387 = vrcp.pop %v1385
      %v1388 = vmul.f32 %v1377, %v1386
      %v1389 = vmul.f32 %v1379, %v1387
      %v1390 = vpack.c.bf16 %v1389, %v1388
      %1391 = vrot.lane.b32.xlu0 %v1195, 56
      %v1392 = vpop.permute.xlu0 %1391
      %v1395 = vsel %vm1075, %v1390, 0
      %1397 = vmatprep.subr.bf16.mxu0 0
      %1398 = vmatpush1.bf16.msra.mxu0 %v1392
      %1399 = vmatprep.subr.bf16.mxu0 0
      %1400 = vmatpush1.bf16.msra.mxu0 0
      %1401 = vmatprep.subr.bf16.mxu0 0
      %1402 = vmatpush1.bf16.msra.mxu0 0
      %1403 = vmatprep.subr.bf16.mxu0 0
      %1404 = vmatpush1.bf16.msra.mxu0 0
      %1405 = vmatprep.subr.bf16.mxu0 0
      %1406 = vmatpush1.bf16.msra.mxu0 0
      %1407 = vmatprep.subr.bf16.mxu0 0
      %1408 = vmatpush1.bf16.msra.mxu0 0
      %1409 = vmatprep.subr.bf16.mxu0 0
      %1410 = vmatpush1.bf16.msra.mxu0 0
      %1411 = vmatprep.subr.bf16.mxu0 0
      %1412 = vmatpush1.bf16.msra.mxu0 0
      %1413 = vmatprep.subr.bf16.mxu0 0
      %1414 = vmatpush1.bf16.msra.mxu0 0
      %1415 = vmatprep.subr.bf16.mxu0 0
      %1416 = vmatpush1.bf16.msra.mxu0 0
      %1417 = vmatprep.subr.bf16.mxu0 0
      %1418 = vmatpush1.bf16.msra.mxu0 0
      %1419 = vmatprep.subr.bf16.mxu0 0
      %1420 = vmatpush1.bf16.msra.mxu0 0
      %1421 = vmatprep.subr.bf16.mxu0 0
      %1422 = vmatpush1.bf16.msra.mxu0 0
      %1423 = vmatprep.subr.bf16.mxu0 0
      %1424 = vmatpush1.bf16.msra.mxu0 0
      %1425 = vmatprep.subr.bf16.mxu0 0
      %1426 = vmatpush1.bf16.msra.mxu0 0
      %1427 = vmatprep.subr.bf16.mxu0 0
      %1428 = vmatpush1.bf16.msra.mxu0 0
      %1429 = vmatprep.mubr.bf16.mxu0 0
      %1430 = vmatmul.mubr.bf16.gmra.mrb[0].mxu0 %v1395
      %v1431 = vpop.f32.mrb[0].mxu0
      %v1432 = vadd.f32 0.0, %v1431
      %v1433 = vpop.f32.mrb[0].mxu0
      %v1434 = vpop.f32.mrb[0].mxu0
      %v1435 = vadd.f32 0.0, %v1434
      %v1436 = vpop.f32.mrb[0].mxu0
      %1437 = vdwg.mxu0
      %1438 = vrot.lane.b32.xlu0 %v1195, 112
      %v1439 = vpop.permute.xlu0 %1438
      %1440 = vrot.lane.b32.xlu0 %v1195, 80
      %v1441 = vpop.permute.xlu0 %1440
      %v1443 = vsel %vm1199, %v1439, 0
      %v1446 = vsel %vm1199, %v1441, 0
      %1448 = vmatprep.subr.bf16.mxu0 0
      %1449 = vmatpush1.bf16.xpose.msra.mxu0 %v1446
      %1450 = vmatprep.subr.bf16.mxu0 0
      %1451 = vmatpush1.bf16.xpose.msra.mxu0 0
      %1452 = vmatprep.subr.bf16.mxu0 0
      %1453 = vmatpush1.bf16.xpose.msra.mxu0 0
      %1454 = vmatprep.subr.bf16.mxu0 0
      %1455 = vmatpush1.bf16.xpose.msra.mxu0 0
      %1456 = vmatprep.subr.bf16.mxu0 0
      %1457 = vmatpush1.bf16.xpose.msra.mxu0 0
      %1458 = vmatprep.subr.bf16.mxu0 0
      %1459 = vmatpush1.bf16.xpose.msra.mxu0 0
      %1460 = vmatprep.subr.bf16.mxu0 0
      %1461 = vmatpush1.bf16.xpose.msra.mxu0 0
      %1462 = vmatprep.subr.bf16.mxu0 0
      %1463 = vmatpush1.bf16.xpose.msra.mxu0 0
      %1464 = vmatprep.subr.bf16.mxu0 0
      %1465 = vmatpush1.bf16.xpose.msra.mxu0 0
      %1466 = vmatprep.subr.bf16.mxu0 0
      %1467 = vmatpush1.bf16.xpose.msra.mxu0 0
      %1468 = vmatprep.subr.bf16.mxu0 0
      %1469 = vmatpush1.bf16.xpose.msra.mxu0 0
      %1470 = vmatprep.subr.bf16.mxu0 0
      %1471 = vmatpush1.bf16.xpose.msra.mxu0 0
      %1472 = vmatprep.subr.bf16.mxu0 0
      %1473 = vmatpush1.bf16.xpose.msra.mxu0 0
      %1474 = vmatprep.subr.bf16.mxu0 0
      %1475 = vmatpush1.bf16.xpose.msra.mxu0 0
      %1476 = vmatprep.subr.bf16.mxu0 0
      %1477 = vmatpush1.bf16.xpose.msra.mxu0 0
      %1478 = vmatprep.subr.bf16.mxu0 0
      %1479 = vmatpush1.bf16.xpose.msra.mxu0 0
      %1480 = vmatprep.mubr.bf16.mxu0 0
      %1481 = vmatmul.mubr.bf16.gmra.mrb[0].mxu0 %v1443
      %v1482 = vpop.f32.mrb[0].mxu0
      %v1483 = vadd.f32 0.0, %v1482
      %v1484 = vpop.f32.mrb[0].mxu0
      %v1485 = vpop.f32.mrb[0].mxu0
      %v1486 = vadd.f32 0.0, %v1485
      %v1487 = vpop.f32.mrb[0].mxu0
      %1488 = vdwg.mxu0
      %v1489 = vsel %vm1075, %v1483, -inf
      %1490 = vmax.xlane.f32.xlu0 %v1489
      %v1491 = vpop.xlane.xlu0 %1490
      %v1492 = vsel %vm1075, %v1486, -inf
      %1493 = vmax.xlane.f32.xlu0 %v1492
      %v1494 = vpop.xlane.xlu0 %1493
      %v1495 = vsub.f32 %v1483, %v1491
      %v1496 = vsub.f32 %v1486, %v1494
      %v1497 = vmul.f32 %v1495, 1.442695
      %v1498 = vpow.pop %v1497
      %v1499 = vmul.f32 %v1496, 1.442695
      %v1500 = vpow.pop %v1499
      %v1501 = vsel %vm1075, %v1498, 0.0
      %1502 = vadd.xlane.f32.xlu0 %v1501
      %v1503 = vpop.xlane.xlu0 %1502
      %v1504 = vsel %vm1075, %v1500, 0.0
      %1505 = vadd.xlane.f32.xlu0 %v1504
      %v1506 = vpop.xlane.xlu0 %1505
      %v1507 = vrcp.pop %v1503
      %v1508 = vrcp.pop %v1506
      %v1509 = vmul.f32 %v1498, %v1507
      %v1510 = vmul.f32 %v1500, %v1508
      %v1511 = vpack.c.bf16 %v1510, %v1509
      %1512 = vrot.lane.b32.xlu0 %v1195, 48
      %v1513 = vpop.permute.xlu0 %1512
      %v1516 = vsel %vm1075, %v1511, 0
      %1518 = vmatprep.subr.bf16.mxu0 0
      %1519 = vmatpush1.bf16.msra.mxu0 %v1513
      %1520 = vmatprep.subr.bf16.mxu0 0
      %1521 = vmatpush1.bf16.msra.mxu0 0
      %1522 = vmatprep.subr.bf16.mxu0 0
      %1523 = vmatpush1.bf16.msra.mxu0 0
      %1524 = vmatprep.subr.bf16.mxu0 0
      %1525 = vmatpush1.bf16.msra.mxu0 0
      %1526 = vmatprep.subr.bf16.mxu0 0
      %1527 = vmatpush1.bf16.msra.mxu0 0
      %1528 = vmatprep.subr.bf16.mxu0 0
      %1529 = vmatpush1.bf16.msra.mxu0 0
      %1530 = vmatprep.subr.bf16.mxu0 0
      %1531 = vmatpush1.bf16.msra.mxu0 0
      %1532 = vmatprep.subr.bf16.mxu0 0
      %1533 = vmatpush1.bf16.msra.mxu0 0
      %1534 = vmatprep.subr.bf16.mxu0 0
      %1535 = vmatpush1.bf16.msra.mxu0 0
      %1536 = vmatprep.subr.bf16.mxu0 0
      %1537 = vmatpush1.bf16.msra.mxu0 0
      %1538 = vmatprep.subr.bf16.mxu0 0
      %1539 = vmatpush1.bf16.msra.mxu0 0
      %1540 = vmatprep.subr.bf16.mxu0 0
      %1541 = vmatpush1.bf16.msra.mxu0 0
      %1542 = vmatprep.subr.bf16.mxu0 0
      %1543 = vmatpush1.bf16.msra.mxu0 0
      %1544 = vmatprep.subr.bf16.mxu0 0
      %1545 = vmatpush1.bf16.msra.mxu0 0
      %1546 = vmatprep.subr.bf16.mxu0 0
      %1547 = vmatpush1.bf16.msra.mxu0 0
      %1548 = vmatprep.subr.bf16.mxu0 0
      %1549 = vmatpush1.bf16.msra.mxu0 0
      %1550 = vmatprep.mubr.bf16.mxu0 0
      %1551 = vmatmul.mubr.bf16.gmra.mrb[0].mxu0 %v1516
      %v1552 = vpop.f32.mrb[0].mxu0
      %v1553 = vadd.f32 0.0, %v1552
      %v1554 = vpop.f32.mrb[0].mxu0
      %v1555 = vpop.f32.mrb[0].mxu0
      %v1556 = vadd.f32 0.0, %v1555
      %v1557 = vpop.f32.mrb[0].mxu0
      %1558 = vdwg.mxu0
      %1559 = vrot.lane.b32.xlu0 %v1195, 104
      %v1560 = vpop.permute.xlu0 %1559
      %1561 = vrot.lane.b32.xlu0 %v1195, 72
      %v1562 = vpop.permute.xlu0 %1561
      %v1564 = vsel %vm1199, %v1560, 0
      %v1567 = vsel %vm1199, %v1562, 0
      %1569 = vmatprep.subr.bf16.mxu0 0
      %1570 = vmatpush1.bf16.xpose.msra.mxu0 %v1567
      %1571 = vmatprep.subr.bf16.mxu0 0
      %1572 = vmatpush1.bf16.xpose.msra.mxu0 0
      %1573 = vmatprep.subr.bf16.mxu0 0
      %1574 = vmatpush1.bf16.xpose.msra.mxu0 0
      %1575 = vmatprep.subr.bf16.mxu0 0
      %1576 = vmatpush1.bf16.xpose.msra.mxu0 0
      %1577 = vmatprep.subr.bf16.mxu0 0
      %1578 = vmatpush1.bf16.xpose.msra.mxu0 0
      %1579 = vmatprep.subr.bf16.mxu0 0
      %1580 = vmatpush1.bf16.xpose.msra.mxu0 0
      %1581 = vmatprep.subr.bf16.mxu0 0
      %1582 = vmatpush1.bf16.xpose.msra.mxu0 0
      %1583 = vmatprep.subr.bf16.mxu0 0
      %1584 = vmatpush1.bf16.xpose.msra.mxu0 0
      %1585 = vmatprep.subr.bf16.mxu0 0
      %1586 = vmatpush1.bf16.xpose.msra.mxu0 0
      %1587 = vmatprep.subr.bf16.mxu0 0
      %1588 = vmatpush1.bf16.xpose.msra.mxu0 0
      %1589 = vmatprep.subr.bf16.mxu0 0
      %1590 = vmatpush1.bf16.xpose.msra.mxu0 0
      %1591 = vmatprep.subr.bf16.mxu0 0
      %1592 = vmatpush1.bf16.xpose.msra.mxu0 0
      %1593 = vmatprep.subr.bf16.mxu0 0
      %1594 = vmatpush1.bf16.xpose.msra.mxu0 0
      %1595 = vmatprep.subr.bf16.mxu0 0
      %1596 = vmatpush1.bf16.xpose.msra.mxu0 0
      %1597 = vmatprep.subr.bf16.mxu0 0
      %1598 = vmatpush1.bf16.xpose.msra.mxu0 0
      %1599 = vmatprep.subr.bf16.mxu0 0
      %1600 = vmatpush1.bf16.xpose.msra.mxu0 0
      %1601 = vmatprep.mubr.bf16.mxu0 0
      %1602 = vmatmul.mubr.bf16.gmra.mrb[0].mxu0 %v1564
      %v1603 = vpop.f32.mrb[0].mxu0
      %v1604 = vadd.f32 0.0, %v1603
      %v1605 = vpop.f32.mrb[0].mxu0
      %v1606 = vpop.f32.mrb[0].mxu0
      %v1607 = vadd.f32 0.0, %v1606
      %v1608 = vpop.f32.mrb[0].mxu0
      %1609 = vdwg.mxu0
      %v1610 = vsel %vm1075, %v1604, -inf
      %1611 = vmax.xlane.f32.xlu0 %v1610
      %v1612 = vpop.xlane.xlu0 %1611
      %v1613 = vsel %vm1075, %v1607, -inf
      %1614 = vmax.xlane.f32.xlu0 %v1613
      %v1615 = vpop.xlane.xlu0 %1614
      %v1616 = vsub.f32 %v1604, %v1612
      %v1617 = vsub.f32 %v1607, %v1615
      %v1618 = vmul.f32 %v1616, 1.442695
      %v1619 = vpow.pop %v1618
      %v1620 = vmul.f32 %v1617, 1.442695
      %v1621 = vpow.pop %v1620
      %v1622 = vsel %vm1075, %v1619, 0.0
      %1623 = vadd.xlane.f32.xlu0 %v1622
      %v1624 = vpop.xlane.xlu0 %1623
      %v1625 = vsel %vm1075, %v1621, 0.0
      %1626 = vadd.xlane.f32.xlu0 %v1625
      %v1627 = vpop.xlane.xlu0 %1626
      %v1628 = vrcp.pop %v1624
      %v1629 = vrcp.pop %v1627
      %v1630 = vmul.f32 %v1619, %v1628
      %v1631 = vmul.f32 %v1621, %v1629
      %v1632 = vpack.c.bf16 %v1631, %v1630
      %1633 = vrot.lane.b32.xlu0 %v1195, 40
      %v1634 = vpop.permute.xlu0 %1633
      %v1637 = vsel %vm1075, %v1632, 0
      %1639 = vmatprep.subr.bf16.mxu0 0
      %1640 = vmatpush1.bf16.msra.mxu0 %v1634
      %1641 = vmatprep.subr.bf16.mxu0 0
      %1642 = vmatpush1.bf16.msra.mxu0 0
      %1643 = vmatprep.subr.bf16.mxu0 0
      %1644 = vmatpush1.bf16.msra.mxu0 0
      %1645 = vmatprep.subr.bf16.mxu0 0
      %1646 = vmatpush1.bf16.msra.mxu0 0
      %1647 = vmatprep.subr.bf16.mxu0 0
      %1648 = vmatpush1.bf16.msra.mxu0 0
      %1649 = vmatprep.subr.bf16.mxu0 0
      %1650 = vmatpush1.bf16.msra.mxu0 0
      %1651 = vmatprep.subr.bf16.mxu0 0
      %1652 = vmatpush1.bf16.msra.mxu0 0
      %1653 = vmatprep.subr.bf16.mxu0 0
      %1654 = vmatpush1.bf16.msra.mxu0 0
      %1655 = vmatprep.subr.bf16.mxu0 0
      %1656 = vmatpush1.bf16.msra.mxu0 0
      %1657 = vmatprep.subr.bf16.mxu0 0
      %1658 = vmatpush1.bf16.msra.mxu0 0
      %1659 = vmatprep.subr.bf16.mxu0 0
      %1660 = vmatpush1.bf16.msra.mxu0 0
      %1661 = vmatprep.subr.bf16.mxu0 0
      %1662 = vmatpush1.bf16.msra.mxu0 0
      %1663 = vmatprep.subr.bf16.mxu0 0
      %1664 = vmatpush1.bf16.msra.mxu0 0
      %1665 = vmatprep.subr.bf16.mxu0 0
      %1666 = vmatpush1.bf16.msra.mxu0 0
      %1667 = vmatprep.subr.bf16.mxu0 0
      %1668 = vmatpush1.bf16.msra.mxu0 0
      %1669 = vmatprep.subr.bf16.mxu0 0
      %1670 = vmatpush1.bf16.msra.mxu0 0
      %1671 = vmatprep.mubr.bf16.mxu0 0
      %1672 = vmatmul.mubr.bf16.gmra.mrb[0].mxu0 %v1637
      %v1673 = vpop.f32.mrb[0].mxu0
      %v1674 = vadd.f32 0.0, %v1673
      %v1675 = vpop.f32.mrb[0].mxu0
      %v1676 = vpop.f32.mrb[0].mxu0
      %v1677 = vadd.f32 0.0, %v1676
      %v1678 = vpop.f32.mrb[0].mxu0
      %1679 = vdwg.mxu0
      %1682 = vrot.lane.b32.xlu0 %v1432, 8
      %v1683 = vpop.permute.xlu0 %1682
      %1684 = vrot.lane.b32.xlu0 %v1435, 8
      %v1685 = vpop.permute.xlu0 %1684
      %1690 = vrot.lane.b32.xlu0 %v1553, 16
      %v1691 = vpop.permute.xlu0 %1690
      %1692 = vrot.lane.b32.xlu0 %v1556, 16
      %v1693 = vpop.permute.xlu0 %1692
      %1698 = vrot.lane.b32.xlu0 %v1674, 24
      %v1699 = vpop.permute.xlu0 %1698
      %1700 = vrot.lane.b32.xlu0 %v1677, 24
      %v1701 = vpop.permute.xlu0 %1700
      %v1704 = vsel %vm1199, %v1311, %v1683
      %v1705 = vsel %vm1199, %v1314, %v1685
      %v1706 = vsel %vm1075, %v1704, %v1691
      %v1707 = vsel %vm1075, %v1705, %v1693
      %vm1708 = vcmask 195584
      %v1709 = vsel %vm1708, %v1706, %v1699
      %v1710 = vsel %vm1708, %v1707, %v1701
      %v1711 = vpack.c.bf16 %v1710, %v1709
      %v1713 = vlaneseq
      %v1714 = vshrl.u32 %v1713, 7
      %v1715 = vsub.s32 0, %v1714
      %v1716 = vrot.slane %v1194, %v1715
      %v1722 = vunpack.c.l.b16 %v1190
      %v1723 = vunpack.c.l.b16 %v1191
      %v1724 = vunpack.c.l.b16 %v1192
      %v1725 = vunpack.c.l.b16 %v1193
      %v1726 = vpack.c.b16 %v1723, %v1722
      %v1727 = vpack.c.b16 %v1725, %v1724
      %v1731 = vsel %vm1145, %v1711, 0
      %1733 = vmatprep.subr.bf16.mxu0 0
      %1734 = vmatpush1.bf16.msra.mxu0 %v1726
      %1735 = vmatprep.subr.bf16.mxu0 0
      %1736 = vmatpush1.bf16.msra.mxu0 %v1727
      %1737 = vmatprep.subr.bf16.mxu0 0
      %1738 = vmatpush1.bf16.msra.mxu0 0
      %1739 = vmatprep.subr.bf16.mxu0 0
      %1740 = vmatpush1.bf16.msra.mxu0 0
      %1741 = vmatprep.subr.bf16.mxu0 0
      %1742 = vmatpush1.bf16.msra.mxu0 0
      %1743 = vmatprep.subr.bf16.mxu0 0
      %1744 = vmatpush1.bf16.msra.mxu0 0
      %1745 = vmatprep.subr.bf16.mxu0 0
      %1746 = vmatpush1.bf16.msra.mxu0 0
      %1747 = vmatprep.subr.bf16.mxu0 0
      %1748 = vmatpush1.bf16.msra.mxu0 0
      %1749 = vmatprep.subr.bf16.mxu0 0
      %1750 = vmatpush1.bf16.msra.mxu0 0
      %1751 = vmatprep.subr.bf16.mxu0 0
      %1752 = vmatpush1.bf16.msra.mxu0 0
      %1753 = vmatprep.subr.bf16.mxu0 0
      %1754 = vmatpush1.bf16.msra.mxu0 0
      %1755 = vmatprep.subr.bf16.mxu0 0
      %1756 = vmatpush1.bf16.msra.mxu0 0
      %1757 = vmatprep.subr.bf16.mxu0 0
      %1758 = vmatpush1.bf16.msra.mxu0 0
      %1759 = vmatprep.subr.bf16.mxu0 0
      %1760 = vmatpush1.bf16.msra.mxu0 0
      %1761 = vmatprep.subr.bf16.mxu0 0
      %1762 = vmatpush1.bf16.msra.mxu0 0
      %1763 = vmatprep.subr.bf16.mxu0 0
      %1764 = vmatpush1.bf16.msra.mxu0 0
      %1765 = vmatprep.mubr.bf16.mxu0 0
      %1766 = vmatmul.mubr.bf16.gmra.mrb[0].mxu0 %v1731
      %v1767 = vpop.f32.mrb[0].mxu0
      %v1768 = vadd.f32 %v1716, %v1767
      %v1769 = vpop.f32.mrb[0].mxu0
      %v1770 = vpop.f32.mrb[0].mxu0
      %v1771 = vadd.f32 %v1716, %v1770
      %v1772 = vpop.f32.mrb[0].mxu0
      %1773 = vdwg.mxu0
      %v1774 = vadd.f32 %v1114, %v1768
      %v1775 = vadd.f32 %v1117, %v1771
      %v1776 = vsel %vm1145, %v1774, 0.0
      %1777 = vadd.xlane.f32.xlu0 %v1776
      %v1778 = vpop.xlane.xlu0 %1777
      %v1779 = vsel %vm1145, %v1775, 0.0
      %1780 = vadd.xlane.f32.xlu0 %v1779
      %v1781 = vpop.xlane.xlu0 %1780
      %v1782 = vrcp.pop 32.0
      %v1783 = vmul.f32 %v1778, %v1782
      %v1784 = vmul.f32 %v1781, %v1782
      %v1785 = vsub.f32 %v1774, %v1783
      %v1786 = vsub.f32 %v1775, %v1784
      %v1787 = vmul.f32 %v1785, %v1785
      %v1788 = vmul.f32 %v1786, %v1786
      %v1789 = vsel %vm1145, %v1787, 0.0
      %1790 = vadd.xlane.f32.xlu0 %v1789
      %v1791 = vpop.xlane.xlu0 %1790
      %v1792 = vsel %vm1145, %v1788, 0.0
      %1793 = vadd.xlane.f32.xlu0 %v1792
      %v1794 = vpop.xlane.xlu0 %1793
      %v1795 = vmul.f32 %v1791, %v1782
      %v1796 = vmul.f32 %v1794, %v1782
      %v1797 = vadd.f32 %v1795, 1e-05
      %v1798 = vadd.f32 %v1796, 1e-05
      %v1799 = vrsqrt.pop %v1797
      %v1800 = vrsqrt.pop %v1798
      %v1801 = vmul.f32 %v1785, %v1799
      %v1802 = vmul.f32 %v1786, %v1800
      %v1803 = vlaneseq
      %v1804 = vshrl.u32 %v1803, 7
      %v1805 = vsub.s32 0, %v1804
      %v1806 = vrot.slane %v1120, %v1805
      %v1807 = vmul.f32 %v1801, %v1806
      %v1808 = vmul.f32 %v1802, %v1806
      %v1809 = vlaneseq
      %v1810 = vshrl.u32 %v1809, 7
      %v1811 = vsub.s32 1, %v1810
      %v1812 = vrot.slane %v1120, %v1811
      %v1813 = vadd.f32 %v1807, %v1812
      %v1814 = vadd.f32 %v1808, %v1812
      %v1815 = vpack.c.bf16 %v1814, %v1813
      %v1816 = vld [vmem:[%s21] sm:$0xf]
      %v1817 = vld [vmem:[%s21 + $0x4] sm:$0xf]
      %v1818 = vld [vmem:[%s21 + $0x8] sm:$0xf]
      %v1819 = vld [vmem:[%s21 + $0xc] sm:$0xf]
      %v1820 = vld [vmem:[%s23] sm:$0x1]
      %v1822 = vlaneseq
      %v1823 = vshrl.u32 %v1822, 7
      %v1824 = vsub.s32 0, %v1823
      %v1825 = vrot.slane %v1820, %v1824
      %v1831 = vunpack.c.l.b16 %v1816
      %v1832 = vunpack.c.l.b16 %v1817
      %v1833 = vunpack.c.l.b16 %v1818
      %v1834 = vunpack.c.l.b16 %v1819
      %v1835 = vpack.c.b16 %v1832, %v1831
      %v1836 = vpack.c.b16 %v1834, %v1833
      %v1840 = vsel %vm1145, %v1815, 0
      %1842 = vmatprep.subr.bf16.mxu0 0
      %1843 = vmatpush1.bf16.msra.mxu0 %v1835
      %1844 = vmatprep.subr.bf16.mxu0 0
      %1845 = vmatpush1.bf16.msra.mxu0 %v1836
      %1846 = vmatprep.subr.bf16.mxu0 0
      %1847 = vmatpush1.bf16.msra.mxu0 0
      %1848 = vmatprep.subr.bf16.mxu0 0
      %1849 = vmatpush1.bf16.msra.mxu0 0
      %1850 = vmatprep.subr.bf16.mxu0 0
      %1851 = vmatpush1.bf16.msra.mxu0 0
      %1852 = vmatprep.subr.bf16.mxu0 0
      %1853 = vmatpush1.bf16.msra.mxu0 0
      %1854 = vmatprep.subr.bf16.mxu0 0
      %1855 = vmatpush1.bf16.msra.mxu0 0
      %1856 = vmatprep.subr.bf16.mxu0 0
      %1857 = vmatpush1.bf16.msra.mxu0 0
      %1858 = vmatprep.subr.bf16.mxu0 0
      %1859 = vmatpush1.bf16.msra.mxu0 0
      %1860 = vmatprep.subr.bf16.mxu0 0
      %1861 = vmatpush1.bf16.msra.mxu0 0
      %1862 = vmatprep.subr.bf16.mxu0 0
      %1863 = vmatpush1.bf16.msra.mxu0 0
      %1864 = vmatprep.subr.bf16.mxu0 0
      %1865 = vmatpush1.bf16.msra.mxu0 0
      %1866 = vmatprep.subr.bf16.mxu0 0
      %1867 = vmatpush1.bf16.msra.mxu0 0
      %1868 = vmatprep.subr.bf16.mxu0 0
      %1869 = vmatpush1.bf16.msra.mxu0 0
      %1870 = vmatprep.subr.bf16.mxu0 0
      %1871 = vmatpush1.bf16.msra.mxu0 0
      %1872 = vmatprep.subr.bf16.mxu0 0
      %1873 = vmatpush1.bf16.msra.mxu0 0
      %1874 = vmatprep.mubr.bf16.mxu0 0
      %1875 = vmatmul.mubr.bf16.gmra.mrb[0].mxu0 %v1840
      %v1876 = vpop.f32.mrb[0].mxu0
      %v1877 = vadd.f32 %v1825, %v1876
      %v1878 = vpop.f32.mrb[0].mxu0
      %v1879 = vpop.f32.mrb[0].mxu0
      %v1880 = vadd.f32 %v1825, %v1879
      %v1881 = vpop.f32.mrb[0].mxu0
      %1882 = vdwg.mxu0
      %v1883 = vmax.f32 %v1877, 0.0
      %v1884 = vmax.f32 %v1880, 0.0
      %v1885 = vpack.c.bf16 %v1884, %v1883
      %v1886 = vld [vmem:[%s25] sm:$0xf]
      %v1887 = vld [vmem:[%s25 + $0x4] sm:$0xf]
      %v1888 = vld [vmem:[%s25 + $0x8] sm:$0xf]
      %v1889 = vld [vmem:[%s25 + $0xc] sm:$0xf]
      %v1890 = vld [vmem:[%s25 + $0x10] sm:$0xf]
      %v1891 = vld [vmem:[%s25 + $0x14] sm:$0xf]
      %v1892 = vld [vmem:[%s25 + $0x18] sm:$0xf]
      %v1893 = vld [vmem:[%s25 + $0x1c] sm:$0xf]
      %v1894 = vld [vmem:[%s27] sm:$0x1]
      %v1896 = vlaneseq
      %v1897 = vshrl.u32 %v1896, 7
      %v1898 = vsub.s32 0, %v1897
      %v1899 = vrot.slane %v1894, %v1898
      %v1909 = vunpack.c.l.b16 %v1886
      %v1910 = vunpack.c.l.b16 %v1887
      %v1911 = vunpack.c.l.b16 %v1888
      %v1912 = vunpack.c.l.b16 %v1889
      %v1913 = vunpack.c.l.b16 %v1890
      %v1914 = vunpack.c.l.b16 %v1891
      %v1915 = vunpack.c.l.b16 %v1892
      %v1916 = vunpack.c.l.b16 %v1893
      %v1917 = vpack.c.b16 %v1910, %v1909
      %v1918 = vpack.c.b16 %v1912, %v1911
      %v1919 = vpack.c.b16 %v1914, %v1913
      %v1920 = vpack.c.b16 %v1916, %v1915
      %vm1925 = vcmask 523264
      %v1927 = vsel %vm1925, %v1885, 0
      %1929 = vmatprep.subr.bf16.mxu0 0
      %1930 = vmatpush1.bf16.msra.mxu0 %v1917
      %1931 = vmatprep.subr.bf16.mxu0 0
      %1932 = vmatpush1.bf16.msra.mxu0 %v1918
      %1933 = vmatprep.subr.bf16.mxu0 0
      %1934 = vmatpush1.bf16.msra.mxu0 %v1919
      %1935 = vmatprep.subr.bf16.mxu0 0
      %1936 = vmatpush1.bf16.msra.mxu0 %v1920
      %1937 = vmatprep.subr.bf16.mxu0 0
      %1938 = vmatpush1.bf16.msra.mxu0 0
      %1939 = vmatprep.subr.bf16.mxu0 0
      %1940 = vmatpush1.bf16.msra.mxu0 0
      %1941 = vmatprep.subr.bf16.mxu0 0
      %1942 = vmatpush1.bf16.msra.mxu0 0
      %1943 = vmatprep.subr.bf16.mxu0 0
      %1944 = vmatpush1.bf16.msra.mxu0 0
      %1945 = vmatprep.subr.bf16.mxu0 0
      %1946 = vmatpush1.bf16.msra.mxu0 0
      %1947 = vmatprep.subr.bf16.mxu0 0
      %1948 = vmatpush1.bf16.msra.mxu0 0
      %1949 = vmatprep.subr.bf16.mxu0 0
      %1950 = vmatpush1.bf16.msra.mxu0 0
      %1951 = vmatprep.subr.bf16.mxu0 0
      %1952 = vmatpush1.bf16.msra.mxu0 0
      %1953 = vmatprep.subr.bf16.mxu0 0
      %1954 = vmatpush1.bf16.msra.mxu0 0
      %1955 = vmatprep.subr.bf16.mxu0 0
      %1956 = vmatpush1.bf16.msra.mxu0 0
      %1957 = vmatprep.subr.bf16.mxu0 0
      %1958 = vmatpush1.bf16.msra.mxu0 0
      %1959 = vmatprep.subr.bf16.mxu0 0
      %1960 = vmatpush1.bf16.msra.mxu0 0
      %1961 = vmatprep.mubr.bf16.mxu0 0
      %1962 = vmatmul.mubr.bf16.gmra.mrb[0].mxu0 %v1927
      %v1963 = vpop.f32.mrb[0].mxu0
      %v1964 = vadd.f32 %v1899, %v1963
      %v1965 = vpop.f32.mrb[0].mxu0
      %v1966 = vpop.f32.mrb[0].mxu0
      %v1967 = vadd.f32 %v1899, %v1966
      %v1968 = vpop.f32.mrb[0].mxu0
      %1969 = vdwg.mxu0
      %v1970 = vadd.f32 %v1813, %v1964
      %v1971 = vadd.f32 %v1814, %v1967
      %v1972 = vsel %vm1145, %v1970, 0.0
      %1973 = vadd.xlane.f32.xlu0 %v1972
      %v1974 = vpop.xlane.xlu0 %1973
      %v1975 = vsel %vm1145, %v1971, 0.0
      %1976 = vadd.xlane.f32.xlu0 %v1975
      %v1977 = vpop.xlane.xlu0 %1976
      %v1978 = vmul.f32 %v1974, %v1782
      %v1979 = vmul.f32 %v1977, %v1782
      %v1980 = vsub.f32 %v1970, %v1978
      %v1981 = vsub.f32 %v1971, %v1979
      %v1982 = vmul.f32 %v1980, %v1980
      %v1983 = vmul.f32 %v1981, %v1981
      %v1984 = vsel %vm1145, %v1982, 0.0
      %1985 = vadd.xlane.f32.xlu0 %v1984
      %v1986 = vpop.xlane.xlu0 %1985
      %v1987 = vsel %vm1145, %v1983, 0.0
      %1988 = vadd.xlane.f32.xlu0 %v1987
      %v1989 = vpop.xlane.xlu0 %1988
      %v1990 = vmul.f32 %v1986, %v1782
      %v1991 = vmul.f32 %v1989, %v1782
      %v1992 = vadd.f32 %v1990, 1e-05
      %v1993 = vadd.f32 %v1991, 1e-05
      %v1994 = vrsqrt.pop %v1992
      %v1995 = vrsqrt.pop %v1993
      %v1996 = vmul.f32 %v1980, %v1994
      %v1997 = vmul.f32 %v1981, %v1995
      %v1998 = vlaneseq
      %v1999 = vshrl.u32 %v1998, 7
      %v2000 = vsub.s32 2, %v1999
      %v2001 = vrot.slane %v1120, %v2000
      %v2002 = vmul.f32 %v1996, %v2001
      %v2003 = vmul.f32 %v1997, %v2001
      %v2004 = vlaneseq
      %v2005 = vshrl.u32 %v2004, 7
      %v2006 = vsub.s32 3, %v2005
      %v2007 = vrot.slane %v1120, %v2006
      %v2008 = vadd.f32 %v2002, %v2007
      %v2009 = vadd.f32 %v2003, %v2007
      %s2010 = scalar_lea.vmem %s29, 4
      %v2011 = vld [vmem:[%s2010] sm:$0xf]
      %v2012 = vpack.c.bf16 %v2009, %v2008
      %s2013 = scalar_lea.vmem %s13, 16
      %v2014 = vld [vmem:[%s2013] sm:$0xf]
      %v2015 = vld [vmem:[%s2013 + $0x4] sm:$0xf]
      %v2016 = vld [vmem:[%s2013 + $0x8] sm:$0xf]
      %v2017 = vld [vmem:[%s2013 + $0xc] sm:$0xf]
      %s2018 = scalar_lea.vmem %s15, 1
      %v2019 = vld [vmem:[%s2018] sm:$0x1]
      %v2021 = vlaneseq
      %v2022 = vshrl.u32 %v2021, 7
      %v2023 = vsub.s32 0, %v2022
      %v2024 = vrot.slane %v2019, %v2023
      %v2030 = vunpack.c.l.b16 %v2014
      %v2031 = vunpack.c.l.b16 %v2015
      %v2032 = vunpack.c.l.b16 %v2016
      %v2033 = vunpack.c.l.b16 %v2017
      %v2034 = vpack.c.b16 %v2031, %v2030
      %v2035 = vpack.c.b16 %v2033, %v2032
      %v2039 = vsel %vm1145, %v2012, 0
      %2041 = vmatprep.subr.bf16.mxu0 0
      %2042 = vmatpush1.bf16.msra.mxu0 %v2034
      %2043 = vmatprep.subr.bf16.mxu0 0
      %2044 = vmatpush1.bf16.msra.mxu0 %v2035
      %2045 = vmatprep.subr.bf16.mxu0 0
      %2046 = vmatpush1.bf16.msra.mxu0 0
      %2047 = vmatprep.subr.bf16.mxu0 0
      %2048 = vmatpush1.bf16.msra.mxu0 0
      %2049 = vmatprep.subr.bf16.mxu0 0
      %2050 = vmatpush1.bf16.msra.mxu0 0
      %2051 = vmatprep.subr.bf16.mxu0 0
      %2052 = vmatpush1.bf16.msra.mxu0 0
      %2053 = vmatprep.subr.bf16.mxu0 0
      %2054 = vmatpush1.bf16.msra.mxu0 0
      %2055 = vmatprep.subr.bf16.mxu0 0
      %2056 = vmatpush1.bf16.msra.mxu0 0
      %2057 = vmatprep.subr.bf16.mxu0 0
      %2058 = vmatpush1.bf16.msra.mxu0 0
      %2059 = vmatprep.subr.bf16.mxu0 0
      %2060 = vmatpush1.bf16.msra.mxu0 0
      %2061 = vmatprep.subr.bf16.mxu0 0
      %2062 = vmatpush1.bf16.msra.mxu0 0
      %2063 = vmatprep.subr.bf16.mxu0 0
      %2064 = vmatpush1.bf16.msra.mxu0 0
      %2065 = vmatprep.subr.bf16.mxu0 0
      %2066 = vmatpush1.bf16.msra.mxu0 0
      %2067 = vmatprep.subr.bf16.mxu0 0
      %2068 = vmatpush1.bf16.msra.mxu0 0
      %2069 = vmatprep.subr.bf16.mxu0 0
      %2070 = vmatpush1.bf16.msra.mxu0 0
      %2071 = vmatprep.subr.bf16.mxu0 0
      %2072 = vmatpush1.bf16.msra.mxu0 0
      %2073 = vmatprep.mubr.bf16.mxu0 0
      %2074 = vmatmul.mubr.bf16.gmra.mrb[0].mxu0 %v2039
      %v2075 = vpop.f32.mrb[0].mxu0
      %v2076 = vadd.f32 %v2024, %v2075
      %v2077 = vpop.f32.mrb[0].mxu0
      %v2078 = vpop.f32.mrb[0].mxu0
      %v2079 = vadd.f32 %v2024, %v2078
      %v2080 = vpop.f32.mrb[0].mxu0
      %2081 = vdwg.mxu0
      %s2082 = scalar_lea.vmem %s17, 16
      %v2083 = vld [vmem:[%s2082] sm:$0xf]
      %v2084 = vld [vmem:[%s2082 + $0x4] sm:$0xf]
      %v2085 = vld [vmem:[%s2082 + $0x8] sm:$0xf]
      %v2086 = vld [vmem:[%s2082 + $0xc] sm:$0xf]
      %s2087 = scalar_lea.vmem %s19, 1
      %v2088 = vld [vmem:[%s2087] sm:$0x1]
      %v2089 = vpack.c.bf16 %v2079, %v2076
      %2091 = vrot.lane.b32.xlu0 %v2089, 96
      %v2092 = vpop.permute.xlu0 %2091
      %v2094 = vsel %vm1199, %v2089, 0
      %v2097 = vsel %vm1199, %v2092, 0
      %2099 = vmatprep.subr.bf16.mxu0 0
      %2100 = vmatpush1.bf16.xpose.msra.mxu0 %v2097
      %2101 = vmatprep.subr.bf16.mxu0 0
      %2102 = vmatpush1.bf16.xpose.msra.mxu0 0
      %2103 = vmatprep.subr.bf16.mxu0 0
      %2104 = vmatpush1.bf16.xpose.msra.mxu0 0
      %2105 = vmatprep.subr.bf16.mxu0 0
      %2106 = vmatpush1.bf16.xpose.msra.mxu0 0
      %2107 = vmatprep.subr.bf16.mxu0 0
      %2108 = vmatpush1.bf16.xpose.msra.mxu0 0
      %2109 = vmatprep.subr.bf16.mxu0 0
      %2110 = vmatpush1.bf16.xpose.msra.mxu0 0
      %2111 = vmatprep.subr.bf16.mxu0 0
      %2112 = vmatpush1.bf16.xpose.msra.mxu0 0
      %2113 = vmatprep.subr.bf16.mxu0 0
      %2114 = vmatpush1.bf16.xpose.msra.mxu0 0
      %2115 = vmatprep.subr.bf16.mxu0 0
      %2116 = vmatpush1.bf16.xpose.msra.mxu0 0
      %2117 = vmatprep.subr.bf16.mxu0 0
      %2118 = vmatpush1.bf16.xpose.msra.mxu0 0
      %2119 = vmatprep.subr.bf16.mxu0 0
      %2120 = vmatpush1.bf16.xpose.msra.mxu0 0
      %2121 = vmatprep.subr.bf16.mxu0 0
      %2122 = vmatpush1.bf16.xpose.msra.mxu0 0
      %2123 = vmatprep.subr.bf16.mxu0 0
      %2124 = vmatpush1.bf16.xpose.msra.mxu0 0
      %2125 = vmatprep.subr.bf16.mxu0 0
      %2126 = vmatpush1.bf16.xpose.msra.mxu0 0
      %2127 = vmatprep.subr.bf16.mxu0 0
      %2128 = vmatpush1.bf16.xpose.msra.mxu0 0
      %2129 = vmatprep.subr.bf16.mxu0 0
      %2130 = vmatpush1.bf16.xpose.msra.mxu0 0
      %2131 = vmatprep.mubr.bf16.mxu0 0
      %2132 = vmatmul.mubr.bf16.gmra.mrb[0].mxu0 %v2094
      %v2133 = vpop.f32.mrb[0].mxu0
      %v2134 = vadd.f32 0.0, %v2133
      %v2135 = vpop.f32.mrb[0].mxu0
      %v2136 = vpop.f32.mrb[0].mxu0
      %v2137 = vadd.f32 0.0, %v2136
      %v2138 = vpop.f32.mrb[0].mxu0
      %2139 = vdwg.mxu0
      %v2140 = vsel %vm1075, %v2134, -inf
      %2141 = vmax.xlane.f32.xlu0 %v2140
      %v2142 = vpop.xlane.xlu0 %2141
      %v2143 = vsel %vm1075, %v2137, -inf
      %2144 = vmax.xlane.f32.xlu0 %v2143
      %v2145 = vpop.xlane.xlu0 %2144
      %v2146 = vsub.f32 %v2134, %v2142
      %v2147 = vsub.f32 %v2137, %v2145
      %v2148 = vmul.f32 %v2146, 1.442695
      %v2149 = vpow.pop %v2148
      %v2150 = vmul.f32 %v2147, 1.442695
      %v2151 = vpow.pop %v2150
      %v2152 = vsel %vm1075, %v2149, 0.0
      %2153 = vadd.xlane.f32.xlu0 %v2152
      %v2154 = vpop.xlane.xlu0 %2153
      %v2155 = vsel %vm1075, %v2151, 0.0
      %2156 = vadd.xlane.f32.xlu0 %v2155
      %v2157 = vpop.xlane.xlu0 %2156
      %v2158 = vrcp.pop %v2154
      %v2159 = vrcp.pop %v2157
      %v2160 = vmul.f32 %v2149, %v2158
      %v2161 = vmul.f32 %v2151, %v2159
      %v2162 = vpack.c.bf16 %v2161, %v2160
      %2163 = vrot.lane.b32.xlu0 %v2089, 64
      %v2164 = vpop.permute.xlu0 %2163
      %v2167 = vsel %vm1075, %v2162, 0
      %2169 = vmatprep.subr.bf16.mxu0 0
      %2170 = vmatpush1.bf16.msra.mxu0 %v2164
      %2171 = vmatprep.subr.bf16.mxu0 0
      %2172 = vmatpush1.bf16.msra.mxu0 0
      %2173 = vmatprep.subr.bf16.mxu0 0
      %2174 = vmatpush1.bf16.msra.mxu0 0
      %2175 = vmatprep.subr.bf16.mxu0 0
      %2176 = vmatpush1.bf16.msra.mxu0 0
      %2177 = vmatprep.subr.bf16.mxu0 0
      %2178 = vmatpush1.bf16.msra.mxu0 0
      %2179 = vmatprep.subr.bf16.mxu0 0
      %2180 = vmatpush1.bf16.msra.mxu0 0
      %2181 = vmatprep.subr.bf16.mxu0 0
      %2182 = vmatpush1.bf16.msra.mxu0 0
      %2183 = vmatprep.subr.bf16.mxu0 0
      %2184 = vmatpush1.bf16.msra.mxu0 0
      %2185 = vmatprep.subr.bf16.mxu0 0
      %2186 = vmatpush1.bf16.msra.mxu0 0
      %2187 = vmatprep.subr.bf16.mxu0 0
      %2188 = vmatpush1.bf16.msra.mxu0 0
      %2189 = vmatprep.subr.bf16.mxu0 0
      %2190 = vmatpush1.bf16.msra.mxu0 0
      %2191 = vmatprep.subr.bf16.mxu0 0
      %2192 = vmatpush1.bf16.msra.mxu0 0
      %2193 = vmatprep.subr.bf16.mxu0 0
      %2194 = vmatpush1.bf16.msra.mxu0 0
      %2195 = vmatprep.subr.bf16.mxu0 0
      %2196 = vmatpush1.bf16.msra.mxu0 0
      %2197 = vmatprep.subr.bf16.mxu0 0
      %2198 = vmatpush1.bf16.msra.mxu0 0
      %2199 = vmatprep.subr.bf16.mxu0 0
      %2200 = vmatpush1.bf16.msra.mxu0 0
      %2201 = vmatprep.mubr.bf16.mxu0 0
      %2202 = vmatmul.mubr.bf16.gmra.mrb[0].mxu0 %v2167
      %v2203 = vpop.f32.mrb[0].mxu0
      %v2204 = vadd.f32 0.0, %v2203
      %v2205 = vpop.f32.mrb[0].mxu0
      %v2206 = vpop.f32.mrb[0].mxu0
      %v2207 = vadd.f32 0.0, %v2206
      %v2208 = vpop.f32.mrb[0].mxu0
      %2209 = vdwg.mxu0
      %2210 = vrot.lane.b32.xlu0 %v2089, 120
      %v2211 = vpop.permute.xlu0 %2210
      %2212 = vrot.lane.b32.xlu0 %v2089, 88
      %v2213 = vpop.permute.xlu0 %2212
      %v2215 = vsel %vm1199, %v2211, 0
      %v2218 = vsel %vm1199, %v2213, 0
      %2220 = vmatprep.subr.bf16.mxu0 0
      %2221 = vmatpush1.bf16.xpose.msra.mxu0 %v2218
      %2222 = vmatprep.subr.bf16.mxu0 0
      %2223 = vmatpush1.bf16.xpose.msra.mxu0 0
      %2224 = vmatprep.subr.bf16.mxu0 0
      %2225 = vmatpush1.bf16.xpose.msra.mxu0 0
      %2226 = vmatprep.subr.bf16.mxu0 0
      %2227 = vmatpush1.bf16.xpose.msra.mxu0 0
      %2228 = vmatprep.subr.bf16.mxu0 0
      %2229 = vmatpush1.bf16.xpose.msra.mxu0 0
      %2230 = vmatprep.subr.bf16.mxu0 0
      %2231 = vmatpush1.bf16.xpose.msra.mxu0 0
      %2232 = vmatprep.subr.bf16.mxu0 0
      %2233 = vmatpush1.bf16.xpose.msra.mxu0 0
      %2234 = vmatprep.subr.bf16.mxu0 0
      %2235 = vmatpush1.bf16.xpose.msra.mxu0 0
      %2236 = vmatprep.subr.bf16.mxu0 0
      %2237 = vmatpush1.bf16.xpose.msra.mxu0 0
      %2238 = vmatprep.subr.bf16.mxu0 0
      %2239 = vmatpush1.bf16.xpose.msra.mxu0 0
      %2240 = vmatprep.subr.bf16.mxu0 0
      %2241 = vmatpush1.bf16.xpose.msra.mxu0 0
      %2242 = vmatprep.subr.bf16.mxu0 0
      %2243 = vmatpush1.bf16.xpose.msra.mxu0 0
      %2244 = vmatprep.subr.bf16.mxu0 0
      %2245 = vmatpush1.bf16.xpose.msra.mxu0 0
      %2246 = vmatprep.subr.bf16.mxu0 0
      %2247 = vmatpush1.bf16.xpose.msra.mxu0 0
      %2248 = vmatprep.subr.bf16.mxu0 0
      %2249 = vmatpush1.bf16.xpose.msra.mxu0 0
      %2250 = vmatprep.subr.bf16.mxu0 0
      %2251 = vmatpush1.bf16.xpose.msra.mxu0 0
      %2252 = vmatprep.mubr.bf16.mxu0 0
      %2253 = vmatmul.mubr.bf16.gmra.mrb[0].mxu0 %v2215
      %v2254 = vpop.f32.mrb[0].mxu0
      %v2255 = vadd.f32 0.0, %v2254
      %v2256 = vpop.f32.mrb[0].mxu0
      %v2257 = vpop.f32.mrb[0].mxu0
      %v2258 = vadd.f32 0.0, %v2257
      %v2259 = vpop.f32.mrb[0].mxu0
      %2260 = vdwg.mxu0
      %v2261 = vsel %vm1075, %v2255, -inf
      %2262 = vmax.xlane.f32.xlu0 %v2261
      %v2263 = vpop.xlane.xlu0 %2262
      %v2264 = vsel %vm1075, %v2258, -inf
      %2265 = vmax.xlane.f32.xlu0 %v2264
      %v2266 = vpop.xlane.xlu0 %2265
      %v2267 = vsub.f32 %v2255, %v2263
      %v2268 = vsub.f32 %v2258, %v2266
      %v2269 = vmul.f32 %v2267, 1.442695
      %v2270 = vpow.pop %v2269
      %v2271 = vmul.f32 %v2268, 1.442695
      %v2272 = vpow.pop %v2271
      %v2273 = vsel %vm1075, %v2270, 0.0
      %2274 = vadd.xlane.f32.xlu0 %v2273
      %v2275 = vpop.xlane.xlu0 %2274
      %v2276 = vsel %vm1075, %v2272, 0.0
      %2277 = vadd.xlane.f32.xlu0 %v2276
      %v2278 = vpop.xlane.xlu0 %2277
      %v2279 = vrcp.pop %v2275
      %v2280 = vrcp.pop %v2278
      %v2281 = vmul.f32 %v2270, %v2279
      %v2282 = vmul.f32 %v2272, %v2280
      %v2283 = vpack.c.bf16 %v2282, %v2281
      %2284 = vrot.lane.b32.xlu0 %v2089, 56
      %v2285 = vpop.permute.xlu0 %2284
      %v2288 = vsel %vm1075, %v2283, 0
      %2290 = vmatprep.subr.bf16.mxu0 0
      %2291 = vmatpush1.bf16.msra.mxu0 %v2285
      %2292 = vmatprep.subr.bf16.mxu0 0
      %2293 = vmatpush1.bf16.msra.mxu0 0
      %2294 = vmatprep.subr.bf16.mxu0 0
      %2295 = vmatpush1.bf16.msra.mxu0 0
      %2296 = vmatprep.subr.bf16.mxu0 0
      %2297 = vmatpush1.bf16.msra.mxu0 0
      %2298 = vmatprep.subr.bf16.mxu0 0
      %2299 = vmatpush1.bf16.msra.mxu0 0
      %2300 = vmatprep.subr.bf16.mxu0 0
      %2301 = vmatpush1.bf16.msra.mxu0 0
      %2302 = vmatprep.subr.bf16.mxu0 0
      %2303 = vmatpush1.bf16.msra.mxu0 0
      %2304 = vmatprep.subr.bf16.mxu0 0
      %2305 = vmatpush1.bf16.msra.mxu0 0
      %2306 = vmatprep.subr.bf16.mxu0 0
      %2307 = vmatpush1.bf16.msra.mxu0 0
      %2308 = vmatprep.subr.bf16.mxu0 0
      %2309 = vmatpush1.bf16.msra.mxu0 0
      %2310 = vmatprep.subr.bf16.mxu0 0
      %2311 = vmatpush1.bf16.msra.mxu0 0
      %2312 = vmatprep.subr.bf16.mxu0 0
      %2313 = vmatpush1.bf16.msra.mxu0 0
      %2314 = vmatprep.subr.bf16.mxu0 0
      %2315 = vmatpush1.bf16.msra.mxu0 0
      %2316 = vmatprep.subr.bf16.mxu0 0
      %2317 = vmatpush1.bf16.msra.mxu0 0
      %2318 = vmatprep.subr.bf16.mxu0 0
      %2319 = vmatpush1.bf16.msra.mxu0 0
      %2320 = vmatprep.subr.bf16.mxu0 0
      %2321 = vmatpush1.bf16.msra.mxu0 0
      %2322 = vmatprep.mubr.bf16.mxu0 0
      %2323 = vmatmul.mubr.bf16.gmra.mrb[0].mxu0 %v2288
      %v2324 = vpop.f32.mrb[0].mxu0
      %v2325 = vadd.f32 0.0, %v2324
      %v2326 = vpop.f32.mrb[0].mxu0
      %v2327 = vpop.f32.mrb[0].mxu0
      %v2328 = vadd.f32 0.0, %v2327
      %v2329 = vpop.f32.mrb[0].mxu0
      %2330 = vdwg.mxu0
      %2331 = vrot.lane.b32.xlu0 %v2089, 112
      %v2332 = vpop.permute.xlu0 %2331
      %2333 = vrot.lane.b32.xlu0 %v2089, 80
      %v2334 = vpop.permute.xlu0 %2333
      %v2336 = vsel %vm1199, %v2332, 0
      %v2339 = vsel %vm1199, %v2334, 0
      %2341 = vmatprep.subr.bf16.mxu0 0
      %2342 = vmatpush1.bf16.xpose.msra.mxu0 %v2339
      %2343 = vmatprep.subr.bf16.mxu0 0
      %2344 = vmatpush1.bf16.xpose.msra.mxu0 0
      %2345 = vmatprep.subr.bf16.mxu0 0
      %2346 = vmatpush1.bf16.xpose.msra.mxu0 0
      %2347 = vmatprep.subr.bf16.mxu0 0
      %2348 = vmatpush1.bf16.xpose.msra.mxu0 0
      %2349 = vmatprep.subr.bf16.mxu0 0
      %2350 = vmatpush1.bf16.xpose.msra.mxu0 0
      %2351 = vmatprep.subr.bf16.mxu0 0
      %2352 = vmatpush1.bf16.xpose.msra.mxu0 0
      %2353 = vmatprep.subr.bf16.mxu0 0
      %2354 = vmatpush1.bf16.xpose.msra.mxu0 0
      %2355 = vmatprep.subr.bf16.mxu0 0
      %2356 = vmatpush1.bf16.xpose.msra.mxu0 0
      %2357 = vmatprep.subr.bf16.mxu0 0
      %2358 = vmatpush1.bf16.xpose.msra.mxu0 0
      %2359 = vmatprep.subr.bf16.mxu0 0
      %2360 = vmatpush1.bf16.xpose.msra.mxu0 0
      %2361 = vmatprep.subr.bf16.mxu0 0
      %2362 = vmatpush1.bf16.xpose.msra.mxu0 0
      %2363 = vmatprep.subr.bf16.mxu0 0
      %2364 = vmatpush1.bf16.xpose.msra.mxu0 0
      %2365 = vmatprep.subr.bf16.mxu0 0
      %2366 = vmatpush1.bf16.xpose.msra.mxu0 0
      %2367 = vmatprep.subr.bf16.mxu0 0
      %2368 = vmatpush1.bf16.xpose.msra.mxu0 0
      %2369 = vmatprep.subr.bf16.mxu0 0
      %2370 = vmatpush1.bf16.xpose.msra.mxu0 0
      %2371 = vmatprep.subr.bf16.mxu0 0
      %2372 = vmatpush1.bf16.xpose.msra.mxu0 0
      %2373 = vmatprep.mubr.bf16.mxu0 0
      %2374 = vmatmul.mubr.bf16.gmra.mrb[0].mxu0 %v2336
      %v2375 = vpop.f32.mrb[0].mxu0
      %v2376 = vadd.f32 0.0, %v2375
      %v2377 = vpop.f32.mrb[0].mxu0
      %v2378 = vpop.f32.mrb[0].mxu0
      %v2379 = vadd.f32 0.0, %v2378
      %v2380 = vpop.f32.mrb[0].mxu0
      %2381 = vdwg.mxu0
      %v2382 = vsel %vm1075, %v2376, -inf
      %2383 = vmax.xlane.f32.xlu0 %v2382
      %v2384 = vpop.xlane.xlu0 %2383
      %v2385 = vsel %vm1075, %v2379, -inf
      %2386 = vmax.xlane.f32.xlu0 %v2385
      %v2387 = vpop.xlane.xlu0 %2386
      %v2388 = vsub.f32 %v2376, %v2384
      %v2389 = vsub.f32 %v2379, %v2387
      %v2390 = vmul.f32 %v2388, 1.442695
      %v2391 = vpow.pop %v2390
      %v2392 = vmul.f32 %v2389, 1.442695
      %v2393 = vpow.pop %v2392
      %v2394 = vsel %vm1075, %v2391, 0.0
      %2395 = vadd.xlane.f32.xlu0 %v2394
      %v2396 = vpop.xlane.xlu0 %2395
      %v2397 = vsel %vm1075, %v2393, 0.0
      %2398 = vadd.xlane.f32.xlu0 %v2397
      %v2399 = vpop.xlane.xlu0 %2398
      %v2400 = vrcp.pop %v2396
      %v2401 = vrcp.pop %v2399
      %v2402 = vmul.f32 %v2391, %v2400
      %v2403 = vmul.f32 %v2393, %v2401
      %v2404 = vpack.c.bf16 %v2403, %v2402
      %2405 = vrot.lane.b32.xlu0 %v2089, 48
      %v2406 = vpop.permute.xlu0 %2405
      %v2409 = vsel %vm1075, %v2404, 0
      %2411 = vmatprep.subr.bf16.mxu0 0
      %2412 = vmatpush1.bf16.msra.mxu0 %v2406
      %2413 = vmatprep.subr.bf16.mxu0 0
      %2414 = vmatpush1.bf16.msra.mxu0 0
      %2415 = vmatprep.subr.bf16.mxu0 0
      %2416 = vmatpush1.bf16.msra.mxu0 0
      %2417 = vmatprep.subr.bf16.mxu0 0
      %2418 = vmatpush1.bf16.msra.mxu0 0
      %2419 = vmatprep.subr.bf16.mxu0 0
      %2420 = vmatpush1.bf16.msra.mxu0 0
      %2421 = vmatprep.subr.bf16.mxu0 0
      %2422 = vmatpush1.bf16.msra.mxu0 0
      %2423 = vmatprep.subr.bf16.mxu0 0
      %2424 = vmatpush1.bf16.msra.mxu0 0
      %2425 = vmatprep.subr.bf16.mxu0 0
      %2426 = vmatpush1.bf16.msra.mxu0 0
      %2427 = vmatprep.subr.bf16.mxu0 0
      %2428 = vmatpush1.bf16.msra.mxu0 0
      %2429 = vmatprep.subr.bf16.mxu0 0
      %2430 = vmatpush1.bf16.msra.mxu0 0
      %2431 = vmatprep.subr.bf16.mxu0 0
      %2432 = vmatpush1.bf16.msra.mxu0 0
      %2433 = vmatprep.subr.bf16.mxu0 0
      %2434 = vmatpush1.bf16.msra.mxu0 0
      %2435 = vmatprep.subr.bf16.mxu0 0
      %2436 = vmatpush1.bf16.msra.mxu0 0
      %2437 = vmatprep.subr.bf16.mxu0 0
      %2438 = vmatpush1.bf16.msra.mxu0 0
      %2439 = vmatprep.subr.bf16.mxu0 0
      %2440 = vmatpush1.bf16.msra.mxu0 0
      %2441 = vmatprep.subr.bf16.mxu0 0
      %2442 = vmatpush1.bf16.msra.mxu0 0
      %2443 = vmatprep.mubr.bf16.mxu0 0
      %2444 = vmatmul.mubr.bf16.gmra.mrb[0].mxu0 %v2409
      %v2445 = vpop.f32.mrb[0].mxu0
      %v2446 = vadd.f32 0.0, %v2445
      %v2447 = vpop.f32.mrb[0].mxu0
      %v2448 = vpop.f32.mrb[0].mxu0
      %v2449 = vadd.f32 0.0, %v2448
      %v2450 = vpop.f32.mrb[0].mxu0
      %2451 = vdwg.mxu0
      %2452 = vrot.lane.b32.xlu0 %v2089, 104
      %v2453 = vpop.permute.xlu0 %2452
      %2454 = vrot.lane.b32.xlu0 %v2089, 72
      %v2455 = vpop.permute.xlu0 %2454
      %v2457 = vsel %vm1199, %v2453, 0
      %v2460 = vsel %vm1199, %v2455, 0
      %2462 = vmatprep.subr.bf16.mxu0 0
      %2463 = vmatpush1.bf16.xpose.msra.mxu0 %v2460
      %2464 = vmatprep.subr.bf16.mxu0 0
      %2465 = vmatpush1.bf16.xpose.msra.mxu0 0
      %2466 = vmatprep.subr.bf16.mxu0 0
      %2467 = vmatpush1.bf16.xpose.msra.mxu0 0
      %2468 = vmatprep.subr.bf16.mxu0 0
      %2469 = vmatpush1.bf16.xpose.msra.mxu0 0
      %2470 = vmatprep.subr.bf16.mxu0 0
      %2471 = vmatpush1.bf16.xpose.msra.mxu0 0
      %2472 = vmatprep.subr.bf16.mxu0 0
      %2473 = vmatpush1.bf16.xpose.msra.mxu0 0
      %2474 = vmatprep.subr.bf16.mxu0 0
      %2475 = vmatpush1.bf16.xpose.msra.mxu0 0
      %2476 = vmatprep.subr.bf16.mxu0 0
      %2477 = vmatpush1.bf16.xpose.msra.mxu0 0
      %2478 = vmatprep.subr.bf16.mxu0 0
      %2479 = vmatpush1.bf16.xpose.msra.mxu0 0
      %2480 = vmatprep.subr.bf16.mxu0 0
      %2481 = vmatpush1.bf16.xpose.msra.mxu0 0
      %2482 = vmatprep.subr.bf16.mxu0 0
      %2483 = vmatpush1.bf16.xpose.msra.mxu0 0
      %2484 = vmatprep.subr.bf16.mxu0 0
      %2485 = vmatpush1.bf16.xpose.msra.mxu0 0
      %2486 = vmatprep.subr.bf16.mxu0 0
      %2487 = vmatpush1.bf16.xpose.msra.mxu0 0
      %2488 = vmatprep.subr.bf16.mxu0 0
      %2489 = vmatpush1.bf16.xpose.msra.mxu0 0
      %2490 = vmatprep.subr.bf16.mxu0 0
      %2491 = vmatpush1.bf16.xpose.msra.mxu0 0
      %2492 = vmatprep.subr.bf16.mxu0 0
      %2493 = vmatpush1.bf16.xpose.msra.mxu0 0
      %2494 = vmatprep.mubr.bf16.mxu0 0
      %2495 = vmatmul.mubr.bf16.gmra.mrb[0].mxu0 %v2457
      %v2496 = vpop.f32.mrb[0].mxu0
      %v2497 = vadd.f32 0.0, %v2496
      %v2498 = vpop.f32.mrb[0].mxu0
      %v2499 = vpop.f32.mrb[0].mxu0
      %v2500 = vadd.f32 0.0, %v2499
      %v2501 = vpop.f32.mrb[0].mxu0
      %2502 = vdwg.mxu0
      %v2503 = vsel %vm1075, %v2497, -inf
      %2504 = vmax.xlane.f32.xlu0 %v2503
      %v2505 = vpop.xlane.xlu0 %2504
      %v2506 = vsel %vm1075, %v2500, -inf
      %2507 = vmax.xlane.f32.xlu0 %v2506
      %v2508 = vpop.xlane.xlu0 %2507
      %v2509 = vsub.f32 %v2497, %v2505
      %v2510 = vsub.f32 %v2500, %v2508
      %v2511 = vmul.f32 %v2509, 1.442695
      %v2512 = vpow.pop %v2511
      %v2513 = vmul.f32 %v2510, 1.442695
      %v2514 = vpow.pop %v2513
      %v2515 = vsel %vm1075, %v2512, 0.0
      %2516 = vadd.xlane.f32.xlu0 %v2515
      %v2517 = vpop.xlane.xlu0 %2516
      %v2518 = vsel %vm1075, %v2514, 0.0
      %2519 = vadd.xlane.f32.xlu0 %v2518
      %v2520 = vpop.xlane.xlu0 %2519
      %v2521 = vrcp.pop %v2517
      %v2522 = vrcp.pop %v2520
      %v2523 = vmul.f32 %v2512, %v2521
      %v2524 = vmul.f32 %v2514, %v2522
      %v2525 = vpack.c.bf16 %v2524, %v2523
      %2526 = vrot.lane.b32.xlu0 %v2089, 40
      %v2527 = vpop.permute.xlu0 %2526
      %v2530 = vsel %vm1075, %v2525, 0
      %2532 = vmatprep.subr.bf16.mxu0 0
      %2533 = vmatpush1.bf16.msra.mxu0 %v2527
      %2534 = vmatprep.subr.bf16.mxu0 0
      %2535 = vmatpush1.bf16.msra.mxu0 0
      %2536 = vmatprep.subr.bf16.mxu0 0
      %2537 = vmatpush1.bf16.msra.mxu0 0
      %2538 = vmatprep.subr.bf16.mxu0 0
      %2539 = vmatpush1.bf16.msra.mxu0 0
      %2540 = vmatprep.subr.bf16.mxu0 0
      %2541 = vmatpush1.bf16.msra.mxu0 0
      %2542 = vmatprep.subr.bf16.mxu0 0
      %2543 = vmatpush1.bf16.msra.mxu0 0
      %2544 = vmatprep.subr.bf16.mxu0 0
      %2545 = vmatpush1.bf16.msra.mxu0 0
      %2546 = vmatprep.subr.bf16.mxu0 0
      %2547 = vmatpush1.bf16.msra.mxu0 0
      %2548 = vmatprep.subr.bf16.mxu0 0
      %2549 = vmatpush1.bf16.msra.mxu0 0
      %2550 = vmatprep.subr.bf16.mxu0 0
      %2551 = vmatpush1.bf16.msra.mxu0 0
      %2552 = vmatprep.subr.bf16.mxu0 0
      %2553 = vmatpush1.bf16.msra.mxu0 0
      %2554 = vmatprep.subr.bf16.mxu0 0
      %2555 = vmatpush1.bf16.msra.mxu0 0
      %2556 = vmatprep.subr.bf16.mxu0 0
      %2557 = vmatpush1.bf16.msra.mxu0 0
      %2558 = vmatprep.subr.bf16.mxu0 0
      %2559 = vmatpush1.bf16.msra.mxu0 0
      %2560 = vmatprep.subr.bf16.mxu0 0
      %2561 = vmatpush1.bf16.msra.mxu0 0
      %2562 = vmatprep.subr.bf16.mxu0 0
      %2563 = vmatpush1.bf16.msra.mxu0 0
      %2564 = vmatprep.mubr.bf16.mxu0 0
      %2565 = vmatmul.mubr.bf16.gmra.mrb[0].mxu0 %v2530
      %v2566 = vpop.f32.mrb[0].mxu0
      %v2567 = vadd.f32 0.0, %v2566
      %v2568 = vpop.f32.mrb[0].mxu0
      %v2569 = vpop.f32.mrb[0].mxu0
      %v2570 = vadd.f32 0.0, %v2569
      %v2571 = vpop.f32.mrb[0].mxu0
      %2572 = vdwg.mxu0
      %2575 = vrot.lane.b32.xlu0 %v2325, 8
      %v2576 = vpop.permute.xlu0 %2575
      %2577 = vrot.lane.b32.xlu0 %v2328, 8
      %v2578 = vpop.permute.xlu0 %2577
      %2583 = vrot.lane.b32.xlu0 %v2446, 16
      %v2584 = vpop.permute.xlu0 %2583
      %2585 = vrot.lane.b32.xlu0 %v2449, 16
      %v2586 = vpop.permute.xlu0 %2585
      %2591 = vrot.lane.b32.xlu0 %v2567, 24
      %v2592 = vpop.permute.xlu0 %2591
      %2593 = vrot.lane.b32.xlu0 %v2570, 24
      %v2594 = vpop.permute.xlu0 %2593
      %v2597 = vsel %vm1199, %v2204, %v2576
      %v2598 = vsel %vm1199, %v2207, %v2578
      %v2599 = vsel %vm1075, %v2597, %v2584
      %v2600 = vsel %vm1075, %v2598, %v2586
      %v2601 = vsel %vm1708, %v2599, %v2592
      %v2602 = vsel %vm1708, %v2600, %v2594
      %v2603 = vpack.c.bf16 %v2602, %v2601
      %v2605 = vlaneseq
      %v2606 = vshrl.u32 %v2605, 7
      %v2607 = vsub.s32 0, %v2606
      %v2608 = vrot.slane %v2088, %v2607
      %v2614 = vunpack.c.l.b16 %v2083
      %v2615 = vunpack.c.l.b16 %v2084
      %v2616 = vunpack.c.l.b16 %v2085
      %v2617 = vunpack.c.l.b16 %v2086
      %v2618 = vpack.c.b16 %v2615, %v2614
      %v2619 = vpack.c.b16 %v2617, %v2616
      %v2623 = vsel %vm1145, %v2603, 0
      %2625 = vmatprep.subr.bf16.mxu0 0
      %2626 = vmatpush1.bf16.msra.mxu0 %v2618
      %2627 = vmatprep.subr.bf16.mxu0 0
      %2628 = vmatpush1.bf16.msra.mxu0 %v2619
      %2629 = vmatprep.subr.bf16.mxu0 0
      %2630 = vmatpush1.bf16.msra.mxu0 0
      %2631 = vmatprep.subr.bf16.mxu0 0
      %2632 = vmatpush1.bf16.msra.mxu0 0
      %2633 = vmatprep.subr.bf16.mxu0 0
      %2634 = vmatpush1.bf16.msra.mxu0 0
      %2635 = vmatprep.subr.bf16.mxu0 0
      %2636 = vmatpush1.bf16.msra.mxu0 0
      %2637 = vmatprep.subr.bf16.mxu0 0
      %2638 = vmatpush1.bf16.msra.mxu0 0
      %2639 = vmatprep.subr.bf16.mxu0 0
      %2640 = vmatpush1.bf16.msra.mxu0 0
      %2641 = vmatprep.subr.bf16.mxu0 0
      %2642 = vmatpush1.bf16.msra.mxu0 0
      %2643 = vmatprep.subr.bf16.mxu0 0
      %2644 = vmatpush1.bf16.msra.mxu0 0
      %2645 = vmatprep.subr.bf16.mxu0 0
      %2646 = vmatpush1.bf16.msra.mxu0 0
      %2647 = vmatprep.subr.bf16.mxu0 0
      %2648 = vmatpush1.bf16.msra.mxu0 0
      %2649 = vmatprep.subr.bf16.mxu0 0
      %2650 = vmatpush1.bf16.msra.mxu0 0
      %2651 = vmatprep.subr.bf16.mxu0 0
      %2652 = vmatpush1.bf16.msra.mxu0 0
      %2653 = vmatprep.subr.bf16.mxu0 0
      %2654 = vmatpush1.bf16.msra.mxu0 0
      %2655 = vmatprep.subr.bf16.mxu0 0
      %2656 = vmatpush1.bf16.msra.mxu0 0
      %2657 = vmatprep.mubr.bf16.mxu0 0
      %2658 = vmatmul.mubr.bf16.gmra.mrb[0].mxu0 %v2623
      %v2659 = vpop.f32.mrb[0].mxu0
      %v2660 = vadd.f32 %v2608, %v2659
      %v2661 = vpop.f32.mrb[0].mxu0
      %v2662 = vpop.f32.mrb[0].mxu0
      %v2663 = vadd.f32 %v2608, %v2662
      %v2664 = vpop.f32.mrb[0].mxu0
      %2665 = vdwg.mxu0
      %v2666 = vadd.f32 %v2008, %v2660
      %v2667 = vadd.f32 %v2009, %v2663
      %v2668 = vsel %vm1145, %v2666, 0.0
      %2669 = vadd.xlane.f32.xlu0 %v2668
      %v2670 = vpop.xlane.xlu0 %2669
      %v2671 = vsel %vm1145, %v2667, 0.0
      %2672 = vadd.xlane.f32.xlu0 %v2671
      %v2673 = vpop.xlane.xlu0 %2672
      %v2674 = vmul.f32 %v2670, %v1782
      %v2675 = vmul.f32 %v2673, %v1782
      %v2676 = vsub.f32 %v2666, %v2674
      %v2677 = vsub.f32 %v2667, %v2675
      %v2678 = vmul.f32 %v2676, %v2676
      %v2679 = vmul.f32 %v2677, %v2677
      %v2680 = vsel %vm1145, %v2678, 0.0
      %2681 = vadd.xlane.f32.xlu0 %v2680
      %v2682 = vpop.xlane.xlu0 %2681
      %v2683 = vsel %vm1145, %v2679, 0.0
      %2684 = vadd.xlane.f32.xlu0 %v2683
      %v2685 = vpop.xlane.xlu0 %2684
      %v2686 = vmul.f32 %v2682, %v1782
      %v2687 = vmul.f32 %v2685, %v1782
      %v2688 = vadd.f32 %v2686, 1e-05
      %v2689 = vadd.f32 %v2687, 1e-05
      %v2690 = vrsqrt.pop %v2688
      %v2691 = vrsqrt.pop %v2689
      %v2692 = vmul.f32 %v2676, %v2690
      %v2693 = vmul.f32 %v2677, %v2691
      %v2694 = vlaneseq
      %v2695 = vshrl.u32 %v2694, 7
      %v2696 = vsub.s32 0, %v2695
      %v2697 = vrot.slane %v2011, %v2696
      %v2698 = vmul.f32 %v2692, %v2697
      %v2699 = vmul.f32 %v2693, %v2697
      %v2700 = vlaneseq
      %v2701 = vshrl.u32 %v2700, 7
      %v2702 = vsub.s32 1, %v2701
      %v2703 = vrot.slane %v2011, %v2702
      %v2704 = vadd.f32 %v2698, %v2703
      %v2705 = vadd.f32 %v2699, %v2703
      %v2706 = vpack.c.bf16 %v2705, %v2704
      %s2707 = scalar_lea.vmem %s21, 16
      %v2708 = vld [vmem:[%s2707] sm:$0xf]
      %v2709 = vld [vmem:[%s2707 + $0x4] sm:$0xf]
      %v2710 = vld [vmem:[%s2707 + $0x8] sm:$0xf]
      %v2711 = vld [vmem:[%s2707 + $0xc] sm:$0xf]
      %s2712 = scalar_lea.vmem %s23, 1
      %v2713 = vld [vmem:[%s2712] sm:$0x1]
      %v2715 = vlaneseq
      %v2716 = vshrl.u32 %v2715, 7
      %v2717 = vsub.s32 0, %v2716
      %v2718 = vrot.slane %v2713, %v2717
      %v2724 = vunpack.c.l.b16 %v2708
      %v2725 = vunpack.c.l.b16 %v2709
      %v2726 = vunpack.c.l.b16 %v2710
      %v2727 = vunpack.c.l.b16 %v2711
      %v2728 = vpack.c.b16 %v2725, %v2724
      %v2729 = vpack.c.b16 %v2727, %v2726
      %v2733 = vsel %vm1145, %v2706, 0
      %2735 = vmatprep.subr.bf16.mxu0 0
      %2736 = vmatpush1.bf16.msra.mxu0 %v2728
      %2737 = vmatprep.subr.bf16.mxu0 0
      %2738 = vmatpush1.bf16.msra.mxu0 %v2729
      %2739 = vmatprep.subr.bf16.mxu0 0
      %2740 = vmatpush1.bf16.msra.mxu0 0
      %2741 = vmatprep.subr.bf16.mxu0 0
      %2742 = vmatpush1.bf16.msra.mxu0 0
      %2743 = vmatprep.subr.bf16.mxu0 0
      %2744 = vmatpush1.bf16.msra.mxu0 0
      %2745 = vmatprep.subr.bf16.mxu0 0
      %2746 = vmatpush1.bf16.msra.mxu0 0
      %2747 = vmatprep.subr.bf16.mxu0 0
      %2748 = vmatpush1.bf16.msra.mxu0 0
      %2749 = vmatprep.subr.bf16.mxu0 0
      %2750 = vmatpush1.bf16.msra.mxu0 0
      %2751 = vmatprep.subr.bf16.mxu0 0
      %2752 = vmatpush1.bf16.msra.mxu0 0
      %2753 = vmatprep.subr.bf16.mxu0 0
      %2754 = vmatpush1.bf16.msra.mxu0 0
      %2755 = vmatprep.subr.bf16.mxu0 0
      %2756 = vmatpush1.bf16.msra.mxu0 0
      %2757 = vmatprep.subr.bf16.mxu0 0
      %2758 = vmatpush1.bf16.msra.mxu0 0
      %2759 = vmatprep.subr.bf16.mxu0 0
      %2760 = vmatpush1.bf16.msra.mxu0 0
      %2761 = vmatprep.subr.bf16.mxu0 0
      %2762 = vmatpush1.bf16.msra.mxu0 0
      %2763 = vmatprep.subr.bf16.mxu0 0
      %2764 = vmatpush1.bf16.msra.mxu0 0
      %2765 = vmatprep.subr.bf16.mxu0 0
      %2766 = vmatpush1.bf16.msra.mxu0 0
      %2767 = vmatprep.mubr.bf16.mxu0 0
      %2768 = vmatmul.mubr.bf16.gmra.mrb[0].mxu0 %v2733
      %v2769 = vpop.f32.mrb[0].mxu0
      %v2770 = vadd.f32 %v2718, %v2769
      %v2771 = vpop.f32.mrb[0].mxu0
      %v2772 = vpop.f32.mrb[0].mxu0
      %v2773 = vadd.f32 %v2718, %v2772
      %v2774 = vpop.f32.mrb[0].mxu0
      %2775 = vdwg.mxu0
      %v2776 = vmax.f32 %v2770, 0.0
      %v2777 = vmax.f32 %v2773, 0.0
      %v2778 = vpack.c.bf16 %v2777, %v2776
      %s2779 = scalar_lea.vmem %s25, 32
      %v2780 = vld [vmem:[%s2779] sm:$0xf]
      %v2781 = vld [vmem:[%s2779 + $0x4] sm:$0xf]
      %v2782 = vld [vmem:[%s2779 + $0x8] sm:$0xf]
      %v2783 = vld [vmem:[%s2779 + $0xc] sm:$0xf]
      %v2784 = vld [vmem:[%s2779 + $0x10] sm:$0xf]
      %v2785 = vld [vmem:[%s2779 + $0x14] sm:$0xf]
      %v2786 = vld [vmem:[%s2779 + $0x18] sm:$0xf]
      %v2787 = vld [vmem:[%s2779 + $0x1c] sm:$0xf]
      %s2788 = scalar_lea.vmem %s27, 1
      %v2789 = vld [vmem:[%s2788] sm:$0x1]
      %v2791 = vlaneseq
      %v2792 = vshrl.u32 %v2791, 7
      %v2793 = vsub.s32 0, %v2792
      %v2794 = vrot.slane %v2789, %v2793
      %v2804 = vunpack.c.l.b16 %v2780
      %v2805 = vunpack.c.l.b16 %v2781
      %v2806 = vunpack.c.l.b16 %v2782
      %v2807 = vunpack.c.l.b16 %v2783
      %v2808 = vunpack.c.l.b16 %v2784
      %v2809 = vunpack.c.l.b16 %v2785
      %v2810 = vunpack.c.l.b16 %v2786
      %v2811 = vunpack.c.l.b16 %v2787
      %v2812 = vpack.c.b16 %v2805, %v2804
      %v2813 = vpack.c.b16 %v2807, %v2806
      %v2814 = vpack.c.b16 %v2809, %v2808
      %v2815 = vpack.c.b16 %v2811, %v2810
      %v2821 = vsel %vm1925, %v2778, 0
      %2823 = vmatprep.subr.bf16.mxu0 0
      %2824 = vmatpush1.bf16.msra.mxu0 %v2812
      %2825 = vmatprep.subr.bf16.mxu0 0
      %2826 = vmatpush1.bf16.msra.mxu0 %v2813
      %2827 = vmatprep.subr.bf16.mxu0 0
      %2828 = vmatpush1.bf16.msra.mxu0 %v2814
      %2829 = vmatprep.subr.bf16.mxu0 0
      %2830 = vmatpush1.bf16.msra.mxu0 %v2815
      %2831 = vmatprep.subr.bf16.mxu0 0
      %2832 = vmatpush1.bf16.msra.mxu0 0
      %2833 = vmatprep.subr.bf16.mxu0 0
      %2834 = vmatpush1.bf16.msra.mxu0 0
      %2835 = vmatprep.subr.bf16.mxu0 0
      %2836 = vmatpush1.bf16.msra.mxu0 0
      %2837 = vmatprep.subr.bf16.mxu0 0
      %2838 = vmatpush1.bf16.msra.mxu0 0
      %2839 = vmatprep.subr.bf16.mxu0 0
      %2840 = vmatpush1.bf16.msra.mxu0 0
      %2841 = vmatprep.subr.bf16.mxu0 0
      %2842 = vmatpush1.bf16.msra.mxu0 0
      %2843 = vmatprep.subr.bf16.mxu0 0
      %2844 = vmatpush1.bf16.msra.mxu0 0
      %2845 = vmatprep.subr.bf16.mxu0 0
      %2846 = vmatpush1.bf16.msra.mxu0 0
      %2847 = vmatprep.subr.bf16.mxu0 0
      %2848 = vmatpush1.bf16.msra.mxu0 0
      %2849 = vmatprep.subr.bf16.mxu0 0
      %2850 = vmatpush1.bf16.msra.mxu0 0
      %2851 = vmatprep.subr.bf16.mxu0 0
      %2852 = vmatpush1.bf16.msra.mxu0 0
      %2853 = vmatprep.subr.bf16.mxu0 0
      %2854 = vmatpush1.bf16.msra.mxu0 0
      %2855 = vmatprep.mubr.bf16.mxu0 0
      %2856 = vmatmul.mubr.bf16.gmra.mrb[0].mxu0 %v2821
      %v2857 = vpop.f32.mrb[0].mxu0
      %v2858 = vadd.f32 %v2794, %v2857
      %v2859 = vpop.f32.mrb[0].mxu0
      %v2860 = vpop.f32.mrb[0].mxu0
      %v2861 = vadd.f32 %v2794, %v2860
      %v2862 = vpop.f32.mrb[0].mxu0
      %2863 = vdwg.mxu0
      %v2864 = vadd.f32 %v2704, %v2858
      %v2865 = vadd.f32 %v2705, %v2861
      %v2866 = vsel %vm1145, %v2864, 0.0
      %2867 = vadd.xlane.f32.xlu0 %v2866
      %v2868 = vpop.xlane.xlu0 %2867
      %v2869 = vsel %vm1145, %v2865, 0.0
      %2870 = vadd.xlane.f32.xlu0 %v2869
      %v2871 = vpop.xlane.xlu0 %2870
      %v2872 = vmul.f32 %v2868, %v1782
      %v2873 = vmul.f32 %v2871, %v1782
      %v2874 = vsub.f32 %v2864, %v2872
      %v2875 = vsub.f32 %v2865, %v2873
      %v2876 = vmul.f32 %v2874, %v2874
      %v2877 = vmul.f32 %v2875, %v2875
      %v2878 = vsel %vm1145, %v2876, 0.0
      %2879 = vadd.xlane.f32.xlu0 %v2878
      %v2880 = vpop.xlane.xlu0 %2879
      %v2881 = vsel %vm1145, %v2877, 0.0
      %2882 = vadd.xlane.f32.xlu0 %v2881
      %v2883 = vpop.xlane.xlu0 %2882
      %v2884 = vmul.f32 %v2880, %v1782
      %v2885 = vmul.f32 %v2883, %v1782
      %v2886 = vadd.f32 %v2884, 1e-05
      %v2887 = vadd.f32 %v2885, 1e-05
      %v2888 = vrsqrt.pop %v2886
      %v2889 = vrsqrt.pop %v2887
      %v2890 = vmul.f32 %v2874, %v2888
      %v2891 = vmul.f32 %v2875, %v2889
      %v2892 = vlaneseq
      %v2893 = vshrl.u32 %v2892, 7
      %v2894 = vsub.s32 2, %v2893
      %v2895 = vrot.slane %v2011, %v2894
      %v2896 = vmul.f32 %v2890, %v2895
      %v2897 = vmul.f32 %v2891, %v2895
      %v2898 = vlaneseq
      %v2899 = vshrl.u32 %v2898, 7
      %v2900 = vsub.s32 3, %v2899
      %v2901 = vrot.slane %v2011, %v2900
      %v2902 = vadd.f32 %v2896, %v2901
      %v2903 = vadd.f32 %v2897, %v2901
      %v2904 = vld [vmem:[%s31] sm:$0x1]
      %v2905 = vld [vmem:[%s31 + $0x1] sm:$0x1]
      %v2906 = vsel %vm1145, %v2902, 0.0
      %2907 = vadd.xlane.f32.xlu0 %v2906
      %v2908 = vpop.xlane.xlu0 %2907
      %v2909 = vsel %vm1145, %v2903, 0.0
      %2910 = vadd.xlane.f32.xlu0 %v2909
      %v2911 = vpop.xlane.xlu0 %2910
      %v2912 = vmul.f32 %v2908, %v1782
      %v2913 = vmul.f32 %v2911, %v1782
      %v2914 = vsub.f32 %v2902, %v2912
      %v2915 = vsub.f32 %v2903, %v2913
      %v2916 = vmul.f32 %v2914, %v2914
      %v2917 = vmul.f32 %v2915, %v2915
      %v2918 = vsel %vm1145, %v2916, 0.0
      %2919 = vadd.xlane.f32.xlu0 %v2918
      %v2920 = vpop.xlane.xlu0 %2919
      %v2921 = vsel %vm1145, %v2917, 0.0
      %2922 = vadd.xlane.f32.xlu0 %v2921
      %v2923 = vpop.xlane.xlu0 %2922
      %v2924 = vmul.f32 %v2920, %v1782
      %v2925 = vmul.f32 %v2923, %v1782
      %v2926 = vadd.f32 %v2924, 1e-05
      %v2927 = vadd.f32 %v2925, 1e-05
      %v2928 = vrsqrt.pop %v2926
      %v2929 = vrsqrt.pop %v2927
      %v2930 = vmul.f32 %v2914, %v2928
      %v2931 = vmul.f32 %v2915, %v2929
      %v2932 = vlaneseq
      %v2933 = vshrl.u32 %v2932, 7
      %v2934 = vsub.s32 0, %v2933
      %v2935 = vrot.slane %v2904, %v2934
      %v2936 = vmul.f32 %v2930, %v2935
      %v2937 = vmul.f32 %v2931, %v2935
      %v2938 = vlaneseq
      %v2939 = vshrl.u32 %v2938, 7
      %v2940 = vsub.s32 0, %v2939
      %v2941 = vrot.slane %v2905, %v2940
      %v2942 = vadd.f32 %v2936, %v2941
      %v2943 = vadd.f32 %v2937, %v2941
      %v2944 = vpack.c.bf16 %v2943, %v2942
      %v2945 = vld [vmem:[%s1056] sm:$0xff]
      %v2946 = vld [vmem:[%s1056 + $0x8] sm:$0xff]
      %v2947 = vpack.c.bf16 %v2946, %v2945
      %v2948 = vld [vmem:[%s9] sm:$0xf]
      %v2949 = vld [vmem:[%s9 + $0x4] sm:$0xf]
      %v2950 = vld [vmem:[%s11] sm:$0xff]
      %v2951 = vld [vmem:[%s11 + $0x8] sm:$0xff]
      %v2954 = vunpack.c.l.b16 %v2948
      %v2955 = vunpack.c.l.b16 %v2949
      %v2956 = vpack.c.b16 %v2955, %v2954
      %v2959 = vsel %vm1075, %v2947, 0
      %2961 = vmatprep.subr.bf16.mxu0 0
      %2962 = vmatpush1.bf16.msra.mxu0 %v2956
      %2963 = vmatprep.subr.bf16.mxu0 0
      %2964 = vmatpush1.bf16.msra.mxu0 0
      %2965 = vmatprep.subr.bf16.mxu0 0
      %2966 = vmatpush1.bf16.msra.mxu0 0
      %2967 = vmatprep.subr.bf16.mxu0 0
      %2968 = vmatpush1.bf16.msra.mxu0 0
      %2969 = vmatprep.subr.bf16.mxu0 0
      %2970 = vmatpush1.bf16.msra.mxu0 0
      %2971 = vmatprep.subr.bf16.mxu0 0
      %2972 = vmatpush1.bf16.msra.mxu0 0
      %2973 = vmatprep.subr.bf16.mxu0 0
      %2974 = vmatpush1.bf16.msra.mxu0 0
      %2975 = vmatprep.subr.bf16.mxu0 0
      %2976 = vmatpush1.bf16.msra.mxu0 0
      %2977 = vmatprep.subr.bf16.mxu0 0
      %2978 = vmatpush1.bf16.msra.mxu0 0
      %2979 = vmatprep.subr.bf16.mxu0 0
      %2980 = vmatpush1.bf16.msra.mxu0 0
      %2981 = vmatprep.subr.bf16.mxu0 0
      %2982 = vmatpush1.bf16.msra.mxu0 0
      %2983 = vmatprep.subr.bf16.mxu0 0
      %2984 = vmatpush1.bf16.msra.mxu0 0
      %2985 = vmatprep.subr.bf16.mxu0 0
      %2986 = vmatpush1.bf16.msra.mxu0 0
      %2987 = vmatprep.subr.bf16.mxu0 0
      %2988 = vmatpush1.bf16.msra.mxu0 0
      %2989 = vmatprep.subr.bf16.mxu0 0
      %2990 = vmatpush1.bf16.msra.mxu0 0
      %2991 = vmatprep.subr.bf16.mxu0 0
      %2992 = vmatpush1.bf16.msra.mxu0 0
      %2993 = vmatprep.mubr.bf16.mxu0 0
      %2994 = vmatmul.mubr.bf16.gmra.mrb[0].mxu0 %v2959
      %v2995 = vpop.f32.mrb[0].mxu0
      %v2996 = vadd.f32 %v2950, %v2995
      %v2997 = vpop.f32.mrb[0].mxu0
      %v2998 = vpop.f32.mrb[0].mxu0
      %v2999 = vadd.f32 %v2951, %v2998
      %v3000 = vpop.f32.mrb[0].mxu0
      %3001 = vdwg.mxu0
      %v3002 = vld [vmem:[%s61] sm:$0x3f]
      %v3003 = vpack.c.bf16 %v2999, %v2996
      %v3004 = vld [vmem:[%s33] sm:$0xf]
      %v3005 = vld [vmem:[%s33 + $0x4] sm:$0xf]
      %v3006 = vld [vmem:[%s33 + $0x8] sm:$0xf]
      %v3007 = vld [vmem:[%s33 + $0xc] sm:$0xf]
      %v3008 = vld [vmem:[%s35] sm:$0x1]
      %v3010 = vlaneseq
      %v3011 = vshrl.u32 %v3010, 7
      %v3012 = vsub.s32 0, %v3011
      %v3013 = vrot.slane %v3008, %v3012
      %v3019 = vunpack.c.l.b16 %v3004
      %v3020 = vunpack.c.l.b16 %v3005
      %v3021 = vunpack.c.l.b16 %v3006
      %v3022 = vunpack.c.l.b16 %v3007
      %v3023 = vpack.c.b16 %v3020, %v3019
      %v3024 = vpack.c.b16 %v3022, %v3021
      %v3028 = vsel %vm1145, %v3003, 0
      %3030 = vmatprep.subr.bf16.mxu0 0
      %3031 = vmatpush1.bf16.msra.mxu0 %v3023
      %3032 = vmatprep.subr.bf16.mxu0 0
      %3033 = vmatpush1.bf16.msra.mxu0 %v3024
      %3034 = vmatprep.subr.bf16.mxu0 0
      %3035 = vmatpush1.bf16.msra.mxu0 0
      %3036 = vmatprep.subr.bf16.mxu0 0
      %3037 = vmatpush1.bf16.msra.mxu0 0
      %3038 = vmatprep.subr.bf16.mxu0 0
      %3039 = vmatpush1.bf16.msra.mxu0 0
      %3040 = vmatprep.subr.bf16.mxu0 0
      %3041 = vmatpush1.bf16.msra.mxu0 0
      %3042 = vmatprep.subr.bf16.mxu0 0
      %3043 = vmatpush1.bf16.msra.mxu0 0
      %3044 = vmatprep.subr.bf16.mxu0 0
      %3045 = vmatpush1.bf16.msra.mxu0 0
      %3046 = vmatprep.subr.bf16.mxu0 0
      %3047 = vmatpush1.bf16.msra.mxu0 0
      %3048 = vmatprep.subr.bf16.mxu0 0
      %3049 = vmatpush1.bf16.msra.mxu0 0
      %3050 = vmatprep.subr.bf16.mxu0 0
      %3051 = vmatpush1.bf16.msra.mxu0 0
      %3052 = vmatprep.subr.bf16.mxu0 0
      %3053 = vmatpush1.bf16.msra.mxu0 0
      %3054 = vmatprep.subr.bf16.mxu0 0
      %3055 = vmatpush1.bf16.msra.mxu0 0
      %3056 = vmatprep.subr.bf16.mxu0 0
      %3057 = vmatpush1.bf16.msra.mxu0 0
      %3058 = vmatprep.subr.bf16.mxu0 0
      %3059 = vmatpush1.bf16.msra.mxu0 0
      %3060 = vmatprep.subr.bf16.mxu0 0
      %3061 = vmatpush1.bf16.msra.mxu0 0
      %3062 = vmatprep.mubr.bf16.mxu0 0
      %3063 = vmatmul.mubr.bf16.gmra.mrb[0].mxu0 %v3028
      %v3064 = vpop.f32.mrb[0].mxu0
      %v3065 = vadd.f32 %v3013, %v3064
      %v3066 = vpop.f32.mrb[0].mxu0
      %v3067 = vpop.f32.mrb[0].mxu0
      %v3068 = vadd.f32 %v3013, %v3067
      %v3069 = vpop.f32.mrb[0].mxu0
      %3070 = vdwg.mxu0
      %v3071 = vld [vmem:[%s37] sm:$0xf]
      %v3072 = vld [vmem:[%s37 + $0x4] sm:$0xf]
      %v3073 = vld [vmem:[%s37 + $0x8] sm:$0xf]
      %v3074 = vld [vmem:[%s37 + $0xc] sm:$0xf]
      %v3075 = vld [vmem:[%s39] sm:$0x1]
      %v3076 = vlaneseq
      %v3077 = vshrl.u32 %v3076, 7
      %v3078 = vadd.s32 %v3077, 8
      %v3079 = vlaneseq
      %v3080 = vand.u32 %v3079, 127
      %vm3081 = vcmp.le.s32.totalorder %v3080, %v3077
      %vm3082 = vcmp.le.s32.totalorder %v3080, %v3078
      %v3083 = vpack.c.bf16 %v3068, %v3065
      %3085 = vrot.lane.b32.xlu0 %v3083, 96
      %v3086 = vpop.permute.xlu0 %3085
      %v3088 = vsel %vm1199, %v3083, 0
      %v3091 = vsel %vm1199, %v3086, 0
      %3093 = vmatprep.subr.bf16.mxu0 0
      %3094 = vmatpush1.bf16.xpose.msra.mxu0 %v3091
      %3095 = vmatprep.subr.bf16.mxu0 0
      %3096 = vmatpush1.bf16.xpose.msra.mxu0 0
      %3097 = vmatprep.subr.bf16.mxu0 0
      %3098 = vmatpush1.bf16.xpose.msra.mxu0 0
      %3099 = vmatprep.subr.bf16.mxu0 0
      %3100 = vmatpush1.bf16.xpose.msra.mxu0 0
      %3101 = vmatprep.subr.bf16.mxu0 0
      %3102 = vmatpush1.bf16.xpose.msra.mxu0 0
      %3103 = vmatprep.subr.bf16.mxu0 0
      %3104 = vmatpush1.bf16.xpose.msra.mxu0 0
      %3105 = vmatprep.subr.bf16.mxu0 0
      %3106 = vmatpush1.bf16.xpose.msra.mxu0 0
      %3107 = vmatprep.subr.bf16.mxu0 0
      %3108 = vmatpush1.bf16.xpose.msra.mxu0 0
      %3109 = vmatprep.subr.bf16.mxu0 0
      %3110 = vmatpush1.bf16.xpose.msra.mxu0 0
      %3111 = vmatprep.subr.bf16.mxu0 0
      %3112 = vmatpush1.bf16.xpose.msra.mxu0 0
      %3113 = vmatprep.subr.bf16.mxu0 0
      %3114 = vmatpush1.bf16.xpose.msra.mxu0 0
      %3115 = vmatprep.subr.bf16.mxu0 0
      %3116 = vmatpush1.bf16.xpose.msra.mxu0 0
      %3117 = vmatprep.subr.bf16.mxu0 0
      %3118 = vmatpush1.bf16.xpose.msra.mxu0 0
      %3119 = vmatprep.subr.bf16.mxu0 0
      %3120 = vmatpush1.bf16.xpose.msra.mxu0 0
      %3121 = vmatprep.subr.bf16.mxu0 0
      %3122 = vmatpush1.bf16.xpose.msra.mxu0 0
      %3123 = vmatprep.subr.bf16.mxu0 0
      %3124 = vmatpush1.bf16.xpose.msra.mxu0 0
      %3125 = vmatprep.mubr.bf16.mxu0 0
      %3126 = vmatmul.mubr.bf16.gmra.mrb[0].mxu0 %v3088
      %v3127 = vpop.f32.mrb[0].mxu0
      %v3128 = vadd.f32 0.0, %v3127
      %v3129 = vpop.f32.mrb[0].mxu0
      %v3130 = vpop.f32.mrb[0].mxu0
      %v3131 = vadd.f32 0.0, %v3130
      %v3132 = vpop.f32.mrb[0].mxu0
      %3133 = vdwg.mxu0
      %v3134 = vsel %vm3081, %v3128, -1e+30
      %v3135 = vsel %vm3082, %v3131, -1e+30
      %v3136 = vsel %vm1075, %v3134, -inf
      %3137 = vmax.xlane.f32.xlu0 %v3136
      %v3138 = vpop.xlane.xlu0 %3137
      %v3139 = vsel %vm1075, %v3135, -inf
      %3140 = vmax.xlane.f32.xlu0 %v3139
      %v3141 = vpop.xlane.xlu0 %3140
      %v3142 = vsub.f32 %v3134, %v3138
      %v3143 = vsub.f32 %v3135, %v3141
      %v3144 = vmul.f32 %v3142, 1.442695
      %v3145 = vpow.pop %v3144
      %v3146 = vmul.f32 %v3143, 1.442695
      %v3147 = vpow.pop %v3146
      %v3148 = vsel %vm1075, %v3145, 0.0
      %3149 = vadd.xlane.f32.xlu0 %v3148
      %v3150 = vpop.xlane.xlu0 %3149
      %v3151 = vsel %vm1075, %v3147, 0.0
      %3152 = vadd.xlane.f32.xlu0 %v3151
      %v3153 = vpop.xlane.xlu0 %3152
      %v3154 = vrcp.pop %v3150
      %v3155 = vrcp.pop %v3153
      %v3156 = vmul.f32 %v3145, %v3154
      %v3157 = vmul.f32 %v3147, %v3155
      %v3158 = vpack.c.bf16 %v3157, %v3156
      %3159 = vrot.lane.b32.xlu0 %v3083, 64
      %v3160 = vpop.permute.xlu0 %3159
      %v3163 = vsel %vm1075, %v3158, 0
      %3165 = vmatprep.subr.bf16.mxu0 0
      %3166 = vmatpush1.bf16.msra.mxu0 %v3160
      %3167 = vmatprep.subr.bf16.mxu0 0
      %3168 = vmatpush1.bf16.msra.mxu0 0
      %3169 = vmatprep.subr.bf16.mxu0 0
      %3170 = vmatpush1.bf16.msra.mxu0 0
      %3171 = vmatprep.subr.bf16.mxu0 0
      %3172 = vmatpush1.bf16.msra.mxu0 0
      %3173 = vmatprep.subr.bf16.mxu0 0
      %3174 = vmatpush1.bf16.msra.mxu0 0
      %3175 = vmatprep.subr.bf16.mxu0 0
      %3176 = vmatpush1.bf16.msra.mxu0 0
      %3177 = vmatprep.subr.bf16.mxu0 0
      %3178 = vmatpush1.bf16.msra.mxu0 0
      %3179 = vmatprep.subr.bf16.mxu0 0
      %3180 = vmatpush1.bf16.msra.mxu0 0
      %3181 = vmatprep.subr.bf16.mxu0 0
      %3182 = vmatpush1.bf16.msra.mxu0 0
      %3183 = vmatprep.subr.bf16.mxu0 0
      %3184 = vmatpush1.bf16.msra.mxu0 0
      %3185 = vmatprep.subr.bf16.mxu0 0
      %3186 = vmatpush1.bf16.msra.mxu0 0
      %3187 = vmatprep.subr.bf16.mxu0 0
      %3188 = vmatpush1.bf16.msra.mxu0 0
      %3189 = vmatprep.subr.bf16.mxu0 0
      %3190 = vmatpush1.bf16.msra.mxu0 0
      %3191 = vmatprep.subr.bf16.mxu0 0
      %3192 = vmatpush1.bf16.msra.mxu0 0
      %3193 = vmatprep.subr.bf16.mxu0 0
      %3194 = vmatpush1.bf16.msra.mxu0 0
      %3195 = vmatprep.subr.bf16.mxu0 0
      %3196 = vmatpush1.bf16.msra.mxu0 0
      %3197 = vmatprep.mubr.bf16.mxu0 0
      %3198 = vmatmul.mubr.bf16.gmra.mrb[0].mxu0 %v3163
      %v3199 = vpop.f32.mrb[0].mxu0
      %v3200 = vadd.f32 0.0, %v3199
      %v3201 = vpop.f32.mrb[0].mxu0
      %v3202 = vpop.f32.mrb[0].mxu0
      %v3203 = vadd.f32 0.0, %v3202
      %v3204 = vpop.f32.mrb[0].mxu0
      %3205 = vdwg.mxu0
      %3206 = vrot.lane.b32.xlu0 %v3083, 120
      %v3207 = vpop.permute.xlu0 %3206
      %3208 = vrot.lane.b32.xlu0 %v3083, 88
      %v3209 = vpop.permute.xlu0 %3208
      %v3211 = vsel %vm1199, %v3207, 0
      %v3214 = vsel %vm1199, %v3209, 0
      %3216 = vmatprep.subr.bf16.mxu0 0
      %3217 = vmatpush1.bf16.xpose.msra.mxu0 %v3214
      %3218 = vmatprep.subr.bf16.mxu0 0
      %3219 = vmatpush1.bf16.xpose.msra.mxu0 0
      %3220 = vmatprep.subr.bf16.mxu0 0
      %3221 = vmatpush1.bf16.xpose.msra.mxu0 0
      %3222 = vmatprep.subr.bf16.mxu0 0
      %3223 = vmatpush1.bf16.xpose.msra.mxu0 0
      %3224 = vmatprep.subr.bf16.mxu0 0
      %3225 = vmatpush1.bf16.xpose.msra.mxu0 0
      %3226 = vmatprep.subr.bf16.mxu0 0
      %3227 = vmatpush1.bf16.xpose.msra.mxu0 0
      %3228 = vmatprep.subr.bf16.mxu0 0
      %3229 = vmatpush1.bf16.xpose.msra.mxu0 0
      %3230 = vmatprep.subr.bf16.mxu0 0
      %3231 = vmatpush1.bf16.xpose.msra.mxu0 0
      %3232 = vmatprep.subr.bf16.mxu0 0
      %3233 = vmatpush1.bf16.xpose.msra.mxu0 0
      %3234 = vmatprep.subr.bf16.mxu0 0
      %3235 = vmatpush1.bf16.xpose.msra.mxu0 0
      %3236 = vmatprep.subr.bf16.mxu0 0
      %3237 = vmatpush1.bf16.xpose.msra.mxu0 0
      %3238 = vmatprep.subr.bf16.mxu0 0
      %3239 = vmatpush1.bf16.xpose.msra.mxu0 0
      %3240 = vmatprep.subr.bf16.mxu0 0
      %3241 = vmatpush1.bf16.xpose.msra.mxu0 0
      %3242 = vmatprep.subr.bf16.mxu0 0
      %3243 = vmatpush1.bf16.xpose.msra.mxu0 0
      %3244 = vmatprep.subr.bf16.mxu0 0
      %3245 = vmatpush1.bf16.xpose.msra.mxu0 0
      %3246 = vmatprep.subr.bf16.mxu0 0
      %3247 = vmatpush1.bf16.xpose.msra.mxu0 0
      %3248 = vmatprep.mubr.bf16.mxu0 0
      %3249 = vmatmul.mubr.bf16.gmra.mrb[0].mxu0 %v3211
      %v3250 = vpop.f32.mrb[0].mxu0
      %v3251 = vadd.f32 0.0, %v3250
      %v3252 = vpop.f32.mrb[0].mxu0
      %v3253 = vpop.f32.mrb[0].mxu0
      %v3254 = vadd.f32 0.0, %v3253
      %v3255 = vpop.f32.mrb[0].mxu0
      %3256 = vdwg.mxu0
      %v3257 = vsel %vm3081, %v3251, -1e+30
      %v3258 = vsel %vm3082, %v3254, -1e+30
      %v3259 = vsel %vm1075, %v3257, -inf
      %3260 = vmax.xlane.f32.xlu0 %v3259
      %v3261 = vpop.xlane.xlu0 %3260
      %v3262 = vsel %vm1075, %v3258, -inf
      %3263 = vmax.xlane.f32.xlu0 %v3262
      %v3264 = vpop.xlane.xlu0 %3263
      %v3265 = vsub.f32 %v3257, %v3261
      %v3266 = vsub.f32 %v3258, %v3264
      %v3267 = vmul.f32 %v3265, 1.442695
      %v3268 = vpow.pop %v3267
      %v3269 = vmul.f32 %v3266, 1.442695
      %v3270 = vpow.pop %v3269
      %v3271 = vsel %vm1075, %v3268, 0.0
      %3272 = vadd.xlane.f32.xlu0 %v3271
      %v3273 = vpop.xlane.xlu0 %3272
      %v3274 = vsel %vm1075, %v3270, 0.0
      %3275 = vadd.xlane.f32.xlu0 %v3274
      %v3276 = vpop.xlane.xlu0 %3275
      %v3277 = vrcp.pop %v3273
      %v3278 = vrcp.pop %v3276
      %v3279 = vmul.f32 %v3268, %v3277
      %v3280 = vmul.f32 %v3270, %v3278
      %v3281 = vpack.c.bf16 %v3280, %v3279
      %3282 = vrot.lane.b32.xlu0 %v3083, 56
      %v3283 = vpop.permute.xlu0 %3282
      %v3286 = vsel %vm1075, %v3281, 0
      %3288 = vmatprep.subr.bf16.mxu0 0
      %3289 = vmatpush1.bf16.msra.mxu0 %v3283
      %3290 = vmatprep.subr.bf16.mxu0 0
      %3291 = vmatpush1.bf16.msra.mxu0 0
      %3292 = vmatprep.subr.bf16.mxu0 0
      %3293 = vmatpush1.bf16.msra.mxu0 0
      %3294 = vmatprep.subr.bf16.mxu0 0
      %3295 = vmatpush1.bf16.msra.mxu0 0
      %3296 = vmatprep.subr.bf16.mxu0 0
      %3297 = vmatpush1.bf16.msra.mxu0 0
      %3298 = vmatprep.subr.bf16.mxu0 0
      %3299 = vmatpush1.bf16.msra.mxu0 0
      %3300 = vmatprep.subr.bf16.mxu0 0
      %3301 = vmatpush1.bf16.msra.mxu0 0
      %3302 = vmatprep.subr.bf16.mxu0 0
      %3303 = vmatpush1.bf16.msra.mxu0 0
      %3304 = vmatprep.subr.bf16.mxu0 0
      %3305 = vmatpush1.bf16.msra.mxu0 0
      %3306 = vmatprep.subr.bf16.mxu0 0
      %3307 = vmatpush1.bf16.msra.mxu0 0
      %3308 = vmatprep.subr.bf16.mxu0 0
      %3309 = vmatpush1.bf16.msra.mxu0 0
      %3310 = vmatprep.subr.bf16.mxu0 0
      %3311 = vmatpush1.bf16.msra.mxu0 0
      %3312 = vmatprep.subr.bf16.mxu0 0
      %3313 = vmatpush1.bf16.msra.mxu0 0
      %3314 = vmatprep.subr.bf16.mxu0 0
      %3315 = vmatpush1.bf16.msra.mxu0 0
      %3316 = vmatprep.subr.bf16.mxu0 0
      %3317 = vmatpush1.bf16.msra.mxu0 0
      %3318 = vmatprep.subr.bf16.mxu0 0
      %3319 = vmatpush1.bf16.msra.mxu0 0
      %3320 = vmatprep.mubr.bf16.mxu0 0
      %3321 = vmatmul.mubr.bf16.gmra.mrb[0].mxu0 %v3286
      %v3322 = vpop.f32.mrb[0].mxu0
      %v3323 = vadd.f32 0.0, %v3322
      %v3324 = vpop.f32.mrb[0].mxu0
      %v3325 = vpop.f32.mrb[0].mxu0
      %v3326 = vadd.f32 0.0, %v3325
      %v3327 = vpop.f32.mrb[0].mxu0
      %3328 = vdwg.mxu0
      %3329 = vrot.lane.b32.xlu0 %v3083, 112
      %v3330 = vpop.permute.xlu0 %3329
      %3331 = vrot.lane.b32.xlu0 %v3083, 80
      %v3332 = vpop.permute.xlu0 %3331
      %v3334 = vsel %vm1199, %v3330, 0
      %v3337 = vsel %vm1199, %v3332, 0
      %3339 = vmatprep.subr.bf16.mxu0 0
      %3340 = vmatpush1.bf16.xpose.msra.mxu0 %v3337
      %3341 = vmatprep.subr.bf16.mxu0 0
      %3342 = vmatpush1.bf16.xpose.msra.mxu0 0
      %3343 = vmatprep.subr.bf16.mxu0 0
      %3344 = vmatpush1.bf16.xpose.msra.mxu0 0
      %3345 = vmatprep.subr.bf16.mxu0 0
      %3346 = vmatpush1.bf16.xpose.msra.mxu0 0
      %3347 = vmatprep.subr.bf16.mxu0 0
      %3348 = vmatpush1.bf16.xpose.msra.mxu0 0
      %3349 = vmatprep.subr.bf16.mxu0 0
      %3350 = vmatpush1.bf16.xpose.msra.mxu0 0
      %3351 = vmatprep.subr.bf16.mxu0 0
      %3352 = vmatpush1.bf16.xpose.msra.mxu0 0
      %3353 = vmatprep.subr.bf16.mxu0 0
      %3354 = vmatpush1.bf16.xpose.msra.mxu0 0
      %3355 = vmatprep.subr.bf16.mxu0 0
      %3356 = vmatpush1.bf16.xpose.msra.mxu0 0
      %3357 = vmatprep.subr.bf16.mxu0 0
      %3358 = vmatpush1.bf16.xpose.msra.mxu0 0
      %3359 = vmatprep.subr.bf16.mxu0 0
      %3360 = vmatpush1.bf16.xpose.msra.mxu0 0
      %3361 = vmatprep.subr.bf16.mxu0 0
      %3362 = vmatpush1.bf16.xpose.msra.mxu0 0
      %3363 = vmatprep.subr.bf16.mxu0 0
      %3364 = vmatpush1.bf16.xpose.msra.mxu0 0
      %3365 = vmatprep.subr.bf16.mxu0 0
      %3366 = vmatpush1.bf16.xpose.msra.mxu0 0
      %3367 = vmatprep.subr.bf16.mxu0 0
      %3368 = vmatpush1.bf16.xpose.msra.mxu0 0
      %3369 = vmatprep.subr.bf16.mxu0 0
      %3370 = vmatpush1.bf16.xpose.msra.mxu0 0
      %3371 = vmatprep.mubr.bf16.mxu0 0
      %3372 = vmatmul.mubr.bf16.gmra.mrb[0].mxu0 %v3334
      %v3373 = vpop.f32.mrb[0].mxu0
      %v3374 = vadd.f32 0.0, %v3373
      %v3375 = vpop.f32.mrb[0].mxu0
      %v3376 = vpop.f32.mrb[0].mxu0
      %v3377 = vadd.f32 0.0, %v3376
      %v3378 = vpop.f32.mrb[0].mxu0
      %3379 = vdwg.mxu0
      %v3380 = vsel %vm3081, %v3374, -1e+30
      %v3381 = vsel %vm3082, %v3377, -1e+30
      %v3382 = vsel %vm1075, %v3380, -inf
      %3383 = vmax.xlane.f32.xlu0 %v3382
      %v3384 = vpop.xlane.xlu0 %3383
      %v3385 = vsel %vm1075, %v3381, -inf
      %3386 = vmax.xlane.f32.xlu0 %v3385
      %v3387 = vpop.xlane.xlu0 %3386
      %v3388 = vsub.f32 %v3380, %v3384
      %v3389 = vsub.f32 %v3381, %v3387
      %v3390 = vmul.f32 %v3388, 1.442695
      %v3391 = vpow.pop %v3390
      %v3392 = vmul.f32 %v3389, 1.442695
      %v3393 = vpow.pop %v3392
      %v3394 = vsel %vm1075, %v3391, 0.0
      %3395 = vadd.xlane.f32.xlu0 %v3394
      %v3396 = vpop.xlane.xlu0 %3395
      %v3397 = vsel %vm1075, %v3393, 0.0
      %3398 = vadd.xlane.f32.xlu0 %v3397
      %v3399 = vpop.xlane.xlu0 %3398
      %v3400 = vrcp.pop %v3396
      %v3401 = vrcp.pop %v3399
      %v3402 = vmul.f32 %v3391, %v3400
      %v3403 = vmul.f32 %v3393, %v3401
      %v3404 = vpack.c.bf16 %v3403, %v3402
      %3405 = vrot.lane.b32.xlu0 %v3083, 48
      %v3406 = vpop.permute.xlu0 %3405
      %v3409 = vsel %vm1075, %v3404, 0
      %3411 = vmatprep.subr.bf16.mxu0 0
      %3412 = vmatpush1.bf16.msra.mxu0 %v3406
      %3413 = vmatprep.subr.bf16.mxu0 0
      %3414 = vmatpush1.bf16.msra.mxu0 0
      %3415 = vmatprep.subr.bf16.mxu0 0
      %3416 = vmatpush1.bf16.msra.mxu0 0
      %3417 = vmatprep.subr.bf16.mxu0 0
      %3418 = vmatpush1.bf16.msra.mxu0 0
      %3419 = vmatprep.subr.bf16.mxu0 0
      %3420 = vmatpush1.bf16.msra.mxu0 0
      %3421 = vmatprep.subr.bf16.mxu0 0
      %3422 = vmatpush1.bf16.msra.mxu0 0
      %3423 = vmatprep.subr.bf16.mxu0 0
      %3424 = vmatpush1.bf16.msra.mxu0 0
      %3425 = vmatprep.subr.bf16.mxu0 0
      %3426 = vmatpush1.bf16.msra.mxu0 0
      %3427 = vmatprep.subr.bf16.mxu0 0
      %3428 = vmatpush1.bf16.msra.mxu0 0
      %3429 = vmatprep.subr.bf16.mxu0 0
      %3430 = vmatpush1.bf16.msra.mxu0 0
      %3431 = vmatprep.subr.bf16.mxu0 0
      %3432 = vmatpush1.bf16.msra.mxu0 0
      %3433 = vmatprep.subr.bf16.mxu0 0
      %3434 = vmatpush1.bf16.msra.mxu0 0
      %3435 = vmatprep.subr.bf16.mxu0 0
      %3436 = vmatpush1.bf16.msra.mxu0 0
      %3437 = vmatprep.subr.bf16.mxu0 0
      %3438 = vmatpush1.bf16.msra.mxu0 0
      %3439 = vmatprep.subr.bf16.mxu0 0
      %3440 = vmatpush1.bf16.msra.mxu0 0
      %3441 = vmatprep.subr.bf16.mxu0 0
      %3442 = vmatpush1.bf16.msra.mxu0 0
      %3443 = vmatprep.mubr.bf16.mxu0 0
      %3444 = vmatmul.mubr.bf16.gmra.mrb[0].mxu0 %v3409
      %v3445 = vpop.f32.mrb[0].mxu0
      %v3446 = vadd.f32 0.0, %v3445
      %v3447 = vpop.f32.mrb[0].mxu0
      %v3448 = vpop.f32.mrb[0].mxu0
      %v3449 = vadd.f32 0.0, %v3448
      %v3450 = vpop.f32.mrb[0].mxu0
      %3451 = vdwg.mxu0
      %3452 = vrot.lane.b32.xlu0 %v3083, 104
      %v3453 = vpop.permute.xlu0 %3452
      %3454 = vrot.lane.b32.xlu0 %v3083, 72
      %v3455 = vpop.permute.xlu0 %3454
      %v3457 = vsel %vm1199, %v3453, 0
      %v3460 = vsel %vm1199, %v3455, 0
      %3462 = vmatprep.subr.bf16.mxu0 0
      %3463 = vmatpush1.bf16.xpose.msra.mxu0 %v3460
      %3464 = vmatprep.subr.bf16.mxu0 0
      %3465 = vmatpush1.bf16.xpose.msra.mxu0 0
      %3466 = vmatprep.subr.bf16.mxu0 0
      %3467 = vmatpush1.bf16.xpose.msra.mxu0 0
      %3468 = vmatprep.subr.bf16.mxu0 0
      %3469 = vmatpush1.bf16.xpose.msra.mxu0 0
      %3470 = vmatprep.subr.bf16.mxu0 0
      %3471 = vmatpush1.bf16.xpose.msra.mxu0 0
      %3472 = vmatprep.subr.bf16.mxu0 0
      %3473 = vmatpush1.bf16.xpose.msra.mxu0 0
      %3474 = vmatprep.subr.bf16.mxu0 0
      %3475 = vmatpush1.bf16.xpose.msra.mxu0 0
      %3476 = vmatprep.subr.bf16.mxu0 0
      %3477 = vmatpush1.bf16.xpose.msra.mxu0 0
      %3478 = vmatprep.subr.bf16.mxu0 0
      %3479 = vmatpush1.bf16.xpose.msra.mxu0 0
      %3480 = vmatprep.subr.bf16.mxu0 0
      %3481 = vmatpush1.bf16.xpose.msra.mxu0 0
      %3482 = vmatprep.subr.bf16.mxu0 0
      %3483 = vmatpush1.bf16.xpose.msra.mxu0 0
      %3484 = vmatprep.subr.bf16.mxu0 0
      %3485 = vmatpush1.bf16.xpose.msra.mxu0 0
      %3486 = vmatprep.subr.bf16.mxu0 0
      %3487 = vmatpush1.bf16.xpose.msra.mxu0 0
      %3488 = vmatprep.subr.bf16.mxu0 0
      %3489 = vmatpush1.bf16.xpose.msra.mxu0 0
      %3490 = vmatprep.subr.bf16.mxu0 0
      %3491 = vmatpush1.bf16.xpose.msra.mxu0 0
      %3492 = vmatprep.subr.bf16.mxu0 0
      %3493 = vmatpush1.bf16.xpose.msra.mxu0 0
      %3494 = vmatprep.mubr.bf16.mxu0 0
      %3495 = vmatmul.mubr.bf16.gmra.mrb[0].mxu0 %v3457
      %v3496 = vpop.f32.mrb[0].mxu0
      %v3497 = vadd.f32 0.0, %v3496
      %v3498 = vpop.f32.mrb[0].mxu0
      %v3499 = vpop.f32.mrb[0].mxu0
      %v3500 = vadd.f32 0.0, %v3499
      %v3501 = vpop.f32.mrb[0].mxu0
      %3502 = vdwg.mxu0
      %v3503 = vsel %vm3081, %v3497, -1e+30
      %v3504 = vsel %vm3082, %v3500, -1e+30
      %v3505 = vsel %vm1075, %v3503, -inf
      %3506 = vmax.xlane.f32.xlu0 %v3505
      %v3507 = vpop.xlane.xlu0 %3506
      %v3508 = vsel %vm1075, %v3504, -inf
      %3509 = vmax.xlane.f32.xlu0 %v3508
      %v3510 = vpop.xlane.xlu0 %3509
      %v3511 = vsub.f32 %v3503, %v3507
      %v3512 = vsub.f32 %v3504, %v3510
      %v3513 = vmul.f32 %v3511, 1.442695
      %v3514 = vpow.pop %v3513
      %v3515 = vmul.f32 %v3512, 1.442695
      %v3516 = vpow.pop %v3515
      %v3517 = vsel %vm1075, %v3514, 0.0
      %3518 = vadd.xlane.f32.xlu0 %v3517
      %v3519 = vpop.xlane.xlu0 %3518
      %v3520 = vsel %vm1075, %v3516, 0.0
      %3521 = vadd.xlane.f32.xlu0 %v3520
      %v3522 = vpop.xlane.xlu0 %3521
      %v3523 = vrcp.pop %v3519
      %v3524 = vrcp.pop %v3522
      %v3525 = vmul.f32 %v3514, %v3523
      %v3526 = vmul.f32 %v3516, %v3524
      %v3527 = vpack.c.bf16 %v3526, %v3525
      %3528 = vrot.lane.b32.xlu0 %v3083, 40
      %v3529 = vpop.permute.xlu0 %3528
      %v3532 = vsel %vm1075, %v3527, 0
      %3534 = vmatprep.subr.bf16.mxu0 0
      %3535 = vmatpush1.bf16.msra.mxu0 %v3529
      %3536 = vmatprep.subr.bf16.mxu0 0
      %3537 = vmatpush1.bf16.msra.mxu0 0
      %3538 = vmatprep.subr.bf16.mxu0 0
      %3539 = vmatpush1.bf16.msra.mxu0 0
      %3540 = vmatprep.subr.bf16.mxu0 0
      %3541 = vmatpush1.bf16.msra.mxu0 0
      %3542 = vmatprep.subr.bf16.mxu0 0
      %3543 = vmatpush1.bf16.msra.mxu0 0
      %3544 = vmatprep.subr.bf16.mxu0 0
      %3545 = vmatpush1.bf16.msra.mxu0 0
      %3546 = vmatprep.subr.bf16.mxu0 0
      %3547 = vmatpush1.bf16.msra.mxu0 0
      %3548 = vmatprep.subr.bf16.mxu0 0
      %3549 = vmatpush1.bf16.msra.mxu0 0
      %3550 = vmatprep.subr.bf16.mxu0 0
      %3551 = vmatpush1.bf16.msra.mxu0 0
      %3552 = vmatprep.subr.bf16.mxu0 0
      %3553 = vmatpush1.bf16.msra.mxu0 0
      %3554 = vmatprep.subr.bf16.mxu0 0
      %3555 = vmatpush1.bf16.msra.mxu0 0
      %3556 = vmatprep.subr.bf16.mxu0 0
      %3557 = vmatpush1.bf16.msra.mxu0 0
      %3558 = vmatprep.subr.bf16.mxu0 0
      %3559 = vmatpush1.bf16.msra.mxu0 0
      %3560 = vmatprep.subr.bf16.mxu0 0
      %3561 = vmatpush1.bf16.msra.mxu0 0
      %3562 = vmatprep.subr.bf16.mxu0 0
      %3563 = vmatpush1.bf16.msra.mxu0 0
      %3564 = vmatprep.subr.bf16.mxu0 0
      %3565 = vmatpush1.bf16.msra.mxu0 0
      %3566 = vmatprep.mubr.bf16.mxu0 0
      %3567 = vmatmul.mubr.bf16.gmra.mrb[0].mxu0 %v3532
      %v3568 = vpop.f32.mrb[0].mxu0
      %v3569 = vadd.f32 0.0, %v3568
      %v3570 = vpop.f32.mrb[0].mxu0
      %v3571 = vpop.f32.mrb[0].mxu0
      %v3572 = vadd.f32 0.0, %v3571
      %v3573 = vpop.f32.mrb[0].mxu0
      %3574 = vdwg.mxu0
      %3577 = vrot.lane.b32.xlu0 %v3323, 8
      %v3578 = vpop.permute.xlu0 %3577
      %3579 = vrot.lane.b32.xlu0 %v3326, 8
      %v3580 = vpop.permute.xlu0 %3579
      %3585 = vrot.lane.b32.xlu0 %v3446, 16
      %v3586 = vpop.permute.xlu0 %3585
      %3587 = vrot.lane.b32.xlu0 %v3449, 16
      %v3588 = vpop.permute.xlu0 %3587
      %3593 = vrot.lane.b32.xlu0 %v3569, 24
      %v3594 = vpop.permute.xlu0 %3593
      %3595 = vrot.lane.b32.xlu0 %v3572, 24
      %v3596 = vpop.permute.xlu0 %3595
      %v3599 = vsel %vm1199, %v3200, %v3578
      %v3600 = vsel %vm1199, %v3203, %v3580
      %v3601 = vsel %vm1075, %v3599, %v3586
      %v3602 = vsel %vm1075, %v3600, %v3588
      %v3603 = vsel %vm1708, %v3601, %v3594
      %v3604 = vsel %vm1708, %v3602, %v3596
      %v3605 = vpack.c.bf16 %v3604, %v3603
      %v3607 = vlaneseq
      %v3608 = vshrl.u32 %v3607, 7
      %v3609 = vsub.s32 0, %v3608
      %v3610 = vrot.slane %v3075, %v3609
      %v3616 = vunpack.c.l.b16 %v3071
      %v3617 = vunpack.c.l.b16 %v3072
      %v3618 = vunpack.c.l.b16 %v3073
      %v3619 = vunpack.c.l.b16 %v3074
      %v3620 = vpack.c.b16 %v3617, %v3616
      %v3621 = vpack.c.b16 %v3619, %v3618
      %v3625 = vsel %vm1145, %v3605, 0
      %3627 = vmatprep.subr.bf16.mxu0 0
      %3628 = vmatpush1.bf16.msra.mxu0 %v3620
      %3629 = vmatprep.subr.bf16.mxu0 0
      %3630 = vmatpush1.bf16.msra.mxu0 %v3621
      %3631 = vmatprep.subr.bf16.mxu0 0
      %3632 = vmatpush1.bf16.msra.mxu0 0
      %3633 = vmatprep.subr.bf16.mxu0 0
      %3634 = vmatpush1.bf16.msra.mxu0 0
      %3635 = vmatprep.subr.bf16.mxu0 0
      %3636 = vmatpush1.bf16.msra.mxu0 0
      %3637 = vmatprep.subr.bf16.mxu0 0
      %3638 = vmatpush1.bf16.msra.mxu0 0
      %3639 = vmatprep.subr.bf16.mxu0 0
      %3640 = vmatpush1.bf16.msra.mxu0 0
      %3641 = vmatprep.subr.bf16.mxu0 0
      %3642 = vmatpush1.bf16.msra.mxu0 0
      %3643 = vmatprep.subr.bf16.mxu0 0
      %3644 = vmatpush1.bf16.msra.mxu0 0
      %3645 = vmatprep.subr.bf16.mxu0 0
      %3646 = vmatpush1.bf16.msra.mxu0 0
      %3647 = vmatprep.subr.bf16.mxu0 0
      %3648 = vmatpush1.bf16.msra.mxu0 0
      %3649 = vmatprep.subr.bf16.mxu0 0
      %3650 = vmatpush1.bf16.msra.mxu0 0
      %3651 = vmatprep.subr.bf16.mxu0 0
      %3652 = vmatpush1.bf16.msra.mxu0 0
      %3653 = vmatprep.subr.bf16.mxu0 0
      %3654 = vmatpush1.bf16.msra.mxu0 0
      %3655 = vmatprep.subr.bf16.mxu0 0
      %3656 = vmatpush1.bf16.msra.mxu0 0
      %3657 = vmatprep.subr.bf16.mxu0 0
      %3658 = vmatpush1.bf16.msra.mxu0 0
      %3659 = vmatprep.mubr.bf16.mxu0 0
      %3660 = vmatmul.mubr.bf16.gmra.mrb[0].mxu0 %v3625
      %v3661 = vpop.f32.mrb[0].mxu0
      %v3662 = vadd.f32 %v3610, %v3661
      %v3663 = vpop.f32.mrb[0].mxu0
      %v3664 = vpop.f32.mrb[0].mxu0
      %v3665 = vadd.f32 %v3610, %v3664
      %v3666 = vpop.f32.mrb[0].mxu0
      %3667 = vdwg.mxu0
      %v3668 = vadd.f32 %v2996, %v3662
      %v3669 = vadd.f32 %v2999, %v3665
      %v3670 = vsel %vm1145, %v3668, 0.0
      %3671 = vadd.xlane.f32.xlu0 %v3670
      %v3672 = vpop.xlane.xlu0 %3671
      %v3673 = vsel %vm1145, %v3669, 0.0
      %3674 = vadd.xlane.f32.xlu0 %v3673
      %v3675 = vpop.xlane.xlu0 %3674
      %v3676 = vmul.f32 %v3672, %v1782
      %v3677 = vmul.f32 %v3675, %v1782
      %v3678 = vsub.f32 %v3668, %v3676
      %v3679 = vsub.f32 %v3669, %v3677
      %v3680 = vmul.f32 %v3678, %v3678
      %v3681 = vmul.f32 %v3679, %v3679
      %v3682 = vsel %vm1145, %v3680, 0.0
      %3683 = vadd.xlane.f32.xlu0 %v3682
      %v3684 = vpop.xlane.xlu0 %3683
      %v3685 = vsel %vm1145, %v3681, 0.0
      %3686 = vadd.xlane.f32.xlu0 %v3685
      %v3687 = vpop.xlane.xlu0 %3686
      %v3688 = vmul.f32 %v3684, %v1782
      %v3689 = vmul.f32 %v3687, %v1782
      %v3690 = vadd.f32 %v3688, 1e-05
      %v3691 = vadd.f32 %v3689, 1e-05
      %v3692 = vrsqrt.pop %v3690
      %v3693 = vrsqrt.pop %v3691
      %v3694 = vmul.f32 %v3678, %v3692
      %v3695 = vmul.f32 %v3679, %v3693
      %v3696 = vlaneseq
      %v3697 = vshrl.u32 %v3696, 7
      %v3698 = vsub.s32 0, %v3697
      %v3699 = vrot.slane %v3002, %v3698
      %v3700 = vmul.f32 %v3694, %v3699
      %v3701 = vmul.f32 %v3695, %v3699
      %v3702 = vlaneseq
      %v3703 = vshrl.u32 %v3702, 7
      %v3704 = vsub.s32 1, %v3703
      %v3705 = vrot.slane %v3002, %v3704
      %v3706 = vadd.f32 %v3700, %v3705
      %v3707 = vadd.f32 %v3701, %v3705
      %v3708 = vpack.c.bf16 %v3707, %v3706
      %v3709 = vld [vmem:[%s41] sm:$0xf]
      %v3710 = vld [vmem:[%s41 + $0x4] sm:$0xf]
      %v3711 = vld [vmem:[%s41 + $0x8] sm:$0xf]
      %v3712 = vld [vmem:[%s41 + $0xc] sm:$0xf]
      %v3713 = vld [vmem:[%s43] sm:$0x1]
      %v3715 = vlaneseq
      %v3716 = vshrl.u32 %v3715, 7
      %v3717 = vsub.s32 0, %v3716
      %v3718 = vrot.slane %v3713, %v3717
      %v3724 = vunpack.c.l.b16 %v3709
      %v3725 = vunpack.c.l.b16 %v3710
      %v3726 = vunpack.c.l.b16 %v3711
      %v3727 = vunpack.c.l.b16 %v3712
      %v3728 = vpack.c.b16 %v3725, %v3724
      %v3729 = vpack.c.b16 %v3727, %v3726
      %v3733 = vsel %vm1145, %v3708, 0
      %3735 = vmatprep.subr.bf16.mxu0 0
      %3736 = vmatpush1.bf16.msra.mxu0 %v3728
      %3737 = vmatprep.subr.bf16.mxu0 0
      %3738 = vmatpush1.bf16.msra.mxu0 %v3729
      %3739 = vmatprep.subr.bf16.mxu0 0
      %3740 = vmatpush1.bf16.msra.mxu0 0
      %3741 = vmatprep.subr.bf16.mxu0 0
      %3742 = vmatpush1.bf16.msra.mxu0 0
      %3743 = vmatprep.subr.bf16.mxu0 0
      %3744 = vmatpush1.bf16.msra.mxu0 0
      %3745 = vmatprep.subr.bf16.mxu0 0
      %3746 = vmatpush1.bf16.msra.mxu0 0
      %3747 = vmatprep.subr.bf16.mxu0 0
      %3748 = vmatpush1.bf16.msra.mxu0 0
      %3749 = vmatprep.subr.bf16.mxu0 0
      %3750 = vmatpush1.bf16.msra.mxu0 0
      %3751 = vmatprep.subr.bf16.mxu0 0
      %3752 = vmatpush1.bf16.msra.mxu0 0
      %3753 = vmatprep.subr.bf16.mxu0 0
      %3754 = vmatpush1.bf16.msra.mxu0 0
      %3755 = vmatprep.subr.bf16.mxu0 0
      %3756 = vmatpush1.bf16.msra.mxu0 0
      %3757 = vmatprep.subr.bf16.mxu0 0
      %3758 = vmatpush1.bf16.msra.mxu0 0
      %3759 = vmatprep.subr.bf16.mxu0 0
      %3760 = vmatpush1.bf16.msra.mxu0 0
      %3761 = vmatprep.subr.bf16.mxu0 0
      %3762 = vmatpush1.bf16.msra.mxu0 0
      %3763 = vmatprep.subr.bf16.mxu0 0
      %3764 = vmatpush1.bf16.msra.mxu0 0
      %3765 = vmatprep.subr.bf16.mxu0 0
      %3766 = vmatpush1.bf16.msra.mxu0 0
      %3767 = vmatprep.mubr.bf16.mxu0 0
      %3768 = vmatmul.mubr.bf16.gmra.mrb[0].mxu0 %v3733
      %v3769 = vpop.f32.mrb[0].mxu0
      %v3770 = vadd.f32 %v3718, %v3769
      %v3771 = vpop.f32.mrb[0].mxu0
      %v3772 = vpop.f32.mrb[0].mxu0
      %v3773 = vadd.f32 %v3718, %v3772
      %v3774 = vpop.f32.mrb[0].mxu0
      %3775 = vdwg.mxu0
      %v3776 = vld [vmem:[%s45] sm:$0xf]
      %v3777 = vld [vmem:[%s45 + $0x4] sm:$0xf]
      %v3778 = vld [vmem:[%s45 + $0x8] sm:$0xf]
      %v3779 = vld [vmem:[%s45 + $0xc] sm:$0xf]
      %v3780 = vld [vmem:[%s47] sm:$0x1]
      %v3782 = vlaneseq
      %v3783 = vshrl.u32 %v3782, 7
      %v3784 = vsub.s32 0, %v3783
      %v3785 = vrot.slane %v3780, %v3784
      %v3791 = vunpack.c.l.b16 %v3776
      %v3792 = vunpack.c.l.b16 %v3777
      %v3793 = vunpack.c.l.b16 %v3778
      %v3794 = vunpack.c.l.b16 %v3779
      %v3795 = vpack.c.b16 %v3792, %v3791
      %v3796 = vpack.c.b16 %v3794, %v3793
      %v3800 = vsel %vm1145, %v2944, 0
      %3802 = vmatprep.subr.bf16.mxu0 0
      %3803 = vmatpush1.bf16.msra.mxu0 %v3795
      %3804 = vmatprep.subr.bf16.mxu0 0
      %3805 = vmatpush1.bf16.msra.mxu0 %v3796
      %3806 = vmatprep.subr.bf16.mxu0 0
      %3807 = vmatpush1.bf16.msra.mxu0 0
      %3808 = vmatprep.subr.bf16.mxu0 0
      %3809 = vmatpush1.bf16.msra.mxu0 0
      %3810 = vmatprep.subr.bf16.mxu0 0
      %3811 = vmatpush1.bf16.msra.mxu0 0
      %3812 = vmatprep.subr.bf16.mxu0 0
      %3813 = vmatpush1.bf16.msra.mxu0 0
      %3814 = vmatprep.subr.bf16.mxu0 0
      %3815 = vmatpush1.bf16.msra.mxu0 0
      %3816 = vmatprep.subr.bf16.mxu0 0
      %3817 = vmatpush1.bf16.msra.mxu0 0
      %3818 = vmatprep.subr.bf16.mxu0 0
      %3819 = vmatpush1.bf16.msra.mxu0 0
      %3820 = vmatprep.subr.bf16.mxu0 0
      %3821 = vmatpush1.bf16.msra.mxu0 0
      %3822 = vmatprep.subr.bf16.mxu0 0
      %3823 = vmatpush1.bf16.msra.mxu0 0
      %3824 = vmatprep.subr.bf16.mxu0 0
      %3825 = vmatpush1.bf16.msra.mxu0 0
      %3826 = vmatprep.subr.bf16.mxu0 0
      %3827 = vmatpush1.bf16.msra.mxu0 0
      %3828 = vmatprep.subr.bf16.mxu0 0
      %3829 = vmatpush1.bf16.msra.mxu0 0
      %3830 = vmatprep.subr.bf16.mxu0 0
      %3831 = vmatpush1.bf16.msra.mxu0 0
      %3832 = vmatprep.subr.bf16.mxu0 0
      %3833 = vmatpush1.bf16.msra.mxu0 0
      %3834 = vmatprep.mubr.bf16.mxu0 0
      %3835 = vmatmul.mubr.bf16.gmra.mrb[0].mxu0 %v3800
      %v3836 = vpop.f32.mrb[0].mxu0
      %v3837 = vadd.f32 %v3785, %v3836
      %v3838 = vpop.f32.mrb[0].mxu0
      %v3839 = vpop.f32.mrb[0].mxu0
      %v3840 = vadd.f32 %v3785, %v3839
      %v3841 = vpop.f32.mrb[0].mxu0
      %3842 = vdwg.mxu0
      %v3843 = vld [vmem:[%s49] sm:$0xf]
      %v3844 = vld [vmem:[%s49 + $0x4] sm:$0xf]
      %v3845 = vld [vmem:[%s49 + $0x8] sm:$0xf]
      %v3846 = vld [vmem:[%s49 + $0xc] sm:$0xf]
      %v3847 = vld [vmem:[%s51] sm:$0x1]
      %v3848 = vpack.c.bf16 %v3773, %v3770
      %v3849 = vpack.c.bf16 %v3840, %v3837
      %v3851 = vsel %vm1199, %v3848, 0
      %v3854 = vsel %vm1199, %v3849, 0
      %3856 = vmatprep.subr.bf16.mxu0 0
      %3857 = vmatpush1.bf16.xpose.msra.mxu0 %v3854
      %3858 = vmatprep.subr.bf16.mxu0 0
      %3859 = vmatpush1.bf16.xpose.msra.mxu0 0
      %3860 = vmatprep.subr.bf16.mxu0 0
      %3861 = vmatpush1.bf16.xpose.msra.mxu0 0
      %3862 = vmatprep.subr.bf16.mxu0 0
      %3863 = vmatpush1.bf16.xpose.msra.mxu0 0
      %3864 = vmatprep.subr.bf16.mxu0 0
      %3865 = vmatpush1.bf16.xpose.msra.mxu0 0
      %3866 = vmatprep.subr.bf16.mxu0 0
      %3867 = vmatpush1.bf16.xpose.msra.mxu0 0
      %3868 = vmatprep.subr.bf16.mxu0 0
      %3869 = vmatpush1.bf16.xpose.msra.mxu0 0
      %3870 = vmatprep.subr.bf16.mxu0 0
      %3871 = vmatpush1.bf16.xpose.msra.mxu0 0
      %3872 = vmatprep.subr.bf16.mxu0 0
      %3873 = vmatpush1.bf16.xpose.msra.mxu0 0
      %3874 = vmatprep.subr.bf16.mxu0 0
      %3875 = vmatpush1.bf16.xpose.msra.mxu0 0
      %3876 = vmatprep.subr.bf16.mxu0 0
      %3877 = vmatpush1.bf16.xpose.msra.mxu0 0
      %3878 = vmatprep.subr.bf16.mxu0 0
      %3879 = vmatpush1.bf16.xpose.msra.mxu0 0
      %3880 = vmatprep.subr.bf16.mxu0 0
      %3881 = vmatpush1.bf16.xpose.msra.mxu0 0
      %3882 = vmatprep.subr.bf16.mxu0 0
      %3883 = vmatpush1.bf16.xpose.msra.mxu0 0
      %3884 = vmatprep.subr.bf16.mxu0 0
      %3885 = vmatpush1.bf16.xpose.msra.mxu0 0
      %3886 = vmatprep.subr.bf16.mxu0 0
      %3887 = vmatpush1.bf16.xpose.msra.mxu0 0
      %3888 = vmatprep.mubr.bf16.mxu0 0
      %3889 = vmatmul.mubr.bf16.gmra.mrb[0].mxu0 %v3851
      %v3890 = vpop.f32.mrb[0].mxu0
      %v3891 = vadd.f32 0.0, %v3890
      %v3892 = vpop.f32.mrb[0].mxu0
      %v3893 = vpop.f32.mrb[0].mxu0
      %v3894 = vadd.f32 0.0, %v3893
      %v3895 = vpop.f32.mrb[0].mxu0
      %3896 = vdwg.mxu0
      %v3897 = vsel %vm1075, %v3891, -inf
      %3898 = vmax.xlane.f32.xlu0 %v3897
      %v3899 = vpop.xlane.xlu0 %3898
      %v3900 = vsel %vm1075, %v3894, -inf
      %3901 = vmax.xlane.f32.xlu0 %v3900
      %v3902 = vpop.xlane.xlu0 %3901
      %v3903 = vsub.f32 %v3891, %v3899
      %v3904 = vsub.f32 %v3894, %v3902
      %v3905 = vmul.f32 %v3903, 1.442695
      %v3906 = vpow.pop %v3905
      %v3907 = vmul.f32 %v3904, 1.442695
      %v3908 = vpow.pop %v3907
      %v3909 = vsel %vm1075, %v3906, 0.0
      %3910 = vadd.xlane.f32.xlu0 %v3909
      %v3911 = vpop.xlane.xlu0 %3910
      %v3912 = vsel %vm1075, %v3908, 0.0
      %3913 = vadd.xlane.f32.xlu0 %v3912
      %v3914 = vpop.xlane.xlu0 %3913
      %v3915 = vrcp.pop %v3911
      %v3916 = vrcp.pop %v3914
      %v3917 = vmul.f32 %v3906, %v3915
      %v3918 = vmul.f32 %v3908, %v3916
      %v3919 = vpack.c.bf16 %v3918, %v3917
      %3921 = vrot.lane.b32.xlu0 %v3849, 96
      %v3922 = vpop.permute.xlu0 %3921
      %v3925 = vsel %vm1075, %v3919, 0
      %3927 = vmatprep.subr.bf16.mxu0 0
      %3928 = vmatpush1.bf16.msra.mxu0 %v3922
      %3929 = vmatprep.subr.bf16.mxu0 0
      %3930 = vmatpush1.bf16.msra.mxu0 0
      %3931 = vmatprep.subr.bf16.mxu0 0
      %3932 = vmatpush1.bf16.msra.mxu0 0
      %3933 = vmatprep.subr.bf16.mxu0 0
      %3934 = vmatpush1.bf16.msra.mxu0 0
      %3935 = vmatprep.subr.bf16.mxu0 0
      %3936 = vmatpush1.bf16.msra.mxu0 0
      %3937 = vmatprep.subr.bf16.mxu0 0
      %3938 = vmatpush1.bf16.msra.mxu0 0
      %3939 = vmatprep.subr.bf16.mxu0 0
      %3940 = vmatpush1.bf16.msra.mxu0 0
      %3941 = vmatprep.subr.bf16.mxu0 0
      %3942 = vmatpush1.bf16.msra.mxu0 0
      %3943 = vmatprep.subr.bf16.mxu0 0
      %3944 = vmatpush1.bf16.msra.mxu0 0
      %3945 = vmatprep.subr.bf16.mxu0 0
      %3946 = vmatpush1.bf16.msra.mxu0 0
      %3947 = vmatprep.subr.bf16.mxu0 0
      %3948 = vmatpush1.bf16.msra.mxu0 0
      %3949 = vmatprep.subr.bf16.mxu0 0
      %3950 = vmatpush1.bf16.msra.mxu0 0
      %3951 = vmatprep.subr.bf16.mxu0 0
      %3952 = vmatpush1.bf16.msra.mxu0 0
      %3953 = vmatprep.subr.bf16.mxu0 0
      %3954 = vmatpush1.bf16.msra.mxu0 0
      %3955 = vmatprep.subr.bf16.mxu0 0
      %3956 = vmatpush1.bf16.msra.mxu0 0
      %3957 = vmatprep.subr.bf16.mxu0 0
      %3958 = vmatpush1.bf16.msra.mxu0 0
      %3959 = vmatprep.mubr.bf16.mxu0 0
      %3960 = vmatmul.mubr.bf16.gmra.mrb[0].mxu0 %v3925
      %v3961 = vpop.f32.mrb[0].mxu0
      %v3962 = vadd.f32 0.0, %v3961
      %v3963 = vpop.f32.mrb[0].mxu0
      %v3964 = vpop.f32.mrb[0].mxu0
      %v3965 = vadd.f32 0.0, %v3964
      %v3966 = vpop.f32.mrb[0].mxu0
      %3967 = vdwg.mxu0
      %3969 = vrot.lane.b32.xlu0 %v3848, 120
      %v3970 = vpop.permute.xlu0 %3969
      %3971 = vrot.lane.b32.xlu0 %v3849, 120
      %v3972 = vpop.permute.xlu0 %3971
      %v3974 = vsel %vm1199, %v3970, 0
      %v3977 = vsel %vm1199, %v3972, 0
      %3979 = vmatprep.subr.bf16.mxu0 0
      %3980 = vmatpush1.bf16.xpose.msra.mxu0 %v3977
      %3981 = vmatprep.subr.bf16.mxu0 0
      %3982 = vmatpush1.bf16.xpose.msra.mxu0 0
      %3983 = vmatprep.subr.bf16.mxu0 0
      %3984 = vmatpush1.bf16.xpose.msra.mxu0 0
      %3985 = vmatprep.subr.bf16.mxu0 0
      %3986 = vmatpush1.bf16.xpose.msra.mxu0 0
      %3987 = vmatprep.subr.bf16.mxu0 0
      %3988 = vmatpush1.bf16.xpose.msra.mxu0 0
      %3989 = vmatprep.subr.bf16.mxu0 0
      %3990 = vmatpush1.bf16.xpose.msra.mxu0 0
      %3991 = vmatprep.subr.bf16.mxu0 0
      %3992 = vmatpush1.bf16.xpose.msra.mxu0 0
      %3993 = vmatprep.subr.bf16.mxu0 0
      %3994 = vmatpush1.bf16.xpose.msra.mxu0 0
      %3995 = vmatprep.subr.bf16.mxu0 0
      %3996 = vmatpush1.bf16.xpose.msra.mxu0 0
      %3997 = vmatprep.subr.bf16.mxu0 0
      %3998 = vmatpush1.bf16.xpose.msra.mxu0 0
      %3999 = vmatprep.subr.bf16.mxu0 0
      %4000 = vmatpush1.bf16.xpose.msra.mxu0 0
      %4001 = vmatprep.subr.bf16.mxu0 0
      %4002 = vmatpush1.bf16.xpose.msra.mxu0 0
      %4003 = vmatprep.subr.bf16.mxu0 0
      %4004 = vmatpush1.bf16.xpose.msra.mxu0 0
      %4005 = vmatprep.subr.bf16.mxu0 0
      %4006 = vmatpush1.bf16.xpose.msra.mxu0 0
      %4007 = vmatprep.subr.bf16.mxu0 0
      %4008 = vmatpush1.bf16.xpose.msra.mxu0 0
      %4009 = vmatprep.subr.bf16.mxu0 0
      %4010 = vmatpush1.bf16.xpose.msra.mxu0 0
      %4011 = vmatprep.mubr.bf16.mxu0 0
      %4012 = vmatmul.mubr.bf16.gmra.mrb[0].mxu0 %v3974
      %v4013 = vpop.f32.mrb[0].mxu0
      %v4014 = vadd.f32 0.0, %v4013
      %v4015 = vpop.f32.mrb[0].mxu0
      %v4016 = vpop.f32.mrb[0].mxu0
      %v4017 = vadd.f32 0.0, %v4016
      %v4018 = vpop.f32.mrb[0].mxu0
      %4019 = vdwg.mxu0
      %v4020 = vsel %vm1075, %v4014, -inf
      %4021 = vmax.xlane.f32.xlu0 %v4020
      %v4022 = vpop.xlane.xlu0 %4021
      %v4023 = vsel %vm1075, %v4017, -inf
      %4024 = vmax.xlane.f32.xlu0 %v4023
      %v4025 = vpop.xlane.xlu0 %4024
      %v4026 = vsub.f32 %v4014, %v4022
      %v4027 = vsub.f32 %v4017, %v4025
      %v4028 = vmul.f32 %v4026, 1.442695
      %v4029 = vpow.pop %v4028
      %v4030 = vmul.f32 %v4027, 1.442695
      %v4031 = vpow.pop %v4030
      %v4032 = vsel %vm1075, %v4029, 0.0
      %4033 = vadd.xlane.f32.xlu0 %v4032
      %v4034 = vpop.xlane.xlu0 %4033
      %v4035 = vsel %vm1075, %v4031, 0.0
      %4036 = vadd.xlane.f32.xlu0 %v4035
      %v4037 = vpop.xlane.xlu0 %4036
      %v4038 = vrcp.pop %v4034
      %v4039 = vrcp.pop %v4037
      %v4040 = vmul.f32 %v4029, %v4038
      %v4041 = vmul.f32 %v4031, %v4039
      %v4042 = vpack.c.bf16 %v4041, %v4040
      %4043 = vrot.lane.b32.xlu0 %v3849, 88
      %v4044 = vpop.permute.xlu0 %4043
      %v4047 = vsel %vm1075, %v4042, 0
      %4049 = vmatprep.subr.bf16.mxu0 0
      %4050 = vmatpush1.bf16.msra.mxu0 %v4044
      %4051 = vmatprep.subr.bf16.mxu0 0
      %4052 = vmatpush1.bf16.msra.mxu0 0
      %4053 = vmatprep.subr.bf16.mxu0 0
      %4054 = vmatpush1.bf16.msra.mxu0 0
      %4055 = vmatprep.subr.bf16.mxu0 0
      %4056 = vmatpush1.bf16.msra.mxu0 0
      %4057 = vmatprep.subr.bf16.mxu0 0
      %4058 = vmatpush1.bf16.msra.mxu0 0
      %4059 = vmatprep.subr.bf16.mxu0 0
      %4060 = vmatpush1.bf16.msra.mxu0 0
      %4061 = vmatprep.subr.bf16.mxu0 0
      %4062 = vmatpush1.bf16.msra.mxu0 0
      %4063 = vmatprep.subr.bf16.mxu0 0
      %4064 = vmatpush1.bf16.msra.mxu0 0
      %4065 = vmatprep.subr.bf16.mxu0 0
      %4066 = vmatpush1.bf16.msra.mxu0 0
      %4067 = vmatprep.subr.bf16.mxu0 0
      %4068 = vmatpush1.bf16.msra.mxu0 0
      %4069 = vmatprep.subr.bf16.mxu0 0
      %4070 = vmatpush1.bf16.msra.mxu0 0
      %4071 = vmatprep.subr.bf16.mxu0 0
      %4072 = vmatpush1.bf16.msra.mxu0 0
      %4073 = vmatprep.subr.bf16.mxu0 0
      %4074 = vmatpush1.bf16.msra.mxu0 0
      %4075 = vmatprep.subr.bf16.mxu0 0
      %4076 = vmatpush1.bf16.msra.mxu0 0
      %4077 = vmatprep.subr.bf16.mxu0 0
      %4078 = vmatpush1.bf16.msra.mxu0 0
      %4079 = vmatprep.subr.bf16.mxu0 0
      %4080 = vmatpush1.bf16.msra.mxu0 0
      %4081 = vmatprep.mubr.bf16.mxu0 0
      %4082 = vmatmul.mubr.bf16.gmra.mrb[0].mxu0 %v4047
      %v4083 = vpop.f32.mrb[0].mxu0
      %v4084 = vadd.f32 0.0, %v4083
      %v4085 = vpop.f32.mrb[0].mxu0
      %v4086 = vpop.f32.mrb[0].mxu0
      %v4087 = vadd.f32 0.0, %v4086
      %v4088 = vpop.f32.mrb[0].mxu0
      %4089 = vdwg.mxu0
      %4090 = vrot.lane.b32.xlu0 %v3848, 112
      %v4091 = vpop.permute.xlu0 %4090
      %4092 = vrot.lane.b32.xlu0 %v3849, 112
      %v4093 = vpop.permute.xlu0 %4092
      %v4095 = vsel %vm1199, %v4091, 0
      %v4098 = vsel %vm1199, %v4093, 0
      %4100 = vmatprep.subr.bf16.mxu0 0
      %4101 = vmatpush1.bf16.xpose.msra.mxu0 %v4098
      %4102 = vmatprep.subr.bf16.mxu0 0
      %4103 = vmatpush1.bf16.xpose.msra.mxu0 0
      %4104 = vmatprep.subr.bf16.mxu0 0
      %4105 = vmatpush1.bf16.xpose.msra.mxu0 0
      %4106 = vmatprep.subr.bf16.mxu0 0
      %4107 = vmatpush1.bf16.xpose.msra.mxu0 0
      %4108 = vmatprep.subr.bf16.mxu0 0
      %4109 = vmatpush1.bf16.xpose.msra.mxu0 0
      %4110 = vmatprep.subr.bf16.mxu0 0
      %4111 = vmatpush1.bf16.xpose.msra.mxu0 0
      %4112 = vmatprep.subr.bf16.mxu0 0
      %4113 = vmatpush1.bf16.xpose.msra.mxu0 0
      %4114 = vmatprep.subr.bf16.mxu0 0
      %4115 = vmatpush1.bf16.xpose.msra.mxu0 0
      %4116 = vmatprep.subr.bf16.mxu0 0
      %4117 = vmatpush1.bf16.xpose.msra.mxu0 0
      %4118 = vmatprep.subr.bf16.mxu0 0
      %4119 = vmatpush1.bf16.xpose.msra.mxu0 0
      %4120 = vmatprep.subr.bf16.mxu0 0
      %4121 = vmatpush1.bf16.xpose.msra.mxu0 0
      %4122 = vmatprep.subr.bf16.mxu0 0
      %4123 = vmatpush1.bf16.xpose.msra.mxu0 0
      %4124 = vmatprep.subr.bf16.mxu0 0
      %4125 = vmatpush1.bf16.xpose.msra.mxu0 0
      %4126 = vmatprep.subr.bf16.mxu0 0
      %4127 = vmatpush1.bf16.xpose.msra.mxu0 0
      %4128 = vmatprep.subr.bf16.mxu0 0
      %4129 = vmatpush1.bf16.xpose.msra.mxu0 0
      %4130 = vmatprep.subr.bf16.mxu0 0
      %4131 = vmatpush1.bf16.xpose.msra.mxu0 0
      %4132 = vmatprep.mubr.bf16.mxu0 0
      %4133 = vmatmul.mubr.bf16.gmra.mrb[0].mxu0 %v4095
      %v4134 = vpop.f32.mrb[0].mxu0
      %v4135 = vadd.f32 0.0, %v4134
      %v4136 = vpop.f32.mrb[0].mxu0
      %v4137 = vpop.f32.mrb[0].mxu0
      %v4138 = vadd.f32 0.0, %v4137
      %v4139 = vpop.f32.mrb[0].mxu0
      %4140 = vdwg.mxu0
      %v4141 = vsel %vm1075, %v4135, -inf
      %4142 = vmax.xlane.f32.xlu0 %v4141
      %v4143 = vpop.xlane.xlu0 %4142
      %v4144 = vsel %vm1075, %v4138, -inf
      %4145 = vmax.xlane.f32.xlu0 %v4144
      %v4146 = vpop.xlane.xlu0 %4145
      %v4147 = vsub.f32 %v4135, %v4143
      %v4148 = vsub.f32 %v4138, %v4146
      %v4149 = vmul.f32 %v4147, 1.442695
      %v4150 = vpow.pop %v4149
      %v4151 = vmul.f32 %v4148, 1.442695
      %v4152 = vpow.pop %v4151
      %v4153 = vsel %vm1075, %v4150, 0.0
      %4154 = vadd.xlane.f32.xlu0 %v4153
      %v4155 = vpop.xlane.xlu0 %4154
      %v4156 = vsel %vm1075, %v4152, 0.0
      %4157 = vadd.xlane.f32.xlu0 %v4156
      %v4158 = vpop.xlane.xlu0 %4157
      %v4159 = vrcp.pop %v4155
      %v4160 = vrcp.pop %v4158
      %v4161 = vmul.f32 %v4150, %v4159
      %v4162 = vmul.f32 %v4152, %v4160
      %v4163 = vpack.c.bf16 %v4162, %v4161
      %4164 = vrot.lane.b32.xlu0 %v3849, 80
      %v4165 = vpop.permute.xlu0 %4164
      %v4168 = vsel %vm1075, %v4163, 0
      %4170 = vmatprep.subr.bf16.mxu0 0
      %4171 = vmatpush1.bf16.msra.mxu0 %v4165
      %4172 = vmatprep.subr.bf16.mxu0 0
      %4173 = vmatpush1.bf16.msra.mxu0 0
      %4174 = vmatprep.subr.bf16.mxu0 0
      %4175 = vmatpush1.bf16.msra.mxu0 0
      %4176 = vmatprep.subr.bf16.mxu0 0
      %4177 = vmatpush1.bf16.msra.mxu0 0
      %4178 = vmatprep.subr.bf16.mxu0 0
      %4179 = vmatpush1.bf16.msra.mxu0 0
      %4180 = vmatprep.subr.bf16.mxu0 0
      %4181 = vmatpush1.bf16.msra.mxu0 0
      %4182 = vmatprep.subr.bf16.mxu0 0
      %4183 = vmatpush1.bf16.msra.mxu0 0
      %4184 = vmatprep.subr.bf16.mxu0 0
      %4185 = vmatpush1.bf16.msra.mxu0 0
      %4186 = vmatprep.subr.bf16.mxu0 0
      %4187 = vmatpush1.bf16.msra.mxu0 0
      %4188 = vmatprep.subr.bf16.mxu0 0
      %4189 = vmatpush1.bf16.msra.mxu0 0
      %4190 = vmatprep.subr.bf16.mxu0 0
      %4191 = vmatpush1.bf16.msra.mxu0 0
      %4192 = vmatprep.subr.bf16.mxu0 0
      %4193 = vmatpush1.bf16.msra.mxu0 0
      %4194 = vmatprep.subr.bf16.mxu0 0
      %4195 = vmatpush1.bf16.msra.mxu0 0
      %4196 = vmatprep.subr.bf16.mxu0 0
      %4197 = vmatpush1.bf16.msra.mxu0 0
      %4198 = vmatprep.subr.bf16.mxu0 0
      %4199 = vmatpush1.bf16.msra.mxu0 0
      %4200 = vmatprep.subr.bf16.mxu0 0
      %4201 = vmatpush1.bf16.msra.mxu0 0
      %4202 = vmatprep.mubr.bf16.mxu0 0
      %4203 = vmatmul.mubr.bf16.gmra.mrb[0].mxu0 %v4168
      %v4204 = vpop.f32.mrb[0].mxu0
      %v4205 = vadd.f32 0.0, %v4204
      %v4206 = vpop.f32.mrb[0].mxu0
      %v4207 = vpop.f32.mrb[0].mxu0
      %v4208 = vadd.f32 0.0, %v4207
      %v4209 = vpop.f32.mrb[0].mxu0
      %4210 = vdwg.mxu0
      %4211 = vrot.lane.b32.xlu0 %v3848, 104
      %v4212 = vpop.permute.xlu0 %4211
      %4213 = vrot.lane.b32.xlu0 %v3849, 104
      %v4214 = vpop.permute.xlu0 %4213
      %v4216 = vsel %vm1199, %v4212, 0
      %v4219 = vsel %vm1199, %v4214, 0
      %4221 = vmatprep.subr.bf16.mxu0 0
      %4222 = vmatpush1.bf16.xpose.msra.mxu0 %v4219
      %4223 = vmatprep.subr.bf16.mxu0 0
      %4224 = vmatpush1.bf16.xpose.msra.mxu0 0
      %4225 = vmatprep.subr.bf16.mxu0 0
      %4226 = vmatpush1.bf16.xpose.msra.mxu0 0
      %4227 = vmatprep.subr.bf16.mxu0 0
      %4228 = vmatpush1.bf16.xpose.msra.mxu0 0
      %4229 = vmatprep.subr.bf16.mxu0 0
      %4230 = vmatpush1.bf16.xpose.msra.mxu0 0
      %4231 = vmatprep.subr.bf16.mxu0 0
      %4232 = vmatpush1.bf16.xpose.msra.mxu0 0
      %4233 = vmatprep.subr.bf16.mxu0 0
      %4234 = vmatpush1.bf16.xpose.msra.mxu0 0
      %4235 = vmatprep.subr.bf16.mxu0 0
      %4236 = vmatpush1.bf16.xpose.msra.mxu0 0
      %4237 = vmatprep.subr.bf16.mxu0 0
      %4238 = vmatpush1.bf16.xpose.msra.mxu0 0
      %4239 = vmatprep.subr.bf16.mxu0 0
      %4240 = vmatpush1.bf16.xpose.msra.mxu0 0
      %4241 = vmatprep.subr.bf16.mxu0 0
      %4242 = vmatpush1.bf16.xpose.msra.mxu0 0
      %4243 = vmatprep.subr.bf16.mxu0 0
      %4244 = vmatpush1.bf16.xpose.msra.mxu0 0
      %4245 = vmatprep.subr.bf16.mxu0 0
      %4246 = vmatpush1.bf16.xpose.msra.mxu0 0
      %4247 = vmatprep.subr.bf16.mxu0 0
      %4248 = vmatpush1.bf16.xpose.msra.mxu0 0
      %4249 = vmatprep.subr.bf16.mxu0 0
      %4250 = vmatpush1.bf16.xpose.msra.mxu0 0
      %4251 = vmatprep.subr.bf16.mxu0 0
      %4252 = vmatpush1.bf16.xpose.msra.mxu0 0
      %4253 = vmatprep.mubr.bf16.mxu0 0
      %4254 = vmatmul.mubr.bf16.gmra.mrb[0].mxu0 %v4216
      %v4255 = vpop.f32.mrb[0].mxu0
      %v4256 = vadd.f32 0.0, %v4255
      %v4257 = vpop.f32.mrb[0].mxu0
      %v4258 = vpop.f32.mrb[0].mxu0
      %v4259 = vadd.f32 0.0, %v4258
      %v4260 = vpop.f32.mrb[0].mxu0
      %4261 = vdwg.mxu0
      %v4262 = vsel %vm1075, %v4256, -inf
      %4263 = vmax.xlane.f32.xlu0 %v4262
      %v4264 = vpop.xlane.xlu0 %4263
      %v4265 = vsel %vm1075, %v4259, -inf
      %4266 = vmax.xlane.f32.xlu0 %v4265
      %v4267 = vpop.xlane.xlu0 %4266
      %v4268 = vsub.f32 %v4256, %v4264
      %v4269 = vsub.f32 %v4259, %v4267
      %v4270 = vmul.f32 %v4268, 1.442695
      %v4271 = vpow.pop %v4270
      %v4272 = vmul.f32 %v4269, 1.442695
      %v4273 = vpow.pop %v4272
      %v4274 = vsel %vm1075, %v4271, 0.0
      %4275 = vadd.xlane.f32.xlu0 %v4274
      %v4276 = vpop.xlane.xlu0 %4275
      %v4277 = vsel %vm1075, %v4273, 0.0
      %4278 = vadd.xlane.f32.xlu0 %v4277
      %v4279 = vpop.xlane.xlu0 %4278
      %v4280 = vrcp.pop %v4276
      %v4281 = vrcp.pop %v4279
      %v4282 = vmul.f32 %v4271, %v4280
      %v4283 = vmul.f32 %v4273, %v4281
      %v4284 = vpack.c.bf16 %v4283, %v4282
      %4285 = vrot.lane.b32.xlu0 %v3849, 72
      %v4286 = vpop.permute.xlu0 %4285
      %v4289 = vsel %vm1075, %v4284, 0
      %4291 = vmatprep.subr.bf16.mxu0 0
      %4292 = vmatpush1.bf16.msra.mxu0 %v4286
      %4293 = vmatprep.subr.bf16.mxu0 0
      %4294 = vmatpush1.bf16.msra.mxu0 0
      %4295 = vmatprep.subr.bf16.mxu0 0
      %4296 = vmatpush1.bf16.msra.mxu0 0
      %4297 = vmatprep.subr.bf16.mxu0 0
      %4298 = vmatpush1.bf16.msra.mxu0 0
      %4299 = vmatprep.subr.bf16.mxu0 0
      %4300 = vmatpush1.bf16.msra.mxu0 0
      %4301 = vmatprep.subr.bf16.mxu0 0
      %4302 = vmatpush1.bf16.msra.mxu0 0
      %4303 = vmatprep.subr.bf16.mxu0 0
      %4304 = vmatpush1.bf16.msra.mxu0 0
      %4305 = vmatprep.subr.bf16.mxu0 0
      %4306 = vmatpush1.bf16.msra.mxu0 0
      %4307 = vmatprep.subr.bf16.mxu0 0
      %4308 = vmatpush1.bf16.msra.mxu0 0
      %4309 = vmatprep.subr.bf16.mxu0 0
      %4310 = vmatpush1.bf16.msra.mxu0 0
      %4311 = vmatprep.subr.bf16.mxu0 0
      %4312 = vmatpush1.bf16.msra.mxu0 0
      %4313 = vmatprep.subr.bf16.mxu0 0
      %4314 = vmatpush1.bf16.msra.mxu0 0
      %4315 = vmatprep.subr.bf16.mxu0 0
      %4316 = vmatpush1.bf16.msra.mxu0 0
      %4317 = vmatprep.subr.bf16.mxu0 0
      %4318 = vmatpush1.bf16.msra.mxu0 0
      %4319 = vmatprep.subr.bf16.mxu0 0
      %4320 = vmatpush1.bf16.msra.mxu0 0
      %4321 = vmatprep.subr.bf16.mxu0 0
      %4322 = vmatpush1.bf16.msra.mxu0 0
      %4323 = vmatprep.mubr.bf16.mxu0 0
      %4324 = vmatmul.mubr.bf16.gmra.mrb[0].mxu0 %v4289
      %v4325 = vpop.f32.mrb[0].mxu0
      %v4326 = vadd.f32 0.0, %v4325
      %v4327 = vpop.f32.mrb[0].mxu0
      %v4328 = vpop.f32.mrb[0].mxu0
      %v4329 = vadd.f32 0.0, %v4328
      %v4330 = vpop.f32.mrb[0].mxu0
      %4331 = vdwg.mxu0
      %4334 = vrot.lane.b32.xlu0 %v4084, 8
      %v4335 = vpop.permute.xlu0 %4334
      %4336 = vrot.lane.b32.xlu0 %v4087, 8
      %v4337 = vpop.permute.xlu0 %4336
      %4342 = vrot.lane.b32.xlu0 %v4205, 16
      %v4343 = vpop.permute.xlu0 %4342
      %4344 = vrot.lane.b32.xlu0 %v4208, 16
      %v4345 = vpop.permute.xlu0 %4344
      %4350 = vrot.lane.b32.xlu0 %v4326, 24
      %v4351 = vpop.permute.xlu0 %4350
      %4352 = vrot.lane.b32.xlu0 %v4329, 24
      %v4353 = vpop.permute.xlu0 %4352
      %v4356 = vsel %vm1199, %v3962, %v4335
      %v4357 = vsel %vm1199, %v3965, %v4337
      %v4358 = vsel %vm1075, %v4356, %v4343
      %v4359 = vsel %vm1075, %v4357, %v4345
      %v4360 = vsel %vm1708, %v4358, %v4351
      %v4361 = vsel %vm1708, %v4359, %v4353
      %v4362 = vpack.c.bf16 %v4361, %v4360
      %v4364 = vlaneseq
      %v4365 = vshrl.u32 %v4364, 7
      %v4366 = vsub.s32 0, %v4365
      %v4367 = vrot.slane %v3847, %v4366
      %v4373 = vunpack.c.l.b16 %v3843
      %v4374 = vunpack.c.l.b16 %v3844
      %v4375 = vunpack.c.l.b16 %v3845
      %v4376 = vunpack.c.l.b16 %v3846
      %v4377 = vpack.c.b16 %v4374, %v4373
      %v4378 = vpack.c.b16 %v4376, %v4375
      %v4382 = vsel %vm1145, %v4362, 0
      %4384 = vmatprep.subr.bf16.mxu0 0
      %4385 = vmatpush1.bf16.msra.mxu0 %v4377
      %4386 = vmatprep.subr.bf16.mxu0 0
      %4387 = vmatpush1.bf16.msra.mxu0 %v4378
      %4388 = vmatprep.subr.bf16.mxu0 0
      %4389 = vmatpush1.bf16.msra.mxu0 0
      %4390 = vmatprep.subr.bf16.mxu0 0
      %4391 = vmatpush1.bf16.msra.mxu0 0
      %4392 = vmatprep.subr.bf16.mxu0 0
      %4393 = vmatpush1.bf16.msra.mxu0 0
      %4394 = vmatprep.subr.bf16.mxu0 0
      %4395 = vmatpush1.bf16.msra.mxu0 0
      %4396 = vmatprep.subr.bf16.mxu0 0
      %4397 = vmatpush1.bf16.msra.mxu0 0
      %4398 = vmatprep.subr.bf16.mxu0 0
      %4399 = vmatpush1.bf16.msra.mxu0 0
      %4400 = vmatprep.subr.bf16.mxu0 0
      %4401 = vmatpush1.bf16.msra.mxu0 0
      %4402 = vmatprep.subr.bf16.mxu0 0
      %4403 = vmatpush1.bf16.msra.mxu0 0
      %4404 = vmatprep.subr.bf16.mxu0 0
      %4405 = vmatpush1.bf16.msra.mxu0 0
      %4406 = vmatprep.subr.bf16.mxu0 0
      %4407 = vmatpush1.bf16.msra.mxu0 0
      %4408 = vmatprep.subr.bf16.mxu0 0
      %4409 = vmatpush1.bf16.msra.mxu0 0
      %4410 = vmatprep.subr.bf16.mxu0 0
      %4411 = vmatpush1.bf16.msra.mxu0 0
      %4412 = vmatprep.subr.bf16.mxu0 0
      %4413 = vmatpush1.bf16.msra.mxu0 0
      %4414 = vmatprep.subr.bf16.mxu0 0
      %4415 = vmatpush1.bf16.msra.mxu0 0
      %4416 = vmatprep.mubr.bf16.mxu0 0
      %4417 = vmatmul.mubr.bf16.gmra.mrb[0].mxu0 %v4382
      %v4418 = vpop.f32.mrb[0].mxu0
      %v4419 = vadd.f32 %v4367, %v4418
      %v4420 = vpop.f32.mrb[0].mxu0
      %v4421 = vpop.f32.mrb[0].mxu0
      %v4422 = vadd.f32 %v4367, %v4421
      %v4423 = vpop.f32.mrb[0].mxu0
      %4424 = vdwg.mxu0
      %v4425 = vadd.f32 %v3706, %v4419
      %v4426 = vadd.f32 %v3707, %v4422
      %v4427 = vsel %vm1145, %v4425, 0.0
      %4428 = vadd.xlane.f32.xlu0 %v4427
      %v4429 = vpop.xlane.xlu0 %4428
      %v4430 = vsel %vm1145, %v4426, 0.0
      %4431 = vadd.xlane.f32.xlu0 %v4430
      %v4432 = vpop.xlane.xlu0 %4431
      %v4433 = vmul.f32 %v4429, %v1782
      %v4434 = vmul.f32 %v4432, %v1782
      %v4435 = vsub.f32 %v4425, %v4433
      %v4436 = vsub.f32 %v4426, %v4434
      %v4437 = vmul.f32 %v4435, %v4435
      %v4438 = vmul.f32 %v4436, %v4436
      %v4439 = vsel %vm1145, %v4437, 0.0
      %4440 = vadd.xlane.f32.xlu0 %v4439
      %v4441 = vpop.xlane.xlu0 %4440
      %v4442 = vsel %vm1145, %v4438, 0.0
      %4443 = vadd.xlane.f32.xlu0 %v4442
      %v4444 = vpop.xlane.xlu0 %4443
      %v4445 = vmul.f32 %v4441, %v1782
      %v4446 = vmul.f32 %v4444, %v1782
      %v4447 = vadd.f32 %v4445, 1e-05
      %v4448 = vadd.f32 %v4446, 1e-05
      %v4449 = vrsqrt.pop %v4447
      %v4450 = vrsqrt.pop %v4448
      %v4451 = vmul.f32 %v4435, %v4449
      %v4452 = vmul.f32 %v4436, %v4450
      %v4453 = vlaneseq
      %v4454 = vshrl.u32 %v4453, 7
      %v4455 = vsub.s32 2, %v4454
      %v4456 = vrot.slane %v3002, %v4455
      %v4457 = vmul.f32 %v4451, %v4456
      %v4458 = vmul.f32 %v4452, %v4456
      %v4459 = vlaneseq
      %v4460 = vshrl.u32 %v4459, 7
      %v4461 = vsub.s32 3, %v4460
      %v4462 = vrot.slane %v3002, %v4461
      %v4463 = vadd.f32 %v4457, %v4462
      %v4464 = vadd.f32 %v4458, %v4462
      %v4465 = vpack.c.bf16 %v4464, %v4463
      %v4466 = vld [vmem:[%s53] sm:$0xf]
      %v4467 = vld [vmem:[%s53 + $0x4] sm:$0xf]
      %v4468 = vld [vmem:[%s53 + $0x8] sm:$0xf]
      %v4469 = vld [vmem:[%s53 + $0xc] sm:$0xf]
      %v4470 = vld [vmem:[%s55] sm:$0x1]
      %v4472 = vlaneseq
      %v4473 = vshrl.u32 %v4472, 7
      %v4474 = vsub.s32 0, %v4473
      %v4475 = vrot.slane %v4470, %v4474
      %v4481 = vunpack.c.l.b16 %v4466
      %v4482 = vunpack.c.l.b16 %v4467
      %v4483 = vunpack.c.l.b16 %v4468
      %v4484 = vunpack.c.l.b16 %v4469
      %v4485 = vpack.c.b16 %v4482, %v4481
      %v4486 = vpack.c.b16 %v4484, %v4483
      %v4490 = vsel %vm1145, %v4465, 0
      %4492 = vmatprep.subr.bf16.mxu0 0
      %4493 = vmatpush1.bf16.msra.mxu0 %v4485
      %4494 = vmatprep.subr.bf16.mxu0 0
      %4495 = vmatpush1.bf16.msra.mxu0 %v4486
      %4496 = vmatprep.subr.bf16.mxu0 0
      %4497 = vmatpush1.bf16.msra.mxu0 0
      %4498 = vmatprep.subr.bf16.mxu0 0
      %4499 = vmatpush1.bf16.msra.mxu0 0
      %4500 = vmatprep.subr.bf16.mxu0 0
      %4501 = vmatpush1.bf16.msra.mxu0 0
      %4502 = vmatprep.subr.bf16.mxu0 0
      %4503 = vmatpush1.bf16.msra.mxu0 0
      %4504 = vmatprep.subr.bf16.mxu0 0
      %4505 = vmatpush1.bf16.msra.mxu0 0
      %4506 = vmatprep.subr.bf16.mxu0 0
      %4507 = vmatpush1.bf16.msra.mxu0 0
      %4508 = vmatprep.subr.bf16.mxu0 0
      %4509 = vmatpush1.bf16.msra.mxu0 0
      %4510 = vmatprep.subr.bf16.mxu0 0
      %4511 = vmatpush1.bf16.msra.mxu0 0
      %4512 = vmatprep.subr.bf16.mxu0 0
      %4513 = vmatpush1.bf16.msra.mxu0 0
      %4514 = vmatprep.subr.bf16.mxu0 0
      %4515 = vmatpush1.bf16.msra.mxu0 0
      %4516 = vmatprep.subr.bf16.mxu0 0
      %4517 = vmatpush1.bf16.msra.mxu0 0
      %4518 = vmatprep.subr.bf16.mxu0 0
      %4519 = vmatpush1.bf16.msra.mxu0 0
      %4520 = vmatprep.subr.bf16.mxu0 0
      %4521 = vmatpush1.bf16.msra.mxu0 0
      %4522 = vmatprep.subr.bf16.mxu0 0
      %4523 = vmatpush1.bf16.msra.mxu0 0
      %4524 = vmatprep.mubr.bf16.mxu0 0
      %4525 = vmatmul.mubr.bf16.gmra.mrb[0].mxu0 %v4490
      %v4526 = vpop.f32.mrb[0].mxu0
      %v4527 = vadd.f32 %v4475, %v4526
      %v4528 = vpop.f32.mrb[0].mxu0
      %v4529 = vpop.f32.mrb[0].mxu0
      %v4530 = vadd.f32 %v4475, %v4529
      %v4531 = vpop.f32.mrb[0].mxu0
      %4532 = vdwg.mxu0
      %v4533 = vmax.f32 %v4527, 0.0
      %v4534 = vmax.f32 %v4530, 0.0
      %v4535 = vpack.c.bf16 %v4534, %v4533
      %v4536 = vld [vmem:[%s57] sm:$0xf]
      %v4537 = vld [vmem:[%s57 + $0x4] sm:$0xf]
      %v4538 = vld [vmem:[%s57 + $0x8] sm:$0xf]
      %v4539 = vld [vmem:[%s57 + $0xc] sm:$0xf]
      %v4540 = vld [vmem:[%s57 + $0x10] sm:$0xf]
      %v4541 = vld [vmem:[%s57 + $0x14] sm:$0xf]
      %v4542 = vld [vmem:[%s57 + $0x18] sm:$0xf]
      %v4543 = vld [vmem:[%s57 + $0x1c] sm:$0xf]
      %v4544 = vld [vmem:[%s59] sm:$0x1]
      %v4546 = vlaneseq
      %v4547 = vshrl.u32 %v4546, 7
      %v4548 = vsub.s32 0, %v4547
      %v4549 = vrot.slane %v4544, %v4548
      %v4559 = vunpack.c.l.b16 %v4536
      %v4560 = vunpack.c.l.b16 %v4537
      %v4561 = vunpack.c.l.b16 %v4538
      %v4562 = vunpack.c.l.b16 %v4539
      %v4563 = vunpack.c.l.b16 %v4540
      %v4564 = vunpack.c.l.b16 %v4541
      %v4565 = vunpack.c.l.b16 %v4542
      %v4566 = vunpack.c.l.b16 %v4543
      %v4567 = vpack.c.b16 %v4560, %v4559
      %v4568 = vpack.c.b16 %v4562, %v4561
      %v4569 = vpack.c.b16 %v4564, %v4563
      %v4570 = vpack.c.b16 %v4566, %v4565
      %v4576 = vsel %vm1925, %v4535, 0
      %4578 = vmatprep.subr.bf16.mxu0 0
      %4579 = vmatpush1.bf16.msra.mxu0 %v4567
      %4580 = vmatprep.subr.bf16.mxu0 0
      %4581 = vmatpush1.bf16.msra.mxu0 %v4568
      %4582 = vmatprep.subr.bf16.mxu0 0
      %4583 = vmatpush1.bf16.msra.mxu0 %v4569
      %4584 = vmatprep.subr.bf16.mxu0 0
      %4585 = vmatpush1.bf16.msra.mxu0 %v4570
      %4586 = vmatprep.subr.bf16.mxu0 0
      %4587 = vmatpush1.bf16.msra.mxu0 0
      %4588 = vmatprep.subr.bf16.mxu0 0
      %4589 = vmatpush1.bf16.msra.mxu0 0
      %4590 = vmatprep.subr.bf16.mxu0 0
      %4591 = vmatpush1.bf16.msra.mxu0 0
      %4592 = vmatprep.subr.bf16.mxu0 0
      %4593 = vmatpush1.bf16.msra.mxu0 0
      %4594 = vmatprep.subr.bf16.mxu0 0
      %4595 = vmatpush1.bf16.msra.mxu0 0
      %4596 = vmatprep.subr.bf16.mxu0 0
      %4597 = vmatpush1.bf16.msra.mxu0 0
      %4598 = vmatprep.subr.bf16.mxu0 0
      %4599 = vmatpush1.bf16.msra.mxu0 0
      %4600 = vmatprep.subr.bf16.mxu0 0
      %4601 = vmatpush1.bf16.msra.mxu0 0
      %4602 = vmatprep.subr.bf16.mxu0 0
      %4603 = vmatpush1.bf16.msra.mxu0 0
      %4604 = vmatprep.subr.bf16.mxu0 0
      %4605 = vmatpush1.bf16.msra.mxu0 0
      %4606 = vmatprep.subr.bf16.mxu0 0
      %4607 = vmatpush1.bf16.msra.mxu0 0
      %4608 = vmatprep.subr.bf16.mxu0 0
      %4609 = vmatpush1.bf16.msra.mxu0 0
      %4610 = vmatprep.mubr.bf16.mxu0 0
      %4611 = vmatmul.mubr.bf16.gmra.mrb[0].mxu0 %v4576
      %v4612 = vpop.f32.mrb[0].mxu0
      %v4613 = vpop.f32.mrb[0].mxu0
      %v4614 = vpop.f32.mrb[0].mxu0
      %v4615 = vadd.f32 %v4549, %v4614
      %v4616 = vpop.f32.mrb[0].mxu0
      %4617 = vdwg.mxu0
      %v4618 = vadd.f32 %v4464, %v4615
      %v4619 = vsel %vm1145, %v4618, 0.0
      %4620 = vadd.xlane.f32.xlu0 %v4619
      %v4621 = vpop.xlane.xlu0 %4620
      %v4622 = vmul.f32 %v4621, %v1782
      %v4623 = vsub.f32 %v4618, %v4622
      %v4624 = vmul.f32 %v4623, %v4623
      %v4625 = vsel %vm1145, %v4624, 0.0
      %4626 = vadd.xlane.f32.xlu0 %v4625
      %v4627 = vpop.xlane.xlu0 %4626
      %v4628 = vmul.f32 %v4627, %v1782
      %v4629 = vadd.f32 %v4628, 1e-05
      %v4630 = vrsqrt.pop %v4629
      %v4631 = vmul.f32 %v4623, %v4630
      %v4632 = vlaneseq
      %v4633 = vshrl.u32 %v4632, 7
      %v4634 = vsub.s32 4, %v4633
      %v4635 = vrot.slane %v3002, %v4634
      %v4636 = vmul.f32 %v4631, %v4635
      %v4637 = vlaneseq
      %v4638 = vshrl.u32 %v4637, 7
      %v4639 = vsub.s32 5, %v4638
      %v4640 = vrot.slane %v3002, %v4639
      %v4641 = vadd.f32 %v4636, %v4640
      %v4642 = vld [vmem:[%s63] sm:$0x1]
      %v4643 = vld [vmem:[%s63 + $0x1] sm:$0x1]
      %v4644 = vsel %vm1145, %v4641, 0.0
      %4645 = vadd.xlane.f32.xlu0 %v4644
      %v4646 = vpop.xlane.xlu0 %4645
      %v4647 = vmul.f32 %v4646, %v1782
      %v4648 = vsub.f32 %v4641, %v4647
      %v4649 = vmul.f32 %v4648, %v4648
      %v4650 = vsel %vm1145, %v4649, 0.0
      %4651 = vadd.xlane.f32.xlu0 %v4650
      %v4652 = vpop.xlane.xlu0 %4651
      %v4653 = vmul.f32 %v4652, %v1782
      %v4654 = vadd.f32 %v4653, 1e-05
      %v4655 = vrsqrt.pop %v4654
      %v4656 = vmul.f32 %v4648, %v4655
      %v4657 = vlaneseq
      %v4658 = vshrl.u32 %v4657, 7
      %v4659 = vsub.s32 0, %v4658
      %v4660 = vrot.slane %v4642, %v4659
      %v4661 = vmul.f32 %v4656, %v4660
      %v4662 = vlaneseq
      %v4663 = vshrl.u32 %v4662, 7
      %v4664 = vsub.s32 0, %v4663
      %v4665 = vrot.slane %v4643, %v4664
      %v4666 = vadd.f32 %v4661, %v4665
      %v4667 = vpack.c.bf16 %v4666, %v4666
      %v4668 = vld [vmem:[%s65] sm:$0xf]
      %v4669 = vld [vmem:[%s65 + $0x4] sm:$0xf]
      %v4670 = vld [vmem:[%s65 + $0x8] sm:$0xf]
      %v4671 = vld [vmem:[%s65 + $0xc] sm:$0xf]
      %v4672 = vld [vmem:[%s67] sm:$0x1]
      %v4674 = vlaneseq
      %v4675 = vshrl.u32 %v4674, 7
      %v4676 = vsub.s32 0, %v4675
      %v4677 = vrot.slane %v4672, %v4676
      %v4683 = vunpack.c.l.b16 %v4668
      %v4684 = vunpack.c.l.b16 %v4669
      %v4685 = vunpack.c.l.b16 %v4670
      %v4686 = vunpack.c.l.b16 %v4671
      %v4687 = vpack.c.b16 %v4684, %v4683
      %v4688 = vpack.c.b16 %v4686, %v4685
      %v4692 = vsel %vm1145, %v4667, 0
      %4694 = vmatprep.subr.bf16.mxu0 0
      %4695 = vmatpush1.bf16.msra.mxu0 %v4687
      %4696 = vmatprep.subr.bf16.mxu0 0
      %4697 = vmatpush1.bf16.msra.mxu0 %v4688
      %4698 = vmatprep.subr.bf16.mxu0 0
      %4699 = vmatpush1.bf16.msra.mxu0 0
      %4700 = vmatprep.subr.bf16.mxu0 0
      %4701 = vmatpush1.bf16.msra.mxu0 0
      %4702 = vmatprep.subr.bf16.mxu0 0
      %4703 = vmatpush1.bf16.msra.mxu0 0
      %4704 = vmatprep.subr.bf16.mxu0 0
      %4705 = vmatpush1.bf16.msra.mxu0 0
      %4706 = vmatprep.subr.bf16.mxu0 0
      %4707 = vmatpush1.bf16.msra.mxu0 0
      %4708 = vmatprep.subr.bf16.mxu0 0
      %4709 = vmatpush1.bf16.msra.mxu0 0
      %4710 = vmatprep.subr.bf16.mxu0 0
      %4711 = vmatpush1.bf16.msra.mxu0 0
      %4712 = vmatprep.subr.bf16.mxu0 0
      %4713 = vmatpush1.bf16.msra.mxu0 0
      %4714 = vmatprep.subr.bf16.mxu0 0
      %4715 = vmatpush1.bf16.msra.mxu0 0
      %4716 = vmatprep.subr.bf16.mxu0 0
      %4717 = vmatpush1.bf16.msra.mxu0 0
      %4718 = vmatprep.subr.bf16.mxu0 0
      %4719 = vmatpush1.bf16.msra.mxu0 0
      %4720 = vmatprep.subr.bf16.mxu0 0
      %4721 = vmatpush1.bf16.msra.mxu0 0
      %4722 = vmatprep.subr.bf16.mxu0 0
      %4723 = vmatpush1.bf16.msra.mxu0 0
      %4724 = vmatprep.subr.bf16.mxu0 0
      %4725 = vmatpush1.bf16.msra.mxu0 0
      %4726 = vmatprep.mubr.bf16.mxu0 0
      %4727 = vmatmul.mubr.bf16.gmra.mrb[0].mxu0 %v4692
      %v4728 = vpop.f32.mrb[0].mxu0
      %v4729 = vadd.f32 %v4677, %v4728
      %v4730 = vpop.f32.mrb[0].mxu0
      %v4731 = vpop.f32.mrb[0].mxu0
      %v4732 = vpop.f32.mrb[0].mxu0
      %4733 = vdwg.mxu0
      %vm4734 = vcmask 31744
      %4735 = vst.msk [vmem:[%s1060] sm:$0xff] %vm4734, %v4729
      %p4736 = scmp.lt.s32.totalorder %s80, 1
      %s4737 = scalar_select %p4736, %s80, 1
      %s4738 = smul.addr %s4737, 8
      %s4739 = scalar_lea.vmem %s69, %s4738
      // Predicated region
      $region157: #{model_forward.1} parent=155 // pred_check
        %p4740 = pneg %p822
      $region158: #{model_forward.1} parent=155 // pred_check_branch
        %4742 = sbr.rel (%p4740) target = $region160
      $region159: #{model_forward.1} parent=155 // pred_region
        _
      $region160: #{model_forward.1} parent=155 // pred_fallthru
        _
    $region156: #{model_forward.1} parent=5 // pred_fallthru
      _
    %p4743 = scmp.le.s32.totalorder 2, %s75
    // Predicated region
    $region161: #{model_forward.1} parent=5 // pred_check
      %p4744 = pneg %p4743
    $region162: #{model_forward.1} parent=5 // pred_check_branch
      %4746 = sbr.rel (%p4744) target = $region164
    $region163: #{model_forward.1} parent=5 // pred_region
      %s4747 = ssub.s32 %s75, 2
      // Predicated region
      $region165: #{model_forward.1} parent=163 // pred_check
        %p4748 = pneg %p828
      $region166: #{model_forward.1} parent=163 // pred_check_branch
        %4750 = sbr.rel (%p4748) target = $region168
      $region167: #{model_forward.1} parent=163 // pred_region
        %p4751 = scmp.lt.s32.totalorder %s81, 1
        %s4752 = scalar_select %p4751, %s81, 1
        %s4753 = smul.addr %s4752, 8
        %s4754 = scalar_lea.vmem %s69, %s4753
      $region168: #{model_forward.1} parent=163 // pred_fallthru
        _
    $region164: #{model_forward.1} parent=5 // pred_fallthru
      _
  $region6: #{model_forward.1} parent=0 // loop_footer
    %s79 = sadd.s32 1, %s75
  $region7: #{model_forward.1} parent=0 // loop_footer_branch
    %74 = sbr.rel target = $region3
  $region8: #{model_forward.1} parent=0 // loop_exit
    _

</llo_original>
